<compile_context>
chip_gen: v7x
topology: tpu7x:2x2x1
jax: 0.10.0
libtpu: 0.0.40
codegen_flags: <defaults>
</compile_context>

<pallas_src>
import math
import functools

import jax
import jax.numpy as jnp
from jax.experimental import pallas as pl
from jax.experimental.pallas import tpu as pltpu


KERNEL_SIZES = (3, 5, 11)
KMAX = max(KERNEL_SIZES)
F32 = jnp.float32
BF16 = jnp.bfloat16


# ----------------------------------------------------------------------------
# In-kernel math helpers
# ----------------------------------------------------------------------------
def _gelu(x):
    # tanh-approximation GELU (tanh lives on the EUP slot); matches PyTorch's
    # exact-erf GELU to ~1e-3, fine for inference.
    c = 0.7978845608028654  # sqrt(2/pi)
    return 0.5 * x * (1.0 + jnp.tanh(c * (x + 0.044715 * x * x * x)))


def _ln(x, g, b, eps=1e-5):
    mu = jnp.mean(x, axis=-1, keepdims=True)
    xc = x - mu
    var = jnp.mean(xc * xc, axis=-1, keepdims=True)
    return xc * jax.lax.rsqrt(var + eps) * g + b


# ----------------------------------------------------------------------------
# Pallas kernels
# ----------------------------------------------------------------------------
def _conv_block_kernel(p_ref, w_ref, v_ref, o_ref):
    # Merged 3-branch im2col conv GEMM + bias + GELU + folded eval-BatchNorm.
    acc = jnp.dot(p_ref[0].astype(BF16), w_ref[...], preferred_element_type=F32)
    act = _gelu(acc + v_ref[0:1, :])
    o_ref[0] = (act * v_ref[1:2, :] + v_ref[2:3, :]).astype(o_ref.dtype)


def _fused_stack_kernel(p2_ref, w2_ref, c2v_ref, wp_ref, posb_ref,
                        wa_ref, wf1_ref, wf2_ref, lv_ref, gv_ref, o_ref,
                        *, num_layers, n_heads):
    # One sample per grid step, everything resident in VMEM:
    #   conv block 2 -> 1x1 projection + pos emb -> transformer layers
    #   -> final LN -> classifier -> sigmoid (lane-dense store).
    D = wp_ref.shape[1]
    H = n_heads
    Dh = D // H
    scale = 1.0 / math.sqrt(Dh)

    # ----- DownsampleFrontend block 2 (3 branches merged into one GEMM) -----
    conv = jnp.dot(p2_ref[0].astype(BF16), w2_ref[...], preferred_element_type=F32)
    conv = _gelu(conv + c2v_ref[0:1, :]) * c2v_ref[1:2, :] + c2v_ref[2:3, :]

    # ----- 1x1 projection + positional embedding (proj bias folded in) -----
    x = jnp.dot(conv.astype(BF16), wp_ref[...], preferred_element_type=F32)
    x = x + posb_ref[...]

    # ----- transformer encoder layers (post-norm, GELU FF) -----
    for li in range(num_layers):
        wa = wa_ref[li]          # (D, (2+H)*D) bf16 : [Wq | Wk | Wvo_0..Wvo_{H-1}]
        lv = lv_ref[li]          # (9, 4D) f32 packed bias / LayerNorm vectors

        qkvo = jnp.dot(x.astype(BF16), wa, preferred_element_type=F32)
        q = qkvo[:, :D] + lv[0:1, :D]
        k = qkvo[:, D:2 * D] + lv[1:2, :D]

        attn = None
        for hh in range(H):
            qh = q[:, hh * Dh:(hh + 1) * Dh].astype(BF16)
            kh = k[:, hh * Dh:(hh + 1) * Dh].astype(BF16)
            s = jax.lax.dot_general(qh, kh, (((1,), (1,)), ((), ())),
                                    preferred_element_type=F32) * scale
            s = s - jnp.max(s, axis=-1, keepdims=True)
            e = jnp.exp(s)
            p = e * pl.reciprocal(jnp.sum(e, axis=-1, keepdims=True), approx=True)
            voh = qkvo[:, (2 + hh) * D:(3 + hh) * D]     # x @ (Wv_h @ Wo_h)
            c = jnp.dot(p.astype(BF16), voh.astype(BF16),
                        preferred_element_type=F32)
            attn = c if attn is None else attn + c
        attn = attn + lv[2:3, :D]                        # b_o + b_v @ W_o (folded)

        x = _ln(x + attn, lv[3:4, :D], lv[4:5, :D])
        ff = _gelu(jnp.dot(x.astype(BF16), wf1_ref[li],
                           preferred_element_type=F32) + lv[5:6, :])
        ff = jnp.dot(ff.astype(BF16), wf2_ref[li],
                     preferred_element_type=F32) + lv[6:7, :D]
        x = _ln(x + ff, lv[7:8, :D], lv[8:9, :D])

    # ----- final LayerNorm + classifier + sigmoid (lane-dense (1,T) store) --
    x = _ln(x, gv_ref[0:1, :], gv_ref[1:2, :])
    cw = gv_ref[2:3, :]                                  # (1, D) classifier row
    logit = jax.lax.dot_general(cw.astype(BF16), x.astype(BF16),
                                (((1,), (1,)), ((), ())),
                                preferred_element_type=F32)      # (1, T)
    logit = logit + gv_ref[3:4, 0:1]
    o_ref[0] = (1.0 / (1.0 + jnp.exp(-logit))).astype(o_ref.dtype)


# ----------------------------------------------------------------------------
# Pallas wrappers
# ----------------------------------------------------------------------------
def _const_map(ndim):
    if ndim == 2:
        return lambda i: (0, 0)
    assert ndim == 3
    return lambda i: (0, 0, 0)


def _full_spec(a):
    # whole-array block kept resident across the (parallel) batch grid
    return pl.BlockSpec(a.shape, _const_map(a.ndim))


def _conv_block(patches, w, vec):
    B, L, CK = patches.shape
    C_out = w.shape[1]
    return pl.pallas_call(
        _conv_block_kernel,
        grid=(B,),
        in_specs=[pl.BlockSpec((1, L, CK), lambda i: (i, 0, 0)),
                  _full_spec(w), _full_spec(vec)],
        out_specs=pl.BlockSpec((1, L, C_out), lambda i: (i, 0, 0)),
        out_shape=jax.ShapeDtypeStruct((B, L, C_out), F32),
        compiler_params=pltpu.CompilerParams(dimension_semantics=("parallel",)),
    )(patches, w, vec)


def _fused_stack(patches2, pp):
    B, T, CK2 = patches2.shape
    D = pp['proj_w'].shape[1]
    num_layers = pp['w_attn'].shape[0]
    n_heads = pp['w_attn'].shape[2] // D - 2
    extras = (pp['conv2_w'], pp['conv2_v'], pp['proj_w'], pp['pos_bias'],
              pp['w_attn'], pp['w_ff1'], pp['w_ff2'], pp['layer_vec'],
              pp['global_vec'])
    out = pl.pallas_call(
        functools.partial(_fused_stack_kernel,
                          num_layers=num_layers, n_heads=n_heads),
        grid=(B,),
        in_specs=[pl.BlockSpec((1, T, CK2), lambda i: (i, 0, 0))]
                 + [_full_spec(a) for a in extras],
        out_specs=pl.BlockSpec((1, 1, T), lambda i: (i, 0, 0)),
        out_shape=jax.ShapeDtypeStruct((B, 1, T), F32),
        compiler_params=pltpu.CompilerParams(dimension_semantics=("parallel",)),
    )(patches2, *extras)
    return out[:, 0, :]


# ----------------------------------------------------------------------------
# Host-side preparation (im2col, merged-branch conv weights, packed params)
# ----------------------------------------------------------------------------
def _im2col_nwc(x, stride, kmax):
    """x: (B, L, C) -> (B, L_out, C*kmax) patches for kernel kmax, pad kmax//2."""
    B, L, C = x.shape
    pad = kmax // 2
    xp = jnp.pad(x, ((0, 0), (pad, pad), (0, 0)))
    L_out = (L - 1) // stride + 1
    taps = [xp[:, j: j + stride * (L_out - 1) + 1: stride, :] for j in range(kmax)]
    patches = jnp.stack(taps, axis=-1)               # (B, L_out, C, kmax)
    return patches.reshape(B, L_out, C * kmax), L_out


def _merge_branches(branches, kmax):
    # Zero-pad each branch kernel to kmax (centered) and concatenate along
    # C_out so the 3 branches become ONE GEMM; eval-mode BatchNorm folded
    # host-side into a per-channel scale/shift (spec order: conv->GELU->BN).
    ws, bs, scs, shs = [], [], [], []
    for p in branches:
        c_out, c_in, k = p['w'].shape
        off = (kmax - k) // 2
        wpad = jnp.zeros((c_out, c_in, kmax), F32).at[:, :, off:off + k].set(p['w'])
        ws.append(wpad)
        bs.append(p['b'])
        inv = p['bn_gamma'] / jnp.sqrt(p['bn_var'] + 1e-5)
        scs.append(inv)
        shs.append(p['bn_beta'] - p['bn_mean'] * inv)
    W = jnp.concatenate(ws, axis=0)                  # (C_out_tot, C_in, kmax)
    W = W.reshape(W.shape[0], -1).T.astype(BF16)     # (C_in*kmax, C_out_tot)
    vec = jnp.stack([jnp.concatenate(bs), jnp.concatenate(scs),
                     jnp.concatenate(shs)], axis=0).astype(F32)   # (3, C_out)
    return W, vec


def prepare_params(params, n_heads):
    """One-time host-side repacking into kernel-friendly fused/packed arrays."""
    D = params['proj_w'].shape[0]
    Dh = D // n_heads
    F = params['layers'][0]['b_ff1'].shape[0]        # 4*D

    conv1_w, conv1_v = _merge_branches(params['block1'], KMAX)
    conv2_w, conv2_v = _merge_branches(params['block2'], KMAX)

    # frontend output length: 500 -> 100 (stride 5) -> 50 (stride 2)
    L1 = (500 - 1) // 5 + 1
    T = (L1 - 1) // 2 + 1
    proj_w = params['proj_w'].reshape(D, -1).T.astype(BF16)        # (96, D)
    pos_bias = (params['pos_emb'][0, :T, :] +
                params['proj_b'][None, :]).astype(F32)             # (T, D)

    wa_l, wf1_l, wf2_l, lv_l = [], [], [], []
    for lp in params['layers']:
        # NOTE: synthetic layout -- w_qkv is (D, 3D) column-packed [q|k|v] used
        # as x @ W.  Loading a real PyTorch checkpoint (in_proj_weight (3D,D),
        # out_proj (D,D), applied as x @ W^T) requires transposing first.
        w = lp['w_qkv']
        wq, wk, wv = w[:, :D], w[:, D:2 * D], w[:, 2 * D:]
        b = lp['b_qkv']
        bq, bk, bv = b[:D], b[D:2 * D], b[2 * D:]
        wo = lp['w_o']                                             # (D, D)
        # Fold the out-projection into V per head: Wvo_h = Wv_h @ Wo_h
        wvo = [wv[:, h * Dh:(h + 1) * Dh] @ wo[h * Dh:(h + 1) * Dh, :]
               for h in range(n_heads)]
        bo_total = lp['b_o'] + bv @ wo           # softmax rows sum to 1
        wa_l.append(jnp.concatenate([wq, wk] + wvo, axis=1).astype(BF16))
        wf1_l.append(lp['w_ff1'].astype(BF16))
        wf2_l.append(lp['w_ff2'].astype(BF16))

        def pad_row(v):
            return jnp.pad(v, (0, F - v.shape[0]))
        rows = [pad_row(bq), pad_row(bk), pad_row(bo_total),
                pad_row(lp['ln1_g']), pad_row(lp['ln1_b']),
                lp['b_ff1'],
                pad_row(lp['b_ff2']), pad_row(lp['ln2_g']), pad_row(lp['ln2_b'])]
        lv_l.append(jnp.stack(rows, axis=0).astype(F32))            # (9, 4D)

    global_vec = jnp.stack([params['final_ln_g'], params['final_ln_b'],
                            params['cls_w'][:, 0],
                            jnp.full((D,), params['cls_b'][0], F32)], axis=0)

    return dict(conv1_w=conv1_w, conv1_v=conv1_v,
                conv2_w=conv2_w, conv2_v=conv2_v,
                proj_w=proj_w, pos_bias=pos_bias,
                w_attn=jnp.stack(wa_l), w_ff1=jnp.stack(wf1_l),
                w_ff2=jnp.stack(wf2_l), layer_vec=jnp.stack(lv_l),
                global_vec=global_vec)


# ----------------------------------------------------------------------------
# Forward pass
# ----------------------------------------------------------------------------
def ecog_hubert_classifier_forward(prepped, x, attention_mask=None):
    """x: (B, 500, n_electrodes) -> (B, 50) sigmoid scores (eval mode)."""
    assert x.shape[1] == 500, 'Input must have precisely 500 samples'
    # TODO(synk): key_padding_mask path (attention_mask != None) not implemented.
    assert attention_mask is None

    # ----- ECoGFrontend block 1: merged 3-branch conv (one pallas_call) -----
    patches1, _ = _im2col_nwc(x, stride=5, kmax=KMAX)              # (B,100,C*11)
    h = _conv_block(patches1, prepped['conv1_w'], prepped['conv1_v'])  # (B,100,96)

    # ----- block 2 + projection + pos emb + transformer + classifier -------
    patches2, _ = _im2col_nwc(h, stride=2, kmax=KMAX)              # (B,50,96*11)
    return _fused_stack(patches2, prepped)                          # (B, 50)


# ----------------------------------------------------------------------------
# Deterministic parameter construction (synthetic weights; no checkpoint load)
# ----------------------------------------------------------------------------
def init_params(key, n_electrodes, hidden_dim, n_heads, num_layers,
                filters_per_branch=32, kernel_sizes=KERNEL_SIZES, max_frames=64):
    keys = iter(jax.random.split(key, 64))

    def nrm(shape, scale=0.02):
        return scale * jax.random.normal(next(keys), shape, dtype=F32)

    def branch_params(in_ch, out_ch, k):
        return dict(
            w=nrm((out_ch, in_ch, k), scale=1.0 / math.sqrt(in_ch * k)),
            b=jnp.zeros((out_ch,), F32),
            bn_gamma=jnp.ones((out_ch,), F32),
            bn_beta=jnp.zeros((out_ch,), F32),
            bn_mean=jnp.zeros((out_ch,), F32),
            bn_var=jnp.ones((out_ch,), F32),
        )

    total_ch = filters_per_branch * len(kernel_sizes)
    D = hidden_dim
    params = dict(
        block1=[branch_params(n_electrodes, filters_per_branch, k) for k in kernel_sizes],
        block2=[branch_params(total_ch, filters_per_branch, k) for k in kernel_sizes],
        proj_w=nrm((D, total_ch, 1), scale=1.0 / math.sqrt(total_ch)),
        proj_b=jnp.zeros((D,), F32),
        pos_emb=jnp.zeros((1, max_frames, D), F32),   # nn.Parameter(torch.zeros)
        layers=[],
        final_ln_g=jnp.ones((D,), F32),
        final_ln_b=jnp.zeros((D,), F32),
        cls_w=nrm((D, 1)),
        cls_b=jnp.zeros((1,), F32),
    )
    for _ in range(num_layers):
        params['layers'].append(dict(
            w_qkv=nrm((D, 3 * D)), b_qkv=jnp.zeros((3 * D,), F32),
            w_o=nrm((D, D)), b_o=jnp.zeros((D,), F32),
            ln1_g=jnp.ones((D,), F32), ln1_b=jnp.zeros((D,), F32),
            w_ff1=nrm((D, 4 * D)), b_ff1=jnp.zeros((4 * D,), F32),
            w_ff2=nrm((4 * D, D)), b_ff2=jnp.zeros((D,), F32),
            ln2_g=jnp.ones((D,), F32), ln2_b=jnp.zeros((D,), F32),
        ))
    return params


# ----------------------------------------------------------------------------
if __name__ == "__main__":
    key = jax.random.PRNGKey(0)
    B, L_in, n_electrodes = 2, 500, 4           # 500 samples required by the module
    hidden_dim, n_heads, num_layers = 64, 4, 2  # small hidden/heads for the demo

    k_params, k_x = jax.random.split(key)
    params = init_params(k_params, n_electrodes, hidden_dim, n_heads, num_layers)
    prepped = prepare_params(params, n_heads)   # one-time host-side repack
    x = jax.random.normal(k_x, (B, L_in, n_electrodes), dtype=jnp.float32)

    fwd = jax.jit(ecog_hubert_classifier_forward)
    out = fwd(prepped, x)
    jax.block_until_ready(out)

    assert out.shape == (B, 50), out.shape
    assert bool(jnp.all(jnp.isfinite(out)))
    assert bool(jnp.all((out >= 0.0) & (out <= 1.0)))
    print("KERNEL_OK")
</pallas_src>

<mosaic_0001>
module attributes {stable_mosaic.version = 11 : i64} {
  func.func @_conv_block_kernel(%arg0: i32, %arg1: memref<1x100x44xf32, #tpu.memory_space<vmem>>, %arg2: memref<44x96xbf16, #tpu.memory_space<vmem>>, %arg3: memref<3x96xf32, #tpu.memory_space<vmem>>, %arg4: memref<1x100x96xf32, #tpu.memory_space<vmem>>) attributes {dimension_semantics = [#tpu.dimension_semantics<parallel>], iteration_bounds = array<i64: 2>, scalar_prefetch = 0 : i64, scratch_operands = 0 : i64, tpu.core_type = #tpu.core_type<tc>, window_params = [{transform_indices = @transform_0, window_bounds = array<i64: 1, 100, 44>}, {pipeline_mode = #tpu.pipeline_mode<synchronous>, transform_indices = @transform_1, window_bounds = array<i64: 44, 96>}, {pipeline_mode = #tpu.pipeline_mode<synchronous>, transform_indices = @transform_2, window_bounds = array<i64: 3, 96>}, {transform_indices = @transform_3, window_bounds = array<i64: 1, 100, 96>}]} {
    %c0 = arith.constant 0 : index
    %c0_0 = arith.constant 0 : index
    %c0_1 = arith.constant 0 : index
    %0 = vector.load %arg1[%c0, %c0_0, %c0_1] : memref<1x100x44xf32, #tpu.memory_space<vmem>>, vector<1x100x44xf32>
    %1 = vector.shape_cast %0 : vector<1x100x44xf32> to vector<100x44xf32>
    %2 = arith.truncf %1 : vector<100x44xf32> to vector<100x44xbf16>
    %c0_2 = arith.constant 0 : index
    %c0_3 = arith.constant 0 : index
    %3 = vector.load %arg2[%c0_2, %c0_3] : memref<44x96xbf16, #tpu.memory_space<vmem>>, vector<44x96xbf16>
    %cst = arith.constant dense<0.000000e+00> : vector<100x96xf32>
    %4 = tpu.matmul %2, %3, %cst {dimension_numbers = #tpu.dot_dimension_numbers<[1], [0], [0], [1], [0, 0, 1, 1], [], []>} : vector<100x44xbf16>, vector<44x96xbf16>, vector<100x96xf32> -> vector<100x96xf32>
    %c0_4 = arith.constant 0 : index
    %c0_5 = arith.constant 0 : index
    %5 = vector.load %arg3[%c0_4, %c0_5] : memref<3x96xf32, #tpu.memory_space<vmem>>, vector<1x96xf32>
    %6 = vector.broadcast %5 : vector<1x96xf32> to vector<100x96xf32>
    %7 = arith.addf %4, %6 : vector<100x96xf32>
    %cst_6 = arith.constant 5.000000e-01 : f32
    %8 = vector.broadcast %cst_6 : f32 to vector<100x96xf32>
    %9 = arith.mulf %8, %7 : vector<100x96xf32>
    %cst_7 = arith.constant 4.471500e-02 : f32
    %10 = vector.broadcast %cst_7 : f32 to vector<100x96xf32>
    %11 = arith.mulf %10, %7 : vector<100x96xf32>
    %12 = arith.mulf %11, %7 : vector<100x96xf32>
    %13 = arith.mulf %12, %7 : vector<100x96xf32>
    %14 = arith.addf %7, %13 : vector<100x96xf32>
    %cst_8 = arith.constant 0.797884583 : f32
    %15 = vector.broadcast %cst_8 : f32 to vector<100x96xf32>
    %16 = arith.mulf %15, %14 : vector<100x96xf32>
    %17 = math.tanh %16 : vector<100x96xf32>
    %cst_9 = arith.constant 1.000000e+00 : f32
    %18 = vector.broadcast %cst_9 : f32 to vector<100x96xf32>
    %19 = arith.addf %18, %17 : vector<100x96xf32>
    %20 = arith.mulf %9, %19 : vector<100x96xf32>
    %c1 = arith.constant 1 : index
    %c0_10 = arith.constant 0 : index
    %21 = vector.load %arg3[%c1, %c0_10] : memref<3x96xf32, #tpu.memory_space<vmem>>, vector<1x96xf32>
    %22 = vector.broadcast %21 : vector<1x96xf32> to vector<100x96xf32>
    %23 = arith.mulf %20, %22 : vector<100x96xf32>
    %c2 = arith.constant 2 : index
    %c0_11 = arith.constant 0 : index
    %24 = vector.load %arg3[%c2, %c0_11] : memref<3x96xf32, #tpu.memory_space<vmem>>, vector<1x96xf32>
    %25 = vector.broadcast %24 : vector<1x96xf32> to vector<100x96xf32>
    %26 = arith.addf %23, %25 : vector<100x96xf32>
    %c0_12 = arith.constant 0 : index
    %c0_13 = arith.constant 0 : index
    %c0_14 = arith.constant 0 : index
    %27 = vector.load %arg4[%c0_12, %c0_13, %c0_14] : memref<1x100x96xf32, #tpu.memory_space<vmem>>, vector<1x100x96xf32>
    %28 = vector.shape_cast %27 : vector<1x100x96xf32> to vector<100x96xf32>
    %29 = vector.shape_cast %26 : vector<100x96xf32> to vector<1x100x96xf32>
    tpu.vector_store %arg4[%c0_12, %c0_13, %c0_14], %29 {strides = array<i32>} : memref<1x100x96xf32, #tpu.memory_space<vmem>>, vector<1x100x96xf32>,
    return
  }
  func.func @transform_0(%arg0: i32) -> (i32, i32, i32) {
    %c0_i32 = arith.constant 0 : i32
    %c0_i32_0 = arith.constant 0 : i32
    %c0_i32_1 = arith.constant 0 : i32
    return %arg0, %c0_i32, %c0_i32_0 : i32, i32, i32
  }
  func.func @transform_1(%arg0: i32) -> (i32, i32) {
    %c0_i32 = arith.constant 0 : i32
    %c0_i32_0 = arith.constant 0 : i32
    %c0_i32_1 = arith.constant 0 : i32
    return %c0_i32, %c0_i32_0 : i32, i32
  }
  func.func @transform_2(%arg0: i32) -> (i32, i32) {
    %c0_i32 = arith.constant 0 : i32
    %c0_i32_0 = arith.constant 0 : i32
    %c0_i32_1 = arith.constant 0 : i32
    return %c0_i32, %c0_i32_0 : i32, i32
  }
  func.func @transform_3(%arg0: i32) -> (i32, i32, i32) {
    %c0_i32 = arith.constant 0 : i32
    %c0_i32_0 = arith.constant 0 : i32
    %c0_i32_1 = arith.constant 0 : i32
    return %arg0, %c0_i32, %c0_i32_0 : i32, i32, i32
  }
}

module attributes {stable_mosaic.version = 11 : i64} {
  func.func @_fused_stack_kernel(%arg0: i32, %arg1: memref<1x50x1056xf32, #tpu.memory_space<vmem>>, %arg2: memref<1056x96xbf16, #tpu.memory_space<vmem>>, %arg3: memref<3x96xf32, #tpu.memory_space<vmem>>, %arg4: memref<96x64xbf16, #tpu.memory_space<vmem>>, %arg5: memref<50x64xf32, #tpu.memory_space<vmem>>, %arg6: memref<2x64x384xbf16, #tpu.memory_space<vmem>>, %arg7: memref<2x64x256xbf16, #tpu.memory_space<vmem>>, %arg8: memref<2x256x64xbf16, #tpu.memory_space<vmem>>, %arg9: memref<2x9x256xf32, #tpu.memory_space<vmem>>, %arg10: memref<4x64xf32, #tpu.memory_space<vmem>>, %arg11: memref<1x1x50xf32, #tpu.memory_space<vmem>>) attributes {dimension_semantics = [#tpu.dimension_semantics<parallel>], iteration_bounds = array<i64: 2>, scalar_prefetch = 0 : i64, scratch_operands = 0 : i64, tpu.core_type = #tpu.core_type<tc>, window_params = [{transform_indices = @transform_0, window_bounds = array<i64: 1, 50, 1056>}, {pipeline_mode = #tpu.pipeline_mode<synchronous>, transform_indices = @transform_1, window_bounds = array<i64: 1056, 96>}, {pipeline_mode = #tpu.pipeline_mode<synchronous>, transform_indices = @transform_2, window_bounds = array<i64: 3, 96>}, {pipeline_mode = #tpu.pipeline_mode<synchronous>, transform_indices = @transform_3, window_bounds = array<i64: 96, 64>}, {pipeline_mode = #tpu.pipeline_mode<synchronous>, transform_indices = @transform_4, window_bounds = array<i64: 50, 64>}, {pipeline_mode = #tpu.pipeline_mode<synchronous>, transform_indices = @transform_5, window_bounds = array<i64: 2, 64, 384>}, {pipeline_mode = #tpu.pipeline_mode<synchronous>, transform_indices = @transform_6, window_bounds = array<i64: 2, 64, 256>}, {pipeline_mode = #tpu.pipeline_mode<synchronous>, transform_indices = @transform_7, window_bounds = array<i64: 2, 256, 64>}, {pipeline_mode = #tpu.pipeline_mode<synchronous>, transform_indices = @transform_8, window_bounds = array<i64: 2, 9, 256>}, {pipeline_mode = #tpu.pipeline_mode<synchronous>, transform_indices = @transform_9, window_bounds = array<i64: 4, 64>}, {transform_indices = @transform_10, window_bounds = array<i64: 1, 1, 50>}]} {
    %c0 = arith.constant 0 : index
    %c0_0 = arith.constant 0 : index
    %c0_1 = arith.constant 0 : index
    %0 = vector.load %arg1[%c0, %c0_0, %c0_1] : memref<1x50x1056xf32, #tpu.memory_space<vmem>>, vector<1x50x1056xf32>
    %1 = vector.shape_cast %0 : vector<1x50x1056xf32> to vector<50x1056xf32>
    %2 = arith.truncf %1 : vector<50x1056xf32> to vector<50x1056xbf16>
    %c0_2 = arith.constant 0 : index
    %c0_3 = arith.constant 0 : index
    %3 = vector.load %arg2[%c0_2, %c0_3] : memref<1056x96xbf16, #tpu.memory_space<vmem>>, vector<1056x96xbf16>
    %cst = arith.constant dense<0.000000e+00> : vector<50x96xf32>
    %4 = tpu.matmul %2, %3, %cst {dimension_numbers = #tpu.dot_dimension_numbers<[1], [0], [0], [1], [0, 0, 1, 1], [], []>} : vector<50x1056xbf16>, vector<1056x96xbf16>, vector<50x96xf32> -> vector<50x96xf32>
    %c0_4 = arith.constant 0 : index
    %c0_5 = arith.constant 0 : index
    %5 = vector.load %arg3[%c0_4, %c0_5] : memref<3x96xf32, #tpu.memory_space<vmem>>, vector<1x96xf32>
    %6 = vector.broadcast %5 : vector<1x96xf32> to vector<50x96xf32>
    %7 = arith.addf %4, %6 : vector<50x96xf32>
    %cst_6 = arith.constant 5.000000e-01 : f32
    %8 = vector.broadcast %cst_6 : f32 to vector<50x96xf32>
    %9 = arith.mulf %8, %7 : vector<50x96xf32>
    %cst_7 = arith.constant 4.471500e-02 : f32
    %10 = vector.broadcast %cst_7 : f32 to vector<50x96xf32>
    %11 = arith.mulf %10, %7 : vector<50x96xf32>
    %12 = arith.mulf %11, %7 : vector<50x96xf32>
    %13 = arith.mulf %12, %7 : vector<50x96xf32>
    %14 = arith.addf %7, %13 : vector<50x96xf32>
    %cst_8 = arith.constant 0.797884583 : f32
    %15 = vector.broadcast %cst_8 : f32 to vector<50x96xf32>
    %16 = arith.mulf %15, %14 : vector<50x96xf32>
    %17 = math.tanh %16 : vector<50x96xf32>
    %cst_9 = arith.constant 1.000000e+00 : f32
    %18 = vector.broadcast %cst_9 : f32 to vector<50x96xf32>
    %19 = arith.addf %18, %17 : vector<50x96xf32>
    %20 = arith.mulf %9, %19 : vector<50x96xf32>
    %c1 = arith.constant 1 : index
    %c0_10 = arith.constant 0 : index
    %21 = vector.load %arg3[%c1, %c0_10] : memref<3x96xf32, #tpu.memory_space<vmem>>, vector<1x96xf32>
    %22 = vector.broadcast %21 : vector<1x96xf32> to vector<50x96xf32>
    %23 = arith.mulf %20, %22 : vector<50x96xf32>
    %c2 = arith.constant 2 : index
    %c0_11 = arith.constant 0 : index
    %24 = vector.load %arg3[%c2, %c0_11] : memref<3x96xf32, #tpu.memory_space<vmem>>, vector<1x96xf32>
    %25 = vector.broadcast %24 : vector<1x96xf32> to vector<50x96xf32>
    %26 = arith.addf %23, %25 : vector<50x96xf32>
    %27 = arith.truncf %26 : vector<50x96xf32> to vector<50x96xbf16>
    %c0_12 = arith.constant 0 : index
    %c0_13 = arith.constant 0 : index
    %28 = vector.load %arg4[%c0_12, %c0_13] : memref<96x64xbf16, #tpu.memory_space<vmem>>, vector<96x64xbf16>
    %cst_14 = arith.constant dense<0.000000e+00> : vector<50x64xf32>
    %29 = tpu.matmul %27, %28, %cst_14 {dimension_numbers = #tpu.dot_dimension_numbers<[1], [0], [0], [1], [0, 0, 1, 1], [], []>} : vector<50x96xbf16>, vector<96x64xbf16>, vector<50x64xf32> -> vector<50x64xf32>
    %c0_15 = arith.constant 0 : index
    %c0_16 = arith.constant 0 : index
    %30 = vector.load %arg5[%c0_15, %c0_16] : memref<50x64xf32, #tpu.memory_space<vmem>>, vector<50x64xf32>
    %31 = arith.addf %29, %30 : vector<50x64xf32>
    %c0_17 = arith.constant 0 : index
    %c0_18 = arith.constant 0 : index
    %c0_19 = arith.constant 0 : index
    %32 = vector.load %arg6[%c0_17, %c0_18, %c0_19] : memref<2x64x384xbf16, #tpu.memory_space<vmem>>, vector<1x64x384xbf16>
    %33 = vector.shape_cast %32 : vector<1x64x384xbf16> to vector<64x384xbf16>
    %c0_20 = arith.constant 0 : index
    %c0_21 = arith.constant 0 : index
    %c0_22 = arith.constant 0 : index
    %34 = vector.load %arg9[%c0_20, %c0_21, %c0_22] : memref<2x9x256xf32, #tpu.memory_space<vmem>>, vector<1x9x256xf32>
    %35 = vector.shape_cast %34 : vector<1x9x256xf32> to vector<9x256xf32>
    %36 = arith.truncf %31 : vector<50x64xf32> to vector<50x64xbf16>
    %cst_23 = arith.constant dense<0.000000e+00> : vector<50x384xf32>
    %37 = tpu.matmul %36, %33, %cst_23 {dimension_numbers = #tpu.dot_dimension_numbers<[1], [0], [0], [1], [0, 0, 1, 1], [], []>} : vector<50x64xbf16>, vector<64x384xbf16>, vector<50x384xf32> -> vector<50x384xf32>
    %38 = vector.extract_strided_slice %37 {offsets = [0, 0], sizes = [50, 64], strides = [1, 1]} : vector<50x384xf32> to vector<50x64xf32>
    %39 = vector.extract_strided_slice %35 {offsets = [0, 0], sizes = [1, 64], strides = [1, 1]} : vector<9x256xf32> to vector<1x64xf32>
    %40 = vector.broadcast %39 : vector<1x64xf32> to vector<50x64xf32>
    %41 = arith.addf %38, %40 : vector<50x64xf32>
    %42 = vector.extract_strided_slice %37 {offsets = [0, 64], sizes = [50, 64], strides = [1, 1]} : vector<50x384xf32> to vector<50x64xf32>
    %43 = vector.extract_strided_slice %35 {offsets = [1, 0], sizes = [1, 64], strides = [1, 1]} : vector<9x256xf32> to vector<1x64xf32>
    %44 = vector.broadcast %43 : vector<1x64xf32> to vector<50x64xf32>
    %45 = arith.addf %42, %44 : vector<50x64xf32>
    %46 = vector.extract_strided_slice %41 {offsets = [0, 0], sizes = [50, 16], strides = [1, 1]} : vector<50x64xf32> to vector<50x16xf32>
    %47 = arith.truncf %46 : vector<50x16xf32> to vector<50x16xbf16>
    %48 = vector.extract_strided_slice %45 {offsets = [0, 0], sizes = [50, 16], strides = [1, 1]} : vector<50x64xf32> to vector<50x16xf32>
    %49 = arith.truncf %48 : vector<50x16xf32> to vector<50x16xbf16>
    %cst_24 = arith.constant dense<0.000000e+00> : vector<50x50xf32>
    %50 = tpu.matmul %47, %49, %cst_24 {dimension_numbers = #tpu.dot_dimension_numbers<[1], [1], [0], [0], [0, 0, 1, 0], [], []>} : vector<50x16xbf16>, vector<50x16xbf16>, vector<50x50xf32> -> vector<50x50xf32>
    %cst_25 = arith.constant 2.500000e-01 : f32
    %51 = vector.broadcast %cst_25 : f32 to vector<50x50xf32>
    %52 = arith.mulf %50, %51 : vector<50x50xf32>
    %cst_26 = arith.constant dense<0xFF800000> : vector<50xf32>
    %53 = vector.multi_reduction <maximumf>, %52, %cst_26 [1] : vector<50x50xf32> to vector<50xf32>
    %54 = vector.shape_cast %53 : vector<50xf32> to vector<50x1xf32>
    %55 = vector.broadcast %54 : vector<50x1xf32> to vector<50x50xf32>
    %56 = arith.subf %52, %55 : vector<50x50xf32>
    %57 = math.exp %56 : vector<50x50xf32>
    %cst_27 = arith.constant dense<0.000000e+00> : vector<50xf32>
    %58 = vector.multi_reduction <add>, %57, %cst_27 [1] : vector<50x50xf32> to vector<50xf32>
    %59 = vector.shape_cast %58 : vector<50xf32> to vector<50x1xf32>
    %60 = tpu.reciprocal %59 {approx = true} : vector<50x1xf32> -> vector<50x1xf32>
    %61 = vector.broadcast %60 : vector<50x1xf32> to vector<50x50xf32>
    %62 = arith.mulf %57, %61 : vector<50x50xf32>
    %63 = vector.extract_strided_slice %37 {offsets = [0, 128], sizes = [50, 64], strides = [1, 1]} : vector<50x384xf32> to vector<50x64xf32>
    %64 = arith.truncf %62 : vector<50x50xf32> to vector<50x50xbf16>
    %65 = arith.truncf %63 : vector<50x64xf32> to vector<50x64xbf16>
    %cst_28 = arith.constant dense<0.000000e+00> : vector<50x64xf32>
    %66 = tpu.matmul %64, %65, %cst_28 {dimension_numbers = #tpu.dot_dimension_numbers<[1], [0], [0], [1], [0, 0, 1, 1], [], []>} : vector<50x50xbf16>, vector<50x64xbf16>, vector<50x64xf32> -> vector<50x64xf32>
    %67 = vector.extract_strided_slice %41 {offsets = [0, 16], sizes = [50, 16], strides = [1, 1]} : vector<50x64xf32> to vector<50x16xf32>
    %68 = arith.truncf %67 : vector<50x16xf32> to vector<50x16xbf16>
    %69 = vector.extract_strided_slice %45 {offsets = [0, 16], sizes = [50, 16], strides = [1, 1]} : vector<50x64xf32> to vector<50x16xf32>
    %70 = arith.truncf %69 : vector<50x16xf32> to vector<50x16xbf16>
    %cst_29 = arith.constant dense<0.000000e+00> : vector<50x50xf32>
    %71 = tpu.matmul %68, %70, %cst_29 {dimension_numbers = #tpu.dot_dimension_numbers<[1], [1], [0], [0], [0, 0, 1, 0], [], []>} : vector<50x16xbf16>, vector<50x16xbf16>, vector<50x50xf32> -> vector<50x50xf32>
    %cst_30 = arith.constant 2.500000e-01 : f32
    %72 = vector.broadcast %cst_30 : f32 to vector<50x50xf32>
    %73 = arith.mulf %71, %72 : vector<50x50xf32>
    %cst_31 = arith.constant dense<0xFF800000> : vector<50xf32>
    %74 = vector.multi_reduction <maximumf>, %73, %cst_31 [1] : vector<50x50xf32> to vector<50xf32>
    %75 = vector.shape_cast %74 : vector<50xf32> to vector<50x1xf32>
    %76 = vector.broadcast %75 : vector<50x1xf32> to vector<50x50xf32>
    %77 = arith.subf %73, %76 : vector<50x50xf32>
    %78 = math.exp %77 : vector<50x50xf32>
    %cst_32 = arith.constant dense<0.000000e+00> : vector<50xf32>
    %79 = vector.multi_reduction <add>, %78, %cst_32 [1] : vector<50x50xf32> to vector<50xf32>
    %80 = vector.shape_cast %79 : vector<50xf32> to vector<50x1xf32>
    %81 = tpu.reciprocal %80 {approx = true} : vector<50x1xf32> -> vector<50x1xf32>
    %82 = vector.broadcast %81 : vector<50x1xf32> to vector<50x50xf32>
    %83 = arith.mulf %78, %82 : vector<50x50xf32>
    %84 = vector.extract_strided_slice %37 {offsets = [0, 192], sizes = [50, 64], strides = [1, 1]} : vector<50x384xf32> to vector<50x64xf32>
    %85 = arith.truncf %83 : vector<50x50xf32> to vector<50x50xbf16>
    %86 = arith.truncf %84 : vector<50x64xf32> to vector<50x64xbf16>
    %cst_33 = arith.constant dense<0.000000e+00> : vector<50x64xf32>
    %87 = tpu.matmul %85, %86, %cst_33 {dimension_numbers = #tpu.dot_dimension_numbers<[1], [0], [0], [1], [0, 0, 1, 1], [], []>} : vector<50x50xbf16>, vector<50x64xbf16>, vector<50x64xf32> -> vector<50x64xf32>
    %88 = arith.addf %66, %87 : vector<50x64xf32>
    %89 = vector.extract_strided_slice %41 {offsets = [0, 32], sizes = [50, 16], strides = [1, 1]} : vector<50x64xf32> to vector<50x16xf32>
    %90 = arith.truncf %89 : vector<50x16xf32> to vector<50x16xbf16>
    %91 = vector.extract_strided_slice %45 {offsets = [0, 32], sizes = [50, 16], strides = [1, 1]} : vector<50x64xf32> to vector<50x16xf32>
    %92 = arith.truncf %91 : vector<50x16xf32> to vector<50x16xbf16>
    %cst_34 = arith.constant dense<0.000000e+00> : vector<50x50xf32>
    %93 = tpu.matmul %90, %92, %cst_34 {dimension_numbers = #tpu.dot_dimension_numbers<[1], [1], [0], [0], [0, 0, 1, 0], [], []>} : vector<50x16xbf16>, vector<50x16xbf16>, vector<50x50xf32> -> vector<50x50xf32>
    %cst_35 = arith.constant 2.500000e-01 : f32
    %94 = vector.broadcast %cst_35 : f32 to vector<50x50xf32>
    %95 = arith.mulf %93, %94 : vector<50x50xf32>
    %cst_36 = arith.constant dense<0xFF800000> : vector<50xf32>
    %96 = vector.multi_reduction <maximumf>, %95, %cst_36 [1] : vector<50x50xf32> to vector<50xf32>
    %97 = vector.shape_cast %96 : vector<50xf32> to vector<50x1xf32>
    %98 = vector.broadcast %97 : vector<50x1xf32> to vector<50x50xf32>
    %99 = arith.subf %95, %98 : vector<50x50xf32>
    %100 = math.exp %99 : vector<50x50xf32>
    %cst_37 = arith.constant dense<0.000000e+00> : vector<50xf32>
    %101 = vector.multi_reduction <add>, %100, %cst_37 [1] : vector<50x50xf32> to vector<50xf32>
    %102 = vector.shape_cast %101 : vector<50xf32> to vector<50x1xf32>
    %103 = tpu.reciprocal %102 {approx = true} : vector<50x1xf32> -> vector<50x1xf32>
    %104 = vector.broadcast %103 : vector<50x1xf32> to vector<50x50xf32>
    %105 = arith.mulf %100, %104 : vector<50x50xf32>
    %106 = vector.extract_strided_slice %37 {offsets = [0, 256], sizes = [50, 64], strides = [1, 1]} : vector<50x384xf32> to vector<50x64xf32>
    %107 = arith.truncf %105 : vector<50x50xf32> to vector<50x50xbf16>
    %108 = arith.truncf %106 : vector<50x64xf32> to vector<50x64xbf16>
    %cst_38 = arith.constant dense<0.000000e+00> : vector<50x64xf32>
    %109 = tpu.matmul %107, %108, %cst_38 {dimension_numbers = #tpu.dot_dimension_numbers<[1], [0], [0], [1], [0, 0, 1, 1], [], []>} : vector<50x50xbf16>, vector<50x64xbf16>, vector<50x64xf32> -> vector<50x64xf32>
    %110 = arith.addf %88, %109 : vector<50x64xf32>
    %111 = vector.extract_strided_slice %41 {offsets = [0, 48], sizes = [50, 16], strides = [1, 1]} : vector<50x64xf32> to vector<50x16xf32>
    %112 = arith.truncf %111 : vector<50x16xf32> to vector<50x16xbf16>
    %113 = vector.extract_strided_slice %45 {offsets = [0, 48], sizes = [50, 16], strides = [1, 1]} : vector<50x64xf32> to vector<50x16xf32>
    %114 = arith.truncf %113 : vector<50x16xf32> to vector<50x16xbf16>
    %cst_39 = arith.constant dense<0.000000e+00> : vector<50x50xf32>
    %115 = tpu.matmul %112, %114, %cst_39 {dimension_numbers = #tpu.dot_dimension_numbers<[1], [1], [0], [0], [0, 0, 1, 0], [], []>} : vector<50x16xbf16>, vector<50x16xbf16>, vector<50x50xf32> -> vector<50x50xf32>
    %cst_40 = arith.constant 2.500000e-01 : f32
    %116 = vector.broadcast %cst_40 : f32 to vector<50x50xf32>
    %117 = arith.mulf %115, %116 : vector<50x50xf32>
    %cst_41 = arith.constant dense<0xFF800000> : vector<50xf32>
    %118 = vector.multi_reduction <maximumf>, %117, %cst_41 [1] : vector<50x50xf32> to vector<50xf32>
    %119 = vector.shape_cast %118 : vector<50xf32> to vector<50x1xf32>
    %120 = vector.broadcast %119 : vector<50x1xf32> to vector<50x50xf32>
    %121 = arith.subf %117, %120 : vector<50x50xf32>
    %122 = math.exp %121 : vector<50x50xf32>
    %cst_42 = arith.constant dense<0.000000e+00> : vector<50xf32>
    %123 = vector.multi_reduction <add>, %122, %cst_42 [1] : vector<50x50xf32> to vector<50xf32>
    %124 = vector.shape_cast %123 : vector<50xf32> to vector<50x1xf32>
    %125 = tpu.reciprocal %124 {approx = true} : vector<50x1xf32> -> vector<50x1xf32>
    %126 = vector.broadcast %125 : vector<50x1xf32> to vector<50x50xf32>
    %127 = arith.mulf %122, %126 : vector<50x50xf32>
    %128 = vector.extract_strided_slice %37 {offsets = [0, 320], sizes = [50, 64], strides = [1, 1]} : vector<50x384xf32> to vector<50x64xf32>
    %129 = arith.truncf %127 : vector<50x50xf32> to vector<50x50xbf16>
    %130 = arith.truncf %128 : vector<50x64xf32> to vector<50x64xbf16>
    %cst_43 = arith.constant dense<0.000000e+00> : vector<50x64xf32>
    %131 = tpu.matmul %129, %130, %cst_43 {dimension_numbers = #tpu.dot_dimension_numbers<[1], [0], [0], [1], [0, 0, 1, 1], [], []>} : vector<50x50xbf16>, vector<50x64xbf16>, vector<50x64xf32> -> vector<50x64xf32>
    %132 = arith.addf %110, %131 : vector<50x64xf32>
    %133 = vector.extract_strided_slice %35 {offsets = [2, 0], sizes = [1, 64], strides = [1, 1]} : vector<9x256xf32> to vector<1x64xf32>
    %134 = vector.broadcast %133 : vector<1x64xf32> to vector<50x64xf32>
    %135 = arith.addf %132, %134 : vector<50x64xf32>
    %136 = arith.addf %31, %135 : vector<50x64xf32>
    %137 = vector.extract_strided_slice %35 {offsets = [3, 0], sizes = [1, 64], strides = [1, 1]} : vector<9x256xf32> to vector<1x64xf32>
    %138 = vector.extract_strided_slice %35 {offsets = [4, 0], sizes = [1, 64], strides = [1, 1]} : vector<9x256xf32> to vector<1x64xf32>
    %cst_44 = arith.constant dense<0.000000e+00> : vector<50xf32>
    %139 = vector.multi_reduction <add>, %136, %cst_44 [1] : vector<50x64xf32> to vector<50xf32>
    %140 = vector.shape_cast %139 : vector<50xf32> to vector<50x1xf32>
    %cst_45 = arith.constant 6.400000e+01 : f32
    %141 = vector.broadcast %cst_45 : f32 to vector<50x1xf32>
    %142 = arith.divf %140, %141 : vector<50x1xf32>
    %143 = vector.broadcast %142 : vector<50x1xf32> to vector<50x64xf32>
    %144 = arith.subf %136, %143 : vector<50x64xf32>
    %145 = arith.mulf %144, %144 : vector<50x64xf32>
    %cst_46 = arith.constant dense<0.000000e+00> : vector<50xf32>
    %146 = vector.multi_reduction <add>, %145, %cst_46 [1] : vector<50x64xf32> to vector<50xf32>
    %147 = vector.shape_cast %146 : vector<50xf32> to vector<50x1xf32>
    %cst_47 = arith.constant 6.400000e+01 : f32
    %148 = vector.broadcast %cst_47 : f32 to vector<50x1xf32>
    %149 = arith.divf %147, %148 : vector<50x1xf32>
    %cst_48 = arith.constant 9.99999974E-6 : f32
    %150 = vector.broadcast %cst_48 : f32 to vector<50x1xf32>
    %151 = arith.addf %149, %150 : vector<50x1xf32>
    %152 = math.rsqrt %151 : vector<50x1xf32>
    %153 = vector.broadcast %152 : vector<50x1xf32> to vector<50x64xf32>
    %154 = arith.mulf %144, %153 : vector<50x64xf32>
    %155 = vector.broadcast %137 : vector<1x64xf32> to vector<50x64xf32>
    %156 = arith.mulf %154, %155 : vector<50x64xf32>
    %157 = vector.broadcast %138 : vector<1x64xf32> to vector<50x64xf32>
    %158 = arith.addf %156, %157 : vector<50x64xf32>
    %159 = arith.truncf %158 : vector<50x64xf32> to vector<50x64xbf16>
    %c0_49 = arith.constant 0 : index
    %c0_50 = arith.constant 0 : index
    %c0_51 = arith.constant 0 : index
    %160 = vector.load %arg7[%c0_49, %c0_50, %c0_51] : memref<2x64x256xbf16, #tpu.memory_space<vmem>>, vector<1x64x256xbf16>
    %161 = vector.shape_cast %160 : vector<1x64x256xbf16> to vector<64x256xbf16>
    %cst_52 = arith.constant dense<0.000000e+00> : vector<50x256xf32>
    %162 = tpu.matmul %159, %161, %cst_52 {dimension_numbers = #tpu.dot_dimension_numbers<[1], [0], [0], [1], [0, 0, 1, 1], [], []>} : vector<50x64xbf16>, vector<64x256xbf16>, vector<50x256xf32> -> vector<50x256xf32>
    %163 = vector.extract_strided_slice %35 {offsets = [5, 0], sizes = [1, 256], strides = [1, 1]} : vector<9x256xf32> to vector<1x256xf32>
    %164 = vector.broadcast %163 : vector<1x256xf32> to vector<50x256xf32>
    %165 = arith.addf %162, %164 : vector<50x256xf32>
    %cst_53 = arith.constant 5.000000e-01 : f32
    %166 = vector.broadcast %cst_53 : f32 to vector<50x256xf32>
    %167 = arith.mulf %166, %165 : vector<50x256xf32>
    %cst_54 = arith.constant 4.471500e-02 : f32
    %168 = vector.broadcast %cst_54 : f32 to vector<50x256xf32>
    %169 = arith.mulf %168, %165 : vector<50x256xf32>
    %170 = arith.mulf %169, %165 : vector<50x256xf32>
    %171 = arith.mulf %170, %165 : vector<50x256xf32>
    %172 = arith.addf %165, %171 : vector<50x256xf32>
    %cst_55 = arith.constant 0.797884583 : f32
    %173 = vector.broadcast %cst_55 : f32 to vector<50x256xf32>
    %174 = arith.mulf %173, %172 : vector<50x256xf32>
    %175 = math.tanh %174 : vector<50x256xf32>
    %cst_56 = arith.constant 1.000000e+00 : f32
    %176 = vector.broadcast %cst_56 : f32 to vector<50x256xf32>
    %177 = arith.addf %176, %175 : vector<50x256xf32>
    %178 = arith.mulf %167, %177 : vector<50x256xf32>
    %179 = arith.truncf %178 : vector<50x256xf32> to vector<50x256xbf16>
    %c0_57 = arith.constant 0 : index
    %c0_58 = arith.constant 0 : index
    %c0_59 = arith.constant 0 : index
    %180 = vector.load %arg8[%c0_57, %c0_58, %c0_59] : memref<2x256x64xbf16, #tpu.memory_space<vmem>>, vector<1x256x64xbf16>
    %181 = vector.shape_cast %180 : vector<1x256x64xbf16> to vector<256x64xbf16>
    %cst_60 = arith.constant dense<0.000000e+00> : vector<50x64xf32>
    %182 = tpu.matmul %179, %181, %cst_60 {dimension_numbers = #tpu.dot_dimension_numbers<[1], [0], [0], [1], [0, 0, 1, 1], [], []>} : vector<50x256xbf16>, vector<256x64xbf16>, vector<50x64xf32> -> vector<50x64xf32>
    %183 = vector.extract_strided_slice %35 {offsets = [6, 0], sizes = [1, 64], strides = [1, 1]} : vector<9x256xf32> to vector<1x64xf32>
    %184 = vector.broadcast %183 : vector<1x64xf32> to vector<50x64xf32>
    %185 = arith.addf %182, %184 : vector<50x64xf32>
    %186 = arith.addf %158, %185 : vector<50x64xf32>
    %187 = vector.extract_strided_slice %35 {offsets = [7, 0], sizes = [1, 64], strides = [1, 1]} : vector<9x256xf32> to vector<1x64xf32>
    %188 = vector.extract_strided_slice %35 {offsets = [8, 0], sizes = [1, 64], strides = [1, 1]} : vector<9x256xf32> to vector<1x64xf32>
    %cst_61 = arith.constant dense<0.000000e+00> : vector<50xf32>
    %189 = vector.multi_reduction <add>, %186, %cst_61 [1] : vector<50x64xf32> to vector<50xf32>
    %190 = vector.shape_cast %189 : vector<50xf32> to vector<50x1xf32>
    %cst_62 = arith.constant 6.400000e+01 : f32
    %191 = vector.broadcast %cst_62 : f32 to vector<50x1xf32>
    %192 = arith.divf %190, %191 : vector<50x1xf32>
    %193 = vector.broadcast %192 : vector<50x1xf32> to vector<50x64xf32>
    %194 = arith.subf %186, %193 : vector<50x64xf32>
    %195 = arith.mulf %194, %194 : vector<50x64xf32>
    %cst_63 = arith.constant dense<0.000000e+00> : vector<50xf32>
    %196 = vector.multi_reduction <add>, %195, %cst_63 [1] : vector<50x64xf32> to vector<50xf32>
    %197 = vector.shape_cast %196 : vector<50xf32> to vector<50x1xf32>
    %cst_64 = arith.constant 6.400000e+01 : f32
    %198 = vector.broadcast %cst_64 : f32 to vector<50x1xf32>
    %199 = arith.divf %197, %198 : vector<50x1xf32>
    %cst_65 = arith.constant 9.99999974E-6 : f32
    %200 = vector.broadcast %cst_65 : f32 to vector<50x1xf32>
    %201 = arith.addf %199, %200 : vector<50x1xf32>
    %202 = math.rsqrt %201 : vector<50x1xf32>
    %203 = vector.broadcast %202 : vector<50x1xf32> to vector<50x64xf32>
    %204 = arith.mulf %194, %203 : vector<50x64xf32>
    %205 = vector.broadcast %187 : vector<1x64xf32> to vector<50x64xf32>
    %206 = arith.mulf %204, %205 : vector<50x64xf32>
    %207 = vector.broadcast %188 : vector<1x64xf32> to vector<50x64xf32>
    %208 = arith.addf %206, %207 : vector<50x64xf32>
    %c1_66 = arith.constant 1 : index
    %c0_67 = arith.constant 0 : index
    %c0_68 = arith.constant 0 : index
    %209 = vector.load %arg6[%c1_66, %c0_67, %c0_68] : memref<2x64x384xbf16, #tpu.memory_space<vmem>>, vector<1x64x384xbf16>
    %210 = vector.shape_cast %209 : vector<1x64x384xbf16> to vector<64x384xbf16>
    %c1_69 = arith.constant 1 : index
    %c0_70 = arith.constant 0 : index
    %c0_71 = arith.constant 0 : index
    %211 = vector.load %arg9[%c1_69, %c0_70, %c0_71] : memref<2x9x256xf32, #tpu.memory_space<vmem>>, vector<1x9x256xf32>
    %212 = vector.shape_cast %211 : vector<1x9x256xf32> to vector<9x256xf32>
    %213 = arith.truncf %208 : vector<50x64xf32> to vector<50x64xbf16>
    %cst_72 = arith.constant dense<0.000000e+00> : vector<50x384xf32>
    %214 = tpu.matmul %213, %210, %cst_72 {dimension_numbers = #tpu.dot_dimension_numbers<[1], [0], [0], [1], [0, 0, 1, 1], [], []>} : vector<50x64xbf16>, vector<64x384xbf16>, vector<50x384xf32> -> vector<50x384xf32>
    %215 = vector.extract_strided_slice %214 {offsets = [0, 0], sizes = [50, 64], strides = [1, 1]} : vector<50x384xf32> to vector<50x64xf32>
    %216 = vector.extract_strided_slice %212 {offsets = [0, 0], sizes = [1, 64], strides = [1, 1]} : vector<9x256xf32> to vector<1x64xf32>
    %217 = vector.broadcast %216 : vector<1x64xf32> to vector<50x64xf32>
    %218 = arith.addf %215, %217 : vector<50x64xf32>
    %219 = vector.extract_strided_slice %214 {offsets = [0, 64], sizes = [50, 64], strides = [1, 1]} : vector<50x384xf32> to vector<50x64xf32>
    %220 = vector.extract_strided_slice %212 {offsets = [1, 0], sizes = [1, 64], strides = [1, 1]} : vector<9x256xf32> to vector<1x64xf32>
    %221 = vector.broadcast %220 : vector<1x64xf32> to vector<50x64xf32>
    %222 = arith.addf %219, %221 : vector<50x64xf32>
    %223 = vector.extract_strided_slice %218 {offsets = [0, 0], sizes = [50, 16], strides = [1, 1]} : vector<50x64xf32> to vector<50x16xf32>
    %224 = arith.truncf %223 : vector<50x16xf32> to vector<50x16xbf16>
    %225 = vector.extract_strided_slice %222 {offsets = [0, 0], sizes = [50, 16], strides = [1, 1]} : vector<50x64xf32> to vector<50x16xf32>
    %226 = arith.truncf %225 : vector<50x16xf32> to vector<50x16xbf16>
    %cst_73 = arith.constant dense<0.000000e+00> : vector<50x50xf32>
    %227 = tpu.matmul %224, %226, %cst_73 {dimension_numbers = #tpu.dot_dimension_numbers<[1], [1], [0], [0], [0, 0, 1, 0], [], []>} : vector<50x16xbf16>, vector<50x16xbf16>, vector<50x50xf32> -> vector<50x50xf32>
    %cst_74 = arith.constant 2.500000e-01 : f32
    %228 = vector.broadcast %cst_74 : f32 to vector<50x50xf32>
    %229 = arith.mulf %227, %228 : vector<50x50xf32>
    %cst_75 = arith.constant dense<0xFF800000> : vector<50xf32>
    %230 = vector.multi_reduction <maximumf>, %229, %cst_75 [1] : vector<50x50xf32> to vector<50xf32>
    %231 = vector.shape_cast %230 : vector<50xf32> to vector<50x1xf32>
    %232 = vector.broadcast %231 : vector<50x1xf32> to vector<50x50xf32>
    %233 = arith.subf %229, %232 : vector<50x50xf32>
    %234 = math.exp %233 : vector<50x50xf32>
    %cst_76 = arith.constant dense<0.000000e+00> : vector<50xf32>
    %235 = vector.multi_reduction <add>, %234, %cst_76 [1] : vector<50x50xf32> to vector<50xf32>
    %236 = vector.shape_cast %235 : vector<50xf32> to vector<50x1xf32>
    %237 = tpu.reciprocal %236 {approx = true} : vector<50x1xf32> -> vector<50x1xf32>
    %238 = vector.broadcast %237 : vector<50x1xf32> to vector<50x50xf32>
    %239 = arith.mulf %234, %238 : vector<50x50xf32>
    %240 = vector.extract_strided_slice %214 {offsets = [0, 128], sizes = [50, 64], strides = [1, 1]} : vector<50x384xf32> to vector<50x64xf32>
    %241 = arith.truncf %239 : vector<50x50xf32> to vector<50x50xbf16>
    %242 = arith.truncf %240 : vector<50x64xf32> to vector<50x64xbf16>
    %cst_77 = arith.constant dense<0.000000e+00> : vector<50x64xf32>
    %243 = tpu.matmul %241, %242, %cst_77 {dimension_numbers = #tpu.dot_dimension_numbers<[1], [0], [0], [1], [0, 0, 1, 1], [], []>} : vector<50x50xbf16>, vector<50x64xbf16>, vector<50x64xf32> -> vector<50x64xf32>
    %244 = vector.extract_strided_slice %218 {offsets = [0, 16], sizes = [50, 16], strides = [1, 1]} : vector<50x64xf32> to vector<50x16xf32>
    %245 = arith.truncf %244 : vector<50x16xf32> to vector<50x16xbf16>
    %246 = vector.extract_strided_slice %222 {offsets = [0, 16], sizes = [50, 16], strides = [1, 1]} : vector<50x64xf32> to vector<50x16xf32>
    %247 = arith.truncf %246 : vector<50x16xf32> to vector<50x16xbf16>
    %cst_78 = arith.constant dense<0.000000e+00> : vector<50x50xf32>
    %248 = tpu.matmul %245, %247, %cst_78 {dimension_numbers = #tpu.dot_dimension_numbers<[1], [1], [0], [0], [0, 0, 1, 0], [], []>} : vector<50x16xbf16>, vector<50x16xbf16>, vector<50x50xf32> -> vector<50x50xf32>
    %cst_79 = arith.constant 2.500000e-01 : f32
    %249 = vector.broadcast %cst_79 : f32 to vector<50x50xf32>
    %250 = arith.mulf %248, %249 : vector<50x50xf32>
    %cst_80 = arith.constant dense<0xFF800000> : vector<50xf32>
    %251 = vector.multi_reduction <maximumf>, %250, %cst_80 [1] : vector<50x50xf32> to vector<50xf32>
    %252 = vector.shape_cast %251 : vector<50xf32> to vector<50x1xf32>
    %253 = vector.broadcast %252 : vector<50x1xf32> to vector<50x50xf32>
    %254 = arith.subf %250, %253 : vector<50x50xf32>
    %255 = math.exp %254 : vector<50x50xf32>
    %cst_81 = arith.constant dense<0.000000e+00> : vector<50xf32>
    %256 = vector.multi_reduction <add>, %255, %cst_81 [1] : vector<50x50xf32> to vector<50xf32>
    %257 = vector.shape_cast %256 : vector<50xf32> to vector<50x1xf32>
    %258 = tpu.reciprocal %257 {approx = true} : vector<50x1xf32> -> vector<50x1xf32>
    %259 = vector.broadcast %258 : vector<50x1xf32> to vector<50x50xf32>
    %260 = arith.mulf %255, %259 : vector<50x50xf32>
    %261 = vector.extract_strided_slice %214 {offsets = [0, 192], sizes = [50, 64], strides = [1, 1]} : vector<50x384xf32> to vector<50x64xf32>
    %262 = arith.truncf %260 : vector<50x50xf32> to vector<50x50xbf16>
    %263 = arith.truncf %261 : vector<50x64xf32> to vector<50x64xbf16>
    %cst_82 = arith.constant dense<0.000000e+00> : vector<50x64xf32>
    %264 = tpu.matmul %262, %263, %cst_82 {dimension_numbers = #tpu.dot_dimension_numbers<[1], [0], [0], [1], [0, 0, 1, 1], [], []>} : vector<50x50xbf16>, vector<50x64xbf16>, vector<50x64xf32> -> vector<50x64xf32>
    %265 = arith.addf %243, %264 : vector<50x64xf32>
    %266 = vector.extract_strided_slice %218 {offsets = [0, 32], sizes = [50, 16], strides = [1, 1]} : vector<50x64xf32> to vector<50x16xf32>
    %267 = arith.truncf %266 : vector<50x16xf32> to vector<50x16xbf16>
    %268 = vector.extract_strided_slice %222 {offsets = [0, 32], sizes = [50, 16], strides = [1, 1]} : vector<50x64xf32> to vector<50x16xf32>
    %269 = arith.truncf %268 : vector<50x16xf32> to vector<50x16xbf16>
    %cst_83 = arith.constant dense<0.000000e+00> : vector<50x50xf32>
    %270 = tpu.matmul %267, %269, %cst_83 {dimension_numbers = #tpu.dot_dimension_numbers<[1], [1], [0], [0], [0, 0, 1, 0], [], []>} : vector<50x16xbf16>, vector<50x16xbf16>, vector<50x50xf32> -> vector<50x50xf32>
    %cst_84 = arith.constant 2.500000e-01 : f32
    %271 = vector.broadcast %cst_84 : f32 to vector<50x50xf32>
    %272 = arith.mulf %270, %271 : vector<50x50xf32>
    %cst_85 = arith.constant dense<0xFF800000> : vector<50xf32>
    %273 = vector.multi_reduction <maximumf>, %272, %cst_85 [1] : vector<50x50xf32> to vector<50xf32>
    %274 = vector.shape_cast %273 : vector<50xf32> to vector<50x1xf32>
    %275 = vector.broadcast %274 : vector<50x1xf32> to vector<50x50xf32>
    %276 = arith.subf %272, %275 : vector<50x50xf32>
    %277 = math.exp %276 : vector<50x50xf32>
    %cst_86 = arith.constant dense<0.000000e+00> : vector<50xf32>
    %278 = vector.multi_reduction <add>, %277, %cst_86 [1] : vector<50x50xf32> to vector<50xf32>
    %279 = vector.shape_cast %278 : vector<50xf32> to vector<50x1xf32>
    %280 = tpu.reciprocal %279 {approx = true} : vector<50x1xf32> -> vector<50x1xf32>
    %281 = vector.broadcast %280 : vector<50x1xf32> to vector<50x50xf32>
    %282 = arith.mulf %277, %281 : vector<50x50xf32>
    %283 = vector.extract_strided_slice %214 {offsets = [0, 256], sizes = [50, 64], strides = [1, 1]} : vector<50x384xf32> to vector<50x64xf32>
    %284 = arith.truncf %282 : vector<50x50xf32> to vector<50x50xbf16>
    %285 = arith.truncf %283 : vector<50x64xf32> to vector<50x64xbf16>
    %cst_87 = arith.constant dense<0.000000e+00> : vector<50x64xf32>
    %286 = tpu.matmul %284, %285, %cst_87 {dimension_numbers = #tpu.dot_dimension_numbers<[1], [0], [0], [1], [0, 0, 1, 1], [], []>} : vector<50x50xbf16>, vector<50x64xbf16>, vector<50x64xf32> -> vector<50x64xf32>
    %287 = arith.addf %265, %286 : vector<50x64xf32>
    %288 = vector.extract_strided_slice %218 {offsets = [0, 48], sizes = [50, 16], strides = [1, 1]} : vector<50x64xf32> to vector<50x16xf32>
    %289 = arith.truncf %288 : vector<50x16xf32> to vector<50x16xbf16>
    %290 = vector.extract_strided_slice %222 {offsets = [0, 48], sizes = [50, 16], strides = [1, 1]} : vector<50x64xf32> to vector<50x16xf32>
    %291 = arith.truncf %290 : vector<50x16xf32> to vector<50x16xbf16>
    %cst_88 = arith.constant dense<0.000000e+00> : vector<50x50xf32>
    %292 = tpu.matmul %289, %291, %cst_88 {dimension_numbers = #tpu.dot_dimension_numbers<[1], [1], [0], [0], [0, 0, 1, 0], [], []>} : vector<50x16xbf16>, vector<50x16xbf16>, vector<50x50xf32> -> vector<50x50xf32>
    %cst_89 = arith.constant 2.500000e-01 : f32
    %293 = vector.broadcast %cst_89 : f32 to vector<50x50xf32>
    %294 = arith.mulf %292, %293 : vector<50x50xf32>
    %cst_90 = arith.constant dense<0xFF800000> : vector<50xf32>
    %295 = vector.multi_reduction <maximumf>, %294, %cst_90 [1] : vector<50x50xf32> to vector<50xf32>
    %296 = vector.shape_cast %295 : vector<50xf32> to vector<50x1xf32>
    %297 = vector.broadcast %296 : vector<50x1xf32> to vector<50x50xf32>
    %298 = arith.subf %294, %297 : vector<50x50xf32>
    %299 = math.exp %298 : vector<50x50xf32>
    %cst_91 = arith.constant dense<0.000000e+00> : vector<50xf32>
    %300 = vector.multi_reduction <add>, %299, %cst_91 [1] : vector<50x50xf32> to vector<50xf32>
    %301 = vector.shape_cast %300 : vector<50xf32> to vector<50x1xf32>
    %302 = tpu.reciprocal %301 {approx = true} : vector<50x1xf32> -> vector<50x1xf32>
    %303 = vector.broadcast %302 : vector<50x1xf32> to vector<50x50xf32>
    %304 = arith.mulf %299, %303 : vector<50x50xf32>
    %305 = vector.extract_strided_slice %214 {offsets = [0, 320], sizes = [50, 64], strides = [1, 1]} : vector<50x384xf32> to vector<50x64xf32>
    %306 = arith.truncf %304 : vector<50x50xf32> to vector<50x50xbf16>
    %307 = arith.truncf %305 : vector<50x64xf32> to vector<50x64xbf16>
    %cst_92 = arith.constant dense<0.000000e+00> : vector<50x64xf32>
    %308 = tpu.matmul %306, %307, %cst_92 {dimension_numbers = #tpu.dot_dimension_numbers<[1], [0], [0], [1], [0, 0, 1, 1], [], []>} : vector<50x50xbf16>, vector<50x64xbf16>, vector<50x64xf32> -> vector<50x64xf32>
    %309 = arith.addf %287, %308 : vector<50x64xf32>
    %310 = vector.extract_strided_slice %212 {offsets = [2, 0], sizes = [1, 64], strides = [1, 1]} : vector<9x256xf32> to vector<1x64xf32>
    %311 = vector.broadcast %310 : vector<1x64xf32> to vector<50x64xf32>
    %312 = arith.addf %309, %311 : vector<50x64xf32>
    %313 = arith.addf %208, %312 : vector<50x64xf32>
    %314 = vector.extract_strided_slice %212 {offsets = [3, 0], sizes = [1, 64], strides = [1, 1]} : vector<9x256xf32> to vector<1x64xf32>
    %315 = vector.extract_strided_slice %212 {offsets = [4, 0], sizes = [1, 64], strides = [1, 1]} : vector<9x256xf32> to vector<1x64xf32>
    %cst_93 = arith.constant dense<0.000000e+00> : vector<50xf32>
    %316 = vector.multi_reduction <add>, %313, %cst_93 [1] : vector<50x64xf32> to vector<50xf32>
    %317 = vector.shape_cast %316 : vector<50xf32> to vector<50x1xf32>
    %cst_94 = arith.constant 6.400000e+01 : f32
    %318 = vector.broadcast %cst_94 : f32 to vector<50x1xf32>
    %319 = arith.divf %317, %318 : vector<50x1xf32>
    %320 = vector.broadcast %319 : vector<50x1xf32> to vector<50x64xf32>
    %321 = arith.subf %313, %320 : vector<50x64xf32>
    %322 = arith.mulf %321, %321 : vector<50x64xf32>
    %cst_95 = arith.constant dense<0.000000e+00> : vector<50xf32>
    %323 = vector.multi_reduction <add>, %322, %cst_95 [1] : vector<50x64xf32> to vector<50xf32>
    %324 = vector.shape_cast %323 : vector<50xf32> to vector<50x1xf32>
    %cst_96 = arith.constant 6.400000e+01 : f32
    %325 = vector.broadcast %cst_96 : f32 to vector<50x1xf32>
    %326 = arith.divf %324, %325 : vector<50x1xf32>
    %cst_97 = arith.constant 9.99999974E-6 : f32
    %327 = vector.broadcast %cst_97 : f32 to vector<50x1xf32>
    %328 = arith.addf %326, %327 : vector<50x1xf32>
    %329 = math.rsqrt %328 : vector<50x1xf32>
    %330 = vector.broadcast %329 : vector<50x1xf32> to vector<50x64xf32>
    %331 = arith.mulf %321, %330 : vector<50x64xf32>
    %332 = vector.broadcast %314 : vector<1x64xf32> to vector<50x64xf32>
    %333 = arith.mulf %331, %332 : vector<50x64xf32>
    %334 = vector.broadcast %315 : vector<1x64xf32> to vector<50x64xf32>
    %335 = arith.addf %333, %334 : vector<50x64xf32>
    %336 = arith.truncf %335 : vector<50x64xf32> to vector<50x64xbf16>
    %c1_98 = arith.constant 1 : index
    %c0_99 = arith.constant 0 : index
    %c0_100 = arith.constant 0 : index
    %337 = vector.load %arg7[%c1_98, %c0_99, %c0_100] : memref<2x64x256xbf16, #tpu.memory_space<vmem>>, vector<1x64x256xbf16>
    %338 = vector.shape_cast %337 : vector<1x64x256xbf16> to vector<64x256xbf16>
    %cst_101 = arith.constant dense<0.000000e+00> : vector<50x256xf32>
    %339 = tpu.matmul %336, %338, %cst_101 {dimension_numbers = #tpu.dot_dimension_numbers<[1], [0], [0], [1], [0, 0, 1, 1], [], []>} : vector<50x64xbf16>, vector<64x256xbf16>, vector<50x256xf32> -> vector<50x256xf32>
    %340 = vector.extract_strided_slice %212 {offsets = [5, 0], sizes = [1, 256], strides = [1, 1]} : vector<9x256xf32> to vector<1x256xf32>
    %341 = vector.broadcast %340 : vector<1x256xf32> to vector<50x256xf32>
    %342 = arith.addf %339, %341 : vector<50x256xf32>
    %cst_102 = arith.constant 5.000000e-01 : f32
    %343 = vector.broadcast %cst_102 : f32 to vector<50x256xf32>
    %344 = arith.mulf %343, %342 : vector<50x256xf32>
    %cst_103 = arith.constant 4.471500e-02 : f32
    %345 = vector.broadcast %cst_103 : f32 to vector<50x256xf32>
    %346 = arith.mulf %345, %342 : vector<50x256xf32>
    %347 = arith.mulf %346, %342 : vector<50x256xf32>
    %348 = arith.mulf %347, %342 : vector<50x256xf32>
    %349 = arith.addf %342, %348 : vector<50x256xf32>
    %cst_104 = arith.constant 0.797884583 : f32
    %350 = vector.broadcast %cst_104 : f32 to vector<50x256xf32>
    %351 = arith.mulf %350, %349 : vector<50x256xf32>
    %352 = math.tanh %351 : vector<50x256xf32>
    %cst_105 = arith.constant 1.000000e+00 : f32
    %353 = vector.broadcast %cst_105 : f32 to vector<50x256xf32>
    %354 = arith.addf %353, %352 : vector<50x256xf32>
    %355 = arith.mulf %344, %354 : vector<50x256xf32>
    %356 = arith.truncf %355 : vector<50x256xf32> to vector<50x256xbf16>
    %c1_106 = arith.constant 1 : index
    %c0_107 = arith.constant 0 : index
    %c0_108 = arith.constant 0 : index
    %357 = vector.load %arg8[%c1_106, %c0_107, %c0_108] : memref<2x256x64xbf16, #tpu.memory_space<vmem>>, vector<1x256x64xbf16>
    %358 = vector.shape_cast %357 : vector<1x256x64xbf16> to vector<256x64xbf16>
    %cst_109 = arith.constant dense<0.000000e+00> : vector<50x64xf32>
    %359 = tpu.matmul %356, %358, %cst_109 {dimension_numbers = #tpu.dot_dimension_numbers<[1], [0], [0], [1], [0, 0, 1, 1], [], []>} : vector<50x256xbf16>, vector<256x64xbf16>, vector<50x64xf32> -> vector<50x64xf32>
    %360 = vector.extract_strided_slice %212 {offsets = [6, 0], sizes = [1, 64], strides = [1, 1]} : vector<9x256xf32> to vector<1x64xf32>
    %361 = vector.broadcast %360 : vector<1x64xf32> to vector<50x64xf32>
    %362 = arith.addf %359, %361 : vector<50x64xf32>
    %363 = arith.addf %335, %362 : vector<50x64xf32>
    %364 = vector.extract_strided_slice %212 {offsets = [7, 0], sizes = [1, 64], strides = [1, 1]} : vector<9x256xf32> to vector<1x64xf32>
    %365 = vector.extract_strided_slice %212 {offsets = [8, 0], sizes = [1, 64], strides = [1, 1]} : vector<9x256xf32> to vector<1x64xf32>
    %cst_110 = arith.constant dense<0.000000e+00> : vector<50xf32>
    %366 = vector.multi_reduction <add>, %363, %cst_110 [1] : vector<50x64xf32> to vector<50xf32>
    %367 = vector.shape_cast %366 : vector<50xf32> to vector<50x1xf32>
    %cst_111 = arith.constant 6.400000e+01 : f32
    %368 = vector.broadcast %cst_111 : f32 to vector<50x1xf32>
    %369 = arith.divf %367, %368 : vector<50x1xf32>
    %370 = vector.broadcast %369 : vector<50x1xf32> to vector<50x64xf32>
    %371 = arith.subf %363, %370 : vector<50x64xf32>
    %372 = arith.mulf %371, %371 : vector<50x64xf32>
    %cst_112 = arith.constant dense<0.000000e+00> : vector<50xf32>
    %373 = vector.multi_reduction <add>, %372, %cst_112 [1] : vector<50x64xf32> to vector<50xf32>
    %374 = vector.shape_cast %373 : vector<50xf32> to vector<50x1xf32>
    %cst_113 = arith.constant 6.400000e+01 : f32
    %375 = vector.broadcast %cst_113 : f32 to vector<50x1xf32>
    %376 = arith.divf %374, %375 : vector<50x1xf32>
    %cst_114 = arith.constant 9.99999974E-6 : f32
    %377 = vector.broadcast %cst_114 : f32 to vector<50x1xf32>
    %378 = arith.addf %376, %377 : vector<50x1xf32>
    %379 = math.rsqrt %378 : vector<50x1xf32>
    %380 = vector.broadcast %379 : vector<50x1xf32> to vector<50x64xf32>
    %381 = arith.mulf %371, %380 : vector<50x64xf32>
    %382 = vector.broadcast %364 : vector<1x64xf32> to vector<50x64xf32>
    %383 = arith.mulf %381, %382 : vector<50x64xf32>
    %384 = vector.broadcast %365 : vector<1x64xf32> to vector<50x64xf32>
    %385 = arith.addf %383, %384 : vector<50x64xf32>
    %c0_115 = arith.constant 0 : index
    %c0_116 = arith.constant 0 : index
    %386 = vector.load %arg10[%c0_115, %c0_116] : memref<4x64xf32, #tpu.memory_space<vmem>>, vector<1x64xf32>
    %c1_117 = arith.constant 1 : index
    %c0_118 = arith.constant 0 : index
    %387 = vector.load %arg10[%c1_117, %c0_118] : memref<4x64xf32, #tpu.memory_space<vmem>>, vector<1x64xf32>
    %cst_119 = arith.constant dense<0.000000e+00> : vector<50xf32>
    %388 = vector.multi_reduction <add>, %385, %cst_119 [1] : vector<50x64xf32> to vector<50xf32>
    %389 = vector.shape_cast %388 : vector<50xf32> to vector<50x1xf32>
    %cst_120 = arith.constant 6.400000e+01 : f32
    %390 = vector.broadcast %cst_120 : f32 to vector<50x1xf32>
    %391 = arith.divf %389, %390 : vector<50x1xf32>
    %392 = vector.broadcast %391 : vector<50x1xf32> to vector<50x64xf32>
    %393 = arith.subf %385, %392 : vector<50x64xf32>
    %394 = arith.mulf %393, %393 : vector<50x64xf32>
    %cst_121 = arith.constant dense<0.000000e+00> : vector<50xf32>
    %395 = vector.multi_reduction <add>, %394, %cst_121 [1] : vector<50x64xf32> to vector<50xf32>
    %396 = vector.shape_cast %395 : vector<50xf32> to vector<50x1xf32>
    %cst_122 = arith.constant 6.400000e+01 : f32
    %397 = vector.broadcast %cst_122 : f32 to vector<50x1xf32>
    %398 = arith.divf %396, %397 : vector<50x1xf32>
    %cst_123 = arith.constant 9.99999974E-6 : f32
    %399 = vector.broadcast %cst_123 : f32 to vector<50x1xf32>
    %400 = arith.addf %398, %399 : vector<50x1xf32>
    %401 = math.rsqrt %400 : vector<50x1xf32>
    %402 = vector.broadcast %401 : vector<50x1xf32> to vector<50x64xf32>
    %403 = arith.mulf %393, %402 : vector<50x64xf32>
    %404 = vector.broadcast %386 : vector<1x64xf32> to vector<50x64xf32>
    %405 = arith.mulf %403, %404 : vector<50x64xf32>
    %406 = vector.broadcast %387 : vector<1x64xf32> to vector<50x64xf32>
    %407 = arith.addf %405, %406 : vector<50x64xf32>
    %c2_124 = arith.constant 2 : index
    %c0_125 = arith.constant 0 : index
    %408 = vector.load %arg10[%c2_124, %c0_125] : memref<4x64xf32, #tpu.memory_space<vmem>>, vector<1x64xf32>
    %409 = arith.truncf %408 : vector<1x64xf32> to vector<1x64xbf16>
    %410 = arith.truncf %407 : vector<50x64xf32> to vector<50x64xbf16>
    %cst_126 = arith.constant dense<0.000000e+00> : vector<1x50xf32>
    %411 = tpu.matmul %409, %410, %cst_126 {dimension_numbers = #tpu.dot_dimension_numbers<[1], [1], [0], [0], [0, 0, 1, 0], [], []>} : vector<1x64xbf16>, vector<50x64xbf16>, vector<1x50xf32> -> vector<1x50xf32>
    %c3 = arith.constant 3 : index
    %c0_127 = arith.constant 0 : index
    %412 = vector.load %arg10[%c3, %c0_127] : memref<4x64xf32, #tpu.memory_space<vmem>>, vector<1x1xf32>
    %413 = vector.broadcast %412 : vector<1x1xf32> to vector<1x50xf32>
    %414 = arith.addf %411, %413 : vector<1x50xf32>
    %cst_128 = arith.constant 0.000000e+00 : f32
    %415 = vector.broadcast %cst_128 : f32 to vector<1x50xf32>
    %416 = arith.subf %415, %414 : vector<1x50xf32>
    %417 = math.exp %416 : vector<1x50xf32>
    %cst_129 = arith.constant 1.000000e+00 : f32
    %418 = vector.broadcast %cst_129 : f32 to vector<1x50xf32>
    %419 = arith.addf %418, %417 : vector<1x50xf32>
    %cst_130 = arith.constant 1.000000e+00 : f32
    %420 = vector.broadcast %cst_130 : f32 to vector<1x50xf32>
    %421 = arith.divf %420, %419 : vector<1x50xf32>
    %c0_131 = arith.constant 0 : index
    %c0_132 = arith.constant 0 : index
    %c0_133 = arith.constant 0 : index
    %422 = vector.load %arg11[%c0_131, %c0_132, %c0_133] : memref<1x1x50xf32, #tpu.memory_space<vmem>>, vector<1x1x50xf32>
    %423 = vector.shape_cast %422 : vector<1x1x50xf32> to vector<1x50xf32>
    %424 = vector.shape_cast %421 : vector<1x50xf32> to vector<1x1x50xf32>
    tpu.vector_store %arg11[%c0_131, %c0_132, %c0_133], %424 {strides = array<i32>} : memref<1x1x50xf32, #tpu.memory_space<vmem>>, vector<1x1x50xf32>,
    return
  }
  func.func @transform_0(%arg0: i32) -> (i32, i32, i32) {
    %c0_i32 = arith.constant 0 : i32
    %c0_i32_0 = arith.constant 0 : i32
    %c0_i32_1 = arith.constant 0 : i32
    return %arg0, %c0_i32, %c0_i32_0 : i32, i32, i32
  }
  func.func @transform_1(%arg0: i32) -> (i32, i32) {
    %c0_i32 = arith.constant 0 : i32
    %c0_i32_0 = arith.constant 0 : i32
    %c0_i32_1 = arith.constant 0 : i32
    return %c0_i32, %c0_i32_0 : i32, i32
  }
  func.func @transform_2(%arg0: i32) -> (i32, i32) {
    %c0_i32 = arith.constant 0 : i32
    %c0_i32_0 = arith.constant 0 : i32
    %c0_i32_1 = arith.constant 0 : i32
    return %c0_i32, %c0_i32_0 : i32, i32
  }
  func.func @transform_3(%arg0: i32) -> (i32, i32) {
    %c0_i32 = arith.constant 0 : i32
    %c0_i32_0 = arith.constant 0 : i32
    %c0_i32_1 = arith.constant 0 : i32
    return %c0_i32, %c0_i32_0 : i32, i32
  }
  func.func @transform_4(%arg0: i32) -> (i32, i32) {
    %c0_i32 = arith.constant 0 : i32
    %c0_i32_0 = arith.constant 0 : i32
    %c0_i32_1 = arith.constant 0 : i32
    return %c0_i32, %c0_i32_0 : i32, i32
  }
  func.func @transform_5(%arg0: i32) -> (i32, i32, i32) {
    %c0_i32 = arith.constant 0 : i32
    %c0_i32_0 = arith.constant 0 : i32
    %c0_i32_1 = arith.constant 0 : i32
    %c0_i32_2 = arith.constant 0 : i32
    return %c0_i32, %c0_i32_0, %c0_i32_1 : i32, i32, i32
  }
  func.func @transform_6(%arg0: i32) -> (i32, i32, i32) {
    %c0_i32 = arith.constant 0 : i32
    %c0_i32_0 = arith.constant 0 : i32
    %c0_i32_1 = arith.constant 0 : i32
    %c0_i32_2 = arith.constant 0 : i32
    return %c0_i32, %c0_i32_0, %c0_i32_1 : i32, i32, i32
  }
  func.func @transform_7(%arg0: i32) -> (i32, i32, i32) {
    %c0_i32 = arith.constant 0 : i32
    %c0_i32_0 = arith.constant 0 : i32
    %c0_i32_1 = arith.constant 0 : i32
    %c0_i32_2 = arith.constant 0 : i32
    return %c0_i32, %c0_i32_0, %c0_i32_1 : i32, i32, i32
  }
  func.func @transform_8(%arg0: i32) -> (i32, i32, i32) {
    %c0_i32 = arith.constant 0 : i32
    %c0_i32_0 = arith.constant 0 : i32
    %c0_i32_1 = arith.constant 0 : i32
    %c0_i32_2 = arith.constant 0 : i32
    return %c0_i32, %c0_i32_0, %c0_i32_1 : i32, i32, i32
  }
  func.func @transform_9(%arg0: i32) -> (i32, i32) {
    %c0_i32 = arith.constant 0 : i32
    %c0_i32_0 = arith.constant 0 : i32
    %c0_i32_1 = arith.constant 0 : i32
    return %c0_i32, %c0_i32_0 : i32, i32
  }
  func.func @transform_10(%arg0: i32) -> (i32, i32, i32) {
    %c0_i32 = arith.constant 0 : i32
    %c0_i32_0 = arith.constant 0 : i32
    %c0_i32_1 = arith.constant 0 : i32
    return %arg0, %c0_i32, %c0_i32_0 : i32, i32, i32
  }
}

</mosaic_0001>

<llo_original>
// kernel: ecog_hubert_classifier_forward.2
$region0: #{ecog_hubert_classifier_forward.2}
  #allocation0 [shape = 'u32[]', space=smem, size = 0x4, offset = 0x4, fixed_abs, tag = 'smem constant byte address 0x4 - core index']
  #allocation1 [shape = 'u32[144,128]{1,0:T(1,128)}', space=vmem, size = 0x12000, scoped, tag = 'internal scratch']
  %s0 = inlined_call_operand.vmem [shape: f32[2,100,44], index: 0, kind: input, shape index: {}]
  %s1 = inlined_call_operand.hbm [shape: bf16[44,96], index: 1, kind: input, shape index: {}]
  %s2 = inlined_call_operand.hbm [shape: f32[3,96], index: 2, kind: input, shape index: {}]
  %s3 = inlined_call_operand.vmem [shape: f32[2,100,96], index: 3, kind: output, shape index: {}]
  %s4 = sld [smem:[#allocation0]]
  $region53: #{ecog_hubert_classifier_forward.2} parent=0
    _
  %s6 = ssub.s32 1, %s4
  %s7 = scalar_select 0, %s6, %s4
  $region1: #{ecog_hubert_classifier_forward.2} parent=0
    #allocation2 [shape = 'u8[12288]{0}', space=vmem, size = 0x3000, scoped, tag = 'input window, operand 1, single buffered']
    #allocation3 [shape = 's32[2]{0}', space=sflag, size = 0x8, scoped, tag = 'scoped memory for ecog_hubert_classifier_forward.2']
    #allocation4 [shape = 'u8[2048]{0}', space=vmem, size = 0x800, scoped, tag = 'input window, operand 2, single buffered']
    #allocation5 [shape = 's32[1]{0}', space=sflag, size = 0x4, scoped, tag = 'scoped memory for ecog_hubert_classifier_forward.2']
    %8 = vsyncpa [#allocation3], 0
    %9 = vsyncpa [#allocation5], 0
    loop: start=0, step=1, limit=4
    $region2: #{ecog_hubert_classifier_forward.2} parent=1 // loop_pre_header
      _
    $region3: #{ecog_hubert_classifier_forward.2} parent=1 // loop_header
      %s11 = sphi 0, %s15
      %p12 = scmp.ge.s32.totalorder %s11, 4
      %s21 = sphi 0, %s23
      %s24 = sphi 0, %s21
      %s25 = sphi 0, %s24
      %s41 = sphi 0, %s25
      %s45 = sphi 0, %s45
      %s47 = sphi 0, %s45
      %s48 = sphi 0, %s47
      %s62 = sphi 0, %s48
      %s66 = sphi 0, %s66
      %s68 = sphi 0, %s66
      %s69 = sphi 0, %s68
      %s83 = sphi 0, %s69
      %s89 = sphi 0, %s91
      %s92 = sphi 0, %s89
      %s93 = sphi 0, %s92
      %s109 = sphi 0, %s93
    $region4: #{ecog_hubert_classifier_forward.2} parent=1 // loop_header_branch
      %14 = sbr.rel (%p12) target = $region8
    $region5: #{ecog_hubert_classifier_forward.2} parent=1 // loop_body
      %s16 = ssub.s32 %s11, 1
      %s17 = ssub.s32 %s11, 2
      %s18 = sadd.s32 %s11, 1
      %s19 = ssub.s32 %s11, %s18
      %p20 = scmp.eq.s32.totalorder %s19, 0
      %s22 = sadd.s32 %s21, 1
      %s23 = scalar_select %p20, %s21, %s22
      %p26 = pneg %p20
      %p27 = scmp.eq.s32.totalorder %s11, 1
      %p28 = por %p26, %p27
      %p29 = scmp.ne.s32.totalorder %s21, %s24
      %p30 = scmp.eq.s32.totalorder %s11, 0
      %p31 = por %p29, %p30
      %p32 = scmp.ne.s32.totalorder %s21, %s24
      %p33 = scmp.eq.s32.totalorder %s16, 1
      %p34 = por %p32, %p33
      %p35 = scmp.ne.s32.totalorder %s24, %s25
      %p36 = scmp.eq.s32.totalorder %s16, 0
      %p37 = por %p35, %p36
      %p38 = scmp.ne.s32.totalorder %s24, %s25
      %p39 = scmp.eq.s32.totalorder %s17, 1
      %p40 = por %p38, %p39
      %p42 = scmp.ne.s32.totalorder %s25, %s41
      %p43 = scmp.eq.s32.totalorder %s17, 0
      %p44 = por %p42, %p43
      %s46 = sadd.s32 %s45, 1
      %p49 = scmp.eq.s32.totalorder %s11, 1
      %p50 = scmp.ne.s32.totalorder %s45, %s47
      %p51 = scmp.eq.s32.totalorder %s11, 0
      %p52 = por %p50, %p51
      %p53 = scmp.ne.s32.totalorder %s45, %s47
      %p54 = scmp.eq.s32.totalorder %s16, 1
      %p55 = por %p53, %p54
      %p56 = scmp.ne.s32.totalorder %s47, %s48
      %p57 = scmp.eq.s32.totalorder %s16, 0
      %p58 = por %p56, %p57
      %p59 = scmp.ne.s32.totalorder %s47, %s48
      %p60 = scmp.eq.s32.totalorder %s17, 1
      %p61 = por %p59, %p60
      %p63 = scmp.ne.s32.totalorder %s48, %s62
      %p64 = scmp.eq.s32.totalorder %s17, 0
      %p65 = por %p63, %p64
      %s67 = sadd.s32 %s66, 1
      %p70 = scmp.eq.s32.totalorder %s11, 1
      %p71 = scmp.ne.s32.totalorder %s66, %s68
      %p72 = scmp.eq.s32.totalorder %s11, 0
      %p73 = por %p71, %p72
      %p74 = scmp.ne.s32.totalorder %s66, %s68
      %p75 = scmp.eq.s32.totalorder %s16, 1
      %p76 = por %p74, %p75
      %p77 = scmp.ne.s32.totalorder %s68, %s69
      %p78 = scmp.eq.s32.totalorder %s16, 0
      %p79 = por %p77, %p78
      %p80 = scmp.ne.s32.totalorder %s68, %s69
      %p81 = scmp.eq.s32.totalorder %s17, 1
      %p82 = por %p80, %p81
      %p84 = scmp.ne.s32.totalorder %s69, %s83
      %p85 = scmp.eq.s32.totalorder %s17, 0
      %p86 = por %p84, %p85
      %s87 = ssub.s32 %s11, %s18
      %p88 = scmp.eq.s32.totalorder %s87, 0
      %s90 = sadd.s32 %s89, 1
      %s91 = scalar_select %p88, %s89, %s90
      %p94 = pneg %p88
      %p95 = scmp.eq.s32.totalorder %s11, 1
      %p96 = por %p94, %p95
      %p97 = scmp.ne.s32.totalorder %s89, %s92
      %p98 = scmp.eq.s32.totalorder %s11, 0
      %p99 = por %p97, %p98
      %p100 = scmp.ne.s32.totalorder %s89, %s92
      %p101 = scmp.eq.s32.totalorder %s16, 1
      %p102 = por %p100, %p101
      %p103 = scmp.ne.s32.totalorder %s92, %s93
      %p104 = scmp.eq.s32.totalorder %s16, 0
      %p105 = por %p103, %p104
      %p106 = scmp.ne.s32.totalorder %s92, %s93
      %p107 = scmp.eq.s32.totalorder %s17, 1
      %p108 = por %p106, %p107
      %p110 = scmp.ne.s32.totalorder %s93, %s109
      %p111 = scmp.eq.s32.totalorder %s17, 0
      %p112 = por %p110, %p111
      %p113 = scmp.le.s32.totalorder 1, %s11
      %p114 = scmp.lt.s32.totalorder %s11, 3
      %p115 = pnand %p113, %p114
      %p116 = pneg %p115
      // Predicated region
      $region9: #{ecog_hubert_classifier_forward.2} parent=5 // pred_check
        _
      $region10: #{ecog_hubert_classifier_forward.2} parent=5 // pred_check_branch
        %118 = sbr.rel (%p115) target = $region12
      $region11: #{ecog_hubert_classifier_forward.2} parent=5 // pred_region
        %s119 = ssub.s32 %s11, 1
        // Predicated region
        $region13: #{ecog_hubert_classifier_forward.2} parent=11 // pred_check
          %p120 = pneg %p58
        $region14: #{ecog_hubert_classifier_forward.2} parent=11 // pred_check_branch
          %122 = sbr.rel (%p120) target = $region16
        $region15: #{ecog_hubert_classifier_forward.2} parent=11 // pred_region
          %s124 = ssub.s32 384, 384
          %125 = vsyncadd [#allocation3], %s124
          %s126 = sshll.u32 [#allocation2], 4
          %s127 = int_to_ptr.vmem [resolvable:$true] %s126
          %132 = dma.hbm_to_vmem [thread:$0]  %s1, 384, %s127, [#allocation3], 64, 64, 4
        $region16: #{ecog_hubert_classifier_forward.2} parent=11 // pred_fallthru
          _
        // Predicated region
        $region17: #{ecog_hubert_classifier_forward.2} parent=11 // pred_check
          %p133 = pneg %p79
        $region18: #{ecog_hubert_classifier_forward.2} parent=11 // pred_check_branch
          %135 = sbr.rel (%p133) target = $region20
        $region19: #{ecog_hubert_classifier_forward.2} parent=11 // pred_region
          %s137 = ssub.s32 64, 64
          %138 = vsyncadd [#allocation5], %s137
          %s140 = sshll.u32 [#allocation4], 4
          %s141 = int_to_ptr.vmem [resolvable:$true] %s140
          %143 = dma.hbm_to_vmem [thread:$0]  %s2, 64, %s141, [#allocation5]
        $region20: #{ecog_hubert_classifier_forward.2} parent=11 // pred_fallthru
          _
      $region12: #{ecog_hubert_classifier_forward.2} parent=5 // pred_fallthru
        _
      %p144 = scmp.lt.s32.totalorder %s11, 2
      // Predicated region
      $region21: #{ecog_hubert_classifier_forward.2} parent=5 // pred_check
        %p145 = pneg %p144
      $region22: #{ecog_hubert_classifier_forward.2} parent=5 // pred_check_branch
        %147 = sbr.rel (%p145) target = $region24
      $region23: #{ecog_hubert_classifier_forward.2} parent=5 // pred_region
        // Predicated region
        $region25: #{ecog_hubert_classifier_forward.2} parent=23 // pred_check
          %p148 = pneg %p31
        $region26: #{ecog_hubert_classifier_forward.2} parent=23 // pred_check_branch
          %150 = sbr.rel (%p148) target = $region28
        $region27: #{ecog_hubert_classifier_forward.2} parent=23 // pred_region
          %p151 = scmp.lt.s32.totalorder %s11, 1
          %s152 = scalar_select %p151, %s11, 1
          %s153 = smul.addr %s152, 13
          %s154 = smul.addr %s153, 8
          %s155 = scalar_lea.vmem %s0, %s154
        $region28: #{ecog_hubert_classifier_forward.2} parent=23 // pred_fallthru
          _
      $region24: #{ecog_hubert_classifier_forward.2} parent=5 // pred_fallthru
        _
      %p156 = scmp.le.s32.totalorder 1, %s11
      %p157 = scmp.lt.s32.totalorder %s11, 3
      %p158 = pnand %p156, %p157
      %p159 = pneg %p158
      // Predicated region
      $region29: #{ecog_hubert_classifier_forward.2} parent=5 // pred_check
        _
      $region30: #{ecog_hubert_classifier_forward.2} parent=5 // pred_check_branch
        %161 = sbr.rel (%p158) target = $region32
      $region31: #{ecog_hubert_classifier_forward.2} parent=5 // pred_region
        %s162 = ssub.s32 %s11, 1
        // Predicated region
        $region33: #{ecog_hubert_classifier_forward.2} parent=31 // pred_check
          %p163 = pneg %p58
        $region34: #{ecog_hubert_classifier_forward.2} parent=31 // pred_check_branch
          %165 = sbr.rel (%p163) target = $region36
        $region35: #{ecog_hubert_classifier_forward.2} parent=31 // pred_region
          %166 = dma.done [#allocation3], 384
        $region36: #{ecog_hubert_classifier_forward.2} parent=31 // pred_fallthru
          _
        // Predicated region
        $region37: #{ecog_hubert_classifier_forward.2} parent=31 // pred_check
          %p167 = pneg %p79
        $region38: #{ecog_hubert_classifier_forward.2} parent=31 // pred_check_branch
          %169 = sbr.rel (%p167) target = $region40
        $region39: #{ecog_hubert_classifier_forward.2} parent=31 // pred_region
          %170 = dma.done [#allocation5], 64
        $region40: #{ecog_hubert_classifier_forward.2} parent=31 // pred_fallthru
          _
        %p171 = scmp.lt.s32.totalorder %s16, 1
        %s172 = scalar_select %p171, %s16, 1
        %s173 = smul.addr %s172, 13
        %s174 = smul.addr %s173, 8
        %s175 = scalar_lea.vmem %s0, %s174
        %p176 = pneg %p37
        %p177 = pneg %p34
        %p178 = pneg %p58
        %p179 = pneg %p55
        %p180 = pneg %p79
        %p181 = pneg %p76
        %p182 = pneg %p105
        %p183 = pneg %p102
        %p184 = scmp.lt.s32.totalorder %s16, 1
        %s185 = scalar_select %p184, %s16, 1
        %s186 = smul.addr %s185, 13
        %s187 = smul.addr %s186, 8
        %s188 = scalar_lea.vmem %s3, %s187
        %p189 = scmp.lt.s32.totalorder %s16, 1
        %s190 = scalar_select %p189, %s16, 1
        %s191 = smul.addr %s190, 13
        %s192 = smul.addr %s191, 8
        %s193 = scalar_lea.vmem %s0, %s192
        %p194 = scmp.lt.s32.totalorder %s16, 1
        %s195 = scalar_select %p194, %s16, 1
        %s196 = smul.addr %s195, 13
        %s197 = smul.addr %s196, 8
        %s198 = scalar_lea.vmem %s3, %s197
        %v200 = vld [vmem:[%s193] sm:$0xff]
        %v201 = vld [vmem:[%s193 + $0x8] sm:$0xff]
        %v202 = vld [vmem:[%s193 + $0x10] sm:$0xff]
        %v203 = vld [vmem:[%s193 + $0x18] sm:$0xff]
        %v204 = vld [vmem:[%s193 + $0x20] sm:$0xff]
        %v205 = vld [vmem:[%s193 + $0x28] sm:$0xff]
        %v206 = vld [vmem:[%s193 + $0x30] sm:$0xff]
        %v207 = vld [vmem:[%s193 + $0x38] sm:$0xff]
        %v208 = vld [vmem:[%s193 + $0x40] sm:$0xff]
        %v209 = vld [vmem:[%s193 + $0x48] sm:$0xff]
        %v210 = vld [vmem:[%s193 + $0x50] sm:$0xff]
        %v211 = vld [vmem:[%s193 + $0x58] sm:$0xff]
        %v212 = vld [vmem:[%s193 + $0x60] sm:$0xf]
        %v213 = vpack.c.bf16 %v201, %v200
        %v214 = vpack.c.bf16 %v203, %v202
        %v215 = vpack.c.bf16 %v205, %v204
        %v216 = vpack.c.bf16 %v207, %v206
        %v217 = vpack.c.bf16 %v209, %v208
        %v218 = vpack.c.bf16 %v211, %v210
        %v219 = vpack.c.bf16 %v212, %v212
        %v220 = vld [vmem:[#allocation2] sm:$0xf]
        %v221 = vld [vmem:[#allocation2 + $0x4] sm:$0xf]
        %v222 = vld [vmem:[#allocation2 + $0x8] sm:$0xf]
        %v223 = vld [vmem:[#allocation2 + $0xc] sm:$0xf]
        %v224 = vld [vmem:[#allocation2 + $0x10] sm:$0xf]
        %v225 = vld [vmem:[#allocation2 + $0x14] sm:$0x3]
        %v226 = vld [vmem:[#allocation4] sm:$0x1]
        %v227 = vlaneseq
        %v228 = vshrl.u32 %v227, 7
        %v229 = vsub.s32 0, %v228
        %v230 = vrot.slane %v226, %v229
        %v237 = vunpack.c.l.b16 %v220
        %v238 = vunpack.c.l.b16 %v221
        %v239 = vunpack.c.l.b16 %v222
        %v240 = vunpack.c.l.b16 %v223
        %v241 = vunpack.c.l.b16 %v224
        %v242 = vunpack.c.l.b16 %v225
        %v243 = vpack.c.b16 %v238, %v237
        %v244 = vpack.c.b16 %v240, %v239
        %v245 = vpack.c.b16 %v242, %v241
        %vm248 = vcmask 359424
        %v250 = vsel %vm248, %v213, 0
        %v253 = vsel %vm248, %v214, 0
        %v256 = vsel %vm248, %v215, 0
        %v259 = vsel %vm248, %v216, 0
        %v262 = vsel %vm248, %v217, 0
        %v265 = vsel %vm248, %v218, 0
        %v268 = vsel %vm248, %v219, 0
        %vm270 = vcmask 1045504
        %v272 = vsel %vm270, %v245, 0
        %274 = vmatprep.subr.bf16.mxu0 0
        %275 = vmatpush1.bf16.msra.mxu0 %v243
        %276 = vmatprep.subr.bf16.mxu0 0
        %277 = vmatpush1.bf16.msra.mxu0 %v244
        %278 = vmatprep.subr.bf16.mxu0 0
        %279 = vmatpush1.bf16.msra.mxu0 %v272
        %280 = vmatprep.subr.bf16.mxu0 0
        %281 = vmatpush1.bf16.msra.mxu0 0
        %282 = vmatprep.subr.bf16.mxu0 0
        %283 = vmatpush1.bf16.msra.mxu0 0
        %284 = vmatprep.subr.bf16.mxu0 0
        %285 = vmatpush1.bf16.msra.mxu0 0
        %286 = vmatprep.subr.bf16.mxu0 0
        %287 = vmatpush1.bf16.msra.mxu0 0
        %288 = vmatprep.subr.bf16.mxu0 0
        %289 = vmatpush1.bf16.msra.mxu0 0
        %290 = vmatprep.subr.bf16.mxu0 0
        %291 = vmatpush1.bf16.msra.mxu0 0
        %292 = vmatprep.subr.bf16.mxu0 0
        %293 = vmatpush1.bf16.msra.mxu0 0
        %294 = vmatprep.subr.bf16.mxu0 0
        %295 = vmatpush1.bf16.msra.mxu0 0
        %296 = vmatprep.subr.bf16.mxu0 0
        %297 = vmatpush1.bf16.msra.mxu0 0
        %298 = vmatprep.subr.bf16.mxu0 0
        %299 = vmatpush1.bf16.msra.mxu0 0
        %300 = vmatprep.subr.bf16.mxu0 0
        %301 = vmatpush1.bf16.msra.mxu0 0
        %302 = vmatprep.subr.bf16.mxu0 0
        %303 = vmatpush1.bf16.msra.mxu0 0
        %304 = vmatprep.subr.bf16.mxu0 0
        %305 = vmatpush1.bf16.msra.mxu0 0
        %306 = vmatprep.mubr.bf16.mxu0 0
        %307 = vmatmul.mubr.bf16.gmra.mrb[0].mxu0 %v250
        %v308 = vpop.f32.mrb[0].mxu0
        %v309 = vadd.f32 %v230, %v308
        %v310 = vpop.f32.mrb[0].mxu0
        %v311 = vpop.f32.mrb[0].mxu0
        %v312 = vadd.f32 %v230, %v311
        %v313 = vpop.f32.mrb[0].mxu0
        %314 = vmatprep.mubr.bf16.mxu0 0
        %315 = vmatmul.mubr.bf16.gmra.mrb[0].mxu0 %v253
        %v316 = vpop.f32.mrb[0].mxu0
        %v317 = vadd.f32 %v230, %v316
        %v318 = vpop.f32.mrb[0].mxu0
        %v319 = vpop.f32.mrb[0].mxu0
        %v320 = vadd.f32 %v230, %v319
        %v321 = vpop.f32.mrb[0].mxu0
        %322 = vmatprep.mubr.bf16.mxu0 0
        %323 = vmatmul.mubr.bf16.gmra.mrb[0].mxu0 %v256
        %v324 = vpop.f32.mrb[0].mxu0
        %v325 = vadd.f32 %v230, %v324
        %v326 = vpop.f32.mrb[0].mxu0
        %v327 = vpop.f32.mrb[0].mxu0
        %v328 = vadd.f32 %v230, %v327
        %v329 = vpop.f32.mrb[0].mxu0
        %330 = vmatprep.mubr.bf16.mxu0 0
        %331 = vmatmul.mubr.bf16.gmra.mrb[0].mxu0 %v259
        %v332 = vpop.f32.mrb[0].mxu0
        %v333 = vadd.f32 %v230, %v332
        %v334 = vpop.f32.mrb[0].mxu0
        %v335 = vpop.f32.mrb[0].mxu0
        %v336 = vadd.f32 %v230, %v335
        %v337 = vpop.f32.mrb[0].mxu0
        %338 = vmatprep.mubr.bf16.mxu0 0
        %339 = vmatmul.mubr.bf16.gmra.mrb[0].mxu0 %v262
        %v340 = vpop.f32.mrb[0].mxu0
        %v341 = vadd.f32 %v230, %v340
        %v342 = vpop.f32.mrb[0].mxu0
        %v343 = vpop.f32.mrb[0].mxu0
        %v344 = vadd.f32 %v230, %v343
        %v345 = vpop.f32.mrb[0].mxu0
        %346 = vmatprep.mubr.bf16.mxu0 0
        %347 = vmatmul.mubr.bf16.gmra.mrb[0].mxu0 %v265
        %v348 = vpop.f32.mrb[0].mxu0
        %v349 = vadd.f32 %v230, %v348
        %v350 = vpop.f32.mrb[0].mxu0
        %v351 = vpop.f32.mrb[0].mxu0
        %v352 = vadd.f32 %v230, %v351
        %v353 = vpop.f32.mrb[0].mxu0
        %354 = vmatprep.mubr.bf16.mxu0 0
        %355 = vmatmul.mubr.bf16.gmra.mrb[0].mxu0 %v268
        %v356 = vpop.f32.mrb[0].mxu0
        %v357 = vadd.f32 %v230, %v356
        %v358 = vpop.f32.mrb[0].mxu0
        %v359 = vpop.f32.mrb[0].mxu0
        %v360 = vpop.f32.mrb[0].mxu0
        %361 = vdwg.mxu0
        %v362 = vmul.f32 %v309, 0.5
        %v363 = vmul.f32 %v312, 0.5
        %v364 = vmul.f32 %v317, 0.5
        %v365 = vmul.f32 %v320, 0.5
        %v366 = vmul.f32 %v325, 0.5
        %v367 = vmul.f32 %v328, 0.5
        %v368 = vmul.f32 %v333, 0.5
        %v369 = vmul.f32 %v336, 0.5
        %v370 = vmul.f32 %v341, 0.5
        %v371 = vmul.f32 %v344, 0.5
        %v372 = vmul.f32 %v349, 0.5
        %v373 = vmul.f32 %v352, 0.5
        %v374 = vmul.f32 %v357, 0.5
        %v375 = vmul.f32 %v309, 0.044715
        %v376 = vmul.f32 %v312, 0.044715
        %v377 = vmul.f32 %v317, 0.044715
        %v378 = vmul.f32 %v320, 0.044715
        %v379 = vmul.f32 %v325, 0.044715
        %v380 = vmul.f32 %v328, 0.044715
        %v381 = vmul.f32 %v333, 0.044715
        %v382 = vmul.f32 %v336, 0.044715
        %v383 = vmul.f32 %v341, 0.044715
        %v384 = vmul.f32 %v344, 0.044715
        %v385 = vmul.f32 %v349, 0.044715
        %v386 = vmul.f32 %v352, 0.044715
        %v387 = vmul.f32 %v357, 0.044715
        %v388 = vmul.f32 %v375, %v309
        %v389 = vmul.f32 %v376, %v312
        %v390 = vmul.f32 %v377, %v317
        %v391 = vmul.f32 %v378, %v320
        %v392 = vmul.f32 %v379, %v325
        %v393 = vmul.f32 %v380, %v328
        %v394 = vmul.f32 %v381, %v333
        %v395 = vmul.f32 %v382, %v336
        %v396 = vmul.f32 %v383, %v341
        %v397 = vmul.f32 %v384, %v344
        %v398 = vmul.f32 %v385, %v349
        %v399 = vmul.f32 %v386, %v352
        %v400 = vmul.f32 %v387, %v357
        %v401 = vmul.f32 %v388, %v309
        %v402 = vmul.f32 %v389, %v312
        %v403 = vmul.f32 %v390, %v317
        %v404 = vmul.f32 %v391, %v320
        %v405 = vmul.f32 %v392, %v325
        %v406 = vmul.f32 %v393, %v328
        %v407 = vmul.f32 %v394, %v333
        %v408 = vmul.f32 %v395, %v336
        %v409 = vmul.f32 %v396, %v341
        %v410 = vmul.f32 %v397, %v344
        %v411 = vmul.f32 %v398, %v349
        %v412 = vmul.f32 %v399, %v352
        %v413 = vmul.f32 %v400, %v357
        %v414 = vadd.f32 %v309, %v401
        %v415 = vadd.f32 %v312, %v402
        %v416 = vadd.f32 %v317, %v403
        %v417 = vadd.f32 %v320, %v404
        %v418 = vadd.f32 %v325, %v405
        %v419 = vadd.f32 %v328, %v406
        %v420 = vadd.f32 %v333, %v407
        %v421 = vadd.f32 %v336, %v408
        %v422 = vadd.f32 %v341, %v409
        %v423 = vadd.f32 %v344, %v410
        %v424 = vadd.f32 %v349, %v411
        %v425 = vadd.f32 %v352, %v412
        %v426 = vadd.f32 %v357, %v413
        %v427 = vmul.f32 %v414, 0.7978846
        %v428 = vmul.f32 %v415, 0.7978846
        %v429 = vmul.f32 %v416, 0.7978846
        %v430 = vmul.f32 %v417, 0.7978846
        %v431 = vmul.f32 %v418, 0.7978846
        %v432 = vmul.f32 %v419, 0.7978846
        %v433 = vmul.f32 %v420, 0.7978846
        %v434 = vmul.f32 %v421, 0.7978846
        %v435 = vmul.f32 %v422, 0.7978846
        %v436 = vmul.f32 %v423, 0.7978846
        %v437 = vmul.f32 %v424, 0.7978846
        %v438 = vmul.f32 %v425, 0.7978846
        %v439 = vmul.f32 %v426, 0.7978846
        %v440 = vtanh.pop %v427
        %v441 = vtanh.pop %v428
        %v442 = vtanh.pop %v429
        %v443 = vtanh.pop %v430
        %v444 = vtanh.pop %v431
        %v445 = vtanh.pop %v432
        %v446 = vtanh.pop %v433
        %v447 = vtanh.pop %v434
        %v448 = vtanh.pop %v435
        %v449 = vtanh.pop %v436
        %v450 = vtanh.pop %v437
        %v451 = vtanh.pop %v438
        %v452 = vtanh.pop %v439
        %v453 = vadd.f32 %v440, 1.0
        %v454 = vadd.f32 %v441, 1.0
        %v455 = vadd.f32 %v442, 1.0
        %v456 = vadd.f32 %v443, 1.0
        %v457 = vadd.f32 %v444, 1.0
        %v458 = vadd.f32 %v445, 1.0
        %v459 = vadd.f32 %v446, 1.0
        %v460 = vadd.f32 %v447, 1.0
        %v461 = vadd.f32 %v448, 1.0
        %v462 = vadd.f32 %v449, 1.0
        %v463 = vadd.f32 %v450, 1.0
        %v464 = vadd.f32 %v451, 1.0
        %v465 = vadd.f32 %v452, 1.0
        %v466 = vmul.f32 %v362, %v453
        %v467 = vmul.f32 %v363, %v454
        %v468 = vmul.f32 %v364, %v455
        %v469 = vmul.f32 %v365, %v456
        %v470 = vmul.f32 %v366, %v457
        %v471 = vmul.f32 %v367, %v458
        %v472 = vmul.f32 %v368, %v459
        %v473 = vmul.f32 %v369, %v460
        %v474 = vmul.f32 %v370, %v461
        %v475 = vmul.f32 %v371, %v462
        %v476 = vmul.f32 %v372, %v463
        %v477 = vmul.f32 %v373, %v464
        %v478 = vmul.f32 %v374, %v465
        %v479 = vld [vmem:[#allocation4 + $0x1] sm:$0x1]
        %v480 = vlaneseq
        %v481 = vshrl.u32 %v480, 7
        %v482 = vsub.s32 0, %v481
        %v483 = vrot.slane %v479, %v482
        %v484 = vmul.f32 %v466, %v483
        %v485 = vmul.f32 %v467, %v483
        %v486 = vmul.f32 %v468, %v483
        %v487 = vmul.f32 %v469, %v483
        %v488 = vmul.f32 %v470, %v483
        %v489 = vmul.f32 %v471, %v483
        %v490 = vmul.f32 %v472, %v483
        %v491 = vmul.f32 %v473, %v483
        %v492 = vmul.f32 %v474, %v483
        %v493 = vmul.f32 %v475, %v483
        %v494 = vmul.f32 %v476, %v483
        %v495 = vmul.f32 %v477, %v483
        %v496 = vmul.f32 %v478, %v483
        %v497 = vld [vmem:[#allocation4 + $0x2] sm:$0x1]
        %v498 = vlaneseq
        %v499 = vshrl.u32 %v498, 7
        %v500 = vsub.s32 0, %v499
        %v501 = vrot.slane %v497, %v500
        %v502 = vadd.f32 %v484, %v501
        %v503 = vadd.f32 %v485, %v501
        %v504 = vadd.f32 %v486, %v501
        %v505 = vadd.f32 %v487, %v501
        %v506 = vadd.f32 %v488, %v501
        %v507 = vadd.f32 %v489, %v501
        %v508 = vadd.f32 %v490, %v501
        %v509 = vadd.f32 %v491, %v501
        %v510 = vadd.f32 %v492, %v501
        %v511 = vadd.f32 %v493, %v501
        %v512 = vadd.f32 %v494, %v501
        %v513 = vadd.f32 %v495, %v501
        %v514 = vadd.f32 %v496, %v501
        %vm515 = vcmask 785408
        %516 = vst.msk [vmem:[%s198] sm:$0xff] %vm515, %v502
        %517 = vst.msk [vmem:[%s198 + $0x8] sm:$0xff] %vm515, %v503
        %518 = vst.msk [vmem:[%s198 + $0x10] sm:$0xff] %vm515, %v504
        %519 = vst.msk [vmem:[%s198 + $0x18] sm:$0xff] %vm515, %v505
        %520 = vst.msk [vmem:[%s198 + $0x20] sm:$0xff] %vm515, %v506
        %521 = vst.msk [vmem:[%s198 + $0x28] sm:$0xff] %vm515, %v507
        %522 = vst.msk [vmem:[%s198 + $0x30] sm:$0xff] %vm515, %v508
        %523 = vst.msk [vmem:[%s198 + $0x38] sm:$0xff] %vm515, %v509
        %524 = vst.msk [vmem:[%s198 + $0x40] sm:$0xff] %vm515, %v510
        %525 = vst.msk [vmem:[%s198 + $0x48] sm:$0xff] %vm515, %v511
        %526 = vst.msk [vmem:[%s198 + $0x50] sm:$0xff] %vm515, %v512
        %527 = vst.msk [vmem:[%s198 + $0x58] sm:$0xff] %vm515, %v513
        %vm528 = vcmask 781312
        %529 = vst.msk [vmem:[%s198 + $0x60] sm:$0xf] %vm528, %v514
        %p530 = scmp.lt.s32.totalorder %s16, 1
        %s531 = scalar_select %p530, %s16, 1
        %s532 = smul.addr %s531, 13
        %s533 = smul.addr %s532, 8
        %s534 = scalar_lea.vmem %s3, %s533
        // Predicated region
        $region41: #{ecog_hubert_classifier_forward.2} parent=31 // pred_check
          %p535 = pneg %p102
        $region42: #{ecog_hubert_classifier_forward.2} parent=31 // pred_check_branch
          %537 = sbr.rel (%p535) target = $region44
        $region43: #{ecog_hubert_classifier_forward.2} parent=31 // pred_region
          _
        $region44: #{ecog_hubert_classifier_forward.2} parent=31 // pred_fallthru
          _
      $region32: #{ecog_hubert_classifier_forward.2} parent=5 // pred_fallthru
        _
      %p538 = scmp.le.s32.totalorder 2, %s11
      // Predicated region
      $region45: #{ecog_hubert_classifier_forward.2} parent=5 // pred_check
        %p539 = pneg %p538
      $region46: #{ecog_hubert_classifier_forward.2} parent=5 // pred_check_branch
        %541 = sbr.rel (%p539) target = $region48
      $region47: #{ecog_hubert_classifier_forward.2} parent=5 // pred_region
        %s542 = ssub.s32 %s11, 2
        // Predicated region
        $region49: #{ecog_hubert_classifier_forward.2} parent=47 // pred_check
          %p543 = pneg %p108
        $region50: #{ecog_hubert_classifier_forward.2} parent=47 // pred_check_branch
          %545 = sbr.rel (%p543) target = $region52
        $region51: #{ecog_hubert_classifier_forward.2} parent=47 // pred_region
          %p546 = scmp.lt.s32.totalorder %s17, 1
          %s547 = scalar_select %p546, %s17, 1
          %s548 = smul.addr %s547, 13
          %s549 = smul.addr %s548, 8
          %s550 = scalar_lea.vmem %s3, %s549
        $region52: #{ecog_hubert_classifier_forward.2} parent=47 // pred_fallthru
          _
      $region48: #{ecog_hubert_classifier_forward.2} parent=5 // pred_fallthru
        _
    $region6: #{ecog_hubert_classifier_forward.2} parent=1 // loop_footer
      %s15 = sadd.s32 1, %s11
    $region7: #{ecog_hubert_classifier_forward.2} parent=1 // loop_footer_branch
      %10 = sbr.rel target = $region3
    $region8: #{ecog_hubert_classifier_forward.2} parent=1 // loop_exit
      _
    %551 = vsyncpa [#allocation3], 1
    %s552 = scalar_lea.sflag [#allocation3], 1
    %553 = vsyncpa %s552, 1
    %554 = vsyncpa [#allocation5], 1

// kernel: ecog_hubert_classifier_forward.3
$region0: #{ecog_hubert_classifier_forward.3}
  #allocation0 [shape = 'u32[]', space=smem, size = 0x4, offset = 0x4, fixed_abs, tag = 'smem constant byte address 0x4 - core index']
  #allocation1 [shape = 'u32[144,128]{1,0:T(1,128)}', space=vmem, size = 0x12000, scoped, tag = 'internal scratch']
  %s0 = inlined_call_operand.vmem [shape: f32[2,50,1056], index: 0, kind: input, shape index: {}]
  %s1 = inlined_call_operand.vmem [shape: bf16[1056,96], index: 1, kind: input, shape index: {}]
  %s2 = inlined_call_operand.vmem [shape: f32[3,96], index: 2, kind: input, shape index: {}]
  %s3 = inlined_call_operand.vmem [shape: bf16[96,64], index: 3, kind: input, shape index: {}]
  %s4 = inlined_call_operand.vmem [shape: f32[50,64], index: 4, kind: input, shape index: {}]
  %s5 = inlined_call_operand.vmem [shape: bf16[2,64,384], index: 5, kind: input, shape index: {}]
  %s6 = inlined_call_operand.vmem [shape: bf16[2,64,256], index: 6, kind: input, shape index: {}]
  %s7 = inlined_call_operand.vmem [shape: bf16[2,256,64], index: 7, kind: input, shape index: {}]
  %s8 = inlined_call_operand.vmem [shape: f32[2,9,256], index: 8, kind: input, shape index: {}]
  %s9 = inlined_call_operand.vmem [shape: f32[4,64], index: 9, kind: input, shape index: {}]
  %s10 = inlined_call_operand.hbm [shape: f32[2,1,50], index: 10, kind: output, shape index: {}]
  %s11 = sld [smem:[#allocation0]]
  $region73: #{ecog_hubert_classifier_forward.3} parent=0
    _
  %s13 = ssub.s32 1, %s11
  %s14 = scalar_select 0, %s13, %s11
  $region1: #{ecog_hubert_classifier_forward.3} parent=0
    #allocation2 [shape = 'u8[1024]{0}', space=vmem, size = 0x400, scoped, tag = 'output window, operand 0']
    #allocation3 [shape = 's32[2]{0}', space=sflag, size = 0x8, scoped, tag = 'scoped memory for ecog_hubert_classifier_forward.3']
    %15 = vsyncpa [#allocation3], 0
    %s16 = scalar_lea.sflag [#allocation3], 1
    %17 = vsyncpa %s16, 0
    loop: start=0, step=1, limit=4
    $region2: #{ecog_hubert_classifier_forward.3} parent=1 // loop_pre_header
      _
    $region3: #{ecog_hubert_classifier_forward.3} parent=1 // loop_header
      %s19 = sphi 0, %s23
      %p20 = scmp.ge.s32.totalorder %s19, 4
      %s29 = sphi 0, %s31
      %s32 = sphi 0, %s29
      %s33 = sphi 0, %s32
      %s49 = sphi 0, %s33
      %s53 = sphi 0, %s53
      %s55 = sphi 0, %s53
      %s56 = sphi 0, %s55
      %s70 = sphi 0, %s56
      %s74 = sphi 0, %s74
      %s76 = sphi 0, %s74
      %s77 = sphi 0, %s76
      %s91 = sphi 0, %s77
      %s95 = sphi 0, %s95
      %s97 = sphi 0, %s95
      %s98 = sphi 0, %s97
      %s112 = sphi 0, %s98
      %s116 = sphi 0, %s116
      %s118 = sphi 0, %s116
      %s119 = sphi 0, %s118
      %s133 = sphi 0, %s119
      %s137 = sphi 0, %s137
      %s139 = sphi 0, %s137
      %s140 = sphi 0, %s139
      %s154 = sphi 0, %s140
      %s158 = sphi 0, %s158
      %s160 = sphi 0, %s158
      %s161 = sphi 0, %s160
      %s175 = sphi 0, %s161
      %s179 = sphi 0, %s179
      %s181 = sphi 0, %s179
      %s182 = sphi 0, %s181
      %s196 = sphi 0, %s182
      %s200 = sphi 0, %s200
      %s202 = sphi 0, %s200
      %s203 = sphi 0, %s202
      %s217 = sphi 0, %s203
      %s221 = sphi 0, %s221
      %s223 = sphi 0, %s221
      %s224 = sphi 0, %s223
      %s238 = sphi 0, %s224
      %s244 = sphi 0, %s246
      %s247 = sphi 0, %s244
      %s248 = sphi 0, %s247
      %s264 = sphi 0, %s248
    $region4: #{ecog_hubert_classifier_forward.3} parent=1 // loop_header_branch
      %22 = sbr.rel (%p20) target = $region8
    $region5: #{ecog_hubert_classifier_forward.3} parent=1 // loop_body
      %s24 = ssub.s32 %s19, 1
      %s25 = ssub.s32 %s19, 2
      %s26 = sadd.s32 %s19, 1
      %s27 = ssub.s32 %s19, %s26
      %p28 = scmp.eq.s32.totalorder %s27, 0
      %s30 = sadd.s32 %s29, 1
      %s31 = scalar_select %p28, %s29, %s30
      %p34 = pneg %p28
      %p35 = scmp.eq.s32.totalorder %s19, 1
      %p36 = por %p34, %p35
      %p37 = scmp.ne.s32.totalorder %s29, %s32
      %p38 = scmp.eq.s32.totalorder %s19, 0
      %p39 = por %p37, %p38
      %p40 = scmp.ne.s32.totalorder %s29, %s32
      %p41 = scmp.eq.s32.totalorder %s24, 1
      %p42 = por %p40, %p41
      %p43 = scmp.ne.s32.totalorder %s32, %s33
      %p44 = scmp.eq.s32.totalorder %s24, 0
      %p45 = por %p43, %p44
      %p46 = scmp.ne.s32.totalorder %s32, %s33
      %p47 = scmp.eq.s32.totalorder %s25, 1
      %p48 = por %p46, %p47
      %p50 = scmp.ne.s32.totalorder %s33, %s49
      %p51 = scmp.eq.s32.totalorder %s25, 0
      %p52 = por %p50, %p51
      %s54 = sadd.s32 %s53, 1
      %p57 = scmp.eq.s32.totalorder %s19, 1
      %p58 = scmp.ne.s32.totalorder %s53, %s55
      %p59 = scmp.eq.s32.totalorder %s19, 0
      %p60 = por %p58, %p59
      %p61 = scmp.ne.s32.totalorder %s53, %s55
      %p62 = scmp.eq.s32.totalorder %s24, 1
      %p63 = por %p61, %p62
      %p64 = scmp.ne.s32.totalorder %s55, %s56
      %p65 = scmp.eq.s32.totalorder %s24, 0
      %p66 = por %p64, %p65
      %p67 = scmp.ne.s32.totalorder %s55, %s56
      %p68 = scmp.eq.s32.totalorder %s25, 1
      %p69 = por %p67, %p68
      %p71 = scmp.ne.s32.totalorder %s56, %s70
      %p72 = scmp.eq.s32.totalorder %s25, 0
      %p73 = por %p71, %p72
      %s75 = sadd.s32 %s74, 1
      %p78 = scmp.eq.s32.totalorder %s19, 1
      %p79 = scmp.ne.s32.totalorder %s74, %s76
      %p80 = scmp.eq.s32.totalorder %s19, 0
      %p81 = por %p79, %p80
      %p82 = scmp.ne.s32.totalorder %s74, %s76
      %p83 = scmp.eq.s32.totalorder %s24, 1
      %p84 = por %p82, %p83
      %p85 = scmp.ne.s32.totalorder %s76, %s77
      %p86 = scmp.eq.s32.totalorder %s24, 0
      %p87 = por %p85, %p86
      %p88 = scmp.ne.s32.totalorder %s76, %s77
      %p89 = scmp.eq.s32.totalorder %s25, 1
      %p90 = por %p88, %p89
      %p92 = scmp.ne.s32.totalorder %s77, %s91
      %p93 = scmp.eq.s32.totalorder %s25, 0
      %p94 = por %p92, %p93
      %s96 = sadd.s32 %s95, 1
      %p99 = scmp.eq.s32.totalorder %s19, 1
      %p100 = scmp.ne.s32.totalorder %s95, %s97
      %p101 = scmp.eq.s32.totalorder %s19, 0
      %p102 = por %p100, %p101
      %p103 = scmp.ne.s32.totalorder %s95, %s97
      %p104 = scmp.eq.s32.totalorder %s24, 1
      %p105 = por %p103, %p104
      %p106 = scmp.ne.s32.totalorder %s97, %s98
      %p107 = scmp.eq.s32.totalorder %s24, 0
      %p108 = por %p106, %p107
      %p109 = scmp.ne.s32.totalorder %s97, %s98
      %p110 = scmp.eq.s32.totalorder %s25, 1
      %p111 = por %p109, %p110
      %p113 = scmp.ne.s32.totalorder %s98, %s112
      %p114 = scmp.eq.s32.totalorder %s25, 0
      %p115 = por %p113, %p114
      %s117 = sadd.s32 %s116, 1
      %p120 = scmp.eq.s32.totalorder %s19, 1
      %p121 = scmp.ne.s32.totalorder %s116, %s118
      %p122 = scmp.eq.s32.totalorder %s19, 0
      %p123 = por %p121, %p122
      %p124 = scmp.ne.s32.totalorder %s116, %s118
      %p125 = scmp.eq.s32.totalorder %s24, 1
      %p126 = por %p124, %p125
      %p127 = scmp.ne.s32.totalorder %s118, %s119
      %p128 = scmp.eq.s32.totalorder %s24, 0
      %p129 = por %p127, %p128
      %p130 = scmp.ne.s32.totalorder %s118, %s119
      %p131 = scmp.eq.s32.totalorder %s25, 1
      %p132 = por %p130, %p131
      %p134 = scmp.ne.s32.totalorder %s119, %s133
      %p135 = scmp.eq.s32.totalorder %s25, 0
      %p136 = por %p134, %p135
      %s138 = sadd.s32 %s137, 1
      %p141 = scmp.eq.s32.totalorder %s19, 1
      %p142 = scmp.ne.s32.totalorder %s137, %s139
      %p143 = scmp.eq.s32.totalorder %s19, 0
      %p144 = por %p142, %p143
      %p145 = scmp.ne.s32.totalorder %s137, %s139
      %p146 = scmp.eq.s32.totalorder %s24, 1
      %p147 = por %p145, %p146
      %p148 = scmp.ne.s32.totalorder %s139, %s140
      %p149 = scmp.eq.s32.totalorder %s24, 0
      %p150 = por %p148, %p149
      %p151 = scmp.ne.s32.totalorder %s139, %s140
      %p152 = scmp.eq.s32.totalorder %s25, 1
      %p153 = por %p151, %p152
      %p155 = scmp.ne.s32.totalorder %s140, %s154
      %p156 = scmp.eq.s32.totalorder %s25, 0
      %p157 = por %p155, %p156
      %s159 = sadd.s32 %s158, 1
      %p162 = scmp.eq.s32.totalorder %s19, 1
      %p163 = scmp.ne.s32.totalorder %s158, %s160
      %p164 = scmp.eq.s32.totalorder %s19, 0
      %p165 = por %p163, %p164
      %p166 = scmp.ne.s32.totalorder %s158, %s160
      %p167 = scmp.eq.s32.totalorder %s24, 1
      %p168 = por %p166, %p167
      %p169 = scmp.ne.s32.totalorder %s160, %s161
      %p170 = scmp.eq.s32.totalorder %s24, 0
      %p171 = por %p169, %p170
      %p172 = scmp.ne.s32.totalorder %s160, %s161
      %p173 = scmp.eq.s32.totalorder %s25, 1
      %p174 = por %p172, %p173
      %p176 = scmp.ne.s32.totalorder %s161, %s175
      %p177 = scmp.eq.s32.totalorder %s25, 0
      %p178 = por %p176, %p177
      %s180 = sadd.s32 %s179, 1
      %p183 = scmp.eq.s32.totalorder %s19, 1
      %p184 = scmp.ne.s32.totalorder %s179, %s181
      %p185 = scmp.eq.s32.totalorder %s19, 0
      %p186 = por %p184, %p185
      %p187 = scmp.ne.s32.totalorder %s179, %s181
      %p188 = scmp.eq.s32.totalorder %s24, 1
      %p189 = por %p187, %p188
      %p190 = scmp.ne.s32.totalorder %s181, %s182
      %p191 = scmp.eq.s32.totalorder %s24, 0
      %p192 = por %p190, %p191
      %p193 = scmp.ne.s32.totalorder %s181, %s182
      %p194 = scmp.eq.s32.totalorder %s25, 1
      %p195 = por %p193, %p194
      %p197 = scmp.ne.s32.totalorder %s182, %s196
      %p198 = scmp.eq.s32.totalorder %s25, 0
      %p199 = por %p197, %p198
      %s201 = sadd.s32 %s200, 1
      %p204 = scmp.eq.s32.totalorder %s19, 1
      %p205 = scmp.ne.s32.totalorder %s200, %s202
      %p206 = scmp.eq.s32.totalorder %s19, 0
      %p207 = por %p205, %p206
      %p208 = scmp.ne.s32.totalorder %s200, %s202
      %p209 = scmp.eq.s32.totalorder %s24, 1
      %p210 = por %p208, %p209
      %p211 = scmp.ne.s32.totalorder %s202, %s203
      %p212 = scmp.eq.s32.totalorder %s24, 0
      %p213 = por %p211, %p212
      %p214 = scmp.ne.s32.totalorder %s202, %s203
      %p215 = scmp.eq.s32.totalorder %s25, 1
      %p216 = por %p214, %p215
      %p218 = scmp.ne.s32.totalorder %s203, %s217
      %p219 = scmp.eq.s32.totalorder %s25, 0
      %p220 = por %p218, %p219
      %s222 = sadd.s32 %s221, 1
      %p225 = scmp.eq.s32.totalorder %s19, 1
      %p226 = scmp.ne.s32.totalorder %s221, %s223
      %p227 = scmp.eq.s32.totalorder %s19, 0
      %p228 = por %p226, %p227
      %p229 = scmp.ne.s32.totalorder %s221, %s223
      %p230 = scmp.eq.s32.totalorder %s24, 1
      %p231 = por %p229, %p230
      %p232 = scmp.ne.s32.totalorder %s223, %s224
      %p233 = scmp.eq.s32.totalorder %s24, 0
      %p234 = por %p232, %p233
      %p235 = scmp.ne.s32.totalorder %s223, %s224
      %p236 = scmp.eq.s32.totalorder %s25, 1
      %p237 = por %p235, %p236
      %p239 = scmp.ne.s32.totalorder %s224, %s238
      %p240 = scmp.eq.s32.totalorder %s25, 0
      %p241 = por %p239, %p240
      %s242 = ssub.s32 %s19, %s26
      %p243 = scmp.eq.s32.totalorder %s242, 0
      %s245 = sadd.s32 %s244, 1
      %s246 = scalar_select %p243, %s244, %s245
      %p249 = pneg %p243
      %p250 = scmp.eq.s32.totalorder %s19, 1
      %p251 = por %p249, %p250
      %p252 = scmp.ne.s32.totalorder %s244, %s247
      %p253 = scmp.eq.s32.totalorder %s19, 0
      %p254 = por %p252, %p253
      %p255 = scmp.ne.s32.totalorder %s244, %s247
      %p256 = scmp.eq.s32.totalorder %s24, 1
      %p257 = por %p255, %p256
      %p258 = scmp.ne.s32.totalorder %s247, %s248
      %p259 = scmp.eq.s32.totalorder %s24, 0
      %p260 = por %p258, %p259
      %p261 = scmp.ne.s32.totalorder %s247, %s248
      %p262 = scmp.eq.s32.totalorder %s25, 1
      %p263 = por %p261, %p262
      %p265 = scmp.ne.s32.totalorder %s248, %s264
      %p266 = scmp.eq.s32.totalorder %s25, 0
      %p267 = por %p265, %p266
      %p268 = scmp.le.s32.totalorder 1, %s19
      %p269 = scmp.lt.s32.totalorder %s19, 3
      %p270 = pnand %p268, %p269
      %p271 = pneg %p270
      // Predicated region
      $region9: #{ecog_hubert_classifier_forward.3} parent=5 // pred_check
        _
      $region10: #{ecog_hubert_classifier_forward.3} parent=5 // pred_check_branch
        %273 = sbr.rel (%p270) target = $region12
      $region11: #{ecog_hubert_classifier_forward.3} parent=5 // pred_region
        %s274 = ssub.s32 %s19, 1
        // Predicated region
        $region13: #{ecog_hubert_classifier_forward.3} parent=11 // pred_check
          %p275 = pneg %p66
        $region14: #{ecog_hubert_classifier_forward.3} parent=11 // pred_check_branch
          %277 = sbr.rel (%p275) target = $region16
        $region15: #{ecog_hubert_classifier_forward.3} parent=11 // pred_region
          _
        $region16: #{ecog_hubert_classifier_forward.3} parent=11 // pred_fallthru
          _
        // Predicated region
        $region17: #{ecog_hubert_classifier_forward.3} parent=11 // pred_check
          %p278 = pneg %p87
        $region18: #{ecog_hubert_classifier_forward.3} parent=11 // pred_check_branch
          %280 = sbr.rel (%p278) target = $region20
        $region19: #{ecog_hubert_classifier_forward.3} parent=11 // pred_region
          _
        $region20: #{ecog_hubert_classifier_forward.3} parent=11 // pred_fallthru
          _
        // Predicated region
        $region21: #{ecog_hubert_classifier_forward.3} parent=11 // pred_check
          %p281 = pneg %p108
        $region22: #{ecog_hubert_classifier_forward.3} parent=11 // pred_check_branch
          %283 = sbr.rel (%p281) target = $region24
        $region23: #{ecog_hubert_classifier_forward.3} parent=11 // pred_region
          _
        $region24: #{ecog_hubert_classifier_forward.3} parent=11 // pred_fallthru
          _
        // Predicated region
        $region25: #{ecog_hubert_classifier_forward.3} parent=11 // pred_check
          %p284 = pneg %p129
        $region26: #{ecog_hubert_classifier_forward.3} parent=11 // pred_check_branch
          %286 = sbr.rel (%p284) target = $region28
        $region27: #{ecog_hubert_classifier_forward.3} parent=11 // pred_region
          _
        $region28: #{ecog_hubert_classifier_forward.3} parent=11 // pred_fallthru
          _
        // Predicated region
        $region29: #{ecog_hubert_classifier_forward.3} parent=11 // pred_check
          %p287 = pneg %p150
        $region30: #{ecog_hubert_classifier_forward.3} parent=11 // pred_check_branch
          %289 = sbr.rel (%p287) target = $region32
        $region31: #{ecog_hubert_classifier_forward.3} parent=11 // pred_region
          _
        $region32: #{ecog_hubert_classifier_forward.3} parent=11 // pred_fallthru
          _
        // Predicated region
        $region33: #{ecog_hubert_classifier_forward.3} parent=11 // pred_check
          %p290 = pneg %p171
        $region34: #{ecog_hubert_classifier_forward.3} parent=11 // pred_check_branch
          %292 = sbr.rel (%p290) target = $region36
        $region35: #{ecog_hubert_classifier_forward.3} parent=11 // pred_region
          _
        $region36: #{ecog_hubert_classifier_forward.3} parent=11 // pred_fallthru
          _
        // Predicated region
        $region37: #{ecog_hubert_classifier_forward.3} parent=11 // pred_check
          %p293 = pneg %p192
        $region38: #{ecog_hubert_classifier_forward.3} parent=11 // pred_check_branch
          %295 = sbr.rel (%p293) target = $region40
        $region39: #{ecog_hubert_classifier_forward.3} parent=11 // pred_region
          _
        $region40: #{ecog_hubert_classifier_forward.3} parent=11 // pred_fallthru
          _
        // Predicated region
        $region41: #{ecog_hubert_classifier_forward.3} parent=11 // pred_check
          %p296 = pneg %p213
        $region42: #{ecog_hubert_classifier_forward.3} parent=11 // pred_check_branch
          %298 = sbr.rel (%p296) target = $region44
        $region43: #{ecog_hubert_classifier_forward.3} parent=11 // pred_region
          _
        $region44: #{ecog_hubert_classifier_forward.3} parent=11 // pred_fallthru
          _
        // Predicated region
        $region45: #{ecog_hubert_classifier_forward.3} parent=11 // pred_check
          %p299 = pneg %p234
        $region46: #{ecog_hubert_classifier_forward.3} parent=11 // pred_check_branch
          %301 = sbr.rel (%p299) target = $region48
        $region47: #{ecog_hubert_classifier_forward.3} parent=11 // pred_region
          _
        $region48: #{ecog_hubert_classifier_forward.3} parent=11 // pred_fallthru
          _
      $region12: #{ecog_hubert_classifier_forward.3} parent=5 // pred_fallthru
        _
      %p302 = scmp.lt.s32.totalorder %s19, 2
      // Predicated region
      $region49: #{ecog_hubert_classifier_forward.3} parent=5 // pred_check
        %p303 = pneg %p302
      $region50: #{ecog_hubert_classifier_forward.3} parent=5 // pred_check_branch
        %305 = sbr.rel (%p303) target = $region52
      $region51: #{ecog_hubert_classifier_forward.3} parent=5 // pred_region
        // Predicated region
        $region53: #{ecog_hubert_classifier_forward.3} parent=51 // pred_check
          %p306 = pneg %p39
        $region54: #{ecog_hubert_classifier_forward.3} parent=51 // pred_check_branch
          %308 = sbr.rel (%p306) target = $region56
        $region55: #{ecog_hubert_classifier_forward.3} parent=51 // pred_region
          %p309 = scmp.lt.s32.totalorder %s19, 1
          %s310 = scalar_select %p309, %s19, 1
          %s311 = smul.addr %s310, 63
          %s312 = smul.addr %s311, 8
          %s313 = scalar_lea.vmem %s0, %s312
        $region56: #{ecog_hubert_classifier_forward.3} parent=51 // pred_fallthru
          _
      $region52: #{ecog_hubert_classifier_forward.3} parent=5 // pred_fallthru
        _
      %p314 = scmp.le.s32.totalorder 1, %s19
      %p315 = scmp.lt.s32.totalorder %s19, 3
      %p316 = pnand %p314, %p315
      %p317 = pneg %p316
      // Predicated region
      $region57: #{ecog_hubert_classifier_forward.3} parent=5 // pred_check
        _
      $region58: #{ecog_hubert_classifier_forward.3} parent=5 // pred_check_branch
        %319 = sbr.rel (%p316) target = $region60
      $region59: #{ecog_hubert_classifier_forward.3} parent=5 // pred_region
        %s320 = ssub.s32 %s19, 1
        %p321 = scmp.lt.s32.totalorder %s24, 1
        %s322 = scalar_select %p321, %s24, 1
        %s323 = smul.addr %s322, 63
        %s324 = smul.addr %s323, 8
        %s325 = scalar_lea.vmem %s0, %s324
        %p326 = pneg %p45
        %p327 = pneg %p42
        %p328 = pneg %p66
        %p329 = pneg %p63
        %p330 = pneg %p87
        %p331 = pneg %p84
        %p332 = pneg %p108
        %p333 = pneg %p105
        %p334 = pneg %p129
        %p335 = pneg %p126
        %p336 = pneg %p150
        %p337 = pneg %p147
        %p338 = pneg %p171
        %p339 = pneg %p168
        %p340 = pneg %p192
        %p341 = pneg %p189
        %p342 = pneg %p213
        %p343 = pneg %p210
        %p344 = pneg %p234
        %p345 = pneg %p231
        %p346 = pneg %p260
        %p347 = pneg %p257
        %s348 = sand.u32 %s247, 1
        %s349 = scalar_lea.sflag [#allocation3], %s348
        %s350 = sand.u32 %s247, 1
        %s351 = scalar_lea.vmem [#allocation2], %s350
        %p352 = scmp.lt.s32.totalorder %s24, 1
        %s353 = scalar_select %p352, %s24, 1
        %s354 = smul.addr %s353, 63
        %s355 = smul.addr %s354, 8
        %s356 = scalar_lea.vmem %s0, %s355
        %v358 = vld [vmem:[%s356] sm:$0xff]
        %v359 = vld [vmem:[%s356 + $0x8] sm:$0xff]
        %v360 = vld [vmem:[%s356 + $0x10] sm:$0xff]
        %v361 = vld [vmem:[%s356 + $0x18] sm:$0xff]
        %v362 = vld [vmem:[%s356 + $0x20] sm:$0xff]
        %v363 = vld [vmem:[%s356 + $0x28] sm:$0xff]
        %v364 = vld [vmem:[%s356 + $0x30] sm:$0xff]
        %v365 = vld [vmem:[%s356 + $0x38] sm:$0xff]
        %v366 = vld [vmem:[%s356 + $0x40] sm:$0xff]
        %v367 = vld [vmem:[%s356 + $0x48] sm:$0xff]
        %v368 = vld [vmem:[%s356 + $0x50] sm:$0xff]
        %v369 = vld [vmem:[%s356 + $0x58] sm:$0xff]
        %v370 = vld [vmem:[%s356 + $0x60] sm:$0xff]
        %v371 = vld [vmem:[%s356 + $0x68] sm:$0xff]
        %v372 = vld [vmem:[%s356 + $0x70] sm:$0xff]
        %v373 = vld [vmem:[%s356 + $0x78] sm:$0xff]
        %v374 = vld [vmem:[%s356 + $0x80] sm:$0xff]
        %v375 = vld [vmem:[%s356 + $0x88] sm:$0xff]
        %v376 = vld [vmem:[%s356 + $0x90] sm:$0xff]
        %v377 = vld [vmem:[%s356 + $0x98] sm:$0xff]
        %v378 = vld [vmem:[%s356 + $0xa0] sm:$0xff]
        %v379 = vld [vmem:[%s356 + $0xa8] sm:$0xff]
        %v380 = vld [vmem:[%s356 + $0xb0] sm:$0xff]
        %v381 = vld [vmem:[%s356 + $0xb8] sm:$0xff]
        %v382 = vld [vmem:[%s356 + $0xc0] sm:$0xff]
        %v383 = vld [vmem:[%s356 + $0xc8] sm:$0xff]
        %v384 = vld [vmem:[%s356 + $0xd0] sm:$0xff]
        %v385 = vld [vmem:[%s356 + $0xd8] sm:$0xff]
        %v386 = vld [vmem:[%s356 + $0xe0] sm:$0xff]
        %v387 = vld [vmem:[%s356 + $0xe8] sm:$0xff]
        %v388 = vld [vmem:[%s356 + $0xf0] sm:$0xff]
        %v389 = vld [vmem:[%s356 + $0xf8] sm:$0xff]
        %v390 = vld [vmem:[%s356 + $0x100] sm:$0xff]
        %v391 = vld [vmem:[%s356 + $0x108] sm:$0xff]
        %v392 = vld [vmem:[%s356 + $0x110] sm:$0xff]
        %v393 = vld [vmem:[%s356 + $0x118] sm:$0xff]
        %v394 = vld [vmem:[%s356 + $0x120] sm:$0xff]
        %v395 = vld [vmem:[%s356 + $0x128] sm:$0xff]
        %v396 = vld [vmem:[%s356 + $0x130] sm:$0xff]
        %v397 = vld [vmem:[%s356 + $0x138] sm:$0xff]
        %v398 = vld [vmem:[%s356 + $0x140] sm:$0xff]
        %v399 = vld [vmem:[%s356 + $0x148] sm:$0xff]
        %v400 = vld [vmem:[%s356 + $0x150] sm:$0xff]
        %v401 = vld [vmem:[%s356 + $0x158] sm:$0xff]
        %v402 = vld [vmem:[%s356 + $0x160] sm:$0xff]
        %v403 = vld [vmem:[%s356 + $0x168] sm:$0xff]
        %v404 = vld [vmem:[%s356 + $0x170] sm:$0xff]
        %v405 = vld [vmem:[%s356 + $0x178] sm:$0xff]
        %v406 = vld [vmem:[%s356 + $0x180] sm:$0xff]
        %v407 = vld [vmem:[%s356 + $0x188] sm:$0xff]
        %v408 = vld [vmem:[%s356 + $0x190] sm:$0xff]
        %v409 = vld [vmem:[%s356 + $0x198] sm:$0xff]
        %v410 = vld [vmem:[%s356 + $0x1a0] sm:$0xff]
        %v411 = vld [vmem:[%s356 + $0x1a8] sm:$0xff]
        %v412 = vld [vmem:[%s356 + $0x1b0] sm:$0x3]
        %v413 = vld [vmem:[%s356 + $0x1b8] sm:$0x3]
        %v414 = vld [vmem:[%s356 + $0x1c0] sm:$0x3]
        %v415 = vld [vmem:[%s356 + $0x1c8] sm:$0x3]
        %v416 = vld [vmem:[%s356 + $0x1d0] sm:$0x3]
        %v417 = vld [vmem:[%s356 + $0x1d8] sm:$0x3]
        %v418 = vld [vmem:[%s356 + $0x1e0] sm:$0x3]
        %v419 = vld [vmem:[%s356 + $0x1e8] sm:$0x3]
        %v420 = vld [vmem:[%s356 + $0x1f0] sm:$0x3]
        %v421 = vpack.c.bf16 %v367, %v358
        %v422 = vpack.c.bf16 %v368, %v359
        %v423 = vpack.c.bf16 %v369, %v360
        %v424 = vpack.c.bf16 %v370, %v361
        %v425 = vpack.c.bf16 %v371, %v362
        %v426 = vpack.c.bf16 %v372, %v363
        %v427 = vpack.c.bf16 %v373, %v364
        %v428 = vpack.c.bf16 %v374, %v365
        %v429 = vpack.c.bf16 %v375, %v366
        %v430 = vpack.c.bf16 %v385, %v376
        %v431 = vpack.c.bf16 %v386, %v377
        %v432 = vpack.c.bf16 %v387, %v378
        %v433 = vpack.c.bf16 %v388, %v379
        %v434 = vpack.c.bf16 %v389, %v380
        %v435 = vpack.c.bf16 %v390, %v381
        %v436 = vpack.c.bf16 %v391, %v382
        %v437 = vpack.c.bf16 %v392, %v383
        %v438 = vpack.c.bf16 %v393, %v384
        %v439 = vpack.c.bf16 %v403, %v394
        %v440 = vpack.c.bf16 %v404, %v395
        %v441 = vpack.c.bf16 %v405, %v396
        %v442 = vpack.c.bf16 %v406, %v397
        %v443 = vpack.c.bf16 %v407, %v398
        %v444 = vpack.c.bf16 %v408, %v399
        %v445 = vpack.c.bf16 %v409, %v400
        %v446 = vpack.c.bf16 %v410, %v401
        %v447 = vpack.c.bf16 %v411, %v402
        %v448 = vpack.c.bf16 %v412, %v412
        %v449 = vpack.c.bf16 %v413, %v413
        %v450 = vpack.c.bf16 %v414, %v414
        %v451 = vpack.c.bf16 %v415, %v415
        %v452 = vpack.c.bf16 %v416, %v416
        %v453 = vpack.c.bf16 %v417, %v417
        %v454 = vpack.c.bf16 %v418, %v418
        %v455 = vpack.c.bf16 %v419, %v419
        %v456 = vpack.c.bf16 %v420, %v420
        %v457 = vld [vmem:[%s1] sm:$0xf]
        %v458 = vld [vmem:[%s1 + $0x4] sm:$0xf]
        %v459 = vld [vmem:[%s1 + $0x8] sm:$0xf]
        %v460 = vld [vmem:[%s1 + $0xc] sm:$0xf]
        %v461 = vld [vmem:[%s1 + $0x10] sm:$0xf]
        %v462 = vld [vmem:[%s1 + $0x14] sm:$0xf]
        %v463 = vld [vmem:[%s1 + $0x18] sm:$0xf]
        %v464 = vld [vmem:[%s1 + $0x1c] sm:$0xf]
        %v465 = vld [vmem:[%s1 + $0x20] sm:$0xf]
        %v466 = vld [vmem:[%s1 + $0x24] sm:$0xf]
        %v467 = vld [vmem:[%s1 + $0x28] sm:$0xf]
        %v468 = vld [vmem:[%s1 + $0x2c] sm:$0xf]
        %v469 = vld [vmem:[%s1 + $0x30] sm:$0xf]
        %v470 = vld [vmem:[%s1 + $0x34] sm:$0xf]
        %v471 = vld [vmem:[%s1 + $0x38] sm:$0xf]
        %v472 = vld [vmem:[%s1 + $0x3c] sm:$0xf]
        %v473 = vld [vmem:[%s1 + $0x40] sm:$0xf]
        %v474 = vld [vmem:[%s1 + $0x44] sm:$0xf]
        %v475 = vld [vmem:[%s1 + $0x48] sm:$0xf]
        %v476 = vld [vmem:[%s1 + $0x4c] sm:$0xf]
        %v477 = vld [vmem:[%s1 + $0x50] sm:$0xf]
        %v478 = vld [vmem:[%s1 + $0x54] sm:$0xf]
        %v479 = vld [vmem:[%s1 + $0x58] sm:$0xf]
        %v480 = vld [vmem:[%s1 + $0x5c] sm:$0xf]
        %v481 = vld [vmem:[%s1 + $0x60] sm:$0xf]
        %v482 = vld [vmem:[%s1 + $0x64] sm:$0xf]
        %v483 = vld [vmem:[%s1 + $0x68] sm:$0xf]
        %v484 = vld [vmem:[%s1 + $0x6c] sm:$0xf]
        %v485 = vld [vmem:[%s1 + $0x70] sm:$0xf]
        %v486 = vld [vmem:[%s1 + $0x74] sm:$0xf]
        %v487 = vld [vmem:[%s1 + $0x78] sm:$0xf]
        %v488 = vld [vmem:[%s1 + $0x7c] sm:$0xf]
        %v489 = vld [vmem:[%s1 + $0x80] sm:$0xf]
        %v490 = vld [vmem:[%s1 + $0x84] sm:$0xf]
        %v491 = vld [vmem:[%s1 + $0x88] sm:$0xf]
        %v492 = vld [vmem:[%s1 + $0x8c] sm:$0xf]
        %v493 = vld [vmem:[%s1 + $0x90] sm:$0xf]
        %v494 = vld [vmem:[%s1 + $0x94] sm:$0xf]
        %v495 = vld [vmem:[%s1 + $0x98] sm:$0xf]
        %v496 = vld [vmem:[%s1 + $0x9c] sm:$0xf]
        %v497 = vld [vmem:[%s1 + $0xa0] sm:$0xf]
        %v498 = vld [vmem:[%s1 + $0xa4] sm:$0xf]
        %v499 = vld [vmem:[%s1 + $0xa8] sm:$0xf]
        %v500 = vld [vmem:[%s1 + $0xac] sm:$0xf]
        %v501 = vld [vmem:[%s1 + $0xb0] sm:$0xf]
        %v502 = vld [vmem:[%s1 + $0xb4] sm:$0xf]
        %v503 = vld [vmem:[%s1 + $0xb8] sm:$0xf]
        %v504 = vld [vmem:[%s1 + $0xbc] sm:$0xf]
        %v505 = vld [vmem:[%s1 + $0xc0] sm:$0xf]
        %v506 = vld [vmem:[%s1 + $0xc4] sm:$0xf]
        %v507 = vld [vmem:[%s1 + $0xc8] sm:$0xf]
        %v508 = vld [vmem:[%s1 + $0xcc] sm:$0xf]
        %v509 = vld [vmem:[%s1 + $0xd0] sm:$0xf]
        %v510 = vld [vmem:[%s1 + $0xd4] sm:$0xf]
        %v511 = vld [vmem:[%s1 + $0xd8] sm:$0xf]
        %v512 = vld [vmem:[%s1 + $0xdc] sm:$0xf]
        %v513 = vld [vmem:[%s1 + $0xe0] sm:$0xf]
        %v514 = vld [vmem:[%s1 + $0xe4] sm:$0xf]
        %v515 = vld [vmem:[%s1 + $0xe8] sm:$0xf]
        %v516 = vld [vmem:[%s1 + $0xec] sm:$0xf]
        %v517 = vld [vmem:[%s1 + $0xf0] sm:$0xf]
        %v518 = vld [vmem:[%s1 + $0xf4] sm:$0xf]
        %v519 = vld [vmem:[%s1 + $0xf8] sm:$0xf]
        %v520 = vld [vmem:[%s1 + $0xfc] sm:$0xf]
        %v521 = vld [vmem:[%s1 + $0x100] sm:$0xf]
        %v522 = vld [vmem:[%s1 + $0x104] sm:$0xf]
        %v523 = vld [vmem:[%s1 + $0x108] sm:$0xf]
        %v524 = vld [vmem:[%s1 + $0x10c] sm:$0xf]
        %v525 = vld [vmem:[%s1 + $0x110] sm:$0xf]
        %v526 = vld [vmem:[%s1 + $0x114] sm:$0xf]
        %v527 = vld [vmem:[%s1 + $0x118] sm:$0xf]
        %v528 = vld [vmem:[%s1 + $0x11c] sm:$0xf]
        %v529 = vld [vmem:[%s1 + $0x120] sm:$0xf]
        %v530 = vld [vmem:[%s1 + $0x124] sm:$0xf]
        %v531 = vld [vmem:[%s1 + $0x128] sm:$0xf]
        %v532 = vld [vmem:[%s1 + $0x12c] sm:$0xf]
        %v533 = vld [vmem:[%s1 + $0x130] sm:$0xf]
        %v534 = vld [vmem:[%s1 + $0x134] sm:$0xf]
        %v535 = vld [vmem:[%s1 + $0x138] sm:$0xf]
        %v536 = vld [vmem:[%s1 + $0x13c] sm:$0xf]
        %v537 = vld [vmem:[%s1 + $0x140] sm:$0xf]
        %v538 = vld [vmem:[%s1 + $0x144] sm:$0xf]
        %v539 = vld [vmem:[%s1 + $0x148] sm:$0xf]
        %v540 = vld [vmem:[%s1 + $0x14c] sm:$0xf]
        %v541 = vld [vmem:[%s1 + $0x150] sm:$0xf]
        %v542 = vld [vmem:[%s1 + $0x154] sm:$0xf]
        %v543 = vld [vmem:[%s1 + $0x158] sm:$0xf]
        %v544 = vld [vmem:[%s1 + $0x15c] sm:$0xf]
        %v545 = vld [vmem:[%s1 + $0x160] sm:$0xf]
        %v546 = vld [vmem:[%s1 + $0x164] sm:$0xf]
        %v547 = vld [vmem:[%s1 + $0x168] sm:$0xf]
        %v548 = vld [vmem:[%s1 + $0x16c] sm:$0xf]
        %v549 = vld [vmem:[%s1 + $0x170] sm:$0xf]
        %v550 = vld [vmem:[%s1 + $0x174] sm:$0xf]
        %v551 = vld [vmem:[%s1 + $0x178] sm:$0xf]
        %v552 = vld [vmem:[%s1 + $0x17c] sm:$0xf]
        %v553 = vld [vmem:[%s1 + $0x180] sm:$0xf]
        %v554 = vld [vmem:[%s1 + $0x184] sm:$0xf]
        %v555 = vld [vmem:[%s1 + $0x188] sm:$0xf]
        %v556 = vld [vmem:[%s1 + $0x18c] sm:$0xf]
        %v557 = vld [vmem:[%s1 + $0x190] sm:$0xf]
        %v558 = vld [vmem:[%s1 + $0x194] sm:$0xf]
        %v559 = vld [vmem:[%s1 + $0x198] sm:$0xf]
        %v560 = vld [vmem:[%s1 + $0x19c] sm:$0xf]
        %v561 = vld [vmem:[%s1 + $0x1a0] sm:$0xf]
        %v562 = vld [vmem:[%s1 + $0x1a4] sm:$0xf]
        %v563 = vld [vmem:[%s1 + $0x1a8] sm:$0xf]
        %v564 = vld [vmem:[%s1 + $0x1ac] sm:$0xf]
        %v565 = vld [vmem:[%s1 + $0x1b0] sm:$0xf]
        %v566 = vld [vmem:[%s1 + $0x1b4] sm:$0xf]
        %v567 = vld [vmem:[%s1 + $0x1b8] sm:$0xf]
        %v568 = vld [vmem:[%s1 + $0x1bc] sm:$0xf]
        %v569 = vld [vmem:[%s1 + $0x1c0] sm:$0xf]
        %v570 = vld [vmem:[%s1 + $0x1c4] sm:$0xf]
        %v571 = vld [vmem:[%s1 + $0x1c8] sm:$0xf]
        %v572 = vld [vmem:[%s1 + $0x1cc] sm:$0xf]
        %v573 = vld [vmem:[%s1 + $0x1d0] sm:$0xf]
        %v574 = vld [vmem:[%s1 + $0x1d4] sm:$0xf]
        %v575 = vld [vmem:[%s1 + $0x1d8] sm:$0xf]
        %v576 = vld [vmem:[%s1 + $0x1dc] sm:$0xf]
        %v577 = vld [vmem:[%s1 + $0x1e0] sm:$0xf]
        %v578 = vld [vmem:[%s1 + $0x1e4] sm:$0xf]
        %v579 = vld [vmem:[%s1 + $0x1e8] sm:$0xf]
        %v580 = vld [vmem:[%s1 + $0x1ec] sm:$0xf]
        %v581 = vld [vmem:[%s1 + $0x1f0] sm:$0xf]
        %v582 = vld [vmem:[%s1 + $0x1f4] sm:$0xf]
        %v583 = vld [vmem:[%s1 + $0x1f8] sm:$0xf]
        %v584 = vld [vmem:[%s1 + $0x1fc] sm:$0xf]
        %v585 = vld [vmem:[%s1 + $0x200] sm:$0xf]
        %v586 = vld [vmem:[%s1 + $0x204] sm:$0xf]
        %v587 = vld [vmem:[%s1 + $0x208] sm:$0xf]
        %v588 = vld [vmem:[%s1 + $0x20c] sm:$0xf]
        %v589 = vld [vmem:[%s2] sm:$0x1]
        %v590 = vlaneseq
        %v591 = vshrl.u32 %v590, 7
        %v592 = vsub.s32 0, %v591
        %v593 = vrot.slane %v589, %v592
        %v726 = vunpack.c.l.b16 %v457
        %v727 = vunpack.c.l.b16 %v458
        %v728 = vunpack.c.l.b16 %v459
        %v729 = vunpack.c.l.b16 %v460
        %v730 = vunpack.c.l.b16 %v461
        %v731 = vunpack.c.l.b16 %v462
        %v732 = vunpack.c.l.b16 %v463
        %v733 = vunpack.c.l.b16 %v464
        %v734 = vunpack.c.l.b16 %v465
        %v735 = vunpack.c.l.b16 %v466
        %v736 = vunpack.c.l.b16 %v467
        %v737 = vunpack.c.l.b16 %v468
        %v738 = vunpack.c.l.b16 %v469
        %v739 = vunpack.c.l.b16 %v470
        %v740 = vunpack.c.l.b16 %v471
        %v741 = vunpack.c.l.b16 %v472
        %v742 = vunpack.c.l.b16 %v473
        %v743 = vunpack.c.l.b16 %v474
        %v744 = vunpack.c.l.b16 %v475
        %v745 = vunpack.c.l.b16 %v476
        %v746 = vunpack.c.l.b16 %v477
        %v747 = vunpack.c.l.b16 %v478
        %v748 = vunpack.c.l.b16 %v479
        %v749 = vunpack.c.l.b16 %v480
        %v750 = vunpack.c.l.b16 %v481
        %v751 = vunpack.c.l.b16 %v482
        %v752 = vunpack.c.l.b16 %v483
        %v753 = vunpack.c.l.b16 %v484
        %v754 = vunpack.c.l.b16 %v485
        %v755 = vunpack.c.l.b16 %v486
        %v756 = vunpack.c.l.b16 %v487
        %v757 = vunpack.c.l.b16 %v488
        %v758 = vunpack.c.l.b16 %v489
        %v759 = vunpack.c.l.b16 %v490
        %v760 = vunpack.c.l.b16 %v491
        %v761 = vunpack.c.l.b16 %v492
        %v762 = vunpack.c.l.b16 %v493
        %v763 = vunpack.c.l.b16 %v494
        %v764 = vunpack.c.l.b16 %v495
        %v765 = vunpack.c.l.b16 %v496
        %v766 = vunpack.c.l.b16 %v497
        %v767 = vunpack.c.l.b16 %v498
        %v768 = vunpack.c.l.b16 %v499
        %v769 = vunpack.c.l.b16 %v500
        %v770 = vunpack.c.l.b16 %v501
        %v771 = vunpack.c.l.b16 %v502
        %v772 = vunpack.c.l.b16 %v503
        %v773 = vunpack.c.l.b16 %v504
        %v774 = vunpack.c.l.b16 %v505
        %v775 = vunpack.c.l.b16 %v506
        %v776 = vunpack.c.l.b16 %v507
        %v777 = vunpack.c.l.b16 %v508
        %v778 = vunpack.c.l.b16 %v509
        %v779 = vunpack.c.l.b16 %v510
        %v780 = vunpack.c.l.b16 %v511
        %v781 = vunpack.c.l.b16 %v512
        %v782 = vunpack.c.l.b16 %v513
        %v783 = vunpack.c.l.b16 %v514
        %v784 = vunpack.c.l.b16 %v515
        %v785 = vunpack.c.l.b16 %v516
        %v786 = vunpack.c.l.b16 %v517
        %v787 = vunpack.c.l.b16 %v518
        %v788 = vunpack.c.l.b16 %v519
        %v789 = vunpack.c.l.b16 %v520
        %v790 = vunpack.c.l.b16 %v521
        %v791 = vunpack.c.l.b16 %v522
        %v792 = vunpack.c.l.b16 %v523
        %v793 = vunpack.c.l.b16 %v524
        %v794 = vunpack.c.l.b16 %v525
        %v795 = vunpack.c.l.b16 %v526
        %v796 = vunpack.c.l.b16 %v527
        %v797 = vunpack.c.l.b16 %v528
        %v798 = vunpack.c.l.b16 %v529
        %v799 = vunpack.c.l.b16 %v530
        %v800 = vunpack.c.l.b16 %v531
        %v801 = vunpack.c.l.b16 %v532
        %v802 = vunpack.c.l.b16 %v533
        %v803 = vunpack.c.l.b16 %v534
        %v804 = vunpack.c.l.b16 %v535
        %v805 = vunpack.c.l.b16 %v536
        %v806 = vunpack.c.l.b16 %v537
        %v807 = vunpack.c.l.b16 %v538
        %v808 = vunpack.c.l.b16 %v539
        %v809 = vunpack.c.l.b16 %v540
        %v810 = vunpack.c.l.b16 %v541
        %v811 = vunpack.c.l.b16 %v542
        %v812 = vunpack.c.l.b16 %v543
        %v813 = vunpack.c.l.b16 %v544
        %v814 = vunpack.c.l.b16 %v545
        %v815 = vunpack.c.l.b16 %v546
        %v816 = vunpack.c.l.b16 %v547
        %v817 = vunpack.c.l.b16 %v548
        %v818 = vunpack.c.l.b16 %v549
        %v819 = vunpack.c.l.b16 %v550
        %v820 = vunpack.c.l.b16 %v551
        %v821 = vunpack.c.l.b16 %v552
        %v822 = vunpack.c.l.b16 %v553
        %v823 = vunpack.c.l.b16 %v554
        %v824 = vunpack.c.l.b16 %v555
        %v825 = vunpack.c.l.b16 %v556
        %v826 = vunpack.c.l.b16 %v557
        %v827 = vunpack.c.l.b16 %v558
        %v828 = vunpack.c.l.b16 %v559
        %v829 = vunpack.c.l.b16 %v560
        %v830 = vunpack.c.l.b16 %v561
        %v831 = vunpack.c.l.b16 %v562
        %v832 = vunpack.c.l.b16 %v563
        %v833 = vunpack.c.l.b16 %v564
        %v834 = vunpack.c.l.b16 %v565
        %v835 = vunpack.c.l.b16 %v566
        %v836 = vunpack.c.l.b16 %v567
        %v837 = vunpack.c.l.b16 %v568
        %v838 = vunpack.c.l.b16 %v569
        %v839 = vunpack.c.l.b16 %v570
        %v840 = vunpack.c.l.b16 %v571
        %v841 = vunpack.c.l.b16 %v572
        %v842 = vunpack.c.l.b16 %v573
        %v843 = vunpack.c.l.b16 %v574
        %v844 = vunpack.c.l.b16 %v575
        %v845 = vunpack.c.l.b16 %v576
        %v846 = vunpack.c.l.b16 %v577
        %v847 = vunpack.c.l.b16 %v578
        %v848 = vunpack.c.l.b16 %v579
        %v849 = vunpack.c.l.b16 %v580
        %v850 = vunpack.c.l.b16 %v581
        %v851 = vunpack.c.l.b16 %v582
        %v852 = vunpack.c.l.b16 %v583
        %v853 = vunpack.c.l.b16 %v584
        %v854 = vunpack.c.l.b16 %v585
        %v855 = vunpack.c.l.b16 %v586
        %v856 = vunpack.c.l.b16 %v587
        %v857 = vunpack.c.l.b16 %v588
        %v858 = vpack.c.b16 %v727, %v726
        %v859 = vpack.c.b16 %v729, %v728
        %v860 = vpack.c.b16 %v731, %v730
        %v861 = vpack.c.b16 %v733, %v732
        %v862 = vpack.c.b16 %v735, %v734
        %v863 = vpack.c.b16 %v737, %v736
        %v864 = vpack.c.b16 %v739, %v738
        %v865 = vpack.c.b16 %v741, %v740
        %v866 = vpack.c.b16 %v743, %v742
        %v867 = vpack.c.b16 %v745, %v744
        %v868 = vpack.c.b16 %v747, %v746
        %v869 = vpack.c.b16 %v749, %v748
        %v870 = vpack.c.b16 %v751, %v750
        %v871 = vpack.c.b16 %v753, %v752
        %v872 = vpack.c.b16 %v755, %v754
        %v873 = vpack.c.b16 %v757, %v756
        %v874 = vpack.c.b16 %v759, %v758
        %v875 = vpack.c.b16 %v761, %v760
        %v876 = vpack.c.b16 %v763, %v762
        %v877 = vpack.c.b16 %v765, %v764
        %v878 = vpack.c.b16 %v767, %v766
        %v879 = vpack.c.b16 %v769, %v768
        %v880 = vpack.c.b16 %v771, %v770
        %v881 = vpack.c.b16 %v773, %v772
        %v882 = vpack.c.b16 %v775, %v774
        %v883 = vpack.c.b16 %v777, %v776
        %v884 = vpack.c.b16 %v779, %v778
        %v885 = vpack.c.b16 %v781, %v780
        %v886 = vpack.c.b16 %v783, %v782
        %v887 = vpack.c.b16 %v785, %v784
        %v888 = vpack.c.b16 %v787, %v786
        %v889 = vpack.c.b16 %v789, %v788
        %v890 = vpack.c.b16 %v791, %v790
        %v891 = vpack.c.b16 %v793, %v792
        %v892 = vpack.c.b16 %v795, %v794
        %v893 = vpack.c.b16 %v797, %v796
        %v894 = vpack.c.b16 %v799, %v798
        %v895 = vpack.c.b16 %v801, %v800
        %v896 = vpack.c.b16 %v803, %v802
        %v897 = vpack.c.b16 %v805, %v804
        %v898 = vpack.c.b16 %v807, %v806
        %v899 = vpack.c.b16 %v809, %v808
        %v900 = vpack.c.b16 %v811, %v810
        %v901 = vpack.c.b16 %v813, %v812
        %v902 = vpack.c.b16 %v815, %v814
        %v903 = vpack.c.b16 %v817, %v816
        %v904 = vpack.c.b16 %v819, %v818
        %v905 = vpack.c.b16 %v821, %v820
        %v906 = vpack.c.b16 %v823, %v822
        %v907 = vpack.c.b16 %v825, %v824
        %v908 = vpack.c.b16 %v827, %v826
        %v909 = vpack.c.b16 %v829, %v828
        %v910 = vpack.c.b16 %v831, %v830
        %v911 = vpack.c.b16 %v833, %v832
        %v912 = vpack.c.b16 %v835, %v834
        %v913 = vpack.c.b16 %v837, %v836
        %v914 = vpack.c.b16 %v839, %v838
        %v915 = vpack.c.b16 %v841, %v840
        %v916 = vpack.c.b16 %v843, %v842
        %v917 = vpack.c.b16 %v845, %v844
        %v918 = vpack.c.b16 %v847, %v846
        %v919 = vpack.c.b16 %v849, %v848
        %v920 = vpack.c.b16 %v851, %v850
        %v921 = vpack.c.b16 %v853, %v852
        %v922 = vpack.c.b16 %v855, %v854
        %v923 = vpack.c.b16 %v857, %v856
        %vm990 = vcmask 261120
        %v992 = vsel %vm990, %v429, 0
        %v995 = vsel %vm990, %v438, 0
        %v998 = vsel %vm990, %v447, 0
        %v1001 = vsel %vm990, %v456, 0
        %1003 = vmatprep.subr.bf16.mxu0 0
        %1004 = vmatpush1.bf16.msra.mxu0 %v858
        %1005 = vmatprep.subr.bf16.mxu0 0
        %1006 = vmatpush1.bf16.msra.mxu0 %v859
        %1007 = vmatprep.subr.bf16.mxu0 0
        %1008 = vmatpush1.bf16.msra.mxu0 %v860
        %1009 = vmatprep.subr.bf16.mxu0 0
        %1010 = vmatpush1.bf16.msra.mxu0 %v861
        %1011 = vmatprep.subr.bf16.mxu0 0
        %1012 = vmatpush1.bf16.msra.mxu0 %v862
        %1013 = vmatprep.subr.bf16.mxu0 0
        %1014 = vmatpush1.bf16.msra.mxu0 %v863
        %1015 = vmatprep.subr.bf16.mxu0 0
        %1016 = vmatpush1.bf16.msra.mxu0 %v864
        %1017 = vmatprep.subr.bf16.mxu0 0
        %1018 = vmatpush1.bf16.msra.mxu0 %v865
        %1019 = vmatprep.subr.bf16.mxu0 0
        %1020 = vmatpush1.bf16.msra.mxu0 %v866
        %1021 = vmatprep.subr.bf16.mxu0 0
        %1022 = vmatpush1.bf16.msra.mxu0 %v867
        %1023 = vmatprep.subr.bf16.mxu0 0
        %1024 = vmatpush1.bf16.msra.mxu0 %v868
        %1025 = vmatprep.subr.bf16.mxu0 0
        %1026 = vmatpush1.bf16.msra.mxu0 %v869
        %1027 = vmatprep.subr.bf16.mxu0 0
        %1028 = vmatpush1.bf16.msra.mxu0 %v870
        %1029 = vmatprep.subr.bf16.mxu0 0
        %1030 = vmatpush1.bf16.msra.mxu0 %v871
        %1031 = vmatprep.subr.bf16.mxu0 0
        %1032 = vmatpush1.bf16.msra.mxu0 %v872
        %1033 = vmatprep.subr.bf16.mxu0 0
        %1034 = vmatpush1.bf16.msra.mxu0 %v873
        %1035 = vmatprep.mubr.bf16.mxu0 %v422
        %1036 = vmatmul.mubr.bf16.gmra.mrb[0].mxu0 %v421
        %v1037 = vpop.f32.mrb[0].mxu0
        %v1038 = vadd.f32 %v593, %v1037
        %v1039 = vpop.f32.mrb[0].mxu0
        %v1040 = vpop.f32.mrb[0].mxu0
        %v1041 = vadd.f32 %v593, %v1040
        %v1042 = vpop.f32.mrb[0].mxu0
        %1043 = vmatprep.mubr.bf16.mxu0 %v431
        %1044 = vmatmul.mubr.bf16.gmra.mrb[0].mxu0 %v430
        %v1045 = vpop.f32.mrb[0].mxu0
        %v1046 = vadd.f32 %v593, %v1045
        %v1047 = vpop.f32.mrb[0].mxu0
        %v1048 = vpop.f32.mrb[0].mxu0
        %v1049 = vadd.f32 %v593, %v1048
        %v1050 = vpop.f32.mrb[0].mxu0
        %1051 = vmatprep.mubr.bf16.mxu0 %v440
        %1052 = vmatmul.mubr.bf16.gmra.mrb[0].mxu0 %v439
        %v1053 = vpop.f32.mrb[0].mxu0
        %v1054 = vadd.f32 %v593, %v1053
        %v1055 = vpop.f32.mrb[0].mxu0
        %v1056 = vpop.f32.mrb[0].mxu0
        %v1057 = vadd.f32 %v593, %v1056
        %v1058 = vpop.f32.mrb[0].mxu0
        %1059 = vmatprep.mubr.bf16.mxu0 %v449
        %1060 = vmatmul.mubr.bf16.gmra.mrb[0].mxu0 %v448
        %v1061 = vpop.f32.mrb[0].mxu0
        %v1062 = vadd.f32 %v593, %v1061
        %v1063 = vpop.f32.mrb[0].mxu0
        %v1064 = vpop.f32.mrb[0].mxu0
        %v1065 = vpop.f32.mrb[0].mxu0
        %1066 = vdwg.mxu0
        %1067 = vmatprep.subr.bf16.mxu0 0
        %1068 = vmatpush1.bf16.msra.mxu0 %v874
        %1069 = vmatprep.subr.bf16.mxu0 0
        %1070 = vmatpush1.bf16.msra.mxu0 %v875
        %1071 = vmatprep.subr.bf16.mxu0 0
        %1072 = vmatpush1.bf16.msra.mxu0 %v876
        %1073 = vmatprep.subr.bf16.mxu0 0
        %1074 = vmatpush1.bf16.msra.mxu0 %v877
        %1075 = vmatprep.subr.bf16.mxu0 0
        %1076 = vmatpush1.bf16.msra.mxu0 %v878
        %1077 = vmatprep.subr.bf16.mxu0 0
        %1078 = vmatpush1.bf16.msra.mxu0 %v879
        %1079 = vmatprep.subr.bf16.mxu0 0
        %1080 = vmatpush1.bf16.msra.mxu0 %v880
        %1081 = vmatprep.subr.bf16.mxu0 0
        %1082 = vmatpush1.bf16.msra.mxu0 %v881
        %1083 = vmatprep.subr.bf16.mxu0 0
        %1084 = vmatpush1.bf16.msra.mxu0 %v882
        %1085 = vmatprep.subr.bf16.mxu0 0
        %1086 = vmatpush1.bf16.msra.mxu0 %v883
        %1087 = vmatprep.subr.bf16.mxu0 0
        %1088 = vmatpush1.bf16.msra.mxu0 %v884
        %1089 = vmatprep.subr.bf16.mxu0 0
        %1090 = vmatpush1.bf16.msra.mxu0 %v885
        %1091 = vmatprep.subr.bf16.mxu0 0
        %1092 = vmatpush1.bf16.msra.mxu0 %v886
        %1093 = vmatprep.subr.bf16.mxu0 0
        %1094 = vmatpush1.bf16.msra.mxu0 %v887
        %1095 = vmatprep.subr.bf16.mxu0 0
        %1096 = vmatpush1.bf16.msra.mxu0 %v888
        %1097 = vmatprep.subr.bf16.mxu0 0
        %1098 = vmatpush1.bf16.msra.mxu0 %v889
        %1099 = vmatprep.mubr.bf16.mxu0 %v424
        %1100 = vmatmul.mubr.bf16.gmra.mrb[0].mxu0 %v423
        %v1101 = vpop.f32.mrb[0].mxu0
        %v1102 = vadd.f32 %v1038, %v1101
        %v1103 = vpop.f32.mrb[0].mxu0
        %v1104 = vpop.f32.mrb[0].mxu0
        %v1105 = vadd.f32 %v1041, %v1104
        %v1106 = vpop.f32.mrb[0].mxu0
        %1107 = vmatprep.mubr.bf16.mxu0 %v433
        %1108 = vmatmul.mubr.bf16.gmra.mrb[0].mxu0 %v432
        %v1109 = vpop.f32.mrb[0].mxu0
        %v1110 = vadd.f32 %v1046, %v1109
        %v1111 = vpop.f32.mrb[0].mxu0
        %v1112 = vpop.f32.mrb[0].mxu0
        %v1113 = vadd.f32 %v1049, %v1112
        %v1114 = vpop.f32.mrb[0].mxu0
        %1115 = vmatprep.mubr.bf16.mxu0 %v442
        %1116 = vmatmul.mubr.bf16.gmra.mrb[0].mxu0 %v441
        %v1117 = vpop.f32.mrb[0].mxu0
        %v1118 = vadd.f32 %v1054, %v1117
        %v1119 = vpop.f32.mrb[0].mxu0
        %v1120 = vpop.f32.mrb[0].mxu0
        %v1121 = vadd.f32 %v1057, %v1120
        %v1122 = vpop.f32.mrb[0].mxu0
        %1123 = vmatprep.mubr.bf16.mxu0 %v451
        %1124 = vmatmul.mubr.bf16.gmra.mrb[0].mxu0 %v450
        %v1125 = vpop.f32.mrb[0].mxu0
        %v1126 = vadd.f32 %v1062, %v1125
        %v1127 = vpop.f32.mrb[0].mxu0
        %v1128 = vpop.f32.mrb[0].mxu0
        %v1129 = vpop.f32.mrb[0].mxu0
        %1130 = vdwg.mxu0
        %1131 = vmatprep.subr.bf16.mxu0 0
        %1132 = vmatpush1.bf16.msra.mxu0 %v890
        %1133 = vmatprep.subr.bf16.mxu0 0
        %1134 = vmatpush1.bf16.msra.mxu0 %v891
        %1135 = vmatprep.subr.bf16.mxu0 0
        %1136 = vmatpush1.bf16.msra.mxu0 %v892
        %1137 = vmatprep.subr.bf16.mxu0 0
        %1138 = vmatpush1.bf16.msra.mxu0 %v893
        %1139 = vmatprep.subr.bf16.mxu0 0
        %1140 = vmatpush1.bf16.msra.mxu0 %v894
        %1141 = vmatprep.subr.bf16.mxu0 0
        %1142 = vmatpush1.bf16.msra.mxu0 %v895
        %1143 = vmatprep.subr.bf16.mxu0 0
        %1144 = vmatpush1.bf16.msra.mxu0 %v896
        %1145 = vmatprep.subr.bf16.mxu0 0
        %1146 = vmatpush1.bf16.msra.mxu0 %v897
        %1147 = vmatprep.subr.bf16.mxu0 0
        %1148 = vmatpush1.bf16.msra.mxu0 %v898
        %1149 = vmatprep.subr.bf16.mxu0 0
        %1150 = vmatpush1.bf16.msra.mxu0 %v899
        %1151 = vmatprep.subr.bf16.mxu0 0
        %1152 = vmatpush1.bf16.msra.mxu0 %v900
        %1153 = vmatprep.subr.bf16.mxu0 0
        %1154 = vmatpush1.bf16.msra.mxu0 %v901
        %1155 = vmatprep.subr.bf16.mxu0 0
        %1156 = vmatpush1.bf16.msra.mxu0 %v902
        %1157 = vmatprep.subr.bf16.mxu0 0
        %1158 = vmatpush1.bf16.msra.mxu0 %v903
        %1159 = vmatprep.subr.bf16.mxu0 0
        %1160 = vmatpush1.bf16.msra.mxu0 %v904
        %1161 = vmatprep.subr.bf16.mxu0 0
        %1162 = vmatpush1.bf16.msra.mxu0 %v905
        %1163 = vmatprep.mubr.bf16.mxu0 %v426
        %1164 = vmatmul.mubr.bf16.gmra.mrb[0].mxu0 %v425
        %v1165 = vpop.f32.mrb[0].mxu0
        %v1166 = vadd.f32 %v1102, %v1165
        %v1167 = vpop.f32.mrb[0].mxu0
        %v1168 = vpop.f32.mrb[0].mxu0
        %v1169 = vadd.f32 %v1105, %v1168
        %v1170 = vpop.f32.mrb[0].mxu0
        %1171 = vmatprep.mubr.bf16.mxu0 %v435
        %1172 = vmatmul.mubr.bf16.gmra.mrb[0].mxu0 %v434
        %v1173 = vpop.f32.mrb[0].mxu0
        %v1174 = vadd.f32 %v1110, %v1173
        %v1175 = vpop.f32.mrb[0].mxu0
        %v1176 = vpop.f32.mrb[0].mxu0
        %v1177 = vadd.f32 %v1113, %v1176
        %v1178 = vpop.f32.mrb[0].mxu0
        %1179 = vmatprep.mubr.bf16.mxu0 %v444
        %1180 = vmatmul.mubr.bf16.gmra.mrb[0].mxu0 %v443
        %v1181 = vpop.f32.mrb[0].mxu0
        %v1182 = vadd.f32 %v1118, %v1181
        %v1183 = vpop.f32.mrb[0].mxu0
        %v1184 = vpop.f32.mrb[0].mxu0
        %v1185 = vadd.f32 %v1121, %v1184
        %v1186 = vpop.f32.mrb[0].mxu0
        %1187 = vmatprep.mubr.bf16.mxu0 %v453
        %1188 = vmatmul.mubr.bf16.gmra.mrb[0].mxu0 %v452
        %v1189 = vpop.f32.mrb[0].mxu0
        %v1190 = vadd.f32 %v1126, %v1189
        %v1191 = vpop.f32.mrb[0].mxu0
        %v1192 = vpop.f32.mrb[0].mxu0
        %v1193 = vpop.f32.mrb[0].mxu0
        %1194 = vdwg.mxu0
        %1195 = vmatprep.subr.bf16.mxu0 0
        %1196 = vmatpush1.bf16.msra.mxu0 %v906
        %1197 = vmatprep.subr.bf16.mxu0 0
        %1198 = vmatpush1.bf16.msra.mxu0 %v907
        %1199 = vmatprep.subr.bf16.mxu0 0
        %1200 = vmatpush1.bf16.msra.mxu0 %v908
        %1201 = vmatprep.subr.bf16.mxu0 0
        %1202 = vmatpush1.bf16.msra.mxu0 %v909
        %1203 = vmatprep.subr.bf16.mxu0 0
        %1204 = vmatpush1.bf16.msra.mxu0 %v910
        %1205 = vmatprep.subr.bf16.mxu0 0
        %1206 = vmatpush1.bf16.msra.mxu0 %v911
        %1207 = vmatprep.subr.bf16.mxu0 0
        %1208 = vmatpush1.bf16.msra.mxu0 %v912
        %1209 = vmatprep.subr.bf16.mxu0 0
        %1210 = vmatpush1.bf16.msra.mxu0 %v913
        %1211 = vmatprep.subr.bf16.mxu0 0
        %1212 = vmatpush1.bf16.msra.mxu0 %v914
        %1213 = vmatprep.subr.bf16.mxu0 0
        %1214 = vmatpush1.bf16.msra.mxu0 %v915
        %1215 = vmatprep.subr.bf16.mxu0 0
        %1216 = vmatpush1.bf16.msra.mxu0 %v916
        %1217 = vmatprep.subr.bf16.mxu0 0
        %1218 = vmatpush1.bf16.msra.mxu0 %v917
        %1219 = vmatprep.subr.bf16.mxu0 0
        %1220 = vmatpush1.bf16.msra.mxu0 %v918
        %1221 = vmatprep.subr.bf16.mxu0 0
        %1222 = vmatpush1.bf16.msra.mxu0 %v919
        %1223 = vmatprep.subr.bf16.mxu0 0
        %1224 = vmatpush1.bf16.msra.mxu0 %v920
        %1225 = vmatprep.subr.bf16.mxu0 0
        %1226 = vmatpush1.bf16.msra.mxu0 %v921
        %1227 = vmatprep.mubr.bf16.mxu0 %v428
        %1228 = vmatmul.mubr.bf16.gmra.mrb[0].mxu0 %v427
        %v1229 = vpop.f32.mrb[0].mxu0
        %v1230 = vadd.f32 %v1166, %v1229
        %v1231 = vpop.f32.mrb[0].mxu0
        %v1232 = vpop.f32.mrb[0].mxu0
        %v1233 = vadd.f32 %v1169, %v1232
        %v1234 = vpop.f32.mrb[0].mxu0
        %1235 = vmatprep.mubr.bf16.mxu0 %v437
        %1236 = vmatmul.mubr.bf16.gmra.mrb[0].mxu0 %v436
        %v1237 = vpop.f32.mrb[0].mxu0
        %v1238 = vadd.f32 %v1174, %v1237
        %v1239 = vpop.f32.mrb[0].mxu0
        %v1240 = vpop.f32.mrb[0].mxu0
        %v1241 = vadd.f32 %v1177, %v1240
        %v1242 = vpop.f32.mrb[0].mxu0
        %1243 = vmatprep.mubr.bf16.mxu0 %v446
        %1244 = vmatmul.mubr.bf16.gmra.mrb[0].mxu0 %v445
        %v1245 = vpop.f32.mrb[0].mxu0
        %v1246 = vadd.f32 %v1182, %v1245
        %v1247 = vpop.f32.mrb[0].mxu0
        %v1248 = vpop.f32.mrb[0].mxu0
        %v1249 = vadd.f32 %v1185, %v1248
        %v1250 = vpop.f32.mrb[0].mxu0
        %1251 = vmatprep.mubr.bf16.mxu0 %v455
        %1252 = vmatmul.mubr.bf16.gmra.mrb[0].mxu0 %v454
        %v1253 = vpop.f32.mrb[0].mxu0
        %v1254 = vadd.f32 %v1190, %v1253
        %v1255 = vpop.f32.mrb[0].mxu0
        %v1256 = vpop.f32.mrb[0].mxu0
        %v1257 = vpop.f32.mrb[0].mxu0
        %1258 = vdwg.mxu0
        %1259 = vmatprep.subr.bf16.mxu0 0
        %1260 = vmatpush1.bf16.msra.mxu0 %v922
        %1261 = vmatprep.subr.bf16.mxu0 0
        %1262 = vmatpush1.bf16.msra.mxu0 %v923
        %1263 = vmatprep.subr.bf16.mxu0 0
        %1264 = vmatpush1.bf16.msra.mxu0 0
        %1265 = vmatprep.subr.bf16.mxu0 0
        %1266 = vmatpush1.bf16.msra.mxu0 0
        %1267 = vmatprep.subr.bf16.mxu0 0
        %1268 = vmatpush1.bf16.msra.mxu0 0
        %1269 = vmatprep.subr.bf16.mxu0 0
        %1270 = vmatpush1.bf16.msra.mxu0 0
        %1271 = vmatprep.subr.bf16.mxu0 0
        %1272 = vmatpush1.bf16.msra.mxu0 0
        %1273 = vmatprep.subr.bf16.mxu0 0
        %1274 = vmatpush1.bf16.msra.mxu0 0
        %1275 = vmatprep.subr.bf16.mxu0 0
        %1276 = vmatpush1.bf16.msra.mxu0 0
        %1277 = vmatprep.subr.bf16.mxu0 0
        %1278 = vmatpush1.bf16.msra.mxu0 0
        %1279 = vmatprep.subr.bf16.mxu0 0
        %1280 = vmatpush1.bf16.msra.mxu0 0
        %1281 = vmatprep.subr.bf16.mxu0 0
        %1282 = vmatpush1.bf16.msra.mxu0 0
        %1283 = vmatprep.subr.bf16.mxu0 0
        %1284 = vmatpush1.bf16.msra.mxu0 0
        %1285 = vmatprep.subr.bf16.mxu0 0
        %1286 = vmatpush1.bf16.msra.mxu0 0
        %1287 = vmatprep.subr.bf16.mxu0 0
        %1288 = vmatpush1.bf16.msra.mxu0 0
        %1289 = vmatprep.subr.bf16.mxu0 0
        %1290 = vmatpush1.bf16.msra.mxu0 0
        %1291 = vmatprep.mubr.bf16.mxu0 0
        %1292 = vmatmul.mubr.bf16.gmra.mrb[0].mxu0 %v992
        %v1293 = vpop.f32.mrb[0].mxu0
        %v1294 = vadd.f32 %v1230, %v1293
        %v1295 = vpop.f32.mrb[0].mxu0
        %v1296 = vpop.f32.mrb[0].mxu0
        %v1297 = vadd.f32 %v1233, %v1296
        %v1298 = vpop.f32.mrb[0].mxu0
        %1299 = vmatprep.mubr.bf16.mxu0 0
        %1300 = vmatmul.mubr.bf16.gmra.mrb[0].mxu0 %v995
        %v1301 = vpop.f32.mrb[0].mxu0
        %v1302 = vadd.f32 %v1238, %v1301
        %v1303 = vpop.f32.mrb[0].mxu0
        %v1304 = vpop.f32.mrb[0].mxu0
        %v1305 = vadd.f32 %v1241, %v1304
        %v1306 = vpop.f32.mrb[0].mxu0
        %1307 = vmatprep.mubr.bf16.mxu0 0
        %1308 = vmatmul.mubr.bf16.gmra.mrb[0].mxu0 %v998
        %v1309 = vpop.f32.mrb[0].mxu0
        %v1310 = vadd.f32 %v1246, %v1309
        %v1311 = vpop.f32.mrb[0].mxu0
        %v1312 = vpop.f32.mrb[0].mxu0
        %v1313 = vadd.f32 %v1249, %v1312
        %v1314 = vpop.f32.mrb[0].mxu0
        %1315 = vmatprep.mubr.bf16.mxu0 0
        %1316 = vmatmul.mubr.bf16.gmra.mrb[0].mxu0 %v1001
        %v1317 = vpop.f32.mrb[0].mxu0
        %v1318 = vadd.f32 %v1254, %v1317
        %v1319 = vpop.f32.mrb[0].mxu0
        %v1320 = vpop.f32.mrb[0].mxu0
        %v1321 = vpop.f32.mrb[0].mxu0
        %1322 = vdwg.mxu0
        %v1323 = vmul.f32 %v1294, 0.5
        %v1324 = vmul.f32 %v1297, 0.5
        %v1325 = vmul.f32 %v1302, 0.5
        %v1326 = vmul.f32 %v1305, 0.5
        %v1327 = vmul.f32 %v1310, 0.5
        %v1328 = vmul.f32 %v1313, 0.5
        %v1329 = vmul.f32 %v1318, 0.5
        %v1330 = vmul.f32 %v1294, 0.044715
        %v1331 = vmul.f32 %v1297, 0.044715
        %v1332 = vmul.f32 %v1302, 0.044715
        %v1333 = vmul.f32 %v1305, 0.044715
        %v1334 = vmul.f32 %v1310, 0.044715
        %v1335 = vmul.f32 %v1313, 0.044715
        %v1336 = vmul.f32 %v1318, 0.044715
        %v1337 = vmul.f32 %v1330, %v1294
        %v1338 = vmul.f32 %v1331, %v1297
        %v1339 = vmul.f32 %v1332, %v1302
        %v1340 = vmul.f32 %v1333, %v1305
        %v1341 = vmul.f32 %v1334, %v1310
        %v1342 = vmul.f32 %v1335, %v1313
        %v1343 = vmul.f32 %v1336, %v1318
        %v1344 = vmul.f32 %v1337, %v1294
        %v1345 = vmul.f32 %v1338, %v1297
        %v1346 = vmul.f32 %v1339, %v1302
        %v1347 = vmul.f32 %v1340, %v1305
        %v1348 = vmul.f32 %v1341, %v1310
        %v1349 = vmul.f32 %v1342, %v1313
        %v1350 = vmul.f32 %v1343, %v1318
        %v1351 = vadd.f32 %v1294, %v1344
        %v1352 = vadd.f32 %v1297, %v1345
        %v1353 = vadd.f32 %v1302, %v1346
        %v1354 = vadd.f32 %v1305, %v1347
        %v1355 = vadd.f32 %v1310, %v1348
        %v1356 = vadd.f32 %v1313, %v1349
        %v1357 = vadd.f32 %v1318, %v1350
        %v1358 = vmul.f32 %v1351, 0.7978846
        %v1359 = vmul.f32 %v1352, 0.7978846
        %v1360 = vmul.f32 %v1353, 0.7978846
        %v1361 = vmul.f32 %v1354, 0.7978846
        %v1362 = vmul.f32 %v1355, 0.7978846
        %v1363 = vmul.f32 %v1356, 0.7978846
        %v1364 = vmul.f32 %v1357, 0.7978846
        %v1365 = vtanh.pop %v1358
        %v1366 = vtanh.pop %v1359
        %v1367 = vtanh.pop %v1360
        %v1368 = vtanh.pop %v1361
        %v1369 = vtanh.pop %v1362
        %v1370 = vtanh.pop %v1363
        %v1371 = vtanh.pop %v1364
        %v1372 = vadd.f32 %v1365, 1.0
        %v1373 = vadd.f32 %v1366, 1.0
        %v1374 = vadd.f32 %v1367, 1.0
        %v1375 = vadd.f32 %v1368, 1.0
        %v1376 = vadd.f32 %v1369, 1.0
        %v1377 = vadd.f32 %v1370, 1.0
        %v1378 = vadd.f32 %v1371, 1.0
        %v1379 = vmul.f32 %v1323, %v1372
        %v1380 = vmul.f32 %v1324, %v1373
        %v1381 = vmul.f32 %v1325, %v1374
        %v1382 = vmul.f32 %v1326, %v1375
        %v1383 = vmul.f32 %v1327, %v1376
        %v1384 = vmul.f32 %v1328, %v1377
        %v1385 = vmul.f32 %v1329, %v1378
        %v1386 = vld [vmem:[%s2 + $0x1] sm:$0x1]
        %v1387 = vlaneseq
        %v1388 = vshrl.u32 %v1387, 7
        %v1389 = vsub.s32 0, %v1388
        %v1390 = vrot.slane %v1386, %v1389
        %v1391 = vmul.f32 %v1379, %v1390
        %v1392 = vmul.f32 %v1380, %v1390
        %v1393 = vmul.f32 %v1381, %v1390
        %v1394 = vmul.f32 %v1382, %v1390
        %v1395 = vmul.f32 %v1383, %v1390
        %v1396 = vmul.f32 %v1384, %v1390
        %v1397 = vmul.f32 %v1385, %v1390
        %v1398 = vld [vmem:[%s2 + $0x2] sm:$0x1]
        %v1399 = vlaneseq
        %v1400 = vshrl.u32 %v1399, 7
        %v1401 = vsub.s32 0, %v1400
        %v1402 = vrot.slane %v1398, %v1401
        %v1403 = vadd.f32 %v1391, %v1402
        %v1404 = vadd.f32 %v1392, %v1402
        %v1405 = vadd.f32 %v1393, %v1402
        %v1406 = vadd.f32 %v1394, %v1402
        %v1407 = vadd.f32 %v1395, %v1402
        %v1408 = vadd.f32 %v1396, %v1402
        %v1409 = vadd.f32 %v1397, %v1402
        %v1410 = vpack.c.bf16 %v1404, %v1403
        %v1411 = vpack.c.bf16 %v1406, %v1405
        %v1412 = vpack.c.bf16 %v1408, %v1407
        %v1413 = vpack.c.bf16 %v1409, %v1409
        %v1414 = vld [vmem:[%s3] sm:$0xf]
        %v1415 = vld [vmem:[%s3 + $0x4] sm:$0xf]
        %v1416 = vld [vmem:[%s3 + $0x8] sm:$0xf]
        %v1417 = vld [vmem:[%s3 + $0xc] sm:$0xf]
        %v1418 = vld [vmem:[%s3 + $0x10] sm:$0xf]
        %v1419 = vld [vmem:[%s3 + $0x14] sm:$0xf]
        %v1420 = vld [vmem:[%s3 + $0x18] sm:$0xf]
        %v1421 = vld [vmem:[%s3 + $0x1c] sm:$0xf]
        %v1422 = vld [vmem:[%s3 + $0x20] sm:$0xf]
        %v1423 = vld [vmem:[%s3 + $0x24] sm:$0xf]
        %v1424 = vld [vmem:[%s3 + $0x28] sm:$0xf]
        %v1425 = vld [vmem:[%s3 + $0x2c] sm:$0xf]
        %v1426 = vld [vmem:[%s4] sm:$0xff]
        %v1427 = vld [vmem:[%s4 + $0x8] sm:$0xff]
        %v1428 = vld [vmem:[%s4 + $0x10] sm:$0xff]
        %v1429 = vld [vmem:[%s4 + $0x18] sm:$0xff]
        %v1430 = vld [vmem:[%s4 + $0x20] sm:$0xff]
        %v1431 = vld [vmem:[%s4 + $0x28] sm:$0xff]
        %v1432 = vld [vmem:[%s4 + $0x30] sm:$0x3]
        %v1445 = vunpack.c.l.b16 %v1414
        %v1446 = vunpack.c.l.b16 %v1415
        %v1447 = vunpack.c.l.b16 %v1416
        %v1448 = vunpack.c.l.b16 %v1417
        %v1449 = vunpack.c.l.b16 %v1418
        %v1450 = vunpack.c.l.b16 %v1419
        %v1451 = vunpack.c.l.b16 %v1420
        %v1452 = vunpack.c.l.b16 %v1421
        %v1453 = vunpack.c.l.b16 %v1422
        %v1454 = vunpack.c.l.b16 %v1423
        %v1455 = vunpack.c.l.b16 %v1424
        %v1456 = vunpack.c.l.b16 %v1425
        %v1457 = vpack.c.b16 %v1446, %v1445
        %v1458 = vpack.c.b16 %v1448, %v1447
        %v1459 = vpack.c.b16 %v1450, %v1449
        %v1460 = vpack.c.b16 %v1452, %v1451
        %v1461 = vpack.c.b16 %v1454, %v1453
        %v1462 = vpack.c.b16 %v1456, %v1455
        %vm1469 = vcmask 785408
        %v1471 = vsel %vm1469, %v1410, 0
        %v1474 = vsel %vm1469, %v1411, 0
        %v1477 = vsel %vm1469, %v1412, 0
        %v1480 = vsel %vm1469, %v1413, 0
        %1482 = vmatprep.subr.bf16.mxu0 0
        %1483 = vmatpush1.bf16.msra.mxu0 %v1457
        %1484 = vmatprep.subr.bf16.mxu0 0
        %1485 = vmatpush1.bf16.msra.mxu0 %v1458
        %1486 = vmatprep.subr.bf16.mxu0 0
        %1487 = vmatpush1.bf16.msra.mxu0 %v1459
        %1488 = vmatprep.subr.bf16.mxu0 0
        %1489 = vmatpush1.bf16.msra.mxu0 %v1460
        %1490 = vmatprep.subr.bf16.mxu0 0
        %1491 = vmatpush1.bf16.msra.mxu0 %v1461
        %1492 = vmatprep.subr.bf16.mxu0 0
        %1493 = vmatpush1.bf16.msra.mxu0 %v1462
        %1494 = vmatprep.subr.bf16.mxu0 0
        %1495 = vmatpush1.bf16.msra.mxu0 0
        %1496 = vmatprep.subr.bf16.mxu0 0
        %1497 = vmatpush1.bf16.msra.mxu0 0
        %1498 = vmatprep.subr.bf16.mxu0 0
        %1499 = vmatpush1.bf16.msra.mxu0 0
        %1500 = vmatprep.subr.bf16.mxu0 0
        %1501 = vmatpush1.bf16.msra.mxu0 0
        %1502 = vmatprep.subr.bf16.mxu0 0
        %1503 = vmatpush1.bf16.msra.mxu0 0
        %1504 = vmatprep.subr.bf16.mxu0 0
        %1505 = vmatpush1.bf16.msra.mxu0 0
        %1506 = vmatprep.subr.bf16.mxu0 0
        %1507 = vmatpush1.bf16.msra.mxu0 0
        %1508 = vmatprep.subr.bf16.mxu0 0
        %1509 = vmatpush1.bf16.msra.mxu0 0
        %1510 = vmatprep.subr.bf16.mxu0 0
        %1511 = vmatpush1.bf16.msra.mxu0 0
        %1512 = vmatprep.subr.bf16.mxu0 0
        %1513 = vmatpush1.bf16.msra.mxu0 0
        %1514 = vmatprep.mubr.bf16.mxu0 0
        %1515 = vmatmul.mubr.bf16.gmra.mrb[0].mxu0 %v1471
        %v1516 = vpop.f32.mrb[0].mxu0
        %v1517 = vadd.f32 %v1426, %v1516
        %v1518 = vpop.f32.mrb[0].mxu0
        %v1519 = vpop.f32.mrb[0].mxu0
        %v1520 = vadd.f32 %v1427, %v1519
        %v1521 = vpop.f32.mrb[0].mxu0
        %1522 = vmatprep.mubr.bf16.mxu0 0
        %1523 = vmatmul.mubr.bf16.gmra.mrb[0].mxu0 %v1474
        %v1524 = vpop.f32.mrb[0].mxu0
        %v1525 = vadd.f32 %v1428, %v1524
        %v1526 = vpop.f32.mrb[0].mxu0
        %v1527 = vpop.f32.mrb[0].mxu0
        %v1528 = vadd.f32 %v1429, %v1527
        %v1529 = vpop.f32.mrb[0].mxu0
        %1530 = vmatprep.mubr.bf16.mxu0 0
        %1531 = vmatmul.mubr.bf16.gmra.mrb[0].mxu0 %v1477
        %v1532 = vpop.f32.mrb[0].mxu0
        %v1533 = vadd.f32 %v1430, %v1532
        %v1534 = vpop.f32.mrb[0].mxu0
        %v1535 = vpop.f32.mrb[0].mxu0
        %v1536 = vadd.f32 %v1431, %v1535
        %v1537 = vpop.f32.mrb[0].mxu0
        %1538 = vmatprep.mubr.bf16.mxu0 0
        %1539 = vmatmul.mubr.bf16.gmra.mrb[0].mxu0 %v1480
        %v1540 = vpop.f32.mrb[0].mxu0
        %v1541 = vadd.f32 %v1432, %v1540
        %v1542 = vpop.f32.mrb[0].mxu0
        %v1543 = vpop.f32.mrb[0].mxu0
        %v1544 = vpop.f32.mrb[0].mxu0
        %1545 = vdwg.mxu0
        %v1546 = vld [vmem:[%s5] sm:$0xff]
        %v1547 = vld [vmem:[%s5 + $0x8] sm:$0xf]
        %v1548 = vld [vmem:[%s5 + $0xc] sm:$0xff]
        %v1549 = vld [vmem:[%s5 + $0x14] sm:$0xf]
        %v1550 = vld [vmem:[%s5 + $0x18] sm:$0xff]
        %v1551 = vld [vmem:[%s5 + $0x20] sm:$0xf]
        %v1552 = vld [vmem:[%s5 + $0x24] sm:$0xff]
        %v1553 = vld [vmem:[%s5 + $0x2c] sm:$0xf]
        %v1554 = vld [vmem:[%s5 + $0x30] sm:$0xff]
        %v1555 = vld [vmem:[%s5 + $0x38] sm:$0xf]
        %v1556 = vld [vmem:[%s5 + $0x3c] sm:$0xff]
        %v1557 = vld [vmem:[%s5 + $0x44] sm:$0xf]
        %v1558 = vld [vmem:[%s5 + $0x48] sm:$0xff]
        %v1559 = vld [vmem:[%s5 + $0x50] sm:$0xf]
        %v1560 = vld [vmem:[%s5 + $0x54] sm:$0xff]
        %v1561 = vld [vmem:[%s5 + $0x5c] sm:$0xf]
        %v1562 = vld [vmem:[%s8] sm:$0xff]
        %v1563 = vld [vmem:[%s8 + $0x8] sm:$0xff]
        %v1564 = vld [vmem:[%s8 + $0x10] sm:$0x1]
        %v1565 = vpack.c.bf16 %v1520, %v1517
        %v1566 = vpack.c.bf16 %v1528, %v1525
        %v1567 = vpack.c.bf16 %v1536, %v1533
        %v1568 = vpack.c.bf16 %v1541, %v1541
        %v1585 = vunpack.c.l.b16 %v1546
        %v1586 = vunpack.c.h.b16 %v1546
        %v1587 = vunpack.c.l.b16 %v1547
        %v1588 = vunpack.c.l.b16 %v1548
        %v1589 = vunpack.c.h.b16 %v1548
        %v1590 = vunpack.c.l.b16 %v1549
        %v1591 = vunpack.c.l.b16 %v1550
        %v1592 = vunpack.c.h.b16 %v1550
        %v1593 = vunpack.c.l.b16 %v1551
        %v1594 = vunpack.c.l.b16 %v1552
        %v1595 = vunpack.c.h.b16 %v1552
        %v1596 = vunpack.c.l.b16 %v1553
        %v1597 = vunpack.c.l.b16 %v1554
        %v1598 = vunpack.c.h.b16 %v1554
        %v1599 = vunpack.c.l.b16 %v1555
        %v1600 = vunpack.c.l.b16 %v1556
        %v1601 = vunpack.c.h.b16 %v1556
        %v1602 = vunpack.c.l.b16 %v1557
        %v1603 = vunpack.c.l.b16 %v1558
        %v1604 = vunpack.c.h.b16 %v1558
        %v1605 = vunpack.c.l.b16 %v1559
        %v1606 = vunpack.c.l.b16 %v1560
        %v1607 = vunpack.c.h.b16 %v1560
        %v1608 = vunpack.c.l.b16 %v1561
        %v1609 = vpack.c.b16 %v1588, %v1585
        %v1610 = vpack.c.b16 %v1589, %v1586
        %v1611 = vpack.c.b16 %v1590, %v1587
        %v1612 = vpack.c.b16 %v1594, %v1591
        %v1613 = vpack.c.b16 %v1595, %v1592
        %v1614 = vpack.c.b16 %v1596, %v1593
        %v1615 = vpack.c.b16 %v1600, %v1597
        %v1616 = vpack.c.b16 %v1601, %v1598
        %v1617 = vpack.c.b16 %v1602, %v1599
        %v1618 = vpack.c.b16 %v1606, %v1603
        %v1619 = vpack.c.b16 %v1607, %v1604
        %v1620 = vpack.c.b16 %v1608, %v1605
        %vm1633 = vcmask 523264
        %v1635 = vsel %vm1633, %v1565, 0
        %v1638 = vsel %vm1633, %v1566, 0
        %v1641 = vsel %vm1633, %v1567, 0
        %v1644 = vsel %vm1633, %v1568, 0
        %1646 = vmatprep.subr.bf16.mxu0 %v1610
        %1647 = vmatpush1.bf16.msra.mxu0 %v1609
        %1648 = vmatprep.subr.bf16.mxu0 %v1613
        %1649 = vmatpush1.bf16.msra.mxu0 %v1612
        %1650 = vmatprep.subr.bf16.mxu0 %v1616
        %1651 = vmatpush1.bf16.msra.mxu0 %v1615
        %1652 = vmatprep.subr.bf16.mxu0 %v1619
        %1653 = vmatpush1.bf16.msra.mxu0 %v1618
        %1654 = vmatprep.subr.bf16.mxu0 0
        %1655 = vmatpush1.bf16.msra.mxu0 0
        %1656 = vmatprep.subr.bf16.mxu0 0
        %1657 = vmatpush1.bf16.msra.mxu0 0
        %1658 = vmatprep.subr.bf16.mxu0 0
        %1659 = vmatpush1.bf16.msra.mxu0 0
        %1660 = vmatprep.subr.bf16.mxu0 0
        %1661 = vmatpush1.bf16.msra.mxu0 0
        %1662 = vmatprep.subr.bf16.mxu0 0
        %1663 = vmatpush1.bf16.msra.mxu0 0
        %1664 = vmatprep.subr.bf16.mxu0 0
        %1665 = vmatpush1.bf16.msra.mxu0 0
        %1666 = vmatprep.subr.bf16.mxu0 0
        %1667 = vmatpush1.bf16.msra.mxu0 0
        %1668 = vmatprep.subr.bf16.mxu0 0
        %1669 = vmatpush1.bf16.msra.mxu0 0
        %1670 = vmatprep.subr.bf16.mxu0 0
        %1671 = vmatpush1.bf16.msra.mxu0 0
        %1672 = vmatprep.subr.bf16.mxu0 0
        %1673 = vmatpush1.bf16.msra.mxu0 0
        %1674 = vmatprep.subr.bf16.mxu0 0
        %1675 = vmatpush1.bf16.msra.mxu0 0
        %1676 = vmatprep.subr.bf16.mxu0 0
        %1677 = vmatpush1.bf16.msra.mxu0 0
        %1678 = vmatprep.mubr.bf16.mxu0 0
        %1679 = vmatmul.mubr.bf16.gmra.mrb[0].mxu0 %v1635
        %v1680 = vpop.f32.mrb[0].mxu0
        %v1681 = vadd.f32 0.0, %v1680
        %v1682 = vpop.f32.mrb[0].mxu0
        %v1683 = vadd.f32 0.0, %v1682
        %v1684 = vpop.f32.mrb[0].mxu0
        %v1685 = vadd.f32 0.0, %v1684
        %v1686 = vpop.f32.mrb[0].mxu0
        %v1687 = vadd.f32 0.0, %v1686
        %1688 = vmatprep.mubr.bf16.mxu0 0
        %1689 = vmatmul.mubr.bf16.gmra.mrb[0].mxu0 %v1638
        %v1690 = vpop.f32.mrb[0].mxu0
        %v1691 = vadd.f32 0.0, %v1690
        %v1692 = vpop.f32.mrb[0].mxu0
        %v1693 = vadd.f32 0.0, %v1692
        %v1694 = vpop.f32.mrb[0].mxu0
        %v1695 = vadd.f32 0.0, %v1694
        %v1696 = vpop.f32.mrb[0].mxu0
        %v1697 = vadd.f32 0.0, %v1696
        %1698 = vmatprep.mubr.bf16.mxu0 0
        %1699 = vmatmul.mubr.bf16.gmra.mrb[0].mxu0 %v1641
        %v1700 = vpop.f32.mrb[0].mxu0
        %v1701 = vadd.f32 0.0, %v1700
        %v1702 = vpop.f32.mrb[0].mxu0
        %v1703 = vadd.f32 0.0, %v1702
        %v1704 = vpop.f32.mrb[0].mxu0
        %v1705 = vadd.f32 0.0, %v1704
        %v1706 = vpop.f32.mrb[0].mxu0
        %v1707 = vadd.f32 0.0, %v1706
        %1708 = vmatprep.mubr.bf16.mxu0 0
        %1709 = vmatmul.mubr.bf16.gmra.mrb[0].mxu0 %v1644
        %v1710 = vpop.f32.mrb[0].mxu0
        %v1711 = vadd.f32 0.0, %v1710
        %v1712 = vpop.f32.mrb[0].mxu0
        %v1713 = vadd.f32 0.0, %v1712
        %v1714 = vpop.f32.mrb[0].mxu0
        %v1715 = vpop.f32.mrb[0].mxu0
        %1716 = vdwg.mxu0
        %1717 = vmatprep.subr.bf16.mxu0 0
        %1718 = vmatpush1.bf16.msra.mxu0 %v1611
        %1719 = vmatprep.subr.bf16.mxu0 0
        %1720 = vmatpush1.bf16.msra.mxu0 %v1614
        %1721 = vmatprep.subr.bf16.mxu0 0
        %1722 = vmatpush1.bf16.msra.mxu0 %v1617
        %1723 = vmatprep.subr.bf16.mxu0 0
        %1724 = vmatpush1.bf16.msra.mxu0 %v1620
        %1725 = vmatprep.subr.bf16.mxu0 0
        %1726 = vmatpush1.bf16.msra.mxu0 0
        %1727 = vmatprep.subr.bf16.mxu0 0
        %1728 = vmatpush1.bf16.msra.mxu0 0
        %1729 = vmatprep.subr.bf16.mxu0 0
        %1730 = vmatpush1.bf16.msra.mxu0 0
        %1731 = vmatprep.subr.bf16.mxu0 0
        %1732 = vmatpush1.bf16.msra.mxu0 0
        %1733 = vmatprep.subr.bf16.mxu0 0
        %1734 = vmatpush1.bf16.msra.mxu0 0
        %1735 = vmatprep.subr.bf16.mxu0 0
        %1736 = vmatpush1.bf16.msra.mxu0 0
        %1737 = vmatprep.subr.bf16.mxu0 0
        %1738 = vmatpush1.bf16.msra.mxu0 0
        %1739 = vmatprep.subr.bf16.mxu0 0
        %1740 = vmatpush1.bf16.msra.mxu0 0
        %1741 = vmatprep.subr.bf16.mxu0 0
        %1742 = vmatpush1.bf16.msra.mxu0 0
        %1743 = vmatprep.subr.bf16.mxu0 0
        %1744 = vmatpush1.bf16.msra.mxu0 0
        %1745 = vmatprep.subr.bf16.mxu0 0
        %1746 = vmatpush1.bf16.msra.mxu0 0
        %1747 = vmatprep.subr.bf16.mxu0 0
        %1748 = vmatpush1.bf16.msra.mxu0 0
        %1749 = vmatprep.mubr.bf16.mxu0 0
        %1750 = vmatmul.mubr.bf16.gmra.mrb[0].mxu0 %v1635
        %v1751 = vpop.f32.mrb[0].mxu0
        %v1752 = vadd.f32 0.0, %v1751
        %v1753 = vpop.f32.mrb[0].mxu0
        %v1754 = vpop.f32.mrb[0].mxu0
        %v1755 = vadd.f32 0.0, %v1754
        %v1756 = vpop.f32.mrb[0].mxu0
        %1757 = vmatprep.mubr.bf16.mxu0 0
        %1758 = vmatmul.mubr.bf16.gmra.mrb[0].mxu0 %v1638
        %v1759 = vpop.f32.mrb[0].mxu0
        %v1760 = vadd.f32 0.0, %v1759
        %v1761 = vpop.f32.mrb[0].mxu0
        %v1762 = vpop.f32.mrb[0].mxu0
        %v1763 = vadd.f32 0.0, %v1762
        %v1764 = vpop.f32.mrb[0].mxu0
        %1765 = vmatprep.mubr.bf16.mxu0 0
        %1766 = vmatmul.mubr.bf16.gmra.mrb[0].mxu0 %v1641
        %v1767 = vpop.f32.mrb[0].mxu0
        %v1768 = vadd.f32 0.0, %v1767
        %v1769 = vpop.f32.mrb[0].mxu0
        %v1770 = vpop.f32.mrb[0].mxu0
        %v1771 = vadd.f32 0.0, %v1770
        %v1772 = vpop.f32.mrb[0].mxu0
        %1773 = vmatprep.mubr.bf16.mxu0 0
        %1774 = vmatmul.mubr.bf16.gmra.mrb[0].mxu0 %v1644
        %v1775 = vpop.f32.mrb[0].mxu0
        %v1776 = vadd.f32 0.0, %v1775
        %v1777 = vpop.f32.mrb[0].mxu0
        %v1778 = vpop.f32.mrb[0].mxu0
        %v1779 = vpop.f32.mrb[0].mxu0
        %1780 = vdwg.mxu0
        %v1781 = vlaneseq
        %v1782 = vshrl.u32 %v1781, 7
        %v1783 = vsub.s32 0, %v1782
        %v1784 = vrot.slane %v1562, %v1783
        %v1785 = vadd.f32 %v1681, %v1784
        %v1786 = vadd.f32 %v1685, %v1784
        %v1787 = vadd.f32 %v1691, %v1784
        %v1788 = vadd.f32 %v1695, %v1784
        %v1789 = vadd.f32 %v1701, %v1784
        %v1790 = vadd.f32 %v1705, %v1784
        %v1791 = vadd.f32 %v1711, %v1784
        %v1792 = vlaneseq
        %v1793 = vshrl.u32 %v1792, 7
        %v1794 = vsub.s32 1, %v1793
        %v1795 = vrot.slane %v1562, %v1794
        %1797 = vrot.lane.b32.xlu0 %v1795, 64
        %v1798 = vpop.permute.xlu0 %1797
        %v1800 = vadd.f32 %v1681, %v1798
        %v1801 = vadd.f32 %v1685, %v1798
        %v1802 = vadd.f32 %v1691, %v1798
        %v1803 = vadd.f32 %v1695, %v1798
        %v1804 = vadd.f32 %v1701, %v1798
        %v1805 = vadd.f32 %v1705, %v1798
        %v1806 = vadd.f32 %v1711, %v1798
        %v1807 = vpack.c.bf16 %v1786, %v1785
        %v1808 = vpack.c.bf16 %v1788, %v1787
        %v1809 = vpack.c.bf16 %v1790, %v1789
        %v1810 = vpack.c.bf16 %v1791, %v1791
        %v1811 = vpack.c.bf16 %v1801, %v1800
        %v1812 = vpack.c.bf16 %v1803, %v1802
        %v1813 = vpack.c.bf16 %v1805, %v1804
        %v1814 = vpack.c.bf16 %v1806, %v1806
        %1819 = vrot.lane.b32.xlu0 %v1811, 64
        %v1820 = vpop.permute.xlu0 %1819
        %1821 = vrot.lane.b32.xlu0 %v1812, 64
        %v1822 = vpop.permute.xlu0 %1821
        %1823 = vrot.lane.b32.xlu0 %v1813, 64
        %v1824 = vpop.permute.xlu0 %1823
        %1825 = vrot.lane.b32.xlu0 %v1814, 64
        %v1826 = vpop.permute.xlu0 %1825
        %vm1827 = vcmask 130048
        %v1829 = vsel %vm1827, %v1807, 0
        %v1832 = vsel %vm1827, %v1808, 0
        %v1835 = vsel %vm1827, %v1809, 0
        %v1838 = vsel %vm1827, %v1810, 0
        %v1841 = vsel %vm1827, %v1820, 0
        %v1844 = vsel %vm1827, %v1822, 0
        %v1847 = vsel %vm1827, %v1824, 0
        %v1850 = vsel %vm1827, %v1826, 0
        %1852 = vmatprep.subr.bf16.mxu0 0
        %1853 = vmatpush1.bf16.xpose.msra.mxu0 %v1841
        %1854 = vmatprep.subr.bf16.mxu0 0
        %1855 = vmatpush1.bf16.xpose.msra.mxu0 %v1844
        %1856 = vmatprep.subr.bf16.mxu0 0
        %1857 = vmatpush1.bf16.xpose.msra.mxu0 %v1847
        %1858 = vmatprep.subr.bf16.mxu0 0
        %1859 = vmatpush1.bf16.xpose.msra.mxu0 %v1850
        %1860 = vmatprep.subr.bf16.mxu0 0
        %1861 = vmatpush1.bf16.xpose.msra.mxu0 0
        %1862 = vmatprep.subr.bf16.mxu0 0
        %1863 = vmatpush1.bf16.xpose.msra.mxu0 0
        %1864 = vmatprep.subr.bf16.mxu0 0
        %1865 = vmatpush1.bf16.xpose.msra.mxu0 0
        %1866 = vmatprep.subr.bf16.mxu0 0
        %1867 = vmatpush1.bf16.xpose.msra.mxu0 0
        %1868 = vmatprep.subr.bf16.mxu0 0
        %1869 = vmatpush1.bf16.xpose.msra.mxu0 0
        %1870 = vmatprep.subr.bf16.mxu0 0
        %1871 = vmatpush1.bf16.xpose.msra.mxu0 0
        %1872 = vmatprep.subr.bf16.mxu0 0
        %1873 = vmatpush1.bf16.xpose.msra.mxu0 0
        %1874 = vmatprep.subr.bf16.mxu0 0
        %1875 = vmatpush1.bf16.xpose.msra.mxu0 0
        %1876 = vmatprep.subr.bf16.mxu0 0
        %1877 = vmatpush1.bf16.xpose.msra.mxu0 0
        %1878 = vmatprep.subr.bf16.mxu0 0
        %1879 = vmatpush1.bf16.xpose.msra.mxu0 0
        %1880 = vmatprep.subr.bf16.mxu0 0
        %1881 = vmatpush1.bf16.xpose.msra.mxu0 0
        %1882 = vmatprep.subr.bf16.mxu0 0
        %1883 = vmatpush1.bf16.xpose.msra.mxu0 0
        %1884 = vmatprep.mubr.bf16.mxu0 0
        %1885 = vmatmul.mubr.bf16.gmra.mrb[0].mxu0 %v1829
        %v1886 = vpop.f32.mrb[0].mxu0
        %v1887 = vadd.f32 0.0, %v1886
        %v1888 = vpop.f32.mrb[0].mxu0
        %v1889 = vpop.f32.mrb[0].mxu0
        %v1890 = vadd.f32 0.0, %v1889
        %v1891 = vpop.f32.mrb[0].mxu0
        %1892 = vmatprep.mubr.bf16.mxu0 0
        %1893 = vmatmul.mubr.bf16.gmra.mrb[0].mxu0 %v1832
        %v1894 = vpop.f32.mrb[0].mxu0
        %v1895 = vadd.f32 0.0, %v1894
        %v1896 = vpop.f32.mrb[0].mxu0
        %v1897 = vpop.f32.mrb[0].mxu0
        %v1898 = vadd.f32 0.0, %v1897
        %v1899 = vpop.f32.mrb[0].mxu0
        %1900 = vmatprep.mubr.bf16.mxu0 0
        %1901 = vmatmul.mubr.bf16.gmra.mrb[0].mxu0 %v1835
        %v1902 = vpop.f32.mrb[0].mxu0
        %v1903 = vadd.f32 0.0, %v1902
        %v1904 = vpop.f32.mrb[0].mxu0
        %v1905 = vpop.f32.mrb[0].mxu0
        %v1906 = vadd.f32 0.0, %v1905
        %v1907 = vpop.f32.mrb[0].mxu0
        %1908 = vmatprep.mubr.bf16.mxu0 0
        %1909 = vmatmul.mubr.bf16.gmra.mrb[0].mxu0 %v1838
        %v1910 = vpop.f32.mrb[0].mxu0
        %v1911 = vadd.f32 0.0, %v1910
        %v1912 = vpop.f32.mrb[0].mxu0
        %v1913 = vpop.f32.mrb[0].mxu0
        %v1914 = vpop.f32.mrb[0].mxu0
        %1915 = vdwg.mxu0
        %v1916 = vmul.f32 %v1887, 0.25
        %v1917 = vmul.f32 %v1890, 0.25
        %v1918 = vmul.f32 %v1895, 0.25
        %v1919 = vmul.f32 %v1898, 0.25
        %v1920 = vmul.f32 %v1903, 0.25
        %v1921 = vmul.f32 %v1906, 0.25
        %v1922 = vmul.f32 %v1911, 0.25
        %vm1923 = vcmask 408576
        %v1924 = vsel %vm1923, %v1916, -inf
        %1925 = vmax.xlane.f32.xlu0 %v1924
        %v1926 = vpop.xlane.xlu0 %1925
        %v1927 = vsel %vm1923, %v1917, -inf
        %1928 = vmax.xlane.f32.xlu0 %v1927
        %v1929 = vpop.xlane.xlu0 %1928
        %v1930 = vsel %vm1923, %v1918, -inf
        %1931 = vmax.xlane.f32.xlu0 %v1930
        %v1932 = vpop.xlane.xlu0 %1931
        %v1933 = vsel %vm1923, %v1919, -inf
        %1934 = vmax.xlane.f32.xlu0 %v1933
        %v1935 = vpop.xlane.xlu0 %1934
        %v1936 = vsel %vm1923, %v1920, -inf
        %1937 = vmax.xlane.f32.xlu0 %v1936
        %v1938 = vpop.xlane.xlu0 %1937
        %v1939 = vsel %vm1923, %v1921, -inf
        %1940 = vmax.xlane.f32.xlu0 %v1939
        %v1941 = vpop.xlane.xlu0 %1940
        %vm1942 = vcmask 402432
        %v1943 = vsel %vm1942, %v1922, -inf
        %1944 = vmax.xlane.f32.xlu0 %v1943
        %v1945 = vpop.xlane.xlu0 %1944
        %v1946 = vsub.f32 %v1916, %v1926
        %v1947 = vsub.f32 %v1917, %v1929
        %v1948 = vsub.f32 %v1918, %v1932
        %v1949 = vsub.f32 %v1919, %v1935
        %v1950 = vsub.f32 %v1920, %v1938
        %v1951 = vsub.f32 %v1921, %v1941
        %v1952 = vsub.f32 %v1922, %v1945
        %v1953 = vmul.f32 %v1946, 1.442695
        %v1954 = vpow.pop %v1953
        %v1955 = vmul.f32 %v1947, 1.442695
        %v1956 = vpow.pop %v1955
        %v1957 = vmul.f32 %v1948, 1.442695
        %v1958 = vpow.pop %v1957
        %v1959 = vmul.f32 %v1949, 1.442695
        %v1960 = vpow.pop %v1959
        %v1961 = vmul.f32 %v1950, 1.442695
        %v1962 = vpow.pop %v1961
        %v1963 = vmul.f32 %v1951, 1.442695
        %v1964 = vpow.pop %v1963
        %v1965 = vmul.f32 %v1952, 1.442695
        %v1966 = vpow.pop %v1965
        %v1967 = vsel %vm1923, %v1954, 0.0
        %1968 = vadd.xlane.f32.xlu0 %v1967
        %v1969 = vpop.xlane.xlu0 %1968
        %v1970 = vsel %vm1923, %v1956, 0.0
        %1971 = vadd.xlane.f32.xlu0 %v1970
        %v1972 = vpop.xlane.xlu0 %1971
        %v1973 = vsel %vm1923, %v1958, 0.0
        %1974 = vadd.xlane.f32.xlu0 %v1973
        %v1975 = vpop.xlane.xlu0 %1974
        %v1976 = vsel %vm1923, %v1960, 0.0
        %1977 = vadd.xlane.f32.xlu0 %v1976
        %v1978 = vpop.xlane.xlu0 %1977
        %v1979 = vsel %vm1923, %v1962, 0.0
        %1980 = vadd.xlane.f32.xlu0 %v1979
        %v1981 = vpop.xlane.xlu0 %1980
        %v1982 = vsel %vm1923, %v1964, 0.0
        %1983 = vadd.xlane.f32.xlu0 %v1982
        %v1984 = vpop.xlane.xlu0 %1983
        %v1985 = vsel %vm1942, %v1966, 0.0
        %1986 = vadd.xlane.f32.xlu0 %v1985
        %v1987 = vpop.xlane.xlu0 %1986
        %v1988 = vrcp.pop %v1969
        %v1989 = vrcp.pop %v1972
        %v1990 = vrcp.pop %v1975
        %v1991 = vrcp.pop %v1978
        %v1992 = vrcp.pop %v1981
        %v1993 = vrcp.pop %v1984
        %v1994 = vrcp.pop %v1987
        %v1995 = vmul.f32 %v1954, %v1988
        %v1996 = vmul.f32 %v1956, %v1989
        %v1997 = vmul.f32 %v1958, %v1990
        %v1998 = vmul.f32 %v1960, %v1991
        %v1999 = vmul.f32 %v1962, %v1992
        %v2000 = vmul.f32 %v1964, %v1993
        %v2001 = vmul.f32 %v1966, %v1994
        %v2002 = vpack.c.bf16 %v1996, %v1995
        %v2003 = vpack.c.bf16 %v1998, %v1997
        %v2004 = vpack.c.bf16 %v2000, %v1999
        %v2005 = vpack.c.bf16 %v2001, %v2001
        %v2006 = vpack.c.bf16 %v1687, %v1683
        %v2007 = vpack.c.bf16 %v1697, %v1693
        %v2008 = vpack.c.bf16 %v1707, %v1703
        %v2009 = vpack.c.bf16 %v1713, %v1713
        %2014 = vrot.lane.b32.xlu0 %v1807, 112
        %v2015 = vpop.permute.xlu0 %2014
        %2016 = vrot.lane.b32.xlu0 %v1808, 112
        %v2017 = vpop.permute.xlu0 %2016
        %2018 = vrot.lane.b32.xlu0 %v1809, 112
        %v2019 = vpop.permute.xlu0 %2018
        %2020 = vrot.lane.b32.xlu0 %v1810, 112
        %v2021 = vpop.permute.xlu0 %2020
        %2022 = vrot.lane.b32.xlu0 %v1811, 48
        %v2023 = vpop.permute.xlu0 %2022
        %2024 = vrot.lane.b32.xlu0 %v1812, 48
        %v2025 = vpop.permute.xlu0 %2024
        %2026 = vrot.lane.b32.xlu0 %v1813, 48
        %v2027 = vpop.permute.xlu0 %2026
        %2028 = vrot.lane.b32.xlu0 %v1814, 48
        %v2029 = vpop.permute.xlu0 %2028
        %v2031 = vsel %vm1827, %v2015, 0
        %v2034 = vsel %vm1827, %v2017, 0
        %v2037 = vsel %vm1827, %v2019, 0
        %v2040 = vsel %vm1827, %v2021, 0
        %v2043 = vsel %vm1827, %v2023, 0
        %v2046 = vsel %vm1827, %v2025, 0
        %v2049 = vsel %vm1827, %v2027, 0
        %v2052 = vsel %vm1827, %v2029, 0
        %2054 = vmatprep.subr.bf16.mxu0 0
        %2055 = vmatpush1.bf16.xpose.msra.mxu0 %v2043
        %2056 = vmatprep.subr.bf16.mxu0 0
        %2057 = vmatpush1.bf16.xpose.msra.mxu0 %v2046
        %2058 = vmatprep.subr.bf16.mxu0 0
        %2059 = vmatpush1.bf16.xpose.msra.mxu0 %v2049
        %2060 = vmatprep.subr.bf16.mxu0 0
        %2061 = vmatpush1.bf16.xpose.msra.mxu0 %v2052
        %2062 = vmatprep.subr.bf16.mxu0 0
        %2063 = vmatpush1.bf16.xpose.msra.mxu0 0
        %2064 = vmatprep.subr.bf16.mxu0 0
        %2065 = vmatpush1.bf16.xpose.msra.mxu0 0
        %2066 = vmatprep.subr.bf16.mxu0 0
        %2067 = vmatpush1.bf16.xpose.msra.mxu0 0
        %2068 = vmatprep.subr.bf16.mxu0 0
        %2069 = vmatpush1.bf16.xpose.msra.mxu0 0
        %2070 = vmatprep.subr.bf16.mxu0 0
        %2071 = vmatpush1.bf16.xpose.msra.mxu0 0
        %2072 = vmatprep.subr.bf16.mxu0 0
        %2073 = vmatpush1.bf16.xpose.msra.mxu0 0
        %2074 = vmatprep.subr.bf16.mxu0 0
        %2075 = vmatpush1.bf16.xpose.msra.mxu0 0
        %2076 = vmatprep.subr.bf16.mxu0 0
        %2077 = vmatpush1.bf16.xpose.msra.mxu0 0
        %2078 = vmatprep.subr.bf16.mxu0 0
        %2079 = vmatpush1.bf16.xpose.msra.mxu0 0
        %2080 = vmatprep.subr.bf16.mxu0 0
        %2081 = vmatpush1.bf16.xpose.msra.mxu0 0
        %2082 = vmatprep.subr.bf16.mxu0 0
        %2083 = vmatpush1.bf16.xpose.msra.mxu0 0
        %2084 = vmatprep.subr.bf16.mxu0 0
        %2085 = vmatpush1.bf16.xpose.msra.mxu0 0
        %2086 = vmatprep.mubr.bf16.mxu0 0
        %2087 = vmatmul.mubr.bf16.gmra.mrb[0].mxu0 %v2031
        %v2088 = vpop.f32.mrb[0].mxu0
        %v2089 = vadd.f32 0.0, %v2088
        %v2090 = vpop.f32.mrb[0].mxu0
        %v2091 = vpop.f32.mrb[0].mxu0
        %v2092 = vadd.f32 0.0, %v2091
        %v2093 = vpop.f32.mrb[0].mxu0
        %2094 = vmatprep.mubr.bf16.mxu0 0
        %2095 = vmatmul.mubr.bf16.gmra.mrb[0].mxu0 %v2034
        %v2096 = vpop.f32.mrb[0].mxu0
        %v2097 = vadd.f32 0.0, %v2096
        %v2098 = vpop.f32.mrb[0].mxu0
        %v2099 = vpop.f32.mrb[0].mxu0
        %v2100 = vadd.f32 0.0, %v2099
        %v2101 = vpop.f32.mrb[0].mxu0
        %2102 = vmatprep.mubr.bf16.mxu0 0
        %2103 = vmatmul.mubr.bf16.gmra.mrb[0].mxu0 %v2037
        %v2104 = vpop.f32.mrb[0].mxu0
        %v2105 = vadd.f32 0.0, %v2104
        %v2106 = vpop.f32.mrb[0].mxu0
        %v2107 = vpop.f32.mrb[0].mxu0
        %v2108 = vadd.f32 0.0, %v2107
        %v2109 = vpop.f32.mrb[0].mxu0
        %2110 = vmatprep.mubr.bf16.mxu0 0
        %2111 = vmatmul.mubr.bf16.gmra.mrb[0].mxu0 %v2040
        %v2112 = vpop.f32.mrb[0].mxu0
        %v2113 = vadd.f32 0.0, %v2112
        %v2114 = vpop.f32.mrb[0].mxu0
        %v2115 = vpop.f32.mrb[0].mxu0
        %v2116 = vpop.f32.mrb[0].mxu0
        %2117 = vdwg.mxu0
        %v2118 = vmul.f32 %v2089, 0.25
        %v2119 = vmul.f32 %v2092, 0.25
        %v2120 = vmul.f32 %v2097, 0.25
        %v2121 = vmul.f32 %v2100, 0.25
        %v2122 = vmul.f32 %v2105, 0.25
        %v2123 = vmul.f32 %v2108, 0.25
        %v2124 = vmul.f32 %v2113, 0.25
        %v2125 = vsel %vm1923, %v2118, -inf
        %2126 = vmax.xlane.f32.xlu0 %v2125
        %v2127 = vpop.xlane.xlu0 %2126
        %v2128 = vsel %vm1923, %v2119, -inf
        %2129 = vmax.xlane.f32.xlu0 %v2128
        %v2130 = vpop.xlane.xlu0 %2129
        %v2131 = vsel %vm1923, %v2120, -inf
        %2132 = vmax.xlane.f32.xlu0 %v2131
        %v2133 = vpop.xlane.xlu0 %2132
        %v2134 = vsel %vm1923, %v2121, -inf
        %2135 = vmax.xlane.f32.xlu0 %v2134
        %v2136 = vpop.xlane.xlu0 %2135
        %v2137 = vsel %vm1923, %v2122, -inf
        %2138 = vmax.xlane.f32.xlu0 %v2137
        %v2139 = vpop.xlane.xlu0 %2138
        %v2140 = vsel %vm1923, %v2123, -inf
        %2141 = vmax.xlane.f32.xlu0 %v2140
        %v2142 = vpop.xlane.xlu0 %2141
        %v2143 = vsel %vm1942, %v2124, -inf
        %2144 = vmax.xlane.f32.xlu0 %v2143
        %v2145 = vpop.xlane.xlu0 %2144
        %v2146 = vsub.f32 %v2118, %v2127
        %v2147 = vsub.f32 %v2119, %v2130
        %v2148 = vsub.f32 %v2120, %v2133
        %v2149 = vsub.f32 %v2121, %v2136
        %v2150 = vsub.f32 %v2122, %v2139
        %v2151 = vsub.f32 %v2123, %v2142
        %v2152 = vsub.f32 %v2124, %v2145
        %v2153 = vmul.f32 %v2146, 1.442695
        %v2154 = vpow.pop %v2153
        %v2155 = vmul.f32 %v2147, 1.442695
        %v2156 = vpow.pop %v2155
        %v2157 = vmul.f32 %v2148, 1.442695
        %v2158 = vpow.pop %v2157
        %v2159 = vmul.f32 %v2149, 1.442695
        %v2160 = vpow.pop %v2159
        %v2161 = vmul.f32 %v2150, 1.442695
        %v2162 = vpow.pop %v2161
        %v2163 = vmul.f32 %v2151, 1.442695
        %v2164 = vpow.pop %v2163
        %v2165 = vmul.f32 %v2152, 1.442695
        %v2166 = vpow.pop %v2165
        %v2167 = vsel %vm1923, %v2154, 0.0
        %2168 = vadd.xlane.f32.xlu0 %v2167
        %v2169 = vpop.xlane.xlu0 %2168
        %v2170 = vsel %vm1923, %v2156, 0.0
        %2171 = vadd.xlane.f32.xlu0 %v2170
        %v2172 = vpop.xlane.xlu0 %2171
        %v2173 = vsel %vm1923, %v2158, 0.0
        %2174 = vadd.xlane.f32.xlu0 %v2173
        %v2175 = vpop.xlane.xlu0 %2174
        %v2176 = vsel %vm1923, %v2160, 0.0
        %2177 = vadd.xlane.f32.xlu0 %v2176
        %v2178 = vpop.xlane.xlu0 %2177
        %v2179 = vsel %vm1923, %v2162, 0.0
        %2180 = vadd.xlane.f32.xlu0 %v2179
        %v2181 = vpop.xlane.xlu0 %2180
        %v2182 = vsel %vm1923, %v2164, 0.0
        %2183 = vadd.xlane.f32.xlu0 %v2182
        %v2184 = vpop.xlane.xlu0 %2183
        %v2185 = vsel %vm1942, %v2166, 0.0
        %2186 = vadd.xlane.f32.xlu0 %v2185
        %v2187 = vpop.xlane.xlu0 %2186
        %v2188 = vrcp.pop %v2169
        %v2189 = vrcp.pop %v2172
        %v2190 = vrcp.pop %v2175
        %v2191 = vrcp.pop %v2178
        %v2192 = vrcp.pop %v2181
        %v2193 = vrcp.pop %v2184
        %v2194 = vrcp.pop %v2187
        %v2195 = vmul.f32 %v2154, %v2188
        %v2196 = vmul.f32 %v2156, %v2189
        %v2197 = vmul.f32 %v2158, %v2190
        %v2198 = vmul.f32 %v2160, %v2191
        %v2199 = vmul.f32 %v2162, %v2192
        %v2200 = vmul.f32 %v2164, %v2193
        %v2201 = vmul.f32 %v2166, %v2194
        %v2202 = vpack.c.bf16 %v2196, %v2195
        %v2203 = vpack.c.bf16 %v2198, %v2197
        %v2204 = vpack.c.bf16 %v2200, %v2199
        %v2205 = vpack.c.bf16 %v2201, %v2201
        %2210 = vrot.lane.b32.xlu0 %v2006, 64
        %v2211 = vpop.permute.xlu0 %2210
        %2212 = vrot.lane.b32.xlu0 %v2007, 64
        %v2213 = vpop.permute.xlu0 %2212
        %2214 = vrot.lane.b32.xlu0 %v2008, 64
        %v2215 = vpop.permute.xlu0 %2214
        %2216 = vrot.lane.b32.xlu0 %v2009, 64
        %v2217 = vpop.permute.xlu0 %2216
        %v2222 = vsel %vm1923, %v2202, 0
        %v2225 = vsel %vm1923, %v2203, 0
        %v2228 = vsel %vm1923, %v2204, 0
        %v2231 = vsel %vm1923, %v2205, 0
        %vm2233 = vcmask 1040384
        %v2235 = vsel %vm2233, %v2217, 0
        %2237 = vmatprep.subr.bf16.mxu0 0
        %2238 = vmatpush1.bf16.msra.mxu0 %v2211
        %2239 = vmatprep.subr.bf16.mxu0 0
        %2240 = vmatpush1.bf16.msra.mxu0 %v2213
        %2241 = vmatprep.subr.bf16.mxu0 0
        %2242 = vmatpush1.bf16.msra.mxu0 %v2215
        %2243 = vmatprep.subr.bf16.mxu0 0
        %2244 = vmatpush1.bf16.msra.mxu0 %v2235
        %2245 = vmatprep.subr.bf16.mxu0 0
        %2246 = vmatpush1.bf16.msra.mxu0 0
        %2247 = vmatprep.subr.bf16.mxu0 0
        %2248 = vmatpush1.bf16.msra.mxu0 0
        %2249 = vmatprep.subr.bf16.mxu0 0
        %2250 = vmatpush1.bf16.msra.mxu0 0
        %2251 = vmatprep.subr.bf16.mxu0 0
        %2252 = vmatpush1.bf16.msra.mxu0 0
        %2253 = vmatprep.subr.bf16.mxu0 0
        %2254 = vmatpush1.bf16.msra.mxu0 0
        %2255 = vmatprep.subr.bf16.mxu0 0
        %2256 = vmatpush1.bf16.msra.mxu0 0
        %2257 = vmatprep.subr.bf16.mxu0 0
        %2258 = vmatpush1.bf16.msra.mxu0 0
        %2259 = vmatprep.subr.bf16.mxu0 0
        %2260 = vmatpush1.bf16.msra.mxu0 0
        %2261 = vmatprep.subr.bf16.mxu0 0
        %2262 = vmatpush1.bf16.msra.mxu0 0
        %2263 = vmatprep.subr.bf16.mxu0 0
        %2264 = vmatpush1.bf16.msra.mxu0 0
        %2265 = vmatprep.subr.bf16.mxu0 0
        %2266 = vmatpush1.bf16.msra.mxu0 0
        %2267 = vmatprep.subr.bf16.mxu0 0
        %2268 = vmatpush1.bf16.msra.mxu0 0
        %2269 = vmatprep.mubr.bf16.mxu0 0
        %2270 = vmatmul.mubr.bf16.gmra.mrb[0].mxu0 %v2222
        %v2271 = vpop.f32.mrb[0].mxu0
        %v2272 = vadd.f32 0.0, %v2271
        %v2273 = vpop.f32.mrb[0].mxu0
        %v2274 = vpop.f32.mrb[0].mxu0
        %v2275 = vadd.f32 0.0, %v2274
        %v2276 = vpop.f32.mrb[0].mxu0
        %2277 = vmatprep.mubr.bf16.mxu0 0
        %2278 = vmatmul.mubr.bf16.gmra.mrb[0].mxu0 %v2225
        %v2279 = vpop.f32.mrb[0].mxu0
        %v2280 = vadd.f32 0.0, %v2279
        %v2281 = vpop.f32.mrb[0].mxu0
        %v2282 = vpop.f32.mrb[0].mxu0
        %v2283 = vadd.f32 0.0, %v2282
        %v2284 = vpop.f32.mrb[0].mxu0
        %2285 = vmatprep.mubr.bf16.mxu0 0
        %2286 = vmatmul.mubr.bf16.gmra.mrb[0].mxu0 %v2228
        %v2287 = vpop.f32.mrb[0].mxu0
        %v2288 = vadd.f32 0.0, %v2287
        %v2289 = vpop.f32.mrb[0].mxu0
        %v2290 = vpop.f32.mrb[0].mxu0
        %v2291 = vadd.f32 0.0, %v2290
        %v2292 = vpop.f32.mrb[0].mxu0
        %2293 = vmatprep.mubr.bf16.mxu0 0
        %2294 = vmatmul.mubr.bf16.gmra.mrb[0].mxu0 %v2231
        %v2295 = vpop.f32.mrb[0].mxu0
        %v2296 = vadd.f32 0.0, %v2295
        %v2297 = vpop.f32.mrb[0].mxu0
        %v2298 = vpop.f32.mrb[0].mxu0
        %v2299 = vpop.f32.mrb[0].mxu0
        %2300 = vdwg.mxu0
        %v2302 = vsel %vm1923, %v2002, 0
        %v2305 = vsel %vm1923, %v2003, 0
        %v2308 = vsel %vm1923, %v2004, 0
        %v2311 = vsel %vm1923, %v2005, 0
        %v2314 = vsel %vm2233, %v2009, 0
        %2316 = vmatprep.subr.bf16.mxu0 0
        %2317 = vmatpush1.bf16.msra.mxu0 %v2006
        %2318 = vmatprep.subr.bf16.mxu0 0
        %2319 = vmatpush1.bf16.msra.mxu0 %v2007
        %2320 = vmatprep.subr.bf16.mxu0 0
        %2321 = vmatpush1.bf16.msra.mxu0 %v2008
        %2322 = vmatprep.subr.bf16.mxu0 0
        %2323 = vmatpush1.bf16.msra.mxu0 %v2314
        %2324 = vmatprep.subr.bf16.mxu0 0
        %2325 = vmatpush1.bf16.msra.mxu0 0
        %2326 = vmatprep.subr.bf16.mxu0 0
        %2327 = vmatpush1.bf16.msra.mxu0 0
        %2328 = vmatprep.subr.bf16.mxu0 0
        %2329 = vmatpush1.bf16.msra.mxu0 0
        %2330 = vmatprep.subr.bf16.mxu0 0
        %2331 = vmatpush1.bf16.msra.mxu0 0
        %2332 = vmatprep.subr.bf16.mxu0 0
        %2333 = vmatpush1.bf16.msra.mxu0 0
        %2334 = vmatprep.subr.bf16.mxu0 0
        %2335 = vmatpush1.bf16.msra.mxu0 0
        %2336 = vmatprep.subr.bf16.mxu0 0
        %2337 = vmatpush1.bf16.msra.mxu0 0
        %2338 = vmatprep.subr.bf16.mxu0 0
        %2339 = vmatpush1.bf16.msra.mxu0 0
        %2340 = vmatprep.subr.bf16.mxu0 0
        %2341 = vmatpush1.bf16.msra.mxu0 0
        %2342 = vmatprep.subr.bf16.mxu0 0
        %2343 = vmatpush1.bf16.msra.mxu0 0
        %2344 = vmatprep.subr.bf16.mxu0 0
        %2345 = vmatpush1.bf16.msra.mxu0 0
        %2346 = vmatprep.subr.bf16.mxu0 0
        %2347 = vmatpush1.bf16.msra.mxu0 0
        %2348 = vmatprep.mubr.bf16.mxu0 0
        %2349 = vmatmul.mubr.bf16.gmra.mrb[0].mxu0 %v2302
        %v2350 = vpop.f32.mrb[0].mxu0
        %v2351 = vadd.f32 %v2272, %v2350
        %v2352 = vpop.f32.mrb[0].mxu0
        %v2353 = vpop.f32.mrb[0].mxu0
        %v2354 = vadd.f32 %v2275, %v2353
        %v2355 = vpop.f32.mrb[0].mxu0
        %2356 = vmatprep.mubr.bf16.mxu0 0
        %2357 = vmatmul.mubr.bf16.gmra.mrb[0].mxu0 %v2305
        %v2358 = vpop.f32.mrb[0].mxu0
        %v2359 = vadd.f32 %v2280, %v2358
        %v2360 = vpop.f32.mrb[0].mxu0
        %v2361 = vpop.f32.mrb[0].mxu0
        %v2362 = vadd.f32 %v2283, %v2361
        %v2363 = vpop.f32.mrb[0].mxu0
        %2364 = vmatprep.mubr.bf16.mxu0 0
        %2365 = vmatmul.mubr.bf16.gmra.mrb[0].mxu0 %v2308
        %v2366 = vpop.f32.mrb[0].mxu0
        %v2367 = vadd.f32 %v2288, %v2366
        %v2368 = vpop.f32.mrb[0].mxu0
        %v2369 = vpop.f32.mrb[0].mxu0
        %v2370 = vadd.f32 %v2291, %v2369
        %v2371 = vpop.f32.mrb[0].mxu0
        %2372 = vmatprep.mubr.bf16.mxu0 0
        %2373 = vmatmul.mubr.bf16.gmra.mrb[0].mxu0 %v2311
        %v2374 = vpop.f32.mrb[0].mxu0
        %v2375 = vadd.f32 %v2296, %v2374
        %v2376 = vpop.f32.mrb[0].mxu0
        %v2377 = vpop.f32.mrb[0].mxu0
        %v2378 = vpop.f32.mrb[0].mxu0
        %2379 = vdwg.mxu0
        %2380 = vrot.lane.b32.xlu0 %v1807, 96
        %v2381 = vpop.permute.xlu0 %2380
        %2382 = vrot.lane.b32.xlu0 %v1808, 96
        %v2383 = vpop.permute.xlu0 %2382
        %2384 = vrot.lane.b32.xlu0 %v1809, 96
        %v2385 = vpop.permute.xlu0 %2384
        %2386 = vrot.lane.b32.xlu0 %v1810, 96
        %v2387 = vpop.permute.xlu0 %2386
        %2388 = vrot.lane.b32.xlu0 %v1811, 32
        %v2389 = vpop.permute.xlu0 %2388
        %2390 = vrot.lane.b32.xlu0 %v1812, 32
        %v2391 = vpop.permute.xlu0 %2390
        %2392 = vrot.lane.b32.xlu0 %v1813, 32
        %v2393 = vpop.permute.xlu0 %2392
        %2394 = vrot.lane.b32.xlu0 %v1814, 32
        %v2395 = vpop.permute.xlu0 %2394
        %v2397 = vsel %vm1827, %v2381, 0
        %v2400 = vsel %vm1827, %v2383, 0
        %v2403 = vsel %vm1827, %v2385, 0
        %v2406 = vsel %vm1827, %v2387, 0
        %v2409 = vsel %vm1827, %v2389, 0
        %v2412 = vsel %vm1827, %v2391, 0
        %v2415 = vsel %vm1827, %v2393, 0
        %v2418 = vsel %vm1827, %v2395, 0
        %2420 = vmatprep.subr.bf16.mxu0 0
        %2421 = vmatpush1.bf16.xpose.msra.mxu0 %v2409
        %2422 = vmatprep.subr.bf16.mxu0 0
        %2423 = vmatpush1.bf16.xpose.msra.mxu0 %v2412
        %2424 = vmatprep.subr.bf16.mxu0 0
        %2425 = vmatpush1.bf16.xpose.msra.mxu0 %v2415
        %2426 = vmatprep.subr.bf16.mxu0 0
        %2427 = vmatpush1.bf16.xpose.msra.mxu0 %v2418
        %2428 = vmatprep.subr.bf16.mxu0 0
        %2429 = vmatpush1.bf16.xpose.msra.mxu0 0
        %2430 = vmatprep.subr.bf16.mxu0 0
        %2431 = vmatpush1.bf16.xpose.msra.mxu0 0
        %2432 = vmatprep.subr.bf16.mxu0 0
        %2433 = vmatpush1.bf16.xpose.msra.mxu0 0
        %2434 = vmatprep.subr.bf16.mxu0 0
        %2435 = vmatpush1.bf16.xpose.msra.mxu0 0
        %2436 = vmatprep.subr.bf16.mxu0 0
        %2437 = vmatpush1.bf16.xpose.msra.mxu0 0
        %2438 = vmatprep.subr.bf16.mxu0 0
        %2439 = vmatpush1.bf16.xpose.msra.mxu0 0
        %2440 = vmatprep.subr.bf16.mxu0 0
        %2441 = vmatpush1.bf16.xpose.msra.mxu0 0
        %2442 = vmatprep.subr.bf16.mxu0 0
        %2443 = vmatpush1.bf16.xpose.msra.mxu0 0
        %2444 = vmatprep.subr.bf16.mxu0 0
        %2445 = vmatpush1.bf16.xpose.msra.mxu0 0
        %2446 = vmatprep.subr.bf16.mxu0 0
        %2447 = vmatpush1.bf16.xpose.msra.mxu0 0
        %2448 = vmatprep.subr.bf16.mxu0 0
        %2449 = vmatpush1.bf16.xpose.msra.mxu0 0
        %2450 = vmatprep.subr.bf16.mxu0 0
        %2451 = vmatpush1.bf16.xpose.msra.mxu0 0
        %2452 = vmatprep.mubr.bf16.mxu0 0
        %2453 = vmatmul.mubr.bf16.gmra.mrb[0].mxu0 %v2397
        %v2454 = vpop.f32.mrb[0].mxu0
        %v2455 = vadd.f32 0.0, %v2454
        %v2456 = vpop.f32.mrb[0].mxu0
        %v2457 = vpop.f32.mrb[0].mxu0
        %v2458 = vadd.f32 0.0, %v2457
        %v2459 = vpop.f32.mrb[0].mxu0
        %2460 = vmatprep.mubr.bf16.mxu0 0
        %2461 = vmatmul.mubr.bf16.gmra.mrb[0].mxu0 %v2400
        %v2462 = vpop.f32.mrb[0].mxu0
        %v2463 = vadd.f32 0.0, %v2462
        %v2464 = vpop.f32.mrb[0].mxu0
        %v2465 = vpop.f32.mrb[0].mxu0
        %v2466 = vadd.f32 0.0, %v2465
        %v2467 = vpop.f32.mrb[0].mxu0
        %2468 = vmatprep.mubr.bf16.mxu0 0
        %2469 = vmatmul.mubr.bf16.gmra.mrb[0].mxu0 %v2403
        %v2470 = vpop.f32.mrb[0].mxu0
        %v2471 = vadd.f32 0.0, %v2470
        %v2472 = vpop.f32.mrb[0].mxu0
        %v2473 = vpop.f32.mrb[0].mxu0
        %v2474 = vadd.f32 0.0, %v2473
        %v2475 = vpop.f32.mrb[0].mxu0
        %2476 = vmatprep.mubr.bf16.mxu0 0
        %2477 = vmatmul.mubr.bf16.gmra.mrb[0].mxu0 %v2406
        %v2478 = vpop.f32.mrb[0].mxu0
        %v2479 = vadd.f32 0.0, %v2478
        %v2480 = vpop.f32.mrb[0].mxu0
        %v2481 = vpop.f32.mrb[0].mxu0
        %v2482 = vpop.f32.mrb[0].mxu0
        %2483 = vdwg.mxu0
        %v2484 = vmul.f32 %v2455, 0.25
        %v2485 = vmul.f32 %v2458, 0.25
        %v2486 = vmul.f32 %v2463, 0.25
        %v2487 = vmul.f32 %v2466, 0.25
        %v2488 = vmul.f32 %v2471, 0.25
        %v2489 = vmul.f32 %v2474, 0.25
        %v2490 = vmul.f32 %v2479, 0.25
        %v2491 = vsel %vm1923, %v2484, -inf
        %2492 = vmax.xlane.f32.xlu0 %v2491
        %v2493 = vpop.xlane.xlu0 %2492
        %v2494 = vsel %vm1923, %v2485, -inf
        %2495 = vmax.xlane.f32.xlu0 %v2494
        %v2496 = vpop.xlane.xlu0 %2495
        %v2497 = vsel %vm1923, %v2486, -inf
        %2498 = vmax.xlane.f32.xlu0 %v2497
        %v2499 = vpop.xlane.xlu0 %2498
        %v2500 = vsel %vm1923, %v2487, -inf
        %2501 = vmax.xlane.f32.xlu0 %v2500
        %v2502 = vpop.xlane.xlu0 %2501
        %v2503 = vsel %vm1923, %v2488, -inf
        %2504 = vmax.xlane.f32.xlu0 %v2503
        %v2505 = vpop.xlane.xlu0 %2504
        %v2506 = vsel %vm1923, %v2489, -inf
        %2507 = vmax.xlane.f32.xlu0 %v2506
        %v2508 = vpop.xlane.xlu0 %2507
        %v2509 = vsel %vm1942, %v2490, -inf
        %2510 = vmax.xlane.f32.xlu0 %v2509
        %v2511 = vpop.xlane.xlu0 %2510
        %v2512 = vsub.f32 %v2484, %v2493
        %v2513 = vsub.f32 %v2485, %v2496
        %v2514 = vsub.f32 %v2486, %v2499
        %v2515 = vsub.f32 %v2487, %v2502
        %v2516 = vsub.f32 %v2488, %v2505
        %v2517 = vsub.f32 %v2489, %v2508
        %v2518 = vsub.f32 %v2490, %v2511
        %v2519 = vmul.f32 %v2512, 1.442695
        %v2520 = vpow.pop %v2519
        %v2521 = vmul.f32 %v2513, 1.442695
        %v2522 = vpow.pop %v2521
        %v2523 = vmul.f32 %v2514, 1.442695
        %v2524 = vpow.pop %v2523
        %v2525 = vmul.f32 %v2515, 1.442695
        %v2526 = vpow.pop %v2525
        %v2527 = vmul.f32 %v2516, 1.442695
        %v2528 = vpow.pop %v2527
        %v2529 = vmul.f32 %v2517, 1.442695
        %v2530 = vpow.pop %v2529
        %v2531 = vmul.f32 %v2518, 1.442695
        %v2532 = vpow.pop %v2531
        %v2533 = vsel %vm1923, %v2520, 0.0
        %2534 = vadd.xlane.f32.xlu0 %v2533
        %v2535 = vpop.xlane.xlu0 %2534
        %v2536 = vsel %vm1923, %v2522, 0.0
        %2537 = vadd.xlane.f32.xlu0 %v2536
        %v2538 = vpop.xlane.xlu0 %2537
        %v2539 = vsel %vm1923, %v2524, 0.0
        %2540 = vadd.xlane.f32.xlu0 %v2539
        %v2541 = vpop.xlane.xlu0 %2540
        %v2542 = vsel %vm1923, %v2526, 0.0
        %2543 = vadd.xlane.f32.xlu0 %v2542
        %v2544 = vpop.xlane.xlu0 %2543
        %v2545 = vsel %vm1923, %v2528, 0.0
        %2546 = vadd.xlane.f32.xlu0 %v2545
        %v2547 = vpop.xlane.xlu0 %2546
        %v2548 = vsel %vm1923, %v2530, 0.0
        %2549 = vadd.xlane.f32.xlu0 %v2548
        %v2550 = vpop.xlane.xlu0 %2549
        %v2551 = vsel %vm1942, %v2532, 0.0
        %2552 = vadd.xlane.f32.xlu0 %v2551
        %v2553 = vpop.xlane.xlu0 %2552
        %v2554 = vrcp.pop %v2535
        %v2555 = vrcp.pop %v2538
        %v2556 = vrcp.pop %v2541
        %v2557 = vrcp.pop %v2544
        %v2558 = vrcp.pop %v2547
        %v2559 = vrcp.pop %v2550
        %v2560 = vrcp.pop %v2553
        %v2561 = vmul.f32 %v2520, %v2554
        %v2562 = vmul.f32 %v2522, %v2555
        %v2563 = vmul.f32 %v2524, %v2556
        %v2564 = vmul.f32 %v2526, %v2557
        %v2565 = vmul.f32 %v2528, %v2558
        %v2566 = vmul.f32 %v2530, %v2559
        %v2567 = vmul.f32 %v2532, %v2560
        %v2568 = vpack.c.bf16 %v2562, %v2561
        %v2569 = vpack.c.bf16 %v2564, %v2563
        %v2570 = vpack.c.bf16 %v2566, %v2565
        %v2571 = vpack.c.bf16 %v2567, %v2567
        %v2572 = vpack.c.bf16 %v1755, %v1752
        %v2573 = vpack.c.bf16 %v1763, %v1760
        %v2574 = vpack.c.bf16 %v1771, %v1768
        %v2575 = vpack.c.bf16 %v1776, %v1776
        %v2577 = vsel %vm1923, %v2568, 0
        %v2580 = vsel %vm1923, %v2569, 0
        %v2583 = vsel %vm1923, %v2570, 0
        %v2586 = vsel %vm1923, %v2571, 0
        %v2589 = vsel %vm2233, %v2575, 0
        %2591 = vmatprep.subr.bf16.mxu0 0
        %2592 = vmatpush1.bf16.msra.mxu0 %v2572
        %2593 = vmatprep.subr.bf16.mxu0 0
        %2594 = vmatpush1.bf16.msra.mxu0 %v2573
        %2595 = vmatprep.subr.bf16.mxu0 0
        %2596 = vmatpush1.bf16.msra.mxu0 %v2574
        %2597 = vmatprep.subr.bf16.mxu0 0
        %2598 = vmatpush1.bf16.msra.mxu0 %v2589
        %2599 = vmatprep.subr.bf16.mxu0 0
        %2600 = vmatpush1.bf16.msra.mxu0 0
        %2601 = vmatprep.subr.bf16.mxu0 0
        %2602 = vmatpush1.bf16.msra.mxu0 0
        %2603 = vmatprep.subr.bf16.mxu0 0
        %2604 = vmatpush1.bf16.msra.mxu0 0
        %2605 = vmatprep.subr.bf16.mxu0 0
        %2606 = vmatpush1.bf16.msra.mxu0 0
        %2607 = vmatprep.subr.bf16.mxu0 0
        %2608 = vmatpush1.bf16.msra.mxu0 0
        %2609 = vmatprep.subr.bf16.mxu0 0
        %2610 = vmatpush1.bf16.msra.mxu0 0
        %2611 = vmatprep.subr.bf16.mxu0 0
        %2612 = vmatpush1.bf16.msra.mxu0 0
        %2613 = vmatprep.subr.bf16.mxu0 0
        %2614 = vmatpush1.bf16.msra.mxu0 0
        %2615 = vmatprep.subr.bf16.mxu0 0
        %2616 = vmatpush1.bf16.msra.mxu0 0
        %2617 = vmatprep.subr.bf16.mxu0 0
        %2618 = vmatpush1.bf16.msra.mxu0 0
        %2619 = vmatprep.subr.bf16.mxu0 0
        %2620 = vmatpush1.bf16.msra.mxu0 0
        %2621 = vmatprep.subr.bf16.mxu0 0
        %2622 = vmatpush1.bf16.msra.mxu0 0
        %2623 = vmatprep.mubr.bf16.mxu0 0
        %2624 = vmatmul.mubr.bf16.gmra.mrb[0].mxu0 %v2577
        %v2625 = vpop.f32.mrb[0].mxu0
        %v2626 = vadd.f32 0.0, %v2625
        %v2627 = vpop.f32.mrb[0].mxu0
        %v2628 = vpop.f32.mrb[0].mxu0
        %v2629 = vadd.f32 0.0, %v2628
        %v2630 = vpop.f32.mrb[0].mxu0
        %2631 = vmatprep.mubr.bf16.mxu0 0
        %2632 = vmatmul.mubr.bf16.gmra.mrb[0].mxu0 %v2580
        %v2633 = vpop.f32.mrb[0].mxu0
        %v2634 = vadd.f32 0.0, %v2633
        %v2635 = vpop.f32.mrb[0].mxu0
        %v2636 = vpop.f32.mrb[0].mxu0
        %v2637 = vadd.f32 0.0, %v2636
        %v2638 = vpop.f32.mrb[0].mxu0
        %2639 = vmatprep.mubr.bf16.mxu0 0
        %2640 = vmatmul.mubr.bf16.gmra.mrb[0].mxu0 %v2583
        %v2641 = vpop.f32.mrb[0].mxu0
        %v2642 = vadd.f32 0.0, %v2641
        %v2643 = vpop.f32.mrb[0].mxu0
        %v2644 = vpop.f32.mrb[0].mxu0
        %v2645 = vadd.f32 0.0, %v2644
        %v2646 = vpop.f32.mrb[0].mxu0
        %2647 = vmatprep.mubr.bf16.mxu0 0
        %2648 = vmatmul.mubr.bf16.gmra.mrb[0].mxu0 %v2586
        %v2649 = vpop.f32.mrb[0].mxu0
        %v2650 = vadd.f32 0.0, %v2649
        %v2651 = vpop.f32.mrb[0].mxu0
        %v2652 = vpop.f32.mrb[0].mxu0
        %v2653 = vpop.f32.mrb[0].mxu0
        %2654 = vdwg.mxu0
        %v2655 = vadd.f32 %v2351, %v2626
        %v2656 = vadd.f32 %v2354, %v2629
        %v2657 = vadd.f32 %v2359, %v2634
        %v2658 = vadd.f32 %v2362, %v2637
        %v2659 = vadd.f32 %v2367, %v2642
        %v2660 = vadd.f32 %v2370, %v2645
        %v2661 = vadd.f32 %v2375, %v2650
        %2662 = vrot.lane.b32.xlu0 %v1807, 80
        %v2663 = vpop.permute.xlu0 %2662
        %2664 = vrot.lane.b32.xlu0 %v1808, 80
        %v2665 = vpop.permute.xlu0 %2664
        %2666 = vrot.lane.b32.xlu0 %v1809, 80
        %v2667 = vpop.permute.xlu0 %2666
        %2668 = vrot.lane.b32.xlu0 %v1810, 80
        %v2669 = vpop.permute.xlu0 %2668
        %2670 = vrot.lane.b32.xlu0 %v1811, 16
        %v2671 = vpop.permute.xlu0 %2670
        %2672 = vrot.lane.b32.xlu0 %v1812, 16
        %v2673 = vpop.permute.xlu0 %2672
        %2674 = vrot.lane.b32.xlu0 %v1813, 16
        %v2675 = vpop.permute.xlu0 %2674
        %2676 = vrot.lane.b32.xlu0 %v1814, 16
        %v2677 = vpop.permute.xlu0 %2676
        %v2679 = vsel %vm1827, %v2663, 0
        %v2682 = vsel %vm1827, %v2665, 0
        %v2685 = vsel %vm1827, %v2667, 0
        %v2688 = vsel %vm1827, %v2669, 0
        %v2691 = vsel %vm1827, %v2671, 0
        %v2694 = vsel %vm1827, %v2673, 0
        %v2697 = vsel %vm1827, %v2675, 0
        %v2700 = vsel %vm1827, %v2677, 0
        %2702 = vmatprep.subr.bf16.mxu0 0
        %2703 = vmatpush1.bf16.xpose.msra.mxu0 %v2691
        %2704 = vmatprep.subr.bf16.mxu0 0
        %2705 = vmatpush1.bf16.xpose.msra.mxu0 %v2694
        %2706 = vmatprep.subr.bf16.mxu0 0
        %2707 = vmatpush1.bf16.xpose.msra.mxu0 %v2697
        %2708 = vmatprep.subr.bf16.mxu0 0
        %2709 = vmatpush1.bf16.xpose.msra.mxu0 %v2700
        %2710 = vmatprep.subr.bf16.mxu0 0
        %2711 = vmatpush1.bf16.xpose.msra.mxu0 0
        %2712 = vmatprep.subr.bf16.mxu0 0
        %2713 = vmatpush1.bf16.xpose.msra.mxu0 0
        %2714 = vmatprep.subr.bf16.mxu0 0
        %2715 = vmatpush1.bf16.xpose.msra.mxu0 0
        %2716 = vmatprep.subr.bf16.mxu0 0
        %2717 = vmatpush1.bf16.xpose.msra.mxu0 0
        %2718 = vmatprep.subr.bf16.mxu0 0
        %2719 = vmatpush1.bf16.xpose.msra.mxu0 0
        %2720 = vmatprep.subr.bf16.mxu0 0
        %2721 = vmatpush1.bf16.xpose.msra.mxu0 0
        %2722 = vmatprep.subr.bf16.mxu0 0
        %2723 = vmatpush1.bf16.xpose.msra.mxu0 0
        %2724 = vmatprep.subr.bf16.mxu0 0
        %2725 = vmatpush1.bf16.xpose.msra.mxu0 0
        %2726 = vmatprep.subr.bf16.mxu0 0
        %2727 = vmatpush1.bf16.xpose.msra.mxu0 0
        %2728 = vmatprep.subr.bf16.mxu0 0
        %2729 = vmatpush1.bf16.xpose.msra.mxu0 0
        %2730 = vmatprep.subr.bf16.mxu0 0
        %2731 = vmatpush1.bf16.xpose.msra.mxu0 0
        %2732 = vmatprep.subr.bf16.mxu0 0
        %2733 = vmatpush1.bf16.xpose.msra.mxu0 0
        %2734 = vmatprep.mubr.bf16.mxu0 0
        %2735 = vmatmul.mubr.bf16.gmra.mrb[0].mxu0 %v2679
        %v2736 = vpop.f32.mrb[0].mxu0
        %v2737 = vadd.f32 0.0, %v2736
        %v2738 = vpop.f32.mrb[0].mxu0
        %v2739 = vpop.f32.mrb[0].mxu0
        %v2740 = vadd.f32 0.0, %v2739
        %v2741 = vpop.f32.mrb[0].mxu0
        %2742 = vmatprep.mubr.bf16.mxu0 0
        %2743 = vmatmul.mubr.bf16.gmra.mrb[0].mxu0 %v2682
        %v2744 = vpop.f32.mrb[0].mxu0
        %v2745 = vadd.f32 0.0, %v2744
        %v2746 = vpop.f32.mrb[0].mxu0
        %v2747 = vpop.f32.mrb[0].mxu0
        %v2748 = vadd.f32 0.0, %v2747
        %v2749 = vpop.f32.mrb[0].mxu0
        %2750 = vmatprep.mubr.bf16.mxu0 0
        %2751 = vmatmul.mubr.bf16.gmra.mrb[0].mxu0 %v2685
        %v2752 = vpop.f32.mrb[0].mxu0
        %v2753 = vadd.f32 0.0, %v2752
        %v2754 = vpop.f32.mrb[0].mxu0
        %v2755 = vpop.f32.mrb[0].mxu0
        %v2756 = vadd.f32 0.0, %v2755
        %v2757 = vpop.f32.mrb[0].mxu0
        %2758 = vmatprep.mubr.bf16.mxu0 0
        %2759 = vmatmul.mubr.bf16.gmra.mrb[0].mxu0 %v2688
        %v2760 = vpop.f32.mrb[0].mxu0
        %v2761 = vadd.f32 0.0, %v2760
        %v2762 = vpop.f32.mrb[0].mxu0
        %v2763 = vpop.f32.mrb[0].mxu0
        %v2764 = vpop.f32.mrb[0].mxu0
        %2765 = vdwg.mxu0
        %v2766 = vmul.f32 %v2737, 0.25
        %v2767 = vmul.f32 %v2740, 0.25
        %v2768 = vmul.f32 %v2745, 0.25
        %v2769 = vmul.f32 %v2748, 0.25
        %v2770 = vmul.f32 %v2753, 0.25
        %v2771 = vmul.f32 %v2756, 0.25
        %v2772 = vmul.f32 %v2761, 0.25
        %v2773 = vsel %vm1923, %v2766, -inf
        %2774 = vmax.xlane.f32.xlu0 %v2773
        %v2775 = vpop.xlane.xlu0 %2774
        %v2776 = vsel %vm1923, %v2767, -inf
        %2777 = vmax.xlane.f32.xlu0 %v2776
        %v2778 = vpop.xlane.xlu0 %2777
        %v2779 = vsel %vm1923, %v2768, -inf
        %2780 = vmax.xlane.f32.xlu0 %v2779
        %v2781 = vpop.xlane.xlu0 %2780
        %v2782 = vsel %vm1923, %v2769, -inf
        %2783 = vmax.xlane.f32.xlu0 %v2782
        %v2784 = vpop.xlane.xlu0 %2783
        %v2785 = vsel %vm1923, %v2770, -inf
        %2786 = vmax.xlane.f32.xlu0 %v2785
        %v2787 = vpop.xlane.xlu0 %2786
        %v2788 = vsel %vm1923, %v2771, -inf
        %2789 = vmax.xlane.f32.xlu0 %v2788
        %v2790 = vpop.xlane.xlu0 %2789
        %v2791 = vsel %vm1942, %v2772, -inf
        %2792 = vmax.xlane.f32.xlu0 %v2791
        %v2793 = vpop.xlane.xlu0 %2792
        %v2794 = vsub.f32 %v2766, %v2775
        %v2795 = vsub.f32 %v2767, %v2778
        %v2796 = vsub.f32 %v2768, %v2781
        %v2797 = vsub.f32 %v2769, %v2784
        %v2798 = vsub.f32 %v2770, %v2787
        %v2799 = vsub.f32 %v2771, %v2790
        %v2800 = vsub.f32 %v2772, %v2793
        %v2801 = vmul.f32 %v2794, 1.442695
        %v2802 = vpow.pop %v2801
        %v2803 = vmul.f32 %v2795, 1.442695
        %v2804 = vpow.pop %v2803
        %v2805 = vmul.f32 %v2796, 1.442695
        %v2806 = vpow.pop %v2805
        %v2807 = vmul.f32 %v2797, 1.442695
        %v2808 = vpow.pop %v2807
        %v2809 = vmul.f32 %v2798, 1.442695
        %v2810 = vpow.pop %v2809
        %v2811 = vmul.f32 %v2799, 1.442695
        %v2812 = vpow.pop %v2811
        %v2813 = vmul.f32 %v2800, 1.442695
        %v2814 = vpow.pop %v2813
        %v2815 = vsel %vm1923, %v2802, 0.0
        %2816 = vadd.xlane.f32.xlu0 %v2815
        %v2817 = vpop.xlane.xlu0 %2816
        %v2818 = vsel %vm1923, %v2804, 0.0
        %2819 = vadd.xlane.f32.xlu0 %v2818
        %v2820 = vpop.xlane.xlu0 %2819
        %v2821 = vsel %vm1923, %v2806, 0.0
        %2822 = vadd.xlane.f32.xlu0 %v2821
        %v2823 = vpop.xlane.xlu0 %2822
        %v2824 = vsel %vm1923, %v2808, 0.0
        %2825 = vadd.xlane.f32.xlu0 %v2824
        %v2826 = vpop.xlane.xlu0 %2825
        %v2827 = vsel %vm1923, %v2810, 0.0
        %2828 = vadd.xlane.f32.xlu0 %v2827
        %v2829 = vpop.xlane.xlu0 %2828
        %v2830 = vsel %vm1923, %v2812, 0.0
        %2831 = vadd.xlane.f32.xlu0 %v2830
        %v2832 = vpop.xlane.xlu0 %2831
        %v2833 = vsel %vm1942, %v2814, 0.0
        %2834 = vadd.xlane.f32.xlu0 %v2833
        %v2835 = vpop.xlane.xlu0 %2834
        %v2836 = vrcp.pop %v2817
        %v2837 = vrcp.pop %v2820
        %v2838 = vrcp.pop %v2823
        %v2839 = vrcp.pop %v2826
        %v2840 = vrcp.pop %v2829
        %v2841 = vrcp.pop %v2832
        %v2842 = vrcp.pop %v2835
        %v2843 = vmul.f32 %v2802, %v2836
        %v2844 = vmul.f32 %v2804, %v2837
        %v2845 = vmul.f32 %v2806, %v2838
        %v2846 = vmul.f32 %v2808, %v2839
        %v2847 = vmul.f32 %v2810, %v2840
        %v2848 = vmul.f32 %v2812, %v2841
        %v2849 = vmul.f32 %v2814, %v2842
        %v2850 = vpack.c.bf16 %v2844, %v2843
        %v2851 = vpack.c.bf16 %v2846, %v2845
        %v2852 = vpack.c.bf16 %v2848, %v2847
        %v2853 = vpack.c.bf16 %v2849, %v2849
        %2858 = vrot.lane.b32.xlu0 %v2572, 64
        %v2859 = vpop.permute.xlu0 %2858
        %2860 = vrot.lane.b32.xlu0 %v2573, 64
        %v2861 = vpop.permute.xlu0 %2860
        %2862 = vrot.lane.b32.xlu0 %v2574, 64
        %v2863 = vpop.permute.xlu0 %2862
        %2864 = vrot.lane.b32.xlu0 %v2575, 64
        %v2865 = vpop.permute.xlu0 %2864
        %v2870 = vsel %vm1923, %v2850, 0
        %v2873 = vsel %vm1923, %v2851, 0
        %v2876 = vsel %vm1923, %v2852, 0
        %v2879 = vsel %vm1923, %v2853, 0
        %v2882 = vsel %vm2233, %v2865, 0
        %2884 = vmatprep.subr.bf16.mxu0 0
        %2885 = vmatpush1.bf16.msra.mxu0 %v2859
        %2886 = vmatprep.subr.bf16.mxu0 0
        %2887 = vmatpush1.bf16.msra.mxu0 %v2861
        %2888 = vmatprep.subr.bf16.mxu0 0
        %2889 = vmatpush1.bf16.msra.mxu0 %v2863
        %2890 = vmatprep.subr.bf16.mxu0 0
        %2891 = vmatpush1.bf16.msra.mxu0 %v2882
        %2892 = vmatprep.subr.bf16.mxu0 0
        %2893 = vmatpush1.bf16.msra.mxu0 0
        %2894 = vmatprep.subr.bf16.mxu0 0
        %2895 = vmatpush1.bf16.msra.mxu0 0
        %2896 = vmatprep.subr.bf16.mxu0 0
        %2897 = vmatpush1.bf16.msra.mxu0 0
        %2898 = vmatprep.subr.bf16.mxu0 0
        %2899 = vmatpush1.bf16.msra.mxu0 0
        %2900 = vmatprep.subr.bf16.mxu0 0
        %2901 = vmatpush1.bf16.msra.mxu0 0
        %2902 = vmatprep.subr.bf16.mxu0 0
        %2903 = vmatpush1.bf16.msra.mxu0 0
        %2904 = vmatprep.subr.bf16.mxu0 0
        %2905 = vmatpush1.bf16.msra.mxu0 0
        %2906 = vmatprep.subr.bf16.mxu0 0
        %2907 = vmatpush1.bf16.msra.mxu0 0
        %2908 = vmatprep.subr.bf16.mxu0 0
        %2909 = vmatpush1.bf16.msra.mxu0 0
        %2910 = vmatprep.subr.bf16.mxu0 0
        %2911 = vmatpush1.bf16.msra.mxu0 0
        %2912 = vmatprep.subr.bf16.mxu0 0
        %2913 = vmatpush1.bf16.msra.mxu0 0
        %2914 = vmatprep.subr.bf16.mxu0 0
        %2915 = vmatpush1.bf16.msra.mxu0 0
        %2916 = vmatprep.mubr.bf16.mxu0 0
        %2917 = vmatmul.mubr.bf16.gmra.mrb[0].mxu0 %v2870
        %v2918 = vpop.f32.mrb[0].mxu0
        %v2919 = vadd.f32 0.0, %v2918
        %v2920 = vpop.f32.mrb[0].mxu0
        %v2921 = vpop.f32.mrb[0].mxu0
        %v2922 = vadd.f32 0.0, %v2921
        %v2923 = vpop.f32.mrb[0].mxu0
        %2924 = vmatprep.mubr.bf16.mxu0 0
        %2925 = vmatmul.mubr.bf16.gmra.mrb[0].mxu0 %v2873
        %v2926 = vpop.f32.mrb[0].mxu0
        %v2927 = vadd.f32 0.0, %v2926
        %v2928 = vpop.f32.mrb[0].mxu0
        %v2929 = vpop.f32.mrb[0].mxu0
        %v2930 = vadd.f32 0.0, %v2929
        %v2931 = vpop.f32.mrb[0].mxu0
        %2932 = vmatprep.mubr.bf16.mxu0 0
        %2933 = vmatmul.mubr.bf16.gmra.mrb[0].mxu0 %v2876
        %v2934 = vpop.f32.mrb[0].mxu0
        %v2935 = vadd.f32 0.0, %v2934
        %v2936 = vpop.f32.mrb[0].mxu0
        %v2937 = vpop.f32.mrb[0].mxu0
        %v2938 = vadd.f32 0.0, %v2937
        %v2939 = vpop.f32.mrb[0].mxu0
        %2940 = vmatprep.mubr.bf16.mxu0 0
        %2941 = vmatmul.mubr.bf16.gmra.mrb[0].mxu0 %v2879
        %v2942 = vpop.f32.mrb[0].mxu0
        %v2943 = vadd.f32 0.0, %v2942
        %v2944 = vpop.f32.mrb[0].mxu0
        %v2945 = vpop.f32.mrb[0].mxu0
        %v2946 = vpop.f32.mrb[0].mxu0
        %2947 = vdwg.mxu0
        %v2948 = vadd.f32 %v2655, %v2919
        %v2949 = vadd.f32 %v2656, %v2922
        %v2950 = vadd.f32 %v2657, %v2927
        %v2951 = vadd.f32 %v2658, %v2930
        %v2952 = vadd.f32 %v2659, %v2935
        %v2953 = vadd.f32 %v2660, %v2938
        %v2954 = vadd.f32 %v2661, %v2943
        %v2955 = vlaneseq
        %v2956 = vshrl.u32 %v2955, 7
        %v2957 = vsub.s32 2, %v2956
        %v2958 = vrot.slane %v1562, %v2957
        %v2959 = vadd.f32 %v2948, %v2958
        %v2960 = vadd.f32 %v2949, %v2958
        %v2961 = vadd.f32 %v2950, %v2958
        %v2962 = vadd.f32 %v2951, %v2958
        %v2963 = vadd.f32 %v2952, %v2958
        %v2964 = vadd.f32 %v2953, %v2958
        %v2965 = vadd.f32 %v2954, %v2958
        %v2966 = vadd.f32 %v1517, %v2959
        %v2967 = vadd.f32 %v1520, %v2960
        %v2968 = vadd.f32 %v1525, %v2961
        %v2969 = vadd.f32 %v1528, %v2962
        %v2970 = vadd.f32 %v1533, %v2963
        %v2971 = vadd.f32 %v1536, %v2964
        %v2972 = vadd.f32 %v1541, %v2965
        %v2973 = vsel %vm1633, %v2966, 0.0
        %2974 = vadd.xlane.f32.xlu0 %v2973
        %v2975 = vpop.xlane.xlu0 %2974
        %v2976 = vsel %vm1633, %v2967, 0.0
        %2977 = vadd.xlane.f32.xlu0 %v2976
        %v2978 = vpop.xlane.xlu0 %2977
        %v2979 = vsel %vm1633, %v2968, 0.0
        %2980 = vadd.xlane.f32.xlu0 %v2979
        %v2981 = vpop.xlane.xlu0 %2980
        %v2982 = vsel %vm1633, %v2969, 0.0
        %2983 = vadd.xlane.f32.xlu0 %v2982
        %v2984 = vpop.xlane.xlu0 %2983
        %v2985 = vsel %vm1633, %v2970, 0.0
        %2986 = vadd.xlane.f32.xlu0 %v2985
        %v2987 = vpop.xlane.xlu0 %2986
        %v2988 = vsel %vm1633, %v2971, 0.0
        %2989 = vadd.xlane.f32.xlu0 %v2988
        %v2990 = vpop.xlane.xlu0 %2989
        %vm2991 = vcmask 517120
        %v2992 = vsel %vm2991, %v2972, 0.0
        %2993 = vadd.xlane.f32.xlu0 %v2992
        %v2994 = vpop.xlane.xlu0 %2993
        %v2995 = vrcp.pop 64.0
        %v2996 = vmul.f32 %v2975, %v2995
        %v2997 = vmul.f32 %v2978, %v2995
        %v2998 = vmul.f32 %v2981, %v2995
        %v2999 = vmul.f32 %v2984, %v2995
        %v3000 = vmul.f32 %v2987, %v2995
        %v3001 = vmul.f32 %v2990, %v2995
        %v3002 = vmul.f32 %v2994, %v2995
        %v3003 = vsub.f32 %v2966, %v2996
        %v3004 = vsub.f32 %v2967, %v2997
        %v3005 = vsub.f32 %v2968, %v2998
        %v3006 = vsub.f32 %v2969, %v2999
        %v3007 = vsub.f32 %v2970, %v3000
        %v3008 = vsub.f32 %v2971, %v3001
        %v3009 = vsub.f32 %v2972, %v3002
        %v3010 = vmul.f32 %v3003, %v3003
        %v3011 = vmul.f32 %v3004, %v3004
        %v3012 = vmul.f32 %v3005, %v3005
        %v3013 = vmul.f32 %v3006, %v3006
        %v3014 = vmul.f32 %v3007, %v3007
        %v3015 = vmul.f32 %v3008, %v3008
        %v3016 = vmul.f32 %v3009, %v3009
        %v3017 = vsel %vm1633, %v3010, 0.0
        %3018 = vadd.xlane.f32.xlu0 %v3017
        %v3019 = vpop.xlane.xlu0 %3018
        %v3020 = vsel %vm1633, %v3011, 0.0
        %3021 = vadd.xlane.f32.xlu0 %v3020
        %v3022 = vpop.xlane.xlu0 %3021
        %v3023 = vsel %vm1633, %v3012, 0.0
        %3024 = vadd.xlane.f32.xlu0 %v3023
        %v3025 = vpop.xlane.xlu0 %3024
        %v3026 = vsel %vm1633, %v3013, 0.0
        %3027 = vadd.xlane.f32.xlu0 %v3026
        %v3028 = vpop.xlane.xlu0 %3027
        %v3029 = vsel %vm1633, %v3014, 0.0
        %3030 = vadd.xlane.f32.xlu0 %v3029
        %v3031 = vpop.xlane.xlu0 %3030
        %v3032 = vsel %vm1633, %v3015, 0.0
        %3033 = vadd.xlane.f32.xlu0 %v3032
        %v3034 = vpop.xlane.xlu0 %3033
        %v3035 = vsel %vm2991, %v3016, 0.0
        %3036 = vadd.xlane.f32.xlu0 %v3035
        %v3037 = vpop.xlane.xlu0 %3036
        %v3038 = vmul.f32 %v3019, %v2995
        %v3039 = vmul.f32 %v3022, %v2995
        %v3040 = vmul.f32 %v3025, %v2995
        %v3041 = vmul.f32 %v3028, %v2995
        %v3042 = vmul.f32 %v3031, %v2995
        %v3043 = vmul.f32 %v3034, %v2995
        %v3044 = vmul.f32 %v3037, %v2995
        %v3045 = vadd.f32 %v3038, 1e-05
        %v3046 = vadd.f32 %v3039, 1e-05
        %v3047 = vadd.f32 %v3040, 1e-05
        %v3048 = vadd.f32 %v3041, 1e-05
        %v3049 = vadd.f32 %v3042, 1e-05
        %v3050 = vadd.f32 %v3043, 1e-05
        %v3051 = vadd.f32 %v3044, 1e-05
        %v3052 = vrsqrt.pop %v3045
        %v3053 = vrsqrt.pop %v3046
        %v3054 = vrsqrt.pop %v3047
        %v3055 = vrsqrt.pop %v3048
        %v3056 = vrsqrt.pop %v3049
        %v3057 = vrsqrt.pop %v3050
        %v3058 = vrsqrt.pop %v3051
        %v3059 = vmul.f32 %v3003, %v3052
        %v3060 = vmul.f32 %v3004, %v3053
        %v3061 = vmul.f32 %v3005, %v3054
        %v3062 = vmul.f32 %v3006, %v3055
        %v3063 = vmul.f32 %v3007, %v3056
        %v3064 = vmul.f32 %v3008, %v3057
        %v3065 = vmul.f32 %v3009, %v3058
        %v3066 = vlaneseq
        %v3067 = vshrl.u32 %v3066, 7
        %v3068 = vsub.s32 3, %v3067
        %v3069 = vrot.slane %v1562, %v3068
        %v3070 = vmul.f32 %v3059, %v3069
        %v3071 = vmul.f32 %v3060, %v3069
        %v3072 = vmul.f32 %v3061, %v3069
        %v3073 = vmul.f32 %v3062, %v3069
        %v3074 = vmul.f32 %v3063, %v3069
        %v3075 = vmul.f32 %v3064, %v3069
        %v3076 = vmul.f32 %v3065, %v3069
        %v3077 = vlaneseq
        %v3078 = vshrl.u32 %v3077, 7
        %v3079 = vsub.s32 4, %v3078
        %v3080 = vrot.slane %v1562, %v3079
        %v3081 = vadd.f32 %v3070, %v3080
        %v3082 = vadd.f32 %v3071, %v3080
        %v3083 = vadd.f32 %v3072, %v3080
        %v3084 = vadd.f32 %v3073, %v3080
        %v3085 = vadd.f32 %v3074, %v3080
        %v3086 = vadd.f32 %v3075, %v3080
        %v3087 = vadd.f32 %v3076, %v3080
        %v3088 = vpack.c.bf16 %v3082, %v3081
        %v3089 = vpack.c.bf16 %v3084, %v3083
        %v3090 = vpack.c.bf16 %v3086, %v3085
        %v3091 = vpack.c.bf16 %v3087, %v3087
        %v3092 = vld [vmem:[%s6] sm:$0xff]
        %v3093 = vld [vmem:[%s6 + $0x8] sm:$0xff]
        %v3094 = vld [vmem:[%s6 + $0x10] sm:$0xff]
        %v3095 = vld [vmem:[%s6 + $0x18] sm:$0xff]
        %v3096 = vld [vmem:[%s6 + $0x20] sm:$0xff]
        %v3097 = vld [vmem:[%s6 + $0x28] sm:$0xff]
        %v3098 = vld [vmem:[%s6 + $0x30] sm:$0xff]
        %v3099 = vld [vmem:[%s6 + $0x38] sm:$0xff]
        %v3100 = vlaneseq
        %v3101 = vshrl.u32 %v3100, 7
        %v3102 = vsub.s32 5, %v3101
        %v3103 = vrot.slane %v1562, %v3102
        %v3104 = vlaneseq
        %v3105 = vshrl.u32 %v3104, 7
        %v3106 = vsub.s32 5, %v3105
        %v3107 = vrot.slane %v1563, %v3106
        %v3116 = vunpack.c.l.b16 %v3092
        %v3117 = vunpack.c.h.b16 %v3092
        %v3118 = vunpack.c.l.b16 %v3093
        %v3119 = vunpack.c.h.b16 %v3093
        %v3120 = vunpack.c.l.b16 %v3094
        %v3121 = vunpack.c.h.b16 %v3094
        %v3122 = vunpack.c.l.b16 %v3095
        %v3123 = vunpack.c.h.b16 %v3095
        %v3124 = vunpack.c.l.b16 %v3096
        %v3125 = vunpack.c.h.b16 %v3096
        %v3126 = vunpack.c.l.b16 %v3097
        %v3127 = vunpack.c.h.b16 %v3097
        %v3128 = vunpack.c.l.b16 %v3098
        %v3129 = vunpack.c.h.b16 %v3098
        %v3130 = vunpack.c.l.b16 %v3099
        %v3131 = vunpack.c.h.b16 %v3099
        %v3132 = vpack.c.b16 %v3118, %v3116
        %v3133 = vpack.c.b16 %v3119, %v3117
        %v3134 = vpack.c.b16 %v3122, %v3120
        %v3135 = vpack.c.b16 %v3123, %v3121
        %v3136 = vpack.c.b16 %v3126, %v3124
        %v3137 = vpack.c.b16 %v3127, %v3125
        %v3138 = vpack.c.b16 %v3130, %v3128
        %v3139 = vpack.c.b16 %v3131, %v3129
        %v3149 = vsel %vm1633, %v3088, 0
        %v3152 = vsel %vm1633, %v3089, 0
        %v3155 = vsel %vm1633, %v3090, 0
        %v3158 = vsel %vm1633, %v3091, 0
        %3160 = vmatprep.subr.bf16.mxu0 %v3133
        %3161 = vmatpush1.bf16.msra.mxu0 %v3132
        %3162 = vmatprep.subr.bf16.mxu0 %v3135
        %3163 = vmatpush1.bf16.msra.mxu0 %v3134
        %3164 = vmatprep.subr.bf16.mxu0 %v3137
        %3165 = vmatpush1.bf16.msra.mxu0 %v3136
        %3166 = vmatprep.subr.bf16.mxu0 %v3139
        %3167 = vmatpush1.bf16.msra.mxu0 %v3138
        %3168 = vmatprep.subr.bf16.mxu0 0
        %3169 = vmatpush1.bf16.msra.mxu0 0
        %3170 = vmatprep.subr.bf16.mxu0 0
        %3171 = vmatpush1.bf16.msra.mxu0 0
        %3172 = vmatprep.subr.bf16.mxu0 0
        %3173 = vmatpush1.bf16.msra.mxu0 0
        %3174 = vmatprep.subr.bf16.mxu0 0
        %3175 = vmatpush1.bf16.msra.mxu0 0
        %3176 = vmatprep.subr.bf16.mxu0 0
        %3177 = vmatpush1.bf16.msra.mxu0 0
        %3178 = vmatprep.subr.bf16.mxu0 0
        %3179 = vmatpush1.bf16.msra.mxu0 0
        %3180 = vmatprep.subr.bf16.mxu0 0
        %3181 = vmatpush1.bf16.msra.mxu0 0
        %3182 = vmatprep.subr.bf16.mxu0 0
        %3183 = vmatpush1.bf16.msra.mxu0 0
        %3184 = vmatprep.subr.bf16.mxu0 0
        %3185 = vmatpush1.bf16.msra.mxu0 0
        %3186 = vmatprep.subr.bf16.mxu0 0
        %3187 = vmatpush1.bf16.msra.mxu0 0
        %3188 = vmatprep.subr.bf16.mxu0 0
        %3189 = vmatpush1.bf16.msra.mxu0 0
        %3190 = vmatprep.subr.bf16.mxu0 0
        %3191 = vmatpush1.bf16.msra.mxu0 0
        %3192 = vmatprep.mubr.bf16.mxu0 0
        %3193 = vmatmul.mubr.bf16.gmra.mrb[0].mxu0 %v3149
        %v3194 = vpop.f32.mrb[0].mxu0
        %v3195 = vadd.f32 %v3103, %v3194
        %v3196 = vpop.f32.mrb[0].mxu0
        %v3197 = vadd.f32 %v3107, %v3196
        %v3198 = vpop.f32.mrb[0].mxu0
        %v3199 = vadd.f32 %v3103, %v3198
        %v3200 = vpop.f32.mrb[0].mxu0
        %v3201 = vadd.f32 %v3107, %v3200
        %3202 = vmatprep.mubr.bf16.mxu0 0
        %3203 = vmatmul.mubr.bf16.gmra.mrb[0].mxu0 %v3152
        %v3204 = vpop.f32.mrb[0].mxu0
        %v3205 = vadd.f32 %v3103, %v3204
        %v3206 = vpop.f32.mrb[0].mxu0
        %v3207 = vadd.f32 %v3107, %v3206
        %v3208 = vpop.f32.mrb[0].mxu0
        %v3209 = vadd.f32 %v3103, %v3208
        %v3210 = vpop.f32.mrb[0].mxu0
        %v3211 = vadd.f32 %v3107, %v3210
        %3212 = vmatprep.mubr.bf16.mxu0 0
        %3213 = vmatmul.mubr.bf16.gmra.mrb[0].mxu0 %v3155
        %v3214 = vpop.f32.mrb[0].mxu0
        %v3215 = vadd.f32 %v3103, %v3214
        %v3216 = vpop.f32.mrb[0].mxu0
        %v3217 = vadd.f32 %v3107, %v3216
        %v3218 = vpop.f32.mrb[0].mxu0
        %v3219 = vadd.f32 %v3103, %v3218
        %v3220 = vpop.f32.mrb[0].mxu0
        %v3221 = vadd.f32 %v3107, %v3220
        %3222 = vmatprep.mubr.bf16.mxu0 0
        %3223 = vmatmul.mubr.bf16.gmra.mrb[0].mxu0 %v3158
        %v3224 = vpop.f32.mrb[0].mxu0
        %v3225 = vadd.f32 %v3103, %v3224
        %v3226 = vpop.f32.mrb[0].mxu0
        %v3227 = vadd.f32 %v3107, %v3226
        %v3228 = vpop.f32.mrb[0].mxu0
        %v3229 = vpop.f32.mrb[0].mxu0
        %3230 = vdwg.mxu0
        %v3231 = vmul.f32 %v3195, 0.5
        %v3232 = vmul.f32 %v3197, 0.5
        %v3233 = vmul.f32 %v3199, 0.5
        %v3234 = vmul.f32 %v3201, 0.5
        %v3235 = vmul.f32 %v3205, 0.5
        %v3236 = vmul.f32 %v3207, 0.5
        %v3237 = vmul.f32 %v3209, 0.5
        %v3238 = vmul.f32 %v3211, 0.5
        %v3239 = vmul.f32 %v3215, 0.5
        %v3240 = vmul.f32 %v3217, 0.5
        %v3241 = vmul.f32 %v3219, 0.5
        %v3242 = vmul.f32 %v3221, 0.5
        %v3243 = vmul.f32 %v3225, 0.5
        %v3244 = vmul.f32 %v3227, 0.5
        %v3245 = vmul.f32 %v3195, 0.044715
        %v3246 = vmul.f32 %v3197, 0.044715
        %v3247 = vmul.f32 %v3199, 0.044715
        %v3248 = vmul.f32 %v3201, 0.044715
        %v3249 = vmul.f32 %v3205, 0.044715
        %v3250 = vmul.f32 %v3207, 0.044715
        %v3251 = vmul.f32 %v3209, 0.044715
        %v3252 = vmul.f32 %v3211, 0.044715
        %v3253 = vmul.f32 %v3215, 0.044715
        %v3254 = vmul.f32 %v3217, 0.044715
        %v3255 = vmul.f32 %v3219, 0.044715
        %v3256 = vmul.f32 %v3221, 0.044715
        %v3257 = vmul.f32 %v3225, 0.044715
        %v3258 = vmul.f32 %v3227, 0.044715
        %v3259 = vmul.f32 %v3245, %v3195
        %v3260 = vmul.f32 %v3246, %v3197
        %v3261 = vmul.f32 %v3247, %v3199
        %v3262 = vmul.f32 %v3248, %v3201
        %v3263 = vmul.f32 %v3249, %v3205
        %v3264 = vmul.f32 %v3250, %v3207
        %v3265 = vmul.f32 %v3251, %v3209
        %v3266 = vmul.f32 %v3252, %v3211
        %v3267 = vmul.f32 %v3253, %v3215
        %v3268 = vmul.f32 %v3254, %v3217
        %v3269 = vmul.f32 %v3255, %v3219
        %v3270 = vmul.f32 %v3256, %v3221
        %v3271 = vmul.f32 %v3257, %v3225
        %v3272 = vmul.f32 %v3258, %v3227
        %v3273 = vmul.f32 %v3259, %v3195
        %v3274 = vmul.f32 %v3260, %v3197
        %v3275 = vmul.f32 %v3261, %v3199
        %v3276 = vmul.f32 %v3262, %v3201
        %v3277 = vmul.f32 %v3263, %v3205
        %v3278 = vmul.f32 %v3264, %v3207
        %v3279 = vmul.f32 %v3265, %v3209
        %v3280 = vmul.f32 %v3266, %v3211
        %v3281 = vmul.f32 %v3267, %v3215
        %v3282 = vmul.f32 %v3268, %v3217
        %v3283 = vmul.f32 %v3269, %v3219
        %v3284 = vmul.f32 %v3270, %v3221
        %v3285 = vmul.f32 %v3271, %v3225
        %v3286 = vmul.f32 %v3272, %v3227
        %v3287 = vadd.f32 %v3195, %v3273
        %v3288 = vadd.f32 %v3197, %v3274
        %v3289 = vadd.f32 %v3199, %v3275
        %v3290 = vadd.f32 %v3201, %v3276
        %v3291 = vadd.f32 %v3205, %v3277
        %v3292 = vadd.f32 %v3207, %v3278
        %v3293 = vadd.f32 %v3209, %v3279
        %v3294 = vadd.f32 %v3211, %v3280
        %v3295 = vadd.f32 %v3215, %v3281
        %v3296 = vadd.f32 %v3217, %v3282
        %v3297 = vadd.f32 %v3219, %v3283
        %v3298 = vadd.f32 %v3221, %v3284
        %v3299 = vadd.f32 %v3225, %v3285
        %v3300 = vadd.f32 %v3227, %v3286
        %v3301 = vmul.f32 %v3287, 0.7978846
        %v3302 = vmul.f32 %v3288, 0.7978846
        %v3303 = vmul.f32 %v3289, 0.7978846
        %v3304 = vmul.f32 %v3290, 0.7978846
        %v3305 = vmul.f32 %v3291, 0.7978846
        %v3306 = vmul.f32 %v3292, 0.7978846
        %v3307 = vmul.f32 %v3293, 0.7978846
        %v3308 = vmul.f32 %v3294, 0.7978846
        %v3309 = vmul.f32 %v3295, 0.7978846
        %v3310 = vmul.f32 %v3296, 0.7978846
        %v3311 = vmul.f32 %v3297, 0.7978846
        %v3312 = vmul.f32 %v3298, 0.7978846
        %v3313 = vmul.f32 %v3299, 0.7978846
        %v3314 = vmul.f32 %v3300, 0.7978846
        %v3315 = vtanh.pop %v3301
        %v3316 = vtanh.pop %v3302
        %v3317 = vtanh.pop %v3303
        %v3318 = vtanh.pop %v3304
        %v3319 = vtanh.pop %v3305
        %v3320 = vtanh.pop %v3306
        %v3321 = vtanh.pop %v3307
        %v3322 = vtanh.pop %v3308
        %v3323 = vtanh.pop %v3309
        %v3324 = vtanh.pop %v3310
        %v3325 = vtanh.pop %v3311
        %v3326 = vtanh.pop %v3312
        %v3327 = vtanh.pop %v3313
        %v3328 = vtanh.pop %v3314
        %v3329 = vadd.f32 %v3315, 1.0
        %v3330 = vadd.f32 %v3316, 1.0
        %v3331 = vadd.f32 %v3317, 1.0
        %v3332 = vadd.f32 %v3318, 1.0
        %v3333 = vadd.f32 %v3319, 1.0
        %v3334 = vadd.f32 %v3320, 1.0
        %v3335 = vadd.f32 %v3321, 1.0
        %v3336 = vadd.f32 %v3322, 1.0
        %v3337 = vadd.f32 %v3323, 1.0
        %v3338 = vadd.f32 %v3324, 1.0
        %v3339 = vadd.f32 %v3325, 1.0
        %v3340 = vadd.f32 %v3326, 1.0
        %v3341 = vadd.f32 %v3327, 1.0
        %v3342 = vadd.f32 %v3328, 1.0
        %v3343 = vmul.f32 %v3231, %v3329
        %v3344 = vmul.f32 %v3232, %v3330
        %v3345 = vmul.f32 %v3233, %v3331
        %v3346 = vmul.f32 %v3234, %v3332
        %v3347 = vmul.f32 %v3235, %v3333
        %v3348 = vmul.f32 %v3236, %v3334
        %v3349 = vmul.f32 %v3237, %v3335
        %v3350 = vmul.f32 %v3238, %v3336
        %v3351 = vmul.f32 %v3239, %v3337
        %v3352 = vmul.f32 %v3240, %v3338
        %v3353 = vmul.f32 %v3241, %v3339
        %v3354 = vmul.f32 %v3242, %v3340
        %v3355 = vmul.f32 %v3243, %v3341
        %v3356 = vmul.f32 %v3244, %v3342
        %v3357 = vpack.c.bf16 %v3345, %v3343
        %v3358 = vpack.c.bf16 %v3346, %v3344
        %v3359 = vpack.c.bf16 %v3349, %v3347
        %v3360 = vpack.c.bf16 %v3350, %v3348
        %v3361 = vpack.c.bf16 %v3353, %v3351
        %v3362 = vpack.c.bf16 %v3354, %v3352
        %v3363 = vpack.c.bf16 %v3355, %v3355
        %v3364 = vpack.c.bf16 %v3356, %v3356
        %v3365 = vld [vmem:[%s7] sm:$0xf]
        %v3366 = vld [vmem:[%s7 + $0x4] sm:$0xf]
        %v3367 = vld [vmem:[%s7 + $0x8] sm:$0xf]
        %v3368 = vld [vmem:[%s7 + $0xc] sm:$0xf]
        %v3369 = vld [vmem:[%s7 + $0x10] sm:$0xf]
        %v3370 = vld [vmem:[%s7 + $0x14] sm:$0xf]
        %v3371 = vld [vmem:[%s7 + $0x18] sm:$0xf]
        %v3372 = vld [vmem:[%s7 + $0x1c] sm:$0xf]
        %v3373 = vld [vmem:[%s7 + $0x20] sm:$0xf]
        %v3374 = vld [vmem:[%s7 + $0x24] sm:$0xf]
        %v3375 = vld [vmem:[%s7 + $0x28] sm:$0xf]
        %v3376 = vld [vmem:[%s7 + $0x2c] sm:$0xf]
        %v3377 = vld [vmem:[%s7 + $0x30] sm:$0xf]
        %v3378 = vld [vmem:[%s7 + $0x34] sm:$0xf]
        %v3379 = vld [vmem:[%s7 + $0x38] sm:$0xf]
        %v3380 = vld [vmem:[%s7 + $0x3c] sm:$0xf]
        %v3381 = vld [vmem:[%s7 + $0x40] sm:$0xf]
        %v3382 = vld [vmem:[%s7 + $0x44] sm:$0xf]
        %v3383 = vld [vmem:[%s7 + $0x48] sm:$0xf]
        %v3384 = vld [vmem:[%s7 + $0x4c] sm:$0xf]
        %v3385 = vld [vmem:[%s7 + $0x50] sm:$0xf]
        %v3386 = vld [vmem:[%s7 + $0x54] sm:$0xf]
        %v3387 = vld [vmem:[%s7 + $0x58] sm:$0xf]
        %v3388 = vld [vmem:[%s7 + $0x5c] sm:$0xf]
        %v3389 = vld [vmem:[%s7 + $0x60] sm:$0xf]
        %v3390 = vld [vmem:[%s7 + $0x64] sm:$0xf]
        %v3391 = vld [vmem:[%s7 + $0x68] sm:$0xf]
        %v3392 = vld [vmem:[%s7 + $0x6c] sm:$0xf]
        %v3393 = vld [vmem:[%s7 + $0x70] sm:$0xf]
        %v3394 = vld [vmem:[%s7 + $0x74] sm:$0xf]
        %v3395 = vld [vmem:[%s7 + $0x78] sm:$0xf]
        %v3396 = vld [vmem:[%s7 + $0x7c] sm:$0xf]
        %v3397 = vlaneseq
        %v3398 = vshrl.u32 %v3397, 7
        %v3399 = vsub.s32 6, %v3398
        %v3400 = vrot.slane %v1562, %v3399
        %v3433 = vunpack.c.l.b16 %v3365
        %v3434 = vunpack.c.l.b16 %v3366
        %v3435 = vunpack.c.l.b16 %v3367
        %v3436 = vunpack.c.l.b16 %v3368
        %v3437 = vunpack.c.l.b16 %v3369
        %v3438 = vunpack.c.l.b16 %v3370
        %v3439 = vunpack.c.l.b16 %v3371
        %v3440 = vunpack.c.l.b16 %v3372
        %v3441 = vunpack.c.l.b16 %v3373
        %v3442 = vunpack.c.l.b16 %v3374
        %v3443 = vunpack.c.l.b16 %v3375
        %v3444 = vunpack.c.l.b16 %v3376
        %v3445 = vunpack.c.l.b16 %v3377
        %v3446 = vunpack.c.l.b16 %v3378
        %v3447 = vunpack.c.l.b16 %v3379
        %v3448 = vunpack.c.l.b16 %v3380
        %v3449 = vunpack.c.l.b16 %v3381
        %v3450 = vunpack.c.l.b16 %v3382
        %v3451 = vunpack.c.l.b16 %v3383
        %v3452 = vunpack.c.l.b16 %v3384
        %v3453 = vunpack.c.l.b16 %v3385
        %v3454 = vunpack.c.l.b16 %v3386
        %v3455 = vunpack.c.l.b16 %v3387
        %v3456 = vunpack.c.l.b16 %v3388
        %v3457 = vunpack.c.l.b16 %v3389
        %v3458 = vunpack.c.l.b16 %v3390
        %v3459 = vunpack.c.l.b16 %v3391
        %v3460 = vunpack.c.l.b16 %v3392
        %v3461 = vunpack.c.l.b16 %v3393
        %v3462 = vunpack.c.l.b16 %v3394
        %v3463 = vunpack.c.l.b16 %v3395
        %v3464 = vunpack.c.l.b16 %v3396
        %v3465 = vpack.c.b16 %v3434, %v3433
        %v3466 = vpack.c.b16 %v3436, %v3435
        %v3467 = vpack.c.b16 %v3438, %v3437
        %v3468 = vpack.c.b16 %v3440, %v3439
        %v3469 = vpack.c.b16 %v3442, %v3441
        %v3470 = vpack.c.b16 %v3444, %v3443
        %v3471 = vpack.c.b16 %v3446, %v3445
        %v3472 = vpack.c.b16 %v3448, %v3447
        %v3473 = vpack.c.b16 %v3450, %v3449
        %v3474 = vpack.c.b16 %v3452, %v3451
        %v3475 = vpack.c.b16 %v3454, %v3453
        %v3476 = vpack.c.b16 %v3456, %v3455
        %v3477 = vpack.c.b16 %v3458, %v3457
        %v3478 = vpack.c.b16 %v3460, %v3459
        %v3479 = vpack.c.b16 %v3462, %v3461
        %v3480 = vpack.c.b16 %v3464, %v3463
        %3497 = vmatprep.subr.bf16.mxu0 0
        %3498 = vmatpush1.bf16.msra.mxu0 %v3465
        %3499 = vmatprep.subr.bf16.mxu0 0
        %3500 = vmatpush1.bf16.msra.mxu0 %v3466
        %3501 = vmatprep.subr.bf16.mxu0 0
        %3502 = vmatpush1.bf16.msra.mxu0 %v3467
        %3503 = vmatprep.subr.bf16.mxu0 0
        %3504 = vmatpush1.bf16.msra.mxu0 %v3468
        %3505 = vmatprep.subr.bf16.mxu0 0
        %3506 = vmatpush1.bf16.msra.mxu0 %v3469
        %3507 = vmatprep.subr.bf16.mxu0 0
        %3508 = vmatpush1.bf16.msra.mxu0 %v3470
        %3509 = vmatprep.subr.bf16.mxu0 0
        %3510 = vmatpush1.bf16.msra.mxu0 %v3471
        %3511 = vmatprep.subr.bf16.mxu0 0
        %3512 = vmatpush1.bf16.msra.mxu0 %v3472
        %3513 = vmatprep.subr.bf16.mxu0 0
        %3514 = vmatpush1.bf16.msra.mxu0 %v3473
        %3515 = vmatprep.subr.bf16.mxu0 0
        %3516 = vmatpush1.bf16.msra.mxu0 %v3474
        %3517 = vmatprep.subr.bf16.mxu0 0
        %3518 = vmatpush1.bf16.msra.mxu0 %v3475
        %3519 = vmatprep.subr.bf16.mxu0 0
        %3520 = vmatpush1.bf16.msra.mxu0 %v3476
        %3521 = vmatprep.subr.bf16.mxu0 0
        %3522 = vmatpush1.bf16.msra.mxu0 %v3477
        %3523 = vmatprep.subr.bf16.mxu0 0
        %3524 = vmatpush1.bf16.msra.mxu0 %v3478
        %3525 = vmatprep.subr.bf16.mxu0 0
        %3526 = vmatpush1.bf16.msra.mxu0 %v3479
        %3527 = vmatprep.subr.bf16.mxu0 0
        %3528 = vmatpush1.bf16.msra.mxu0 %v3480
        %3529 = vmatprep.mubr.bf16.mxu0 %v3358
        %3530 = vmatmul.mubr.bf16.gmra.mrb[0].mxu0 %v3357
        %v3531 = vpop.f32.mrb[0].mxu0
        %v3532 = vadd.f32 %v3400, %v3531
        %v3533 = vpop.f32.mrb[0].mxu0
        %v3534 = vpop.f32.mrb[0].mxu0
        %v3535 = vadd.f32 %v3400, %v3534
        %v3536 = vpop.f32.mrb[0].mxu0
        %3537 = vmatprep.mubr.bf16.mxu0 %v3360
        %3538 = vmatmul.mubr.bf16.gmra.mrb[0].mxu0 %v3359
        %v3539 = vpop.f32.mrb[0].mxu0
        %v3540 = vadd.f32 %v3400, %v3539
        %v3541 = vpop.f32.mrb[0].mxu0
        %v3542 = vpop.f32.mrb[0].mxu0
        %v3543 = vadd.f32 %v3400, %v3542
        %v3544 = vpop.f32.mrb[0].mxu0
        %3545 = vmatprep.mubr.bf16.mxu0 %v3362
        %3546 = vmatmul.mubr.bf16.gmra.mrb[0].mxu0 %v3361
        %v3547 = vpop.f32.mrb[0].mxu0
        %v3548 = vadd.f32 %v3400, %v3547
        %v3549 = vpop.f32.mrb[0].mxu0
        %v3550 = vpop.f32.mrb[0].mxu0
        %v3551 = vadd.f32 %v3400, %v3550
        %v3552 = vpop.f32.mrb[0].mxu0
        %3553 = vmatprep.mubr.bf16.mxu0 %v3364
        %3554 = vmatmul.mubr.bf16.gmra.mrb[0].mxu0 %v3363
        %v3555 = vpop.f32.mrb[0].mxu0
        %v3556 = vadd.f32 %v3400, %v3555
        %v3557 = vpop.f32.mrb[0].mxu0
        %v3558 = vpop.f32.mrb[0].mxu0
        %v3559 = vpop.f32.mrb[0].mxu0
        %3560 = vdwg.mxu0
        %v3561 = vadd.f32 %v3081, %v3532
        %v3562 = vadd.f32 %v3082, %v3535
        %v3563 = vadd.f32 %v3083, %v3540
        %v3564 = vadd.f32 %v3084, %v3543
        %v3565 = vadd.f32 %v3085, %v3548
        %v3566 = vadd.f32 %v3086, %v3551
        %v3567 = vadd.f32 %v3087, %v3556
        %v3568 = vsel %vm1633, %v3561, 0.0
        %3569 = vadd.xlane.f32.xlu0 %v3568
        %v3570 = vpop.xlane.xlu0 %3569
        %v3571 = vsel %vm1633, %v3562, 0.0
        %3572 = vadd.xlane.f32.xlu0 %v3571
        %v3573 = vpop.xlane.xlu0 %3572
        %v3574 = vsel %vm1633, %v3563, 0.0
        %3575 = vadd.xlane.f32.xlu0 %v3574
        %v3576 = vpop.xlane.xlu0 %3575
        %v3577 = vsel %vm1633, %v3564, 0.0
        %3578 = vadd.xlane.f32.xlu0 %v3577
        %v3579 = vpop.xlane.xlu0 %3578
        %v3580 = vsel %vm1633, %v3565, 0.0
        %3581 = vadd.xlane.f32.xlu0 %v3580
        %v3582 = vpop.xlane.xlu0 %3581
        %v3583 = vsel %vm1633, %v3566, 0.0
        %3584 = vadd.xlane.f32.xlu0 %v3583
        %v3585 = vpop.xlane.xlu0 %3584
        %v3586 = vsel %vm2991, %v3567, 0.0
        %3587 = vadd.xlane.f32.xlu0 %v3586
        %v3588 = vpop.xlane.xlu0 %3587
        %v3589 = vmul.f32 %v3570, %v2995
        %v3590 = vmul.f32 %v3573, %v2995
        %v3591 = vmul.f32 %v3576, %v2995
        %v3592 = vmul.f32 %v3579, %v2995
        %v3593 = vmul.f32 %v3582, %v2995
        %v3594 = vmul.f32 %v3585, %v2995
        %v3595 = vmul.f32 %v3588, %v2995
        %v3596 = vsub.f32 %v3561, %v3589
        %v3597 = vsub.f32 %v3562, %v3590
        %v3598 = vsub.f32 %v3563, %v3591
        %v3599 = vsub.f32 %v3564, %v3592
        %v3600 = vsub.f32 %v3565, %v3593
        %v3601 = vsub.f32 %v3566, %v3594
        %v3602 = vsub.f32 %v3567, %v3595
        %v3603 = vmul.f32 %v3596, %v3596
        %v3604 = vmul.f32 %v3597, %v3597
        %v3605 = vmul.f32 %v3598, %v3598
        %v3606 = vmul.f32 %v3599, %v3599
        %v3607 = vmul.f32 %v3600, %v3600
        %v3608 = vmul.f32 %v3601, %v3601
        %v3609 = vmul.f32 %v3602, %v3602
        %v3610 = vsel %vm1633, %v3603, 0.0
        %3611 = vadd.xlane.f32.xlu0 %v3610
        %v3612 = vpop.xlane.xlu0 %3611
        %v3613 = vsel %vm1633, %v3604, 0.0
        %3614 = vadd.xlane.f32.xlu0 %v3613
        %v3615 = vpop.xlane.xlu0 %3614
        %v3616 = vsel %vm1633, %v3605, 0.0
        %3617 = vadd.xlane.f32.xlu0 %v3616
        %v3618 = vpop.xlane.xlu0 %3617
        %v3619 = vsel %vm1633, %v3606, 0.0
        %3620 = vadd.xlane.f32.xlu0 %v3619
        %v3621 = vpop.xlane.xlu0 %3620
        %v3622 = vsel %vm1633, %v3607, 0.0
        %3623 = vadd.xlane.f32.xlu0 %v3622
        %v3624 = vpop.xlane.xlu0 %3623
        %v3625 = vsel %vm1633, %v3608, 0.0
        %3626 = vadd.xlane.f32.xlu0 %v3625
        %v3627 = vpop.xlane.xlu0 %3626
        %v3628 = vsel %vm2991, %v3609, 0.0
        %3629 = vadd.xlane.f32.xlu0 %v3628
        %v3630 = vpop.xlane.xlu0 %3629
        %v3631 = vmul.f32 %v3612, %v2995
        %v3632 = vmul.f32 %v3615, %v2995
        %v3633 = vmul.f32 %v3618, %v2995
        %v3634 = vmul.f32 %v3621, %v2995
        %v3635 = vmul.f32 %v3624, %v2995
        %v3636 = vmul.f32 %v3627, %v2995
        %v3637 = vmul.f32 %v3630, %v2995
        %v3638 = vadd.f32 %v3631, 1e-05
        %v3639 = vadd.f32 %v3632, 1e-05
        %v3640 = vadd.f32 %v3633, 1e-05
        %v3641 = vadd.f32 %v3634, 1e-05
        %v3642 = vadd.f32 %v3635, 1e-05
        %v3643 = vadd.f32 %v3636, 1e-05
        %v3644 = vadd.f32 %v3637, 1e-05
        %v3645 = vrsqrt.pop %v3638
        %v3646 = vrsqrt.pop %v3639
        %v3647 = vrsqrt.pop %v3640
        %v3648 = vrsqrt.pop %v3641
        %v3649 = vrsqrt.pop %v3642
        %v3650 = vrsqrt.pop %v3643
        %v3651 = vrsqrt.pop %v3644
        %v3652 = vmul.f32 %v3596, %v3645
        %v3653 = vmul.f32 %v3597, %v3646
        %v3654 = vmul.f32 %v3598, %v3647
        %v3655 = vmul.f32 %v3599, %v3648
        %v3656 = vmul.f32 %v3600, %v3649
        %v3657 = vmul.f32 %v3601, %v3650
        %v3658 = vmul.f32 %v3602, %v3651
        %v3659 = vlaneseq
        %v3660 = vshrl.u32 %v3659, 7
        %v3661 = vsub.s32 7, %v3660
        %v3662 = vrot.slane %v1562, %v3661
        %v3663 = vmul.f32 %v3652, %v3662
        %v3664 = vmul.f32 %v3653, %v3662
        %v3665 = vmul.f32 %v3654, %v3662
        %v3666 = vmul.f32 %v3655, %v3662
        %v3667 = vmul.f32 %v3656, %v3662
        %v3668 = vmul.f32 %v3657, %v3662
        %v3669 = vmul.f32 %v3658, %v3662
        %v3670 = vlaneseq
        %v3671 = vshrl.u32 %v3670, 7
        %v3672 = vsub.s32 0, %v3671
        %v3673 = vrot.slane %v1564, %v3672
        %v3674 = vadd.f32 %v3663, %v3673
        %v3675 = vadd.f32 %v3664, %v3673
        %v3676 = vadd.f32 %v3665, %v3673
        %v3677 = vadd.f32 %v3666, %v3673
        %v3678 = vadd.f32 %v3667, %v3673
        %v3679 = vadd.f32 %v3668, %v3673
        %v3680 = vadd.f32 %v3669, %v3673
        %s3681 = scalar_lea.vmem %s5, 96
        %v3682 = vld [vmem:[%s3681] sm:$0xff]
        %v3683 = vld [vmem:[%s3681 + $0x8] sm:$0xf]
        %v3684 = vld [vmem:[%s3681 + $0xc] sm:$0xff]
        %v3685 = vld [vmem:[%s3681 + $0x14] sm:$0xf]
        %v3686 = vld [vmem:[%s3681 + $0x18] sm:$0xff]
        %v3687 = vld [vmem:[%s3681 + $0x20] sm:$0xf]
        %v3688 = vld [vmem:[%s3681 + $0x24] sm:$0xff]
        %v3689 = vld [vmem:[%s3681 + $0x2c] sm:$0xf]
        %v3690 = vld [vmem:[%s3681 + $0x30] sm:$0xff]
        %v3691 = vld [vmem:[%s3681 + $0x38] sm:$0xf]
        %v3692 = vld [vmem:[%s3681 + $0x3c] sm:$0xff]
        %v3693 = vld [vmem:[%s3681 + $0x44] sm:$0xf]
        %v3694 = vld [vmem:[%s3681 + $0x48] sm:$0xff]
        %v3695 = vld [vmem:[%s3681 + $0x50] sm:$0xf]
        %v3696 = vld [vmem:[%s3681 + $0x54] sm:$0xff]
        %v3697 = vld [vmem:[%s3681 + $0x5c] sm:$0xf]
        %s3698 = scalar_lea.vmem %s8, 32
        %v3699 = vld [vmem:[%s3698] sm:$0xff]
        %v3700 = vld [vmem:[%s3698 + $0x8] sm:$0xff]
        %v3701 = vld [vmem:[%s3698 + $0x10] sm:$0x1]
        %v3702 = vpack.c.bf16 %v3675, %v3674
        %v3703 = vpack.c.bf16 %v3677, %v3676
        %v3704 = vpack.c.bf16 %v3679, %v3678
        %v3705 = vpack.c.bf16 %v3680, %v3680
        %v3722 = vunpack.c.l.b16 %v3682
        %v3723 = vunpack.c.h.b16 %v3682
        %v3724 = vunpack.c.l.b16 %v3683
        %v3725 = vunpack.c.l.b16 %v3684
        %v3726 = vunpack.c.h.b16 %v3684
        %v3727 = vunpack.c.l.b16 %v3685
        %v3728 = vunpack.c.l.b16 %v3686
        %v3729 = vunpack.c.h.b16 %v3686
        %v3730 = vunpack.c.l.b16 %v3687
        %v3731 = vunpack.c.l.b16 %v3688
        %v3732 = vunpack.c.h.b16 %v3688
        %v3733 = vunpack.c.l.b16 %v3689
        %v3734 = vunpack.c.l.b16 %v3690
        %v3735 = vunpack.c.h.b16 %v3690
        %v3736 = vunpack.c.l.b16 %v3691
        %v3737 = vunpack.c.l.b16 %v3692
        %v3738 = vunpack.c.h.b16 %v3692
        %v3739 = vunpack.c.l.b16 %v3693
        %v3740 = vunpack.c.l.b16 %v3694
        %v3741 = vunpack.c.h.b16 %v3694
        %v3742 = vunpack.c.l.b16 %v3695
        %v3743 = vunpack.c.l.b16 %v3696
        %v3744 = vunpack.c.h.b16 %v3696
        %v3745 = vunpack.c.l.b16 %v3697
        %v3746 = vpack.c.b16 %v3725, %v3722
        %v3747 = vpack.c.b16 %v3726, %v3723
        %v3748 = vpack.c.b16 %v3727, %v3724
        %v3749 = vpack.c.b16 %v3731, %v3728
        %v3750 = vpack.c.b16 %v3732, %v3729
        %v3751 = vpack.c.b16 %v3733, %v3730
        %v3752 = vpack.c.b16 %v3737, %v3734
        %v3753 = vpack.c.b16 %v3738, %v3735
        %v3754 = vpack.c.b16 %v3739, %v3736
        %v3755 = vpack.c.b16 %v3743, %v3740
        %v3756 = vpack.c.b16 %v3744, %v3741
        %v3757 = vpack.c.b16 %v3745, %v3742
        %v3771 = vsel %vm1633, %v3702, 0
        %v3774 = vsel %vm1633, %v3703, 0
        %v3777 = vsel %vm1633, %v3704, 0
        %v3780 = vsel %vm1633, %v3705, 0
        %3782 = vmatprep.subr.bf16.mxu0 %v3747
        %3783 = vmatpush1.bf16.msra.mxu0 %v3746
        %3784 = vmatprep.subr.bf16.mxu0 %v3750
        %3785 = vmatpush1.bf16.msra.mxu0 %v3749
        %3786 = vmatprep.subr.bf16.mxu0 %v3753
        %3787 = vmatpush1.bf16.msra.mxu0 %v3752
        %3788 = vmatprep.subr.bf16.mxu0 %v3756
        %3789 = vmatpush1.bf16.msra.mxu0 %v3755
        %3790 = vmatprep.subr.bf16.mxu0 0
        %3791 = vmatpush1.bf16.msra.mxu0 0
        %3792 = vmatprep.subr.bf16.mxu0 0
        %3793 = vmatpush1.bf16.msra.mxu0 0
        %3794 = vmatprep.subr.bf16.mxu0 0
        %3795 = vmatpush1.bf16.msra.mxu0 0
        %3796 = vmatprep.subr.bf16.mxu0 0
        %3797 = vmatpush1.bf16.msra.mxu0 0
        %3798 = vmatprep.subr.bf16.mxu0 0
        %3799 = vmatpush1.bf16.msra.mxu0 0
        %3800 = vmatprep.subr.bf16.mxu0 0
        %3801 = vmatpush1.bf16.msra.mxu0 0
        %3802 = vmatprep.subr.bf16.mxu0 0
        %3803 = vmatpush1.bf16.msra.mxu0 0
        %3804 = vmatprep.subr.bf16.mxu0 0
        %3805 = vmatpush1.bf16.msra.mxu0 0
        %3806 = vmatprep.subr.bf16.mxu0 0
        %3807 = vmatpush1.bf16.msra.mxu0 0
        %3808 = vmatprep.subr.bf16.mxu0 0
        %3809 = vmatpush1.bf16.msra.mxu0 0
        %3810 = vmatprep.subr.bf16.mxu0 0
        %3811 = vmatpush1.bf16.msra.mxu0 0
        %3812 = vmatprep.subr.bf16.mxu0 0
        %3813 = vmatpush1.bf16.msra.mxu0 0
        %3814 = vmatprep.mubr.bf16.mxu0 0
        %3815 = vmatmul.mubr.bf16.gmra.mrb[0].mxu0 %v3771
        %v3816 = vpop.f32.mrb[0].mxu0
        %v3817 = vadd.f32 0.0, %v3816
        %v3818 = vpop.f32.mrb[0].mxu0
        %v3819 = vadd.f32 0.0, %v3818
        %v3820 = vpop.f32.mrb[0].mxu0
        %v3821 = vadd.f32 0.0, %v3820
        %v3822 = vpop.f32.mrb[0].mxu0
        %v3823 = vadd.f32 0.0, %v3822
        %3824 = vmatprep.mubr.bf16.mxu0 0
        %3825 = vmatmul.mubr.bf16.gmra.mrb[0].mxu0 %v3774
        %v3826 = vpop.f32.mrb[0].mxu0
        %v3827 = vadd.f32 0.0, %v3826
        %v3828 = vpop.f32.mrb[0].mxu0
        %v3829 = vadd.f32 0.0, %v3828
        %v3830 = vpop.f32.mrb[0].mxu0
        %v3831 = vadd.f32 0.0, %v3830
        %v3832 = vpop.f32.mrb[0].mxu0
        %v3833 = vadd.f32 0.0, %v3832
        %3834 = vmatprep.mubr.bf16.mxu0 0
        %3835 = vmatmul.mubr.bf16.gmra.mrb[0].mxu0 %v3777
        %v3836 = vpop.f32.mrb[0].mxu0
        %v3837 = vadd.f32 0.0, %v3836
        %v3838 = vpop.f32.mrb[0].mxu0
        %v3839 = vadd.f32 0.0, %v3838
        %v3840 = vpop.f32.mrb[0].mxu0
        %v3841 = vadd.f32 0.0, %v3840
        %v3842 = vpop.f32.mrb[0].mxu0
        %v3843 = vadd.f32 0.0, %v3842
        %3844 = vmatprep.mubr.bf16.mxu0 0
        %3845 = vmatmul.mubr.bf16.gmra.mrb[0].mxu0 %v3780
        %v3846 = vpop.f32.mrb[0].mxu0
        %v3847 = vadd.f32 0.0, %v3846
        %v3848 = vpop.f32.mrb[0].mxu0
        %v3849 = vadd.f32 0.0, %v3848
        %v3850 = vpop.f32.mrb[0].mxu0
        %v3851 = vpop.f32.mrb[0].mxu0
        %3852 = vdwg.mxu0
        %3853 = vmatprep.subr.bf16.mxu0 0
        %3854 = vmatpush1.bf16.msra.mxu0 %v3748
        %3855 = vmatprep.subr.bf16.mxu0 0
        %3856 = vmatpush1.bf16.msra.mxu0 %v3751
        %3857 = vmatprep.subr.bf16.mxu0 0
        %3858 = vmatpush1.bf16.msra.mxu0 %v3754
        %3859 = vmatprep.subr.bf16.mxu0 0
        %3860 = vmatpush1.bf16.msra.mxu0 %v3757
        %3861 = vmatprep.subr.bf16.mxu0 0
        %3862 = vmatpush1.bf16.msra.mxu0 0
        %3863 = vmatprep.subr.bf16.mxu0 0
        %3864 = vmatpush1.bf16.msra.mxu0 0
        %3865 = vmatprep.subr.bf16.mxu0 0
        %3866 = vmatpush1.bf16.msra.mxu0 0
        %3867 = vmatprep.subr.bf16.mxu0 0
        %3868 = vmatpush1.bf16.msra.mxu0 0
        %3869 = vmatprep.subr.bf16.mxu0 0
        %3870 = vmatpush1.bf16.msra.mxu0 0
        %3871 = vmatprep.subr.bf16.mxu0 0
        %3872 = vmatpush1.bf16.msra.mxu0 0
        %3873 = vmatprep.subr.bf16.mxu0 0
        %3874 = vmatpush1.bf16.msra.mxu0 0
        %3875 = vmatprep.subr.bf16.mxu0 0
        %3876 = vmatpush1.bf16.msra.mxu0 0
        %3877 = vmatprep.subr.bf16.mxu0 0
        %3878 = vmatpush1.bf16.msra.mxu0 0
        %3879 = vmatprep.subr.bf16.mxu0 0
        %3880 = vmatpush1.bf16.msra.mxu0 0
        %3881 = vmatprep.subr.bf16.mxu0 0
        %3882 = vmatpush1.bf16.msra.mxu0 0
        %3883 = vmatprep.subr.bf16.mxu0 0
        %3884 = vmatpush1.bf16.msra.mxu0 0
        %3885 = vmatprep.mubr.bf16.mxu0 0
        %3886 = vmatmul.mubr.bf16.gmra.mrb[0].mxu0 %v3771
        %v3887 = vpop.f32.mrb[0].mxu0
        %v3888 = vadd.f32 0.0, %v3887
        %v3889 = vpop.f32.mrb[0].mxu0
        %v3890 = vpop.f32.mrb[0].mxu0
        %v3891 = vadd.f32 0.0, %v3890
        %v3892 = vpop.f32.mrb[0].mxu0
        %3893 = vmatprep.mubr.bf16.mxu0 0
        %3894 = vmatmul.mubr.bf16.gmra.mrb[0].mxu0 %v3774
        %v3895 = vpop.f32.mrb[0].mxu0
        %v3896 = vadd.f32 0.0, %v3895
        %v3897 = vpop.f32.mrb[0].mxu0
        %v3898 = vpop.f32.mrb[0].mxu0
        %v3899 = vadd.f32 0.0, %v3898
        %v3900 = vpop.f32.mrb[0].mxu0
        %3901 = vmatprep.mubr.bf16.mxu0 0
        %3902 = vmatmul.mubr.bf16.gmra.mrb[0].mxu0 %v3777
        %v3903 = vpop.f32.mrb[0].mxu0
        %v3904 = vadd.f32 0.0, %v3903
        %v3905 = vpop.f32.mrb[0].mxu0
        %v3906 = vpop.f32.mrb[0].mxu0
        %v3907 = vadd.f32 0.0, %v3906
        %v3908 = vpop.f32.mrb[0].mxu0
        %3909 = vmatprep.mubr.bf16.mxu0 0
        %3910 = vmatmul.mubr.bf16.gmra.mrb[0].mxu0 %v3780
        %v3911 = vpop.f32.mrb[0].mxu0
        %v3912 = vadd.f32 0.0, %v3911
        %v3913 = vpop.f32.mrb[0].mxu0
        %v3914 = vpop.f32.mrb[0].mxu0
        %v3915 = vpop.f32.mrb[0].mxu0
        %3916 = vdwg.mxu0
        %v3917 = vlaneseq
        %v3918 = vshrl.u32 %v3917, 7
        %v3919 = vsub.s32 0, %v3918
        %v3920 = vrot.slane %v3699, %v3919
        %v3921 = vadd.f32 %v3817, %v3920
        %v3922 = vadd.f32 %v3821, %v3920
        %v3923 = vadd.f32 %v3827, %v3920
        %v3924 = vadd.f32 %v3831, %v3920
        %v3925 = vadd.f32 %v3837, %v3920
        %v3926 = vadd.f32 %v3841, %v3920
        %v3927 = vadd.f32 %v3847, %v3920
        %v3928 = vlaneseq
        %v3929 = vshrl.u32 %v3928, 7
        %v3930 = vsub.s32 1, %v3929
        %v3931 = vrot.slane %v3699, %v3930
        %3933 = vrot.lane.b32.xlu0 %v3931, 64
        %v3934 = vpop.permute.xlu0 %3933
        %v3936 = vadd.f32 %v3817, %v3934
        %v3937 = vadd.f32 %v3821, %v3934
        %v3938 = vadd.f32 %v3827, %v3934
        %v3939 = vadd.f32 %v3831, %v3934
        %v3940 = vadd.f32 %v3837, %v3934
        %v3941 = vadd.f32 %v3841, %v3934
        %v3942 = vadd.f32 %v3847, %v3934
        %v3943 = vpack.c.bf16 %v3922, %v3921
        %v3944 = vpack.c.bf16 %v3924, %v3923
        %v3945 = vpack.c.bf16 %v3926, %v3925
        %v3946 = vpack.c.bf16 %v3927, %v3927
        %v3947 = vpack.c.bf16 %v3937, %v3936
        %v3948 = vpack.c.bf16 %v3939, %v3938
        %v3949 = vpack.c.bf16 %v3941, %v3940
        %v3950 = vpack.c.bf16 %v3942, %v3942
        %3955 = vrot.lane.b32.xlu0 %v3947, 64
        %v3956 = vpop.permute.xlu0 %3955
        %3957 = vrot.lane.b32.xlu0 %v3948, 64
        %v3958 = vpop.permute.xlu0 %3957
        %3959 = vrot.lane.b32.xlu0 %v3949, 64
        %v3960 = vpop.permute.xlu0 %3959
        %3961 = vrot.lane.b32.xlu0 %v3950, 64
        %v3962 = vpop.permute.xlu0 %3961
        %v3964 = vsel %vm1827, %v3943, 0
        %v3967 = vsel %vm1827, %v3944, 0
        %v3970 = vsel %vm1827, %v3945, 0
        %v3973 = vsel %vm1827, %v3946, 0
        %v3976 = vsel %vm1827, %v3956, 0
        %v3979 = vsel %vm1827, %v3958, 0
        %v3982 = vsel %vm1827, %v3960, 0
        %v3985 = vsel %vm1827, %v3962, 0
        %3987 = vmatprep.subr.bf16.mxu0 0
        %3988 = vmatpush1.bf16.xpose.msra.mxu0 %v3976
        %3989 = vmatprep.subr.bf16.mxu0 0
        %3990 = vmatpush1.bf16.xpose.msra.mxu0 %v3979
        %3991 = vmatprep.subr.bf16.mxu0 0
        %3992 = vmatpush1.bf16.xpose.msra.mxu0 %v3982
        %3993 = vmatprep.subr.bf16.mxu0 0
        %3994 = vmatpush1.bf16.xpose.msra.mxu0 %v3985
        %3995 = vmatprep.subr.bf16.mxu0 0
        %3996 = vmatpush1.bf16.xpose.msra.mxu0 0
        %3997 = vmatprep.subr.bf16.mxu0 0
        %3998 = vmatpush1.bf16.xpose.msra.mxu0 0
        %3999 = vmatprep.subr.bf16.mxu0 0
        %4000 = vmatpush1.bf16.xpose.msra.mxu0 0
        %4001 = vmatprep.subr.bf16.mxu0 0
        %4002 = vmatpush1.bf16.xpose.msra.mxu0 0
        %4003 = vmatprep.subr.bf16.mxu0 0
        %4004 = vmatpush1.bf16.xpose.msra.mxu0 0
        %4005 = vmatprep.subr.bf16.mxu0 0
        %4006 = vmatpush1.bf16.xpose.msra.mxu0 0
        %4007 = vmatprep.subr.bf16.mxu0 0
        %4008 = vmatpush1.bf16.xpose.msra.mxu0 0
        %4009 = vmatprep.subr.bf16.mxu0 0
        %4010 = vmatpush1.bf16.xpose.msra.mxu0 0
        %4011 = vmatprep.subr.bf16.mxu0 0
        %4012 = vmatpush1.bf16.xpose.msra.mxu0 0
        %4013 = vmatprep.subr.bf16.mxu0 0
        %4014 = vmatpush1.bf16.xpose.msra.mxu0 0
        %4015 = vmatprep.subr.bf16.mxu0 0
        %4016 = vmatpush1.bf16.xpose.msra.mxu0 0
        %4017 = vmatprep.subr.bf16.mxu0 0
        %4018 = vmatpush1.bf16.xpose.msra.mxu0 0
        %4019 = vmatprep.mubr.bf16.mxu0 0
        %4020 = vmatmul.mubr.bf16.gmra.mrb[0].mxu0 %v3964
        %v4021 = vpop.f32.mrb[0].mxu0
        %v4022 = vadd.f32 0.0, %v4021
        %v4023 = vpop.f32.mrb[0].mxu0
        %v4024 = vpop.f32.mrb[0].mxu0
        %v4025 = vadd.f32 0.0, %v4024
        %v4026 = vpop.f32.mrb[0].mxu0
        %4027 = vmatprep.mubr.bf16.mxu0 0
        %4028 = vmatmul.mubr.bf16.gmra.mrb[0].mxu0 %v3967
        %v4029 = vpop.f32.mrb[0].mxu0
        %v4030 = vadd.f32 0.0, %v4029
        %v4031 = vpop.f32.mrb[0].mxu0
        %v4032 = vpop.f32.mrb[0].mxu0
        %v4033 = vadd.f32 0.0, %v4032
        %v4034 = vpop.f32.mrb[0].mxu0
        %4035 = vmatprep.mubr.bf16.mxu0 0
        %4036 = vmatmul.mubr.bf16.gmra.mrb[0].mxu0 %v3970
        %v4037 = vpop.f32.mrb[0].mxu0
        %v4038 = vadd.f32 0.0, %v4037
        %v4039 = vpop.f32.mrb[0].mxu0
        %v4040 = vpop.f32.mrb[0].mxu0
        %v4041 = vadd.f32 0.0, %v4040
        %v4042 = vpop.f32.mrb[0].mxu0
        %4043 = vmatprep.mubr.bf16.mxu0 0
        %4044 = vmatmul.mubr.bf16.gmra.mrb[0].mxu0 %v3973
        %v4045 = vpop.f32.mrb[0].mxu0
        %v4046 = vadd.f32 0.0, %v4045
        %v4047 = vpop.f32.mrb[0].mxu0
        %v4048 = vpop.f32.mrb[0].mxu0
        %v4049 = vpop.f32.mrb[0].mxu0
        %4050 = vdwg.mxu0
        %v4051 = vmul.f32 %v4022, 0.25
        %v4052 = vmul.f32 %v4025, 0.25
        %v4053 = vmul.f32 %v4030, 0.25
        %v4054 = vmul.f32 %v4033, 0.25
        %v4055 = vmul.f32 %v4038, 0.25
        %v4056 = vmul.f32 %v4041, 0.25
        %v4057 = vmul.f32 %v4046, 0.25
        %v4058 = vsel %vm1923, %v4051, -inf
        %4059 = vmax.xlane.f32.xlu0 %v4058
        %v4060 = vpop.xlane.xlu0 %4059
        %v4061 = vsel %vm1923, %v4052, -inf
        %4062 = vmax.xlane.f32.xlu0 %v4061
        %v4063 = vpop.xlane.xlu0 %4062
        %v4064 = vsel %vm1923, %v4053, -inf
        %4065 = vmax.xlane.f32.xlu0 %v4064
        %v4066 = vpop.xlane.xlu0 %4065
        %v4067 = vsel %vm1923, %v4054, -inf
        %4068 = vmax.xlane.f32.xlu0 %v4067
        %v4069 = vpop.xlane.xlu0 %4068
        %v4070 = vsel %vm1923, %v4055, -inf
        %4071 = vmax.xlane.f32.xlu0 %v4070
        %v4072 = vpop.xlane.xlu0 %4071
        %v4073 = vsel %vm1923, %v4056, -inf
        %4074 = vmax.xlane.f32.xlu0 %v4073
        %v4075 = vpop.xlane.xlu0 %4074
        %v4076 = vsel %vm1942, %v4057, -inf
        %4077 = vmax.xlane.f32.xlu0 %v4076
        %v4078 = vpop.xlane.xlu0 %4077
        %v4079 = vsub.f32 %v4051, %v4060
        %v4080 = vsub.f32 %v4052, %v4063
        %v4081 = vsub.f32 %v4053, %v4066
        %v4082 = vsub.f32 %v4054, %v4069
        %v4083 = vsub.f32 %v4055, %v4072
        %v4084 = vsub.f32 %v4056, %v4075
        %v4085 = vsub.f32 %v4057, %v4078
        %v4086 = vmul.f32 %v4079, 1.442695
        %v4087 = vpow.pop %v4086
        %v4088 = vmul.f32 %v4080, 1.442695
        %v4089 = vpow.pop %v4088
        %v4090 = vmul.f32 %v4081, 1.442695
        %v4091 = vpow.pop %v4090
        %v4092 = vmul.f32 %v4082, 1.442695
        %v4093 = vpow.pop %v4092
        %v4094 = vmul.f32 %v4083, 1.442695
        %v4095 = vpow.pop %v4094
        %v4096 = vmul.f32 %v4084, 1.442695
        %v4097 = vpow.pop %v4096
        %v4098 = vmul.f32 %v4085, 1.442695
        %v4099 = vpow.pop %v4098
        %v4100 = vsel %vm1923, %v4087, 0.0
        %4101 = vadd.xlane.f32.xlu0 %v4100
        %v4102 = vpop.xlane.xlu0 %4101
        %v4103 = vsel %vm1923, %v4089, 0.0
        %4104 = vadd.xlane.f32.xlu0 %v4103
        %v4105 = vpop.xlane.xlu0 %4104
        %v4106 = vsel %vm1923, %v4091, 0.0
        %4107 = vadd.xlane.f32.xlu0 %v4106
        %v4108 = vpop.xlane.xlu0 %4107
        %v4109 = vsel %vm1923, %v4093, 0.0
        %4110 = vadd.xlane.f32.xlu0 %v4109
        %v4111 = vpop.xlane.xlu0 %4110
        %v4112 = vsel %vm1923, %v4095, 0.0
        %4113 = vadd.xlane.f32.xlu0 %v4112
        %v4114 = vpop.xlane.xlu0 %4113
        %v4115 = vsel %vm1923, %v4097, 0.0
        %4116 = vadd.xlane.f32.xlu0 %v4115
        %v4117 = vpop.xlane.xlu0 %4116
        %v4118 = vsel %vm1942, %v4099, 0.0
        %4119 = vadd.xlane.f32.xlu0 %v4118
        %v4120 = vpop.xlane.xlu0 %4119
        %v4121 = vrcp.pop %v4102
        %v4122 = vrcp.pop %v4105
        %v4123 = vrcp.pop %v4108
        %v4124 = vrcp.pop %v4111
        %v4125 = vrcp.pop %v4114
        %v4126 = vrcp.pop %v4117
        %v4127 = vrcp.pop %v4120
        %v4128 = vmul.f32 %v4087, %v4121
        %v4129 = vmul.f32 %v4089, %v4122
        %v4130 = vmul.f32 %v4091, %v4123
        %v4131 = vmul.f32 %v4093, %v4124
        %v4132 = vmul.f32 %v4095, %v4125
        %v4133 = vmul.f32 %v4097, %v4126
        %v4134 = vmul.f32 %v4099, %v4127
        %v4135 = vpack.c.bf16 %v4129, %v4128
        %v4136 = vpack.c.bf16 %v4131, %v4130
        %v4137 = vpack.c.bf16 %v4133, %v4132
        %v4138 = vpack.c.bf16 %v4134, %v4134
        %v4139 = vpack.c.bf16 %v3823, %v3819
        %v4140 = vpack.c.bf16 %v3833, %v3829
        %v4141 = vpack.c.bf16 %v3843, %v3839
        %v4142 = vpack.c.bf16 %v3849, %v3849
        %4147 = vrot.lane.b32.xlu0 %v3943, 112
        %v4148 = vpop.permute.xlu0 %4147
        %4149 = vrot.lane.b32.xlu0 %v3944, 112
        %v4150 = vpop.permute.xlu0 %4149
        %4151 = vrot.lane.b32.xlu0 %v3945, 112
        %v4152 = vpop.permute.xlu0 %4151
        %4153 = vrot.lane.b32.xlu0 %v3946, 112
        %v4154 = vpop.permute.xlu0 %4153
        %4155 = vrot.lane.b32.xlu0 %v3947, 48
        %v4156 = vpop.permute.xlu0 %4155
        %4157 = vrot.lane.b32.xlu0 %v3948, 48
        %v4158 = vpop.permute.xlu0 %4157
        %4159 = vrot.lane.b32.xlu0 %v3949, 48
        %v4160 = vpop.permute.xlu0 %4159
        %4161 = vrot.lane.b32.xlu0 %v3950, 48
        %v4162 = vpop.permute.xlu0 %4161
        %v4164 = vsel %vm1827, %v4148, 0
        %v4167 = vsel %vm1827, %v4150, 0
        %v4170 = vsel %vm1827, %v4152, 0
        %v4173 = vsel %vm1827, %v4154, 0
        %v4176 = vsel %vm1827, %v4156, 0
        %v4179 = vsel %vm1827, %v4158, 0
        %v4182 = vsel %vm1827, %v4160, 0
        %v4185 = vsel %vm1827, %v4162, 0
        %4187 = vmatprep.subr.bf16.mxu0 0
        %4188 = vmatpush1.bf16.xpose.msra.mxu0 %v4176
        %4189 = vmatprep.subr.bf16.mxu0 0
        %4190 = vmatpush1.bf16.xpose.msra.mxu0 %v4179
        %4191 = vmatprep.subr.bf16.mxu0 0
        %4192 = vmatpush1.bf16.xpose.msra.mxu0 %v4182
        %4193 = vmatprep.subr.bf16.mxu0 0
        %4194 = vmatpush1.bf16.xpose.msra.mxu0 %v4185
        %4195 = vmatprep.subr.bf16.mxu0 0
        %4196 = vmatpush1.bf16.xpose.msra.mxu0 0
        %4197 = vmatprep.subr.bf16.mxu0 0
        %4198 = vmatpush1.bf16.xpose.msra.mxu0 0
        %4199 = vmatprep.subr.bf16.mxu0 0
        %4200 = vmatpush1.bf16.xpose.msra.mxu0 0
        %4201 = vmatprep.subr.bf16.mxu0 0
        %4202 = vmatpush1.bf16.xpose.msra.mxu0 0
        %4203 = vmatprep.subr.bf16.mxu0 0
        %4204 = vmatpush1.bf16.xpose.msra.mxu0 0
        %4205 = vmatprep.subr.bf16.mxu0 0
        %4206 = vmatpush1.bf16.xpose.msra.mxu0 0
        %4207 = vmatprep.subr.bf16.mxu0 0
        %4208 = vmatpush1.bf16.xpose.msra.mxu0 0
        %4209 = vmatprep.subr.bf16.mxu0 0
        %4210 = vmatpush1.bf16.xpose.msra.mxu0 0
        %4211 = vmatprep.subr.bf16.mxu0 0
        %4212 = vmatpush1.bf16.xpose.msra.mxu0 0
        %4213 = vmatprep.subr.bf16.mxu0 0
        %4214 = vmatpush1.bf16.xpose.msra.mxu0 0
        %4215 = vmatprep.subr.bf16.mxu0 0
        %4216 = vmatpush1.bf16.xpose.msra.mxu0 0
        %4217 = vmatprep.subr.bf16.mxu0 0
        %4218 = vmatpush1.bf16.xpose.msra.mxu0 0
        %4219 = vmatprep.mubr.bf16.mxu0 0
        %4220 = vmatmul.mubr.bf16.gmra.mrb[0].mxu0 %v4164
        %v4221 = vpop.f32.mrb[0].mxu0
        %v4222 = vadd.f32 0.0, %v4221
        %v4223 = vpop.f32.mrb[0].mxu0
        %v4224 = vpop.f32.mrb[0].mxu0
        %v4225 = vadd.f32 0.0, %v4224
        %v4226 = vpop.f32.mrb[0].mxu0
        %4227 = vmatprep.mubr.bf16.mxu0 0
        %4228 = vmatmul.mubr.bf16.gmra.mrb[0].mxu0 %v4167
        %v4229 = vpop.f32.mrb[0].mxu0
        %v4230 = vadd.f32 0.0, %v4229
        %v4231 = vpop.f32.mrb[0].mxu0
        %v4232 = vpop.f32.mrb[0].mxu0
        %v4233 = vadd.f32 0.0, %v4232
        %v4234 = vpop.f32.mrb[0].mxu0
        %4235 = vmatprep.mubr.bf16.mxu0 0
        %4236 = vmatmul.mubr.bf16.gmra.mrb[0].mxu0 %v4170
        %v4237 = vpop.f32.mrb[0].mxu0
        %v4238 = vadd.f32 0.0, %v4237
        %v4239 = vpop.f32.mrb[0].mxu0
        %v4240 = vpop.f32.mrb[0].mxu0
        %v4241 = vadd.f32 0.0, %v4240
        %v4242 = vpop.f32.mrb[0].mxu0
        %4243 = vmatprep.mubr.bf16.mxu0 0
        %4244 = vmatmul.mubr.bf16.gmra.mrb[0].mxu0 %v4173
        %v4245 = vpop.f32.mrb[0].mxu0
        %v4246 = vadd.f32 0.0, %v4245
        %v4247 = vpop.f32.mrb[0].mxu0
        %v4248 = vpop.f32.mrb[0].mxu0
        %v4249 = vpop.f32.mrb[0].mxu0
        %4250 = vdwg.mxu0
        %v4251 = vmul.f32 %v4222, 0.25
        %v4252 = vmul.f32 %v4225, 0.25
        %v4253 = vmul.f32 %v4230, 0.25
        %v4254 = vmul.f32 %v4233, 0.25
        %v4255 = vmul.f32 %v4238, 0.25
        %v4256 = vmul.f32 %v4241, 0.25
        %v4257 = vmul.f32 %v4246, 0.25
        %v4258 = vsel %vm1923, %v4251, -inf
        %4259 = vmax.xlane.f32.xlu0 %v4258
        %v4260 = vpop.xlane.xlu0 %4259
        %v4261 = vsel %vm1923, %v4252, -inf
        %4262 = vmax.xlane.f32.xlu0 %v4261
        %v4263 = vpop.xlane.xlu0 %4262
        %v4264 = vsel %vm1923, %v4253, -inf
        %4265 = vmax.xlane.f32.xlu0 %v4264
        %v4266 = vpop.xlane.xlu0 %4265
        %v4267 = vsel %vm1923, %v4254, -inf
        %4268 = vmax.xlane.f32.xlu0 %v4267
        %v4269 = vpop.xlane.xlu0 %4268
        %v4270 = vsel %vm1923, %v4255, -inf
        %4271 = vmax.xlane.f32.xlu0 %v4270
        %v4272 = vpop.xlane.xlu0 %4271
        %v4273 = vsel %vm1923, %v4256, -inf
        %4274 = vmax.xlane.f32.xlu0 %v4273
        %v4275 = vpop.xlane.xlu0 %4274
        %v4276 = vsel %vm1942, %v4257, -inf
        %4277 = vmax.xlane.f32.xlu0 %v4276
        %v4278 = vpop.xlane.xlu0 %4277
        %v4279 = vsub.f32 %v4251, %v4260
        %v4280 = vsub.f32 %v4252, %v4263
        %v4281 = vsub.f32 %v4253, %v4266
        %v4282 = vsub.f32 %v4254, %v4269
        %v4283 = vsub.f32 %v4255, %v4272
        %v4284 = vsub.f32 %v4256, %v4275
        %v4285 = vsub.f32 %v4257, %v4278
        %v4286 = vmul.f32 %v4279, 1.442695
        %v4287 = vpow.pop %v4286
        %v4288 = vmul.f32 %v4280, 1.442695
        %v4289 = vpow.pop %v4288
        %v4290 = vmul.f32 %v4281, 1.442695
        %v4291 = vpow.pop %v4290
        %v4292 = vmul.f32 %v4282, 1.442695
        %v4293 = vpow.pop %v4292
        %v4294 = vmul.f32 %v4283, 1.442695
        %v4295 = vpow.pop %v4294
        %v4296 = vmul.f32 %v4284, 1.442695
        %v4297 = vpow.pop %v4296
        %v4298 = vmul.f32 %v4285, 1.442695
        %v4299 = vpow.pop %v4298
        %v4300 = vsel %vm1923, %v4287, 0.0
        %4301 = vadd.xlane.f32.xlu0 %v4300
        %v4302 = vpop.xlane.xlu0 %4301
        %v4303 = vsel %vm1923, %v4289, 0.0
        %4304 = vadd.xlane.f32.xlu0 %v4303
        %v4305 = vpop.xlane.xlu0 %4304
        %v4306 = vsel %vm1923, %v4291, 0.0
        %4307 = vadd.xlane.f32.xlu0 %v4306
        %v4308 = vpop.xlane.xlu0 %4307
        %v4309 = vsel %vm1923, %v4293, 0.0
        %4310 = vadd.xlane.f32.xlu0 %v4309
        %v4311 = vpop.xlane.xlu0 %4310
        %v4312 = vsel %vm1923, %v4295, 0.0
        %4313 = vadd.xlane.f32.xlu0 %v4312
        %v4314 = vpop.xlane.xlu0 %4313
        %v4315 = vsel %vm1923, %v4297, 0.0
        %4316 = vadd.xlane.f32.xlu0 %v4315
        %v4317 = vpop.xlane.xlu0 %4316
        %v4318 = vsel %vm1942, %v4299, 0.0
        %4319 = vadd.xlane.f32.xlu0 %v4318
        %v4320 = vpop.xlane.xlu0 %4319
        %v4321 = vrcp.pop %v4302
        %v4322 = vrcp.pop %v4305
        %v4323 = vrcp.pop %v4308
        %v4324 = vrcp.pop %v4311
        %v4325 = vrcp.pop %v4314
        %v4326 = vrcp.pop %v4317
        %v4327 = vrcp.pop %v4320
        %v4328 = vmul.f32 %v4287, %v4321
        %v4329 = vmul.f32 %v4289, %v4322
        %v4330 = vmul.f32 %v4291, %v4323
        %v4331 = vmul.f32 %v4293, %v4324
        %v4332 = vmul.f32 %v4295, %v4325
        %v4333 = vmul.f32 %v4297, %v4326
        %v4334 = vmul.f32 %v4299, %v4327
        %v4335 = vpack.c.bf16 %v4329, %v4328
        %v4336 = vpack.c.bf16 %v4331, %v4330
        %v4337 = vpack.c.bf16 %v4333, %v4332
        %v4338 = vpack.c.bf16 %v4334, %v4334
        %4343 = vrot.lane.b32.xlu0 %v4139, 64
        %v4344 = vpop.permute.xlu0 %4343
        %4345 = vrot.lane.b32.xlu0 %v4140, 64
        %v4346 = vpop.permute.xlu0 %4345
        %4347 = vrot.lane.b32.xlu0 %v4141, 64
        %v4348 = vpop.permute.xlu0 %4347
        %4349 = vrot.lane.b32.xlu0 %v4142, 64
        %v4350 = vpop.permute.xlu0 %4349
        %v4355 = vsel %vm1923, %v4335, 0
        %v4358 = vsel %vm1923, %v4336, 0
        %v4361 = vsel %vm1923, %v4337, 0
        %v4364 = vsel %vm1923, %v4338, 0
        %v4367 = vsel %vm2233, %v4350, 0
        %4369 = vmatprep.subr.bf16.mxu0 0
        %4370 = vmatpush1.bf16.msra.mxu0 %v4344
        %4371 = vmatprep.subr.bf16.mxu0 0
        %4372 = vmatpush1.bf16.msra.mxu0 %v4346
        %4373 = vmatprep.subr.bf16.mxu0 0
        %4374 = vmatpush1.bf16.msra.mxu0 %v4348
        %4375 = vmatprep.subr.bf16.mxu0 0
        %4376 = vmatpush1.bf16.msra.mxu0 %v4367
        %4377 = vmatprep.subr.bf16.mxu0 0
        %4378 = vmatpush1.bf16.msra.mxu0 0
        %4379 = vmatprep.subr.bf16.mxu0 0
        %4380 = vmatpush1.bf16.msra.mxu0 0
        %4381 = vmatprep.subr.bf16.mxu0 0
        %4382 = vmatpush1.bf16.msra.mxu0 0
        %4383 = vmatprep.subr.bf16.mxu0 0
        %4384 = vmatpush1.bf16.msra.mxu0 0
        %4385 = vmatprep.subr.bf16.mxu0 0
        %4386 = vmatpush1.bf16.msra.mxu0 0
        %4387 = vmatprep.subr.bf16.mxu0 0
        %4388 = vmatpush1.bf16.msra.mxu0 0
        %4389 = vmatprep.subr.bf16.mxu0 0
        %4390 = vmatpush1.bf16.msra.mxu0 0
        %4391 = vmatprep.subr.bf16.mxu0 0
        %4392 = vmatpush1.bf16.msra.mxu0 0
        %4393 = vmatprep.subr.bf16.mxu0 0
        %4394 = vmatpush1.bf16.msra.mxu0 0
        %4395 = vmatprep.subr.bf16.mxu0 0
        %4396 = vmatpush1.bf16.msra.mxu0 0
        %4397 = vmatprep.subr.bf16.mxu0 0
        %4398 = vmatpush1.bf16.msra.mxu0 0
        %4399 = vmatprep.subr.bf16.mxu0 0
        %4400 = vmatpush1.bf16.msra.mxu0 0
        %4401 = vmatprep.mubr.bf16.mxu0 0
        %4402 = vmatmul.mubr.bf16.gmra.mrb[0].mxu0 %v4355
        %v4403 = vpop.f32.mrb[0].mxu0
        %v4404 = vadd.f32 0.0, %v4403
        %v4405 = vpop.f32.mrb[0].mxu0
        %v4406 = vpop.f32.mrb[0].mxu0
        %v4407 = vadd.f32 0.0, %v4406
        %v4408 = vpop.f32.mrb[0].mxu0
        %4409 = vmatprep.mubr.bf16.mxu0 0
        %4410 = vmatmul.mubr.bf16.gmra.mrb[0].mxu0 %v4358
        %v4411 = vpop.f32.mrb[0].mxu0
        %v4412 = vadd.f32 0.0, %v4411
        %v4413 = vpop.f32.mrb[0].mxu0
        %v4414 = vpop.f32.mrb[0].mxu0
        %v4415 = vadd.f32 0.0, %v4414
        %v4416 = vpop.f32.mrb[0].mxu0
        %4417 = vmatprep.mubr.bf16.mxu0 0
        %4418 = vmatmul.mubr.bf16.gmra.mrb[0].mxu0 %v4361
        %v4419 = vpop.f32.mrb[0].mxu0
        %v4420 = vadd.f32 0.0, %v4419
        %v4421 = vpop.f32.mrb[0].mxu0
        %v4422 = vpop.f32.mrb[0].mxu0
        %v4423 = vadd.f32 0.0, %v4422
        %v4424 = vpop.f32.mrb[0].mxu0
        %4425 = vmatprep.mubr.bf16.mxu0 0
        %4426 = vmatmul.mubr.bf16.gmra.mrb[0].mxu0 %v4364
        %v4427 = vpop.f32.mrb[0].mxu0
        %v4428 = vadd.f32 0.0, %v4427
        %v4429 = vpop.f32.mrb[0].mxu0
        %v4430 = vpop.f32.mrb[0].mxu0
        %v4431 = vpop.f32.mrb[0].mxu0
        %4432 = vdwg.mxu0
        %v4434 = vsel %vm1923, %v4135, 0
        %v4437 = vsel %vm1923, %v4136, 0
        %v4440 = vsel %vm1923, %v4137, 0
        %v4443 = vsel %vm1923, %v4138, 0
        %v4446 = vsel %vm2233, %v4142, 0
        %4448 = vmatprep.subr.bf16.mxu0 0
        %4449 = vmatpush1.bf16.msra.mxu0 %v4139
        %4450 = vmatprep.subr.bf16.mxu0 0
        %4451 = vmatpush1.bf16.msra.mxu0 %v4140
        %4452 = vmatprep.subr.bf16.mxu0 0
        %4453 = vmatpush1.bf16.msra.mxu0 %v4141
        %4454 = vmatprep.subr.bf16.mxu0 0
        %4455 = vmatpush1.bf16.msra.mxu0 %v4446
        %4456 = vmatprep.subr.bf16.mxu0 0
        %4457 = vmatpush1.bf16.msra.mxu0 0
        %4458 = vmatprep.subr.bf16.mxu0 0
        %4459 = vmatpush1.bf16.msra.mxu0 0
        %4460 = vmatprep.subr.bf16.mxu0 0
        %4461 = vmatpush1.bf16.msra.mxu0 0
        %4462 = vmatprep.subr.bf16.mxu0 0
        %4463 = vmatpush1.bf16.msra.mxu0 0
        %4464 = vmatprep.subr.bf16.mxu0 0
        %4465 = vmatpush1.bf16.msra.mxu0 0
        %4466 = vmatprep.subr.bf16.mxu0 0
        %4467 = vmatpush1.bf16.msra.mxu0 0
        %4468 = vmatprep.subr.bf16.mxu0 0
        %4469 = vmatpush1.bf16.msra.mxu0 0
        %4470 = vmatprep.subr.bf16.mxu0 0
        %4471 = vmatpush1.bf16.msra.mxu0 0
        %4472 = vmatprep.subr.bf16.mxu0 0
        %4473 = vmatpush1.bf16.msra.mxu0 0
        %4474 = vmatprep.subr.bf16.mxu0 0
        %4475 = vmatpush1.bf16.msra.mxu0 0
        %4476 = vmatprep.subr.bf16.mxu0 0
        %4477 = vmatpush1.bf16.msra.mxu0 0
        %4478 = vmatprep.subr.bf16.mxu0 0
        %4479 = vmatpush1.bf16.msra.mxu0 0
        %4480 = vmatprep.mubr.bf16.mxu0 0
        %4481 = vmatmul.mubr.bf16.gmra.mrb[0].mxu0 %v4434
        %v4482 = vpop.f32.mrb[0].mxu0
        %v4483 = vadd.f32 %v4404, %v4482
        %v4484 = vpop.f32.mrb[0].mxu0
        %v4485 = vpop.f32.mrb[0].mxu0
        %v4486 = vadd.f32 %v4407, %v4485
        %v4487 = vpop.f32.mrb[0].mxu0
        %4488 = vmatprep.mubr.bf16.mxu0 0
        %4489 = vmatmul.mubr.bf16.gmra.mrb[0].mxu0 %v4437
        %v4490 = vpop.f32.mrb[0].mxu0
        %v4491 = vadd.f32 %v4412, %v4490
        %v4492 = vpop.f32.mrb[0].mxu0
        %v4493 = vpop.f32.mrb[0].mxu0
        %v4494 = vadd.f32 %v4415, %v4493
        %v4495 = vpop.f32.mrb[0].mxu0
        %4496 = vmatprep.mubr.bf16.mxu0 0
        %4497 = vmatmul.mubr.bf16.gmra.mrb[0].mxu0 %v4440
        %v4498 = vpop.f32.mrb[0].mxu0
        %v4499 = vadd.f32 %v4420, %v4498
        %v4500 = vpop.f32.mrb[0].mxu0
        %v4501 = vpop.f32.mrb[0].mxu0
        %v4502 = vadd.f32 %v4423, %v4501
        %v4503 = vpop.f32.mrb[0].mxu0
        %4504 = vmatprep.mubr.bf16.mxu0 0
        %4505 = vmatmul.mubr.bf16.gmra.mrb[0].mxu0 %v4443
        %v4506 = vpop.f32.mrb[0].mxu0
        %v4507 = vadd.f32 %v4428, %v4506
        %v4508 = vpop.f32.mrb[0].mxu0
        %v4509 = vpop.f32.mrb[0].mxu0
        %v4510 = vpop.f32.mrb[0].mxu0
        %4511 = vdwg.mxu0
        %4512 = vrot.lane.b32.xlu0 %v3943, 96
        %v4513 = vpop.permute.xlu0 %4512
        %4514 = vrot.lane.b32.xlu0 %v3944, 96
        %v4515 = vpop.permute.xlu0 %4514
        %4516 = vrot.lane.b32.xlu0 %v3945, 96
        %v4517 = vpop.permute.xlu0 %4516
        %4518 = vrot.lane.b32.xlu0 %v3946, 96
        %v4519 = vpop.permute.xlu0 %4518
        %4520 = vrot.lane.b32.xlu0 %v3947, 32
        %v4521 = vpop.permute.xlu0 %4520
        %4522 = vrot.lane.b32.xlu0 %v3948, 32
        %v4523 = vpop.permute.xlu0 %4522
        %4524 = vrot.lane.b32.xlu0 %v3949, 32
        %v4525 = vpop.permute.xlu0 %4524
        %4526 = vrot.lane.b32.xlu0 %v3950, 32
        %v4527 = vpop.permute.xlu0 %4526
        %v4529 = vsel %vm1827, %v4513, 0
        %v4532 = vsel %vm1827, %v4515, 0
        %v4535 = vsel %vm1827, %v4517, 0
        %v4538 = vsel %vm1827, %v4519, 0
        %v4541 = vsel %vm1827, %v4521, 0
        %v4544 = vsel %vm1827, %v4523, 0
        %v4547 = vsel %vm1827, %v4525, 0
        %v4550 = vsel %vm1827, %v4527, 0
        %4552 = vmatprep.subr.bf16.mxu0 0
        %4553 = vmatpush1.bf16.xpose.msra.mxu0 %v4541
        %4554 = vmatprep.subr.bf16.mxu0 0
        %4555 = vmatpush1.bf16.xpose.msra.mxu0 %v4544
        %4556 = vmatprep.subr.bf16.mxu0 0
        %4557 = vmatpush1.bf16.xpose.msra.mxu0 %v4547
        %4558 = vmatprep.subr.bf16.mxu0 0
        %4559 = vmatpush1.bf16.xpose.msra.mxu0 %v4550
        %4560 = vmatprep.subr.bf16.mxu0 0
        %4561 = vmatpush1.bf16.xpose.msra.mxu0 0
        %4562 = vmatprep.subr.bf16.mxu0 0
        %4563 = vmatpush1.bf16.xpose.msra.mxu0 0
        %4564 = vmatprep.subr.bf16.mxu0 0
        %4565 = vmatpush1.bf16.xpose.msra.mxu0 0
        %4566 = vmatprep.subr.bf16.mxu0 0
        %4567 = vmatpush1.bf16.xpose.msra.mxu0 0
        %4568 = vmatprep.subr.bf16.mxu0 0
        %4569 = vmatpush1.bf16.xpose.msra.mxu0 0
        %4570 = vmatprep.subr.bf16.mxu0 0
        %4571 = vmatpush1.bf16.xpose.msra.mxu0 0
        %4572 = vmatprep.subr.bf16.mxu0 0
        %4573 = vmatpush1.bf16.xpose.msra.mxu0 0
        %4574 = vmatprep.subr.bf16.mxu0 0
        %4575 = vmatpush1.bf16.xpose.msra.mxu0 0
        %4576 = vmatprep.subr.bf16.mxu0 0
        %4577 = vmatpush1.bf16.xpose.msra.mxu0 0
        %4578 = vmatprep.subr.bf16.mxu0 0
        %4579 = vmatpush1.bf16.xpose.msra.mxu0 0
        %4580 = vmatprep.subr.bf16.mxu0 0
        %4581 = vmatpush1.bf16.xpose.msra.mxu0 0
        %4582 = vmatprep.subr.bf16.mxu0 0
        %4583 = vmatpush1.bf16.xpose.msra.mxu0 0
        %4584 = vmatprep.mubr.bf16.mxu0 0
        %4585 = vmatmul.mubr.bf16.gmra.mrb[0].mxu0 %v4529
        %v4586 = vpop.f32.mrb[0].mxu0
        %v4587 = vadd.f32 0.0, %v4586
        %v4588 = vpop.f32.mrb[0].mxu0
        %v4589 = vpop.f32.mrb[0].mxu0
        %v4590 = vadd.f32 0.0, %v4589
        %v4591 = vpop.f32.mrb[0].mxu0
        %4592 = vmatprep.mubr.bf16.mxu0 0
        %4593 = vmatmul.mubr.bf16.gmra.mrb[0].mxu0 %v4532
        %v4594 = vpop.f32.mrb[0].mxu0
        %v4595 = vadd.f32 0.0, %v4594
        %v4596 = vpop.f32.mrb[0].mxu0
        %v4597 = vpop.f32.mrb[0].mxu0
        %v4598 = vadd.f32 0.0, %v4597
        %v4599 = vpop.f32.mrb[0].mxu0
        %4600 = vmatprep.mubr.bf16.mxu0 0
        %4601 = vmatmul.mubr.bf16.gmra.mrb[0].mxu0 %v4535
        %v4602 = vpop.f32.mrb[0].mxu0
        %v4603 = vadd.f32 0.0, %v4602
        %v4604 = vpop.f32.mrb[0].mxu0
        %v4605 = vpop.f32.mrb[0].mxu0
        %v4606 = vadd.f32 0.0, %v4605
        %v4607 = vpop.f32.mrb[0].mxu0
        %4608 = vmatprep.mubr.bf16.mxu0 0
        %4609 = vmatmul.mubr.bf16.gmra.mrb[0].mxu0 %v4538
        %v4610 = vpop.f32.mrb[0].mxu0
        %v4611 = vadd.f32 0.0, %v4610
        %v4612 = vpop.f32.mrb[0].mxu0
        %v4613 = vpop.f32.mrb[0].mxu0
        %v4614 = vpop.f32.mrb[0].mxu0
        %4615 = vdwg.mxu0
        %v4616 = vmul.f32 %v4587, 0.25
        %v4617 = vmul.f32 %v4590, 0.25
        %v4618 = vmul.f32 %v4595, 0.25
        %v4619 = vmul.f32 %v4598, 0.25
        %v4620 = vmul.f32 %v4603, 0.25
        %v4621 = vmul.f32 %v4606, 0.25
        %v4622 = vmul.f32 %v4611, 0.25
        %v4623 = vsel %vm1923, %v4616, -inf
        %4624 = vmax.xlane.f32.xlu0 %v4623
        %v4625 = vpop.xlane.xlu0 %4624
        %v4626 = vsel %vm1923, %v4617, -inf
        %4627 = vmax.xlane.f32.xlu0 %v4626
        %v4628 = vpop.xlane.xlu0 %4627
        %v4629 = vsel %vm1923, %v4618, -inf
        %4630 = vmax.xlane.f32.xlu0 %v4629
        %v4631 = vpop.xlane.xlu0 %4630
        %v4632 = vsel %vm1923, %v4619, -inf
        %4633 = vmax.xlane.f32.xlu0 %v4632
        %v4634 = vpop.xlane.xlu0 %4633
        %v4635 = vsel %vm1923, %v4620, -inf
        %4636 = vmax.xlane.f32.xlu0 %v4635
        %v4637 = vpop.xlane.xlu0 %4636
        %v4638 = vsel %vm1923, %v4621, -inf
        %4639 = vmax.xlane.f32.xlu0 %v4638
        %v4640 = vpop.xlane.xlu0 %4639
        %v4641 = vsel %vm1942, %v4622, -inf
        %4642 = vmax.xlane.f32.xlu0 %v4641
        %v4643 = vpop.xlane.xlu0 %4642
        %v4644 = vsub.f32 %v4616, %v4625
        %v4645 = vsub.f32 %v4617, %v4628
        %v4646 = vsub.f32 %v4618, %v4631
        %v4647 = vsub.f32 %v4619, %v4634
        %v4648 = vsub.f32 %v4620, %v4637
        %v4649 = vsub.f32 %v4621, %v4640
        %v4650 = vsub.f32 %v4622, %v4643
        %v4651 = vmul.f32 %v4644, 1.442695
        %v4652 = vpow.pop %v4651
        %v4653 = vmul.f32 %v4645, 1.442695
        %v4654 = vpow.pop %v4653
        %v4655 = vmul.f32 %v4646, 1.442695
        %v4656 = vpow.pop %v4655
        %v4657 = vmul.f32 %v4647, 1.442695
        %v4658 = vpow.pop %v4657
        %v4659 = vmul.f32 %v4648, 1.442695
        %v4660 = vpow.pop %v4659
        %v4661 = vmul.f32 %v4649, 1.442695
        %v4662 = vpow.pop %v4661
        %v4663 = vmul.f32 %v4650, 1.442695
        %v4664 = vpow.pop %v4663
        %v4665 = vsel %vm1923, %v4652, 0.0
        %4666 = vadd.xlane.f32.xlu0 %v4665
        %v4667 = vpop.xlane.xlu0 %4666
        %v4668 = vsel %vm1923, %v4654, 0.0
        %4669 = vadd.xlane.f32.xlu0 %v4668
        %v4670 = vpop.xlane.xlu0 %4669
        %v4671 = vsel %vm1923, %v4656, 0.0
        %4672 = vadd.xlane.f32.xlu0 %v4671
        %v4673 = vpop.xlane.xlu0 %4672
        %v4674 = vsel %vm1923, %v4658, 0.0
        %4675 = vadd.xlane.f32.xlu0 %v4674
        %v4676 = vpop.xlane.xlu0 %4675
        %v4677 = vsel %vm1923, %v4660, 0.0
        %4678 = vadd.xlane.f32.xlu0 %v4677
        %v4679 = vpop.xlane.xlu0 %4678
        %v4680 = vsel %vm1923, %v4662, 0.0
        %4681 = vadd.xlane.f32.xlu0 %v4680
        %v4682 = vpop.xlane.xlu0 %4681
        %v4683 = vsel %vm1942, %v4664, 0.0
        %4684 = vadd.xlane.f32.xlu0 %v4683
        %v4685 = vpop.xlane.xlu0 %4684
        %v4686 = vrcp.pop %v4667
        %v4687 = vrcp.pop %v4670
        %v4688 = vrcp.pop %v4673
        %v4689 = vrcp.pop %v4676
        %v4690 = vrcp.pop %v4679
        %v4691 = vrcp.pop %v4682
        %v4692 = vrcp.pop %v4685
        %v4693 = vmul.f32 %v4652, %v4686
        %v4694 = vmul.f32 %v4654, %v4687
        %v4695 = vmul.f32 %v4656, %v4688
        %v4696 = vmul.f32 %v4658, %v4689
        %v4697 = vmul.f32 %v4660, %v4690
        %v4698 = vmul.f32 %v4662, %v4691
        %v4699 = vmul.f32 %v4664, %v4692
        %v4700 = vpack.c.bf16 %v4694, %v4693
        %v4701 = vpack.c.bf16 %v4696, %v4695
        %v4702 = vpack.c.bf16 %v4698, %v4697
        %v4703 = vpack.c.bf16 %v4699, %v4699
        %v4704 = vpack.c.bf16 %v3891, %v3888
        %v4705 = vpack.c.bf16 %v3899, %v3896
        %v4706 = vpack.c.bf16 %v3907, %v3904
        %v4707 = vpack.c.bf16 %v3912, %v3912
        %v4709 = vsel %vm1923, %v4700, 0
        %v4712 = vsel %vm1923, %v4701, 0
        %v4715 = vsel %vm1923, %v4702, 0
        %v4718 = vsel %vm1923, %v4703, 0
        %v4721 = vsel %vm2233, %v4707, 0
        %4723 = vmatprep.subr.bf16.mxu0 0
        %4724 = vmatpush1.bf16.msra.mxu0 %v4704
        %4725 = vmatprep.subr.bf16.mxu0 0
        %4726 = vmatpush1.bf16.msra.mxu0 %v4705
        %4727 = vmatprep.subr.bf16.mxu0 0
        %4728 = vmatpush1.bf16.msra.mxu0 %v4706
        %4729 = vmatprep.subr.bf16.mxu0 0
        %4730 = vmatpush1.bf16.msra.mxu0 %v4721
        %4731 = vmatprep.subr.bf16.mxu0 0
        %4732 = vmatpush1.bf16.msra.mxu0 0
        %4733 = vmatprep.subr.bf16.mxu0 0
        %4734 = vmatpush1.bf16.msra.mxu0 0
        %4735 = vmatprep.subr.bf16.mxu0 0
        %4736 = vmatpush1.bf16.msra.mxu0 0
        %4737 = vmatprep.subr.bf16.mxu0 0
        %4738 = vmatpush1.bf16.msra.mxu0 0
        %4739 = vmatprep.subr.bf16.mxu0 0
        %4740 = vmatpush1.bf16.msra.mxu0 0
        %4741 = vmatprep.subr.bf16.mxu0 0
        %4742 = vmatpush1.bf16.msra.mxu0 0
        %4743 = vmatprep.subr.bf16.mxu0 0
        %4744 = vmatpush1.bf16.msra.mxu0 0
        %4745 = vmatprep.subr.bf16.mxu0 0
        %4746 = vmatpush1.bf16.msra.mxu0 0
        %4747 = vmatprep.subr.bf16.mxu0 0
        %4748 = vmatpush1.bf16.msra.mxu0 0
        %4749 = vmatprep.subr.bf16.mxu0 0
        %4750 = vmatpush1.bf16.msra.mxu0 0
        %4751 = vmatprep.subr.bf16.mxu0 0
        %4752 = vmatpush1.bf16.msra.mxu0 0
        %4753 = vmatprep.subr.bf16.mxu0 0
        %4754 = vmatpush1.bf16.msra.mxu0 0
        %4755 = vmatprep.mubr.bf16.mxu0 0
        %4756 = vmatmul.mubr.bf16.gmra.mrb[0].mxu0 %v4709
        %v4757 = vpop.f32.mrb[0].mxu0
        %v4758 = vadd.f32 0.0, %v4757
        %v4759 = vpop.f32.mrb[0].mxu0
        %v4760 = vpop.f32.mrb[0].mxu0
        %v4761 = vadd.f32 0.0, %v4760
        %v4762 = vpop.f32.mrb[0].mxu0
        %4763 = vmatprep.mubr.bf16.mxu0 0
        %4764 = vmatmul.mubr.bf16.gmra.mrb[0].mxu0 %v4712
        %v4765 = vpop.f32.mrb[0].mxu0
        %v4766 = vadd.f32 0.0, %v4765
        %v4767 = vpop.f32.mrb[0].mxu0
        %v4768 = vpop.f32.mrb[0].mxu0
        %v4769 = vadd.f32 0.0, %v4768
        %v4770 = vpop.f32.mrb[0].mxu0
        %4771 = vmatprep.mubr.bf16.mxu0 0
        %4772 = vmatmul.mubr.bf16.gmra.mrb[0].mxu0 %v4715
        %v4773 = vpop.f32.mrb[0].mxu0
        %v4774 = vadd.f32 0.0, %v4773
        %v4775 = vpop.f32.mrb[0].mxu0
        %v4776 = vpop.f32.mrb[0].mxu0
        %v4777 = vadd.f32 0.0, %v4776
        %v4778 = vpop.f32.mrb[0].mxu0
        %4779 = vmatprep.mubr.bf16.mxu0 0
        %4780 = vmatmul.mubr.bf16.gmra.mrb[0].mxu0 %v4718
        %v4781 = vpop.f32.mrb[0].mxu0
        %v4782 = vadd.f32 0.0, %v4781
        %v4783 = vpop.f32.mrb[0].mxu0
        %v4784 = vpop.f32.mrb[0].mxu0
        %v4785 = vpop.f32.mrb[0].mxu0
        %4786 = vdwg.mxu0
        %v4787 = vadd.f32 %v4483, %v4758
        %v4788 = vadd.f32 %v4486, %v4761
        %v4789 = vadd.f32 %v4491, %v4766
        %v4790 = vadd.f32 %v4494, %v4769
        %v4791 = vadd.f32 %v4499, %v4774
        %v4792 = vadd.f32 %v4502, %v4777
        %v4793 = vadd.f32 %v4507, %v4782
        %4794 = vrot.lane.b32.xlu0 %v3943, 80
        %v4795 = vpop.permute.xlu0 %4794
        %4796 = vrot.lane.b32.xlu0 %v3944, 80
        %v4797 = vpop.permute.xlu0 %4796
        %4798 = vrot.lane.b32.xlu0 %v3945, 80
        %v4799 = vpop.permute.xlu0 %4798
        %4800 = vrot.lane.b32.xlu0 %v3946, 80
        %v4801 = vpop.permute.xlu0 %4800
        %4802 = vrot.lane.b32.xlu0 %v3947, 16
        %v4803 = vpop.permute.xlu0 %4802
        %4804 = vrot.lane.b32.xlu0 %v3948, 16
        %v4805 = vpop.permute.xlu0 %4804
        %4806 = vrot.lane.b32.xlu0 %v3949, 16
        %v4807 = vpop.permute.xlu0 %4806
        %4808 = vrot.lane.b32.xlu0 %v3950, 16
        %v4809 = vpop.permute.xlu0 %4808
        %v4811 = vsel %vm1827, %v4795, 0
        %v4814 = vsel %vm1827, %v4797, 0
        %v4817 = vsel %vm1827, %v4799, 0
        %v4820 = vsel %vm1827, %v4801, 0
        %v4823 = vsel %vm1827, %v4803, 0
        %v4826 = vsel %vm1827, %v4805, 0
        %v4829 = vsel %vm1827, %v4807, 0
        %v4832 = vsel %vm1827, %v4809, 0
        %4834 = vmatprep.subr.bf16.mxu0 0
        %4835 = vmatpush1.bf16.xpose.msra.mxu0 %v4823
        %4836 = vmatprep.subr.bf16.mxu0 0
        %4837 = vmatpush1.bf16.xpose.msra.mxu0 %v4826
        %4838 = vmatprep.subr.bf16.mxu0 0
        %4839 = vmatpush1.bf16.xpose.msra.mxu0 %v4829
        %4840 = vmatprep.subr.bf16.mxu0 0
        %4841 = vmatpush1.bf16.xpose.msra.mxu0 %v4832
        %4842 = vmatprep.subr.bf16.mxu0 0
        %4843 = vmatpush1.bf16.xpose.msra.mxu0 0
        %4844 = vmatprep.subr.bf16.mxu0 0
        %4845 = vmatpush1.bf16.xpose.msra.mxu0 0
        %4846 = vmatprep.subr.bf16.mxu0 0
        %4847 = vmatpush1.bf16.xpose.msra.mxu0 0
        %4848 = vmatprep.subr.bf16.mxu0 0
        %4849 = vmatpush1.bf16.xpose.msra.mxu0 0
        %4850 = vmatprep.subr.bf16.mxu0 0
        %4851 = vmatpush1.bf16.xpose.msra.mxu0 0
        %4852 = vmatprep.subr.bf16.mxu0 0
        %4853 = vmatpush1.bf16.xpose.msra.mxu0 0
        %4854 = vmatprep.subr.bf16.mxu0 0
        %4855 = vmatpush1.bf16.xpose.msra.mxu0 0
        %4856 = vmatprep.subr.bf16.mxu0 0
        %4857 = vmatpush1.bf16.xpose.msra.mxu0 0
        %4858 = vmatprep.subr.bf16.mxu0 0
        %4859 = vmatpush1.bf16.xpose.msra.mxu0 0
        %4860 = vmatprep.subr.bf16.mxu0 0
        %4861 = vmatpush1.bf16.xpose.msra.mxu0 0
        %4862 = vmatprep.subr.bf16.mxu0 0
        %4863 = vmatpush1.bf16.xpose.msra.mxu0 0
        %4864 = vmatprep.subr.bf16.mxu0 0
        %4865 = vmatpush1.bf16.xpose.msra.mxu0 0
        %4866 = vmatprep.mubr.bf16.mxu0 0
        %4867 = vmatmul.mubr.bf16.gmra.mrb[0].mxu0 %v4811
        %v4868 = vpop.f32.mrb[0].mxu0
        %v4869 = vadd.f32 0.0, %v4868
        %v4870 = vpop.f32.mrb[0].mxu0
        %v4871 = vpop.f32.mrb[0].mxu0
        %v4872 = vadd.f32 0.0, %v4871
        %v4873 = vpop.f32.mrb[0].mxu0
        %4874 = vmatprep.mubr.bf16.mxu0 0
        %4875 = vmatmul.mubr.bf16.gmra.mrb[0].mxu0 %v4814
        %v4876 = vpop.f32.mrb[0].mxu0
        %v4877 = vadd.f32 0.0, %v4876
        %v4878 = vpop.f32.mrb[0].mxu0
        %v4879 = vpop.f32.mrb[0].mxu0
        %v4880 = vadd.f32 0.0, %v4879
        %v4881 = vpop.f32.mrb[0].mxu0
        %4882 = vmatprep.mubr.bf16.mxu0 0
        %4883 = vmatmul.mubr.bf16.gmra.mrb[0].mxu0 %v4817
        %v4884 = vpop.f32.mrb[0].mxu0
        %v4885 = vadd.f32 0.0, %v4884
        %v4886 = vpop.f32.mrb[0].mxu0
        %v4887 = vpop.f32.mrb[0].mxu0
        %v4888 = vadd.f32 0.0, %v4887
        %v4889 = vpop.f32.mrb[0].mxu0
        %4890 = vmatprep.mubr.bf16.mxu0 0
        %4891 = vmatmul.mubr.bf16.gmra.mrb[0].mxu0 %v4820
        %v4892 = vpop.f32.mrb[0].mxu0
        %v4893 = vadd.f32 0.0, %v4892
        %v4894 = vpop.f32.mrb[0].mxu0
        %v4895 = vpop.f32.mrb[0].mxu0
        %v4896 = vpop.f32.mrb[0].mxu0
        %4897 = vdwg.mxu0
        %v4898 = vmul.f32 %v4869, 0.25
        %v4899 = vmul.f32 %v4872, 0.25
        %v4900 = vmul.f32 %v4877, 0.25
        %v4901 = vmul.f32 %v4880, 0.25
        %v4902 = vmul.f32 %v4885, 0.25
        %v4903 = vmul.f32 %v4888, 0.25
        %v4904 = vmul.f32 %v4893, 0.25
        %v4905 = vsel %vm1923, %v4898, -inf
        %4906 = vmax.xlane.f32.xlu0 %v4905
        %v4907 = vpop.xlane.xlu0 %4906
        %v4908 = vsel %vm1923, %v4899, -inf
        %4909 = vmax.xlane.f32.xlu0 %v4908
        %v4910 = vpop.xlane.xlu0 %4909
        %v4911 = vsel %vm1923, %v4900, -inf
        %4912 = vmax.xlane.f32.xlu0 %v4911
        %v4913 = vpop.xlane.xlu0 %4912
        %v4914 = vsel %vm1923, %v4901, -inf
        %4915 = vmax.xlane.f32.xlu0 %v4914
        %v4916 = vpop.xlane.xlu0 %4915
        %v4917 = vsel %vm1923, %v4902, -inf
        %4918 = vmax.xlane.f32.xlu0 %v4917
        %v4919 = vpop.xlane.xlu0 %4918
        %v4920 = vsel %vm1923, %v4903, -inf
        %4921 = vmax.xlane.f32.xlu0 %v4920
        %v4922 = vpop.xlane.xlu0 %4921
        %v4923 = vsel %vm1942, %v4904, -inf
        %4924 = vmax.xlane.f32.xlu0 %v4923
        %v4925 = vpop.xlane.xlu0 %4924
        %v4926 = vsub.f32 %v4898, %v4907
        %v4927 = vsub.f32 %v4899, %v4910
        %v4928 = vsub.f32 %v4900, %v4913
        %v4929 = vsub.f32 %v4901, %v4916
        %v4930 = vsub.f32 %v4902, %v4919
        %v4931 = vsub.f32 %v4903, %v4922
        %v4932 = vsub.f32 %v4904, %v4925
        %v4933 = vmul.f32 %v4926, 1.442695
        %v4934 = vpow.pop %v4933
        %v4935 = vmul.f32 %v4927, 1.442695
        %v4936 = vpow.pop %v4935
        %v4937 = vmul.f32 %v4928, 1.442695
        %v4938 = vpow.pop %v4937
        %v4939 = vmul.f32 %v4929, 1.442695
        %v4940 = vpow.pop %v4939
        %v4941 = vmul.f32 %v4930, 1.442695
        %v4942 = vpow.pop %v4941
        %v4943 = vmul.f32 %v4931, 1.442695
        %v4944 = vpow.pop %v4943
        %v4945 = vmul.f32 %v4932, 1.442695
        %v4946 = vpow.pop %v4945
        %v4947 = vsel %vm1923, %v4934, 0.0
        %4948 = vadd.xlane.f32.xlu0 %v4947
        %v4949 = vpop.xlane.xlu0 %4948
        %v4950 = vsel %vm1923, %v4936, 0.0
        %4951 = vadd.xlane.f32.xlu0 %v4950
        %v4952 = vpop.xlane.xlu0 %4951
        %v4953 = vsel %vm1923, %v4938, 0.0
        %4954 = vadd.xlane.f32.xlu0 %v4953
        %v4955 = vpop.xlane.xlu0 %4954
        %v4956 = vsel %vm1923, %v4940, 0.0
        %4957 = vadd.xlane.f32.xlu0 %v4956
        %v4958 = vpop.xlane.xlu0 %4957
        %v4959 = vsel %vm1923, %v4942, 0.0
        %4960 = vadd.xlane.f32.xlu0 %v4959
        %v4961 = vpop.xlane.xlu0 %4960
        %v4962 = vsel %vm1923, %v4944, 0.0
        %4963 = vadd.xlane.f32.xlu0 %v4962
        %v4964 = vpop.xlane.xlu0 %4963
        %v4965 = vsel %vm1942, %v4946, 0.0
        %4966 = vadd.xlane.f32.xlu0 %v4965
        %v4967 = vpop.xlane.xlu0 %4966
        %v4968 = vrcp.pop %v4949
        %v4969 = vrcp.pop %v4952
        %v4970 = vrcp.pop %v4955
        %v4971 = vrcp.pop %v4958
        %v4972 = vrcp.pop %v4961
        %v4973 = vrcp.pop %v4964
        %v4974 = vrcp.pop %v4967
        %v4975 = vmul.f32 %v4934, %v4968
        %v4976 = vmul.f32 %v4936, %v4969
        %v4977 = vmul.f32 %v4938, %v4970
        %v4978 = vmul.f32 %v4940, %v4971
        %v4979 = vmul.f32 %v4942, %v4972
        %v4980 = vmul.f32 %v4944, %v4973
        %v4981 = vmul.f32 %v4946, %v4974
        %v4982 = vpack.c.bf16 %v4976, %v4975
        %v4983 = vpack.c.bf16 %v4978, %v4977
        %v4984 = vpack.c.bf16 %v4980, %v4979
        %v4985 = vpack.c.bf16 %v4981, %v4981
        %4990 = vrot.lane.b32.xlu0 %v4704, 64
        %v4991 = vpop.permute.xlu0 %4990
        %4992 = vrot.lane.b32.xlu0 %v4705, 64
        %v4993 = vpop.permute.xlu0 %4992
        %4994 = vrot.lane.b32.xlu0 %v4706, 64
        %v4995 = vpop.permute.xlu0 %4994
        %4996 = vrot.lane.b32.xlu0 %v4707, 64
        %v4997 = vpop.permute.xlu0 %4996
        %v5002 = vsel %vm1923, %v4982, 0
        %v5005 = vsel %vm1923, %v4983, 0
        %v5008 = vsel %vm1923, %v4984, 0
        %v5011 = vsel %vm1923, %v4985, 0
        %v5014 = vsel %vm2233, %v4997, 0
        %5016 = vmatprep.subr.bf16.mxu0 0
        %5017 = vmatpush1.bf16.msra.mxu0 %v4991
        %5018 = vmatprep.subr.bf16.mxu0 0
        %5019 = vmatpush1.bf16.msra.mxu0 %v4993
        %5020 = vmatprep.subr.bf16.mxu0 0
        %5021 = vmatpush1.bf16.msra.mxu0 %v4995
        %5022 = vmatprep.subr.bf16.mxu0 0
        %5023 = vmatpush1.bf16.msra.mxu0 %v5014
        %5024 = vmatprep.subr.bf16.mxu0 0
        %5025 = vmatpush1.bf16.msra.mxu0 0
        %5026 = vmatprep.subr.bf16.mxu0 0
        %5027 = vmatpush1.bf16.msra.mxu0 0
        %5028 = vmatprep.subr.bf16.mxu0 0
        %5029 = vmatpush1.bf16.msra.mxu0 0
        %5030 = vmatprep.subr.bf16.mxu0 0
        %5031 = vmatpush1.bf16.msra.mxu0 0
        %5032 = vmatprep.subr.bf16.mxu0 0
        %5033 = vmatpush1.bf16.msra.mxu0 0
        %5034 = vmatprep.subr.bf16.mxu0 0
        %5035 = vmatpush1.bf16.msra.mxu0 0
        %5036 = vmatprep.subr.bf16.mxu0 0
        %5037 = vmatpush1.bf16.msra.mxu0 0
        %5038 = vmatprep.subr.bf16.mxu0 0
        %5039 = vmatpush1.bf16.msra.mxu0 0
        %5040 = vmatprep.subr.bf16.mxu0 0
        %5041 = vmatpush1.bf16.msra.mxu0 0
        %5042 = vmatprep.subr.bf16.mxu0 0
        %5043 = vmatpush1.bf16.msra.mxu0 0
        %5044 = vmatprep.subr.bf16.mxu0 0
        %5045 = vmatpush1.bf16.msra.mxu0 0
        %5046 = vmatprep.subr.bf16.mxu0 0
        %5047 = vmatpush1.bf16.msra.mxu0 0
        %5048 = vmatprep.mubr.bf16.mxu0 0
        %5049 = vmatmul.mubr.bf16.gmra.mrb[0].mxu0 %v5002
        %v5050 = vpop.f32.mrb[0].mxu0
        %v5051 = vadd.f32 0.0, %v5050
        %v5052 = vpop.f32.mrb[0].mxu0
        %v5053 = vpop.f32.mrb[0].mxu0
        %v5054 = vadd.f32 0.0, %v5053
        %v5055 = vpop.f32.mrb[0].mxu0
        %5056 = vmatprep.mubr.bf16.mxu0 0
        %5057 = vmatmul.mubr.bf16.gmra.mrb[0].mxu0 %v5005
        %v5058 = vpop.f32.mrb[0].mxu0
        %v5059 = vadd.f32 0.0, %v5058
        %v5060 = vpop.f32.mrb[0].mxu0
        %v5061 = vpop.f32.mrb[0].mxu0
        %v5062 = vadd.f32 0.0, %v5061
        %v5063 = vpop.f32.mrb[0].mxu0
        %5064 = vmatprep.mubr.bf16.mxu0 0
        %5065 = vmatmul.mubr.bf16.gmra.mrb[0].mxu0 %v5008
        %v5066 = vpop.f32.mrb[0].mxu0
        %v5067 = vadd.f32 0.0, %v5066
        %v5068 = vpop.f32.mrb[0].mxu0
        %v5069 = vpop.f32.mrb[0].mxu0
        %v5070 = vadd.f32 0.0, %v5069
        %v5071 = vpop.f32.mrb[0].mxu0
        %5072 = vmatprep.mubr.bf16.mxu0 0
        %5073 = vmatmul.mubr.bf16.gmra.mrb[0].mxu0 %v5011
        %v5074 = vpop.f32.mrb[0].mxu0
        %v5075 = vadd.f32 0.0, %v5074
        %v5076 = vpop.f32.mrb[0].mxu0
        %v5077 = vpop.f32.mrb[0].mxu0
        %v5078 = vpop.f32.mrb[0].mxu0
        %5079 = vdwg.mxu0
        %v5080 = vadd.f32 %v4787, %v5051
        %v5081 = vadd.f32 %v4788, %v5054
        %v5082 = vadd.f32 %v4789, %v5059
        %v5083 = vadd.f32 %v4790, %v5062
        %v5084 = vadd.f32 %v4791, %v5067
        %v5085 = vadd.f32 %v4792, %v5070
        %v5086 = vadd.f32 %v4793, %v5075
        %v5087 = vlaneseq
        %v5088 = vshrl.u32 %v5087, 7
        %v5089 = vsub.s32 2, %v5088
        %v5090 = vrot.slane %v3699, %v5089
        %v5091 = vadd.f32 %v5080, %v5090
        %v5092 = vadd.f32 %v5081, %v5090
        %v5093 = vadd.f32 %v5082, %v5090
        %v5094 = vadd.f32 %v5083, %v5090
        %v5095 = vadd.f32 %v5084, %v5090
        %v5096 = vadd.f32 %v5085, %v5090
        %v5097 = vadd.f32 %v5086, %v5090
        %v5098 = vadd.f32 %v3674, %v5091
        %v5099 = vadd.f32 %v3675, %v5092
        %v5100 = vadd.f32 %v3676, %v5093
        %v5101 = vadd.f32 %v3677, %v5094
        %v5102 = vadd.f32 %v3678, %v5095
        %v5103 = vadd.f32 %v3679, %v5096
        %v5104 = vadd.f32 %v3680, %v5097
        %v5105 = vsel %vm1633, %v5098, 0.0
        %5106 = vadd.xlane.f32.xlu0 %v5105
        %v5107 = vpop.xlane.xlu0 %5106
        %v5108 = vsel %vm1633, %v5099, 0.0
        %5109 = vadd.xlane.f32.xlu0 %v5108
        %v5110 = vpop.xlane.xlu0 %5109
        %v5111 = vsel %vm1633, %v5100, 0.0
        %5112 = vadd.xlane.f32.xlu0 %v5111
        %v5113 = vpop.xlane.xlu0 %5112
        %v5114 = vsel %vm1633, %v5101, 0.0
        %5115 = vadd.xlane.f32.xlu0 %v5114
        %v5116 = vpop.xlane.xlu0 %5115
        %v5117 = vsel %vm1633, %v5102, 0.0
        %5118 = vadd.xlane.f32.xlu0 %v5117
        %v5119 = vpop.xlane.xlu0 %5118
        %v5120 = vsel %vm1633, %v5103, 0.0
        %5121 = vadd.xlane.f32.xlu0 %v5120
        %v5122 = vpop.xlane.xlu0 %5121
        %v5123 = vsel %vm2991, %v5104, 0.0
        %5124 = vadd.xlane.f32.xlu0 %v5123
        %v5125 = vpop.xlane.xlu0 %5124
        %v5126 = vmul.f32 %v5107, %v2995
        %v5127 = vmul.f32 %v5110, %v2995
        %v5128 = vmul.f32 %v5113, %v2995
        %v5129 = vmul.f32 %v5116, %v2995
        %v5130 = vmul.f32 %v5119, %v2995
        %v5131 = vmul.f32 %v5122, %v2995
        %v5132 = vmul.f32 %v5125, %v2995
        %v5133 = vsub.f32 %v5098, %v5126
        %v5134 = vsub.f32 %v5099, %v5127
        %v5135 = vsub.f32 %v5100, %v5128
        %v5136 = vsub.f32 %v5101, %v5129
        %v5137 = vsub.f32 %v5102, %v5130
        %v5138 = vsub.f32 %v5103, %v5131
        %v5139 = vsub.f32 %v5104, %v5132
        %v5140 = vmul.f32 %v5133, %v5133
        %v5141 = vmul.f32 %v5134, %v5134
        %v5142 = vmul.f32 %v5135, %v5135
        %v5143 = vmul.f32 %v5136, %v5136
        %v5144 = vmul.f32 %v5137, %v5137
        %v5145 = vmul.f32 %v5138, %v5138
        %v5146 = vmul.f32 %v5139, %v5139
        %v5147 = vsel %vm1633, %v5140, 0.0
        %5148 = vadd.xlane.f32.xlu0 %v5147
        %v5149 = vpop.xlane.xlu0 %5148
        %v5150 = vsel %vm1633, %v5141, 0.0
        %5151 = vadd.xlane.f32.xlu0 %v5150
        %v5152 = vpop.xlane.xlu0 %5151
        %v5153 = vsel %vm1633, %v5142, 0.0
        %5154 = vadd.xlane.f32.xlu0 %v5153
        %v5155 = vpop.xlane.xlu0 %5154
        %v5156 = vsel %vm1633, %v5143, 0.0
        %5157 = vadd.xlane.f32.xlu0 %v5156
        %v5158 = vpop.xlane.xlu0 %5157
        %v5159 = vsel %vm1633, %v5144, 0.0
        %5160 = vadd.xlane.f32.xlu0 %v5159
        %v5161 = vpop.xlane.xlu0 %5160
        %v5162 = vsel %vm1633, %v5145, 0.0
        %5163 = vadd.xlane.f32.xlu0 %v5162
        %v5164 = vpop.xlane.xlu0 %5163
        %v5165 = vsel %vm2991, %v5146, 0.0
        %5166 = vadd.xlane.f32.xlu0 %v5165
        %v5167 = vpop.xlane.xlu0 %5166
        %v5168 = vmul.f32 %v5149, %v2995
        %v5169 = vmul.f32 %v5152, %v2995
        %v5170 = vmul.f32 %v5155, %v2995
        %v5171 = vmul.f32 %v5158, %v2995
        %v5172 = vmul.f32 %v5161, %v2995
        %v5173 = vmul.f32 %v5164, %v2995
        %v5174 = vmul.f32 %v5167, %v2995
        %v5175 = vadd.f32 %v5168, 1e-05
        %v5176 = vadd.f32 %v5169, 1e-05
        %v5177 = vadd.f32 %v5170, 1e-05
        %v5178 = vadd.f32 %v5171, 1e-05
        %v5179 = vadd.f32 %v5172, 1e-05
        %v5180 = vadd.f32 %v5173, 1e-05
        %v5181 = vadd.f32 %v5174, 1e-05
        %v5182 = vrsqrt.pop %v5175
        %v5183 = vrsqrt.pop %v5176
        %v5184 = vrsqrt.pop %v5177
        %v5185 = vrsqrt.pop %v5178
        %v5186 = vrsqrt.pop %v5179
        %v5187 = vrsqrt.pop %v5180
        %v5188 = vrsqrt.pop %v5181
        %v5189 = vmul.f32 %v5133, %v5182
        %v5190 = vmul.f32 %v5134, %v5183
        %v5191 = vmul.f32 %v5135, %v5184
        %v5192 = vmul.f32 %v5136, %v5185
        %v5193 = vmul.f32 %v5137, %v5186
        %v5194 = vmul.f32 %v5138, %v5187
        %v5195 = vmul.f32 %v5139, %v5188
        %v5196 = vlaneseq
        %v5197 = vshrl.u32 %v5196, 7
        %v5198 = vsub.s32 3, %v5197
        %v5199 = vrot.slane %v3699, %v5198
        %v5200 = vmul.f32 %v5189, %v5199
        %v5201 = vmul.f32 %v5190, %v5199
        %v5202 = vmul.f32 %v5191, %v5199
        %v5203 = vmul.f32 %v5192, %v5199
        %v5204 = vmul.f32 %v5193, %v5199
        %v5205 = vmul.f32 %v5194, %v5199
        %v5206 = vmul.f32 %v5195, %v5199
        %v5207 = vlaneseq
        %v5208 = vshrl.u32 %v5207, 7
        %v5209 = vsub.s32 4, %v5208
        %v5210 = vrot.slane %v3699, %v5209
        %v5211 = vadd.f32 %v5200, %v5210
        %v5212 = vadd.f32 %v5201, %v5210
        %v5213 = vadd.f32 %v5202, %v5210
        %v5214 = vadd.f32 %v5203, %v5210
        %v5215 = vadd.f32 %v5204, %v5210
        %v5216 = vadd.f32 %v5205, %v5210
        %v5217 = vadd.f32 %v5206, %v5210
        %v5218 = vpack.c.bf16 %v5212, %v5211
        %v5219 = vpack.c.bf16 %v5214, %v5213
        %v5220 = vpack.c.bf16 %v5216, %v5215
        %v5221 = vpack.c.bf16 %v5217, %v5217
        %s5222 = scalar_lea.vmem %s6, 64
        %v5223 = vld [vmem:[%s5222] sm:$0xff]
        %v5224 = vld [vmem:[%s5222 + $0x8] sm:$0xff]
        %v5225 = vld [vmem:[%s5222 + $0x10] sm:$0xff]
        %v5226 = vld [vmem:[%s5222 + $0x18] sm:$0xff]
        %v5227 = vld [vmem:[%s5222 + $0x20] sm:$0xff]
        %v5228 = vld [vmem:[%s5222 + $0x28] sm:$0xff]
        %v5229 = vld [vmem:[%s5222 + $0x30] sm:$0xff]
        %v5230 = vld [vmem:[%s5222 + $0x38] sm:$0xff]
        %v5231 = vlaneseq
        %v5232 = vshrl.u32 %v5231, 7
        %v5233 = vsub.s32 5, %v5232
        %v5234 = vrot.slane %v3699, %v5233
        %v5235 = vlaneseq
        %v5236 = vshrl.u32 %v5235, 7
        %v5237 = vsub.s32 5, %v5236
        %v5238 = vrot.slane %v3700, %v5237
        %v5247 = vunpack.c.l.b16 %v5223
        %v5248 = vunpack.c.h.b16 %v5223
        %v5249 = vunpack.c.l.b16 %v5224
        %v5250 = vunpack.c.h.b16 %v5224
        %v5251 = vunpack.c.l.b16 %v5225
        %v5252 = vunpack.c.h.b16 %v5225
        %v5253 = vunpack.c.l.b16 %v5226
        %v5254 = vunpack.c.h.b16 %v5226
        %v5255 = vunpack.c.l.b16 %v5227
        %v5256 = vunpack.c.h.b16 %v5227
        %v5257 = vunpack.c.l.b16 %v5228
        %v5258 = vunpack.c.h.b16 %v5228
        %v5259 = vunpack.c.l.b16 %v5229
        %v5260 = vunpack.c.h.b16 %v5229
        %v5261 = vunpack.c.l.b16 %v5230
        %v5262 = vunpack.c.h.b16 %v5230
        %v5263 = vpack.c.b16 %v5249, %v5247
        %v5264 = vpack.c.b16 %v5250, %v5248
        %v5265 = vpack.c.b16 %v5253, %v5251
        %v5266 = vpack.c.b16 %v5254, %v5252
        %v5267 = vpack.c.b16 %v5257, %v5255
        %v5268 = vpack.c.b16 %v5258, %v5256
        %v5269 = vpack.c.b16 %v5261, %v5259
        %v5270 = vpack.c.b16 %v5262, %v5260
        %v5280 = vsel %vm1633, %v5218, 0
        %v5283 = vsel %vm1633, %v5219, 0
        %v5286 = vsel %vm1633, %v5220, 0
        %v5289 = vsel %vm1633, %v5221, 0
        %5291 = vmatprep.subr.bf16.mxu0 %v5264
        %5292 = vmatpush1.bf16.msra.mxu0 %v5263
        %5293 = vmatprep.subr.bf16.mxu0 %v5266
        %5294 = vmatpush1.bf16.msra.mxu0 %v5265
        %5295 = vmatprep.subr.bf16.mxu0 %v5268
        %5296 = vmatpush1.bf16.msra.mxu0 %v5267
        %5297 = vmatprep.subr.bf16.mxu0 %v5270
        %5298 = vmatpush1.bf16.msra.mxu0 %v5269
        %5299 = vmatprep.subr.bf16.mxu0 0
        %5300 = vmatpush1.bf16.msra.mxu0 0
        %5301 = vmatprep.subr.bf16.mxu0 0
        %5302 = vmatpush1.bf16.msra.mxu0 0
        %5303 = vmatprep.subr.bf16.mxu0 0
        %5304 = vmatpush1.bf16.msra.mxu0 0
        %5305 = vmatprep.subr.bf16.mxu0 0
        %5306 = vmatpush1.bf16.msra.mxu0 0
        %5307 = vmatprep.subr.bf16.mxu0 0
        %5308 = vmatpush1.bf16.msra.mxu0 0
        %5309 = vmatprep.subr.bf16.mxu0 0
        %5310 = vmatpush1.bf16.msra.mxu0 0
        %5311 = vmatprep.subr.bf16.mxu0 0
        %5312 = vmatpush1.bf16.msra.mxu0 0
        %5313 = vmatprep.subr.bf16.mxu0 0
        %5314 = vmatpush1.bf16.msra.mxu0 0
        %5315 = vmatprep.subr.bf16.mxu0 0
        %5316 = vmatpush1.bf16.msra.mxu0 0
        %5317 = vmatprep.subr.bf16.mxu0 0
        %5318 = vmatpush1.bf16.msra.mxu0 0
        %5319 = vmatprep.subr.bf16.mxu0 0
        %5320 = vmatpush1.bf16.msra.mxu0 0
        %5321 = vmatprep.subr.bf16.mxu0 0
        %5322 = vmatpush1.bf16.msra.mxu0 0
        %5323 = vmatprep.mubr.bf16.mxu0 0
        %5324 = vmatmul.mubr.bf16.gmra.mrb[0].mxu0 %v5280
        %v5325 = vpop.f32.mrb[0].mxu0
        %v5326 = vadd.f32 %v5234, %v5325
        %v5327 = vpop.f32.mrb[0].mxu0
        %v5328 = vadd.f32 %v5238, %v5327
        %v5329 = vpop.f32.mrb[0].mxu0
        %v5330 = vadd.f32 %v5234, %v5329
        %v5331 = vpop.f32.mrb[0].mxu0
        %v5332 = vadd.f32 %v5238, %v5331
        %5333 = vmatprep.mubr.bf16.mxu0 0
        %5334 = vmatmul.mubr.bf16.gmra.mrb[0].mxu0 %v5283
        %v5335 = vpop.f32.mrb[0].mxu0
        %v5336 = vadd.f32 %v5234, %v5335
        %v5337 = vpop.f32.mrb[0].mxu0
        %v5338 = vadd.f32 %v5238, %v5337
        %v5339 = vpop.f32.mrb[0].mxu0
        %v5340 = vadd.f32 %v5234, %v5339
        %v5341 = vpop.f32.mrb[0].mxu0
        %v5342 = vadd.f32 %v5238, %v5341
        %5343 = vmatprep.mubr.bf16.mxu0 0
        %5344 = vmatmul.mubr.bf16.gmra.mrb[0].mxu0 %v5286
        %v5345 = vpop.f32.mrb[0].mxu0
        %v5346 = vadd.f32 %v5234, %v5345
        %v5347 = vpop.f32.mrb[0].mxu0
        %v5348 = vadd.f32 %v5238, %v5347
        %v5349 = vpop.f32.mrb[0].mxu0
        %v5350 = vadd.f32 %v5234, %v5349
        %v5351 = vpop.f32.mrb[0].mxu0
        %v5352 = vadd.f32 %v5238, %v5351
        %5353 = vmatprep.mubr.bf16.mxu0 0
        %5354 = vmatmul.mubr.bf16.gmra.mrb[0].mxu0 %v5289
        %v5355 = vpop.f32.mrb[0].mxu0
        %v5356 = vadd.f32 %v5234, %v5355
        %v5357 = vpop.f32.mrb[0].mxu0
        %v5358 = vadd.f32 %v5238, %v5357
        %v5359 = vpop.f32.mrb[0].mxu0
        %v5360 = vpop.f32.mrb[0].mxu0
        %5361 = vdwg.mxu0
        %v5362 = vmul.f32 %v5326, 0.5
        %v5363 = vmul.f32 %v5328, 0.5
        %v5364 = vmul.f32 %v5330, 0.5
        %v5365 = vmul.f32 %v5332, 0.5
        %v5366 = vmul.f32 %v5336, 0.5
        %v5367 = vmul.f32 %v5338, 0.5
        %v5368 = vmul.f32 %v5340, 0.5
        %v5369 = vmul.f32 %v5342, 0.5
        %v5370 = vmul.f32 %v5346, 0.5
        %v5371 = vmul.f32 %v5348, 0.5
        %v5372 = vmul.f32 %v5350, 0.5
        %v5373 = vmul.f32 %v5352, 0.5
        %v5374 = vmul.f32 %v5356, 0.5
        %v5375 = vmul.f32 %v5358, 0.5
        %v5376 = vmul.f32 %v5326, 0.044715
        %v5377 = vmul.f32 %v5328, 0.044715
        %v5378 = vmul.f32 %v5330, 0.044715
        %v5379 = vmul.f32 %v5332, 0.044715
        %v5380 = vmul.f32 %v5336, 0.044715
        %v5381 = vmul.f32 %v5338, 0.044715
        %v5382 = vmul.f32 %v5340, 0.044715
        %v5383 = vmul.f32 %v5342, 0.044715
        %v5384 = vmul.f32 %v5346, 0.044715
        %v5385 = vmul.f32 %v5348, 0.044715
        %v5386 = vmul.f32 %v5350, 0.044715
        %v5387 = vmul.f32 %v5352, 0.044715
        %v5388 = vmul.f32 %v5356, 0.044715
        %v5389 = vmul.f32 %v5358, 0.044715
        %v5390 = vmul.f32 %v5376, %v5326
        %v5391 = vmul.f32 %v5377, %v5328
        %v5392 = vmul.f32 %v5378, %v5330
        %v5393 = vmul.f32 %v5379, %v5332
        %v5394 = vmul.f32 %v5380, %v5336
        %v5395 = vmul.f32 %v5381, %v5338
        %v5396 = vmul.f32 %v5382, %v5340
        %v5397 = vmul.f32 %v5383, %v5342
        %v5398 = vmul.f32 %v5384, %v5346
        %v5399 = vmul.f32 %v5385, %v5348
        %v5400 = vmul.f32 %v5386, %v5350
        %v5401 = vmul.f32 %v5387, %v5352
        %v5402 = vmul.f32 %v5388, %v5356
        %v5403 = vmul.f32 %v5389, %v5358
        %v5404 = vmul.f32 %v5390, %v5326
        %v5405 = vmul.f32 %v5391, %v5328
        %v5406 = vmul.f32 %v5392, %v5330
        %v5407 = vmul.f32 %v5393, %v5332
        %v5408 = vmul.f32 %v5394, %v5336
        %v5409 = vmul.f32 %v5395, %v5338
        %v5410 = vmul.f32 %v5396, %v5340
        %v5411 = vmul.f32 %v5397, %v5342
        %v5412 = vmul.f32 %v5398, %v5346
        %v5413 = vmul.f32 %v5399, %v5348
        %v5414 = vmul.f32 %v5400, %v5350
        %v5415 = vmul.f32 %v5401, %v5352
        %v5416 = vmul.f32 %v5402, %v5356
        %v5417 = vmul.f32 %v5403, %v5358
        %v5418 = vadd.f32 %v5326, %v5404
        %v5419 = vadd.f32 %v5328, %v5405
        %v5420 = vadd.f32 %v5330, %v5406
        %v5421 = vadd.f32 %v5332, %v5407
        %v5422 = vadd.f32 %v5336, %v5408
        %v5423 = vadd.f32 %v5338, %v5409
        %v5424 = vadd.f32 %v5340, %v5410
        %v5425 = vadd.f32 %v5342, %v5411
        %v5426 = vadd.f32 %v5346, %v5412
        %v5427 = vadd.f32 %v5348, %v5413
        %v5428 = vadd.f32 %v5350, %v5414
        %v5429 = vadd.f32 %v5352, %v5415
        %v5430 = vadd.f32 %v5356, %v5416
        %v5431 = vadd.f32 %v5358, %v5417
        %v5432 = vmul.f32 %v5418, 0.7978846
        %v5433 = vmul.f32 %v5419, 0.7978846
        %v5434 = vmul.f32 %v5420, 0.7978846
        %v5435 = vmul.f32 %v5421, 0.7978846
        %v5436 = vmul.f32 %v5422, 0.7978846
        %v5437 = vmul.f32 %v5423, 0.7978846
        %v5438 = vmul.f32 %v5424, 0.7978846
        %v5439 = vmul.f32 %v5425, 0.7978846
        %v5440 = vmul.f32 %v5426, 0.7978846
        %v5441 = vmul.f32 %v5427, 0.7978846
        %v5442 = vmul.f32 %v5428, 0.7978846
        %v5443 = vmul.f32 %v5429, 0.7978846
        %v5444 = vmul.f32 %v5430, 0.7978846
        %v5445 = vmul.f32 %v5431, 0.7978846
        %v5446 = vtanh.pop %v5432
        %v5447 = vtanh.pop %v5433
        %v5448 = vtanh.pop %v5434
        %v5449 = vtanh.pop %v5435
        %v5450 = vtanh.pop %v5436
        %v5451 = vtanh.pop %v5437
        %v5452 = vtanh.pop %v5438
        %v5453 = vtanh.pop %v5439
        %v5454 = vtanh.pop %v5440
        %v5455 = vtanh.pop %v5441
        %v5456 = vtanh.pop %v5442
        %v5457 = vtanh.pop %v5443
        %v5458 = vtanh.pop %v5444
        %v5459 = vtanh.pop %v5445
        %v5460 = vadd.f32 %v5446, 1.0
        %v5461 = vadd.f32 %v5447, 1.0
        %v5462 = vadd.f32 %v5448, 1.0
        %v5463 = vadd.f32 %v5449, 1.0
        %v5464 = vadd.f32 %v5450, 1.0
        %v5465 = vadd.f32 %v5451, 1.0
        %v5466 = vadd.f32 %v5452, 1.0
        %v5467 = vadd.f32 %v5453, 1.0
        %v5468 = vadd.f32 %v5454, 1.0
        %v5469 = vadd.f32 %v5455, 1.0
        %v5470 = vadd.f32 %v5456, 1.0
        %v5471 = vadd.f32 %v5457, 1.0
        %v5472 = vadd.f32 %v5458, 1.0
        %v5473 = vadd.f32 %v5459, 1.0
        %v5474 = vmul.f32 %v5362, %v5460
        %v5475 = vmul.f32 %v5363, %v5461
        %v5476 = vmul.f32 %v5364, %v5462
        %v5477 = vmul.f32 %v5365, %v5463
        %v5478 = vmul.f32 %v5366, %v5464
        %v5479 = vmul.f32 %v5367, %v5465
        %v5480 = vmul.f32 %v5368, %v5466
        %v5481 = vmul.f32 %v5369, %v5467
        %v5482 = vmul.f32 %v5370, %v5468
        %v5483 = vmul.f32 %v5371, %v5469
        %v5484 = vmul.f32 %v5372, %v5470
        %v5485 = vmul.f32 %v5373, %v5471
        %v5486 = vmul.f32 %v5374, %v5472
        %v5487 = vmul.f32 %v5375, %v5473
        %v5488 = vpack.c.bf16 %v5476, %v5474
        %v5489 = vpack.c.bf16 %v5477, %v5475
        %v5490 = vpack.c.bf16 %v5480, %v5478
        %v5491 = vpack.c.bf16 %v5481, %v5479
        %v5492 = vpack.c.bf16 %v5484, %v5482
        %v5493 = vpack.c.bf16 %v5485, %v5483
        %v5494 = vpack.c.bf16 %v5486, %v5486
        %v5495 = vpack.c.bf16 %v5487, %v5487
        %s5496 = scalar_lea.vmem %s7, 128
        %v5497 = vld [vmem:[%s5496] sm:$0xf]
        %v5498 = vld [vmem:[%s5496 + $0x4] sm:$0xf]
        %v5499 = vld [vmem:[%s5496 + $0x8] sm:$0xf]
        %v5500 = vld [vmem:[%s5496 + $0xc] sm:$0xf]
        %v5501 = vld [vmem:[%s5496 + $0x10] sm:$0xf]
        %v5502 = vld [vmem:[%s5496 + $0x14] sm:$0xf]
        %v5503 = vld [vmem:[%s5496 + $0x18] sm:$0xf]
        %v5504 = vld [vmem:[%s5496 + $0x1c] sm:$0xf]
        %v5505 = vld [vmem:[%s5496 + $0x20] sm:$0xf]
        %v5506 = vld [vmem:[%s5496 + $0x24] sm:$0xf]
        %v5507 = vld [vmem:[%s5496 + $0x28] sm:$0xf]
        %v5508 = vld [vmem:[%s5496 + $0x2c] sm:$0xf]
        %v5509 = vld [vmem:[%s5496 + $0x30] sm:$0xf]
        %v5510 = vld [vmem:[%s5496 + $0x34] sm:$0xf]
        %v5511 = vld [vmem:[%s5496 + $0x38] sm:$0xf]
        %v5512 = vld [vmem:[%s5496 + $0x3c] sm:$0xf]
        %v5513 = vld [vmem:[%s5496 + $0x40] sm:$0xf]
        %v5514 = vld [vmem:[%s5496 + $0x44] sm:$0xf]
        %v5515 = vld [vmem:[%s5496 + $0x48] sm:$0xf]
        %v5516 = vld [vmem:[%s5496 + $0x4c] sm:$0xf]
        %v5517 = vld [vmem:[%s5496 + $0x50] sm:$0xf]
        %v5518 = vld [vmem:[%s5496 + $0x54] sm:$0xf]
        %v5519 = vld [vmem:[%s5496 + $0x58] sm:$0xf]
        %v5520 = vld [vmem:[%s5496 + $0x5c] sm:$0xf]
        %v5521 = vld [vmem:[%s5496 + $0x60] sm:$0xf]
        %v5522 = vld [vmem:[%s5496 + $0x64] sm:$0xf]
        %v5523 = vld [vmem:[%s5496 + $0x68] sm:$0xf]
        %v5524 = vld [vmem:[%s5496 + $0x6c] sm:$0xf]
        %v5525 = vld [vmem:[%s5496 + $0x70] sm:$0xf]
        %v5526 = vld [vmem:[%s5496 + $0x74] sm:$0xf]
        %v5527 = vld [vmem:[%s5496 + $0x78] sm:$0xf]
        %v5528 = vld [vmem:[%s5496 + $0x7c] sm:$0xf]
        %v5529 = vlaneseq
        %v5530 = vshrl.u32 %v5529, 7
        %v5531 = vsub.s32 6, %v5530
        %v5532 = vrot.slane %v3699, %v5531
        %v5565 = vunpack.c.l.b16 %v5497
        %v5566 = vunpack.c.l.b16 %v5498
        %v5567 = vunpack.c.l.b16 %v5499
        %v5568 = vunpack.c.l.b16 %v5500
        %v5569 = vunpack.c.l.b16 %v5501
        %v5570 = vunpack.c.l.b16 %v5502
        %v5571 = vunpack.c.l.b16 %v5503
        %v5572 = vunpack.c.l.b16 %v5504
        %v5573 = vunpack.c.l.b16 %v5505
        %v5574 = vunpack.c.l.b16 %v5506
        %v5575 = vunpack.c.l.b16 %v5507
        %v5576 = vunpack.c.l.b16 %v5508
        %v5577 = vunpack.c.l.b16 %v5509
        %v5578 = vunpack.c.l.b16 %v5510
        %v5579 = vunpack.c.l.b16 %v5511
        %v5580 = vunpack.c.l.b16 %v5512
        %v5581 = vunpack.c.l.b16 %v5513
        %v5582 = vunpack.c.l.b16 %v5514
        %v5583 = vunpack.c.l.b16 %v5515
        %v5584 = vunpack.c.l.b16 %v5516
        %v5585 = vunpack.c.l.b16 %v5517
        %v5586 = vunpack.c.l.b16 %v5518
        %v5587 = vunpack.c.l.b16 %v5519
        %v5588 = vunpack.c.l.b16 %v5520
        %v5589 = vunpack.c.l.b16 %v5521
        %v5590 = vunpack.c.l.b16 %v5522
        %v5591 = vunpack.c.l.b16 %v5523
        %v5592 = vunpack.c.l.b16 %v5524
        %v5593 = vunpack.c.l.b16 %v5525
        %v5594 = vunpack.c.l.b16 %v5526
        %v5595 = vunpack.c.l.b16 %v5527
        %v5596 = vunpack.c.l.b16 %v5528
        %v5597 = vpack.c.b16 %v5566, %v5565
        %v5598 = vpack.c.b16 %v5568, %v5567
        %v5599 = vpack.c.b16 %v5570, %v5569
        %v5600 = vpack.c.b16 %v5572, %v5571
        %v5601 = vpack.c.b16 %v5574, %v5573
        %v5602 = vpack.c.b16 %v5576, %v5575
        %v5603 = vpack.c.b16 %v5578, %v5577
        %v5604 = vpack.c.b16 %v5580, %v5579
        %v5605 = vpack.c.b16 %v5582, %v5581
        %v5606 = vpack.c.b16 %v5584, %v5583
        %v5607 = vpack.c.b16 %v5586, %v5585
        %v5608 = vpack.c.b16 %v5588, %v5587
        %v5609 = vpack.c.b16 %v5590, %v5589
        %v5610 = vpack.c.b16 %v5592, %v5591
        %v5611 = vpack.c.b16 %v5594, %v5593
        %v5612 = vpack.c.b16 %v5596, %v5595
        %5629 = vmatprep.subr.bf16.mxu0 0
        %5630 = vmatpush1.bf16.msra.mxu0 %v5597
        %5631 = vmatprep.subr.bf16.mxu0 0
        %5632 = vmatpush1.bf16.msra.mxu0 %v5598
        %5633 = vmatprep.subr.bf16.mxu0 0
        %5634 = vmatpush1.bf16.msra.mxu0 %v5599
        %5635 = vmatprep.subr.bf16.mxu0 0
        %5636 = vmatpush1.bf16.msra.mxu0 %v5600
        %5637 = vmatprep.subr.bf16.mxu0 0
        %5638 = vmatpush1.bf16.msra.mxu0 %v5601
        %5639 = vmatprep.subr.bf16.mxu0 0
        %5640 = vmatpush1.bf16.msra.mxu0 %v5602
        %5641 = vmatprep.subr.bf16.mxu0 0
        %5642 = vmatpush1.bf16.msra.mxu0 %v5603
        %5643 = vmatprep.subr.bf16.mxu0 0
        %5644 = vmatpush1.bf16.msra.mxu0 %v5604
        %5645 = vmatprep.subr.bf16.mxu0 0
        %5646 = vmatpush1.bf16.msra.mxu0 %v5605
        %5647 = vmatprep.subr.bf16.mxu0 0
        %5648 = vmatpush1.bf16.msra.mxu0 %v5606
        %5649 = vmatprep.subr.bf16.mxu0 0
        %5650 = vmatpush1.bf16.msra.mxu0 %v5607
        %5651 = vmatprep.subr.bf16.mxu0 0
        %5652 = vmatpush1.bf16.msra.mxu0 %v5608
        %5653 = vmatprep.subr.bf16.mxu0 0
        %5654 = vmatpush1.bf16.msra.mxu0 %v5609
        %5655 = vmatprep.subr.bf16.mxu0 0
        %5656 = vmatpush1.bf16.msra.mxu0 %v5610
        %5657 = vmatprep.subr.bf16.mxu0 0
        %5658 = vmatpush1.bf16.msra.mxu0 %v5611
        %5659 = vmatprep.subr.bf16.mxu0 0
        %5660 = vmatpush1.bf16.msra.mxu0 %v5612
        %5661 = vmatprep.mubr.bf16.mxu0 %v5489
        %5662 = vmatmul.mubr.bf16.gmra.mrb[0].mxu0 %v5488
        %v5663 = vpop.f32.mrb[0].mxu0
        %v5664 = vadd.f32 %v5532, %v5663
        %v5665 = vpop.f32.mrb[0].mxu0
        %v5666 = vpop.f32.mrb[0].mxu0
        %v5667 = vadd.f32 %v5532, %v5666
        %v5668 = vpop.f32.mrb[0].mxu0
        %5669 = vmatprep.mubr.bf16.mxu0 %v5491
        %5670 = vmatmul.mubr.bf16.gmra.mrb[0].mxu0 %v5490
        %v5671 = vpop.f32.mrb[0].mxu0
        %v5672 = vadd.f32 %v5532, %v5671
        %v5673 = vpop.f32.mrb[0].mxu0
        %v5674 = vpop.f32.mrb[0].mxu0
        %v5675 = vadd.f32 %v5532, %v5674
        %v5676 = vpop.f32.mrb[0].mxu0
        %5677 = vmatprep.mubr.bf16.mxu0 %v5493
        %5678 = vmatmul.mubr.bf16.gmra.mrb[0].mxu0 %v5492
        %v5679 = vpop.f32.mrb[0].mxu0
        %v5680 = vadd.f32 %v5532, %v5679
        %v5681 = vpop.f32.mrb[0].mxu0
        %v5682 = vpop.f32.mrb[0].mxu0
        %v5683 = vadd.f32 %v5532, %v5682
        %v5684 = vpop.f32.mrb[0].mxu0
        %5685 = vmatprep.mubr.bf16.mxu0 %v5495
        %5686 = vmatmul.mubr.bf16.gmra.mrb[0].mxu0 %v5494
        %v5687 = vpop.f32.mrb[0].mxu0
        %v5688 = vadd.f32 %v5532, %v5687
        %v5689 = vpop.f32.mrb[0].mxu0
        %v5690 = vpop.f32.mrb[0].mxu0
        %v5691 = vpop.f32.mrb[0].mxu0
        %5692 = vdwg.mxu0
        %v5693 = vadd.f32 %v5211, %v5664
        %v5694 = vadd.f32 %v5212, %v5667
        %v5695 = vadd.f32 %v5213, %v5672
        %v5696 = vadd.f32 %v5214, %v5675
        %v5697 = vadd.f32 %v5215, %v5680
        %v5698 = vadd.f32 %v5216, %v5683
        %v5699 = vadd.f32 %v5217, %v5688
        %v5700 = vsel %vm1633, %v5693, 0.0
        %5701 = vadd.xlane.f32.xlu0 %v5700
        %v5702 = vpop.xlane.xlu0 %5701
        %v5703 = vsel %vm1633, %v5694, 0.0
        %5704 = vadd.xlane.f32.xlu0 %v5703
        %v5705 = vpop.xlane.xlu0 %5704
        %v5706 = vsel %vm1633, %v5695, 0.0
        %5707 = vadd.xlane.f32.xlu0 %v5706
        %v5708 = vpop.xlane.xlu0 %5707
        %v5709 = vsel %vm1633, %v5696, 0.0
        %5710 = vadd.xlane.f32.xlu0 %v5709
        %v5711 = vpop.xlane.xlu0 %5710
        %v5712 = vsel %vm1633, %v5697, 0.0
        %5713 = vadd.xlane.f32.xlu0 %v5712
        %v5714 = vpop.xlane.xlu0 %5713
        %v5715 = vsel %vm1633, %v5698, 0.0
        %5716 = vadd.xlane.f32.xlu0 %v5715
        %v5717 = vpop.xlane.xlu0 %5716
        %v5718 = vsel %vm2991, %v5699, 0.0
        %5719 = vadd.xlane.f32.xlu0 %v5718
        %v5720 = vpop.xlane.xlu0 %5719
        %v5721 = vmul.f32 %v5702, %v2995
        %v5722 = vmul.f32 %v5705, %v2995
        %v5723 = vmul.f32 %v5708, %v2995
        %v5724 = vmul.f32 %v5711, %v2995
        %v5725 = vmul.f32 %v5714, %v2995
        %v5726 = vmul.f32 %v5717, %v2995
        %v5727 = vmul.f32 %v5720, %v2995
        %v5728 = vsub.f32 %v5693, %v5721
        %v5729 = vsub.f32 %v5694, %v5722
        %v5730 = vsub.f32 %v5695, %v5723
        %v5731 = vsub.f32 %v5696, %v5724
        %v5732 = vsub.f32 %v5697, %v5725
        %v5733 = vsub.f32 %v5698, %v5726
        %v5734 = vsub.f32 %v5699, %v5727
        %v5735 = vmul.f32 %v5728, %v5728
        %v5736 = vmul.f32 %v5729, %v5729
        %v5737 = vmul.f32 %v5730, %v5730
        %v5738 = vmul.f32 %v5731, %v5731
        %v5739 = vmul.f32 %v5732, %v5732
        %v5740 = vmul.f32 %v5733, %v5733
        %v5741 = vmul.f32 %v5734, %v5734
        %v5742 = vsel %vm1633, %v5735, 0.0
        %5743 = vadd.xlane.f32.xlu0 %v5742
        %v5744 = vpop.xlane.xlu0 %5743
        %v5745 = vsel %vm1633, %v5736, 0.0
        %5746 = vadd.xlane.f32.xlu0 %v5745
        %v5747 = vpop.xlane.xlu0 %5746
        %v5748 = vsel %vm1633, %v5737, 0.0
        %5749 = vadd.xlane.f32.xlu0 %v5748
        %v5750 = vpop.xlane.xlu0 %5749
        %v5751 = vsel %vm1633, %v5738, 0.0
        %5752 = vadd.xlane.f32.xlu0 %v5751
        %v5753 = vpop.xlane.xlu0 %5752
        %v5754 = vsel %vm1633, %v5739, 0.0
        %5755 = vadd.xlane.f32.xlu0 %v5754
        %v5756 = vpop.xlane.xlu0 %5755
        %v5757 = vsel %vm1633, %v5740, 0.0
        %5758 = vadd.xlane.f32.xlu0 %v5757
        %v5759 = vpop.xlane.xlu0 %5758
        %v5760 = vsel %vm2991, %v5741, 0.0
        %5761 = vadd.xlane.f32.xlu0 %v5760
        %v5762 = vpop.xlane.xlu0 %5761
        %v5763 = vmul.f32 %v5744, %v2995
        %v5764 = vmul.f32 %v5747, %v2995
        %v5765 = vmul.f32 %v5750, %v2995
        %v5766 = vmul.f32 %v5753, %v2995
        %v5767 = vmul.f32 %v5756, %v2995
        %v5768 = vmul.f32 %v5759, %v2995
        %v5769 = vmul.f32 %v5762, %v2995
        %v5770 = vadd.f32 %v5763, 1e-05
        %v5771 = vadd.f32 %v5764, 1e-05
        %v5772 = vadd.f32 %v5765, 1e-05
        %v5773 = vadd.f32 %v5766, 1e-05
        %v5774 = vadd.f32 %v5767, 1e-05
        %v5775 = vadd.f32 %v5768, 1e-05
        %v5776 = vadd.f32 %v5769, 1e-05
        %v5777 = vrsqrt.pop %v5770
        %v5778 = vrsqrt.pop %v5771
        %v5779 = vrsqrt.pop %v5772
        %v5780 = vrsqrt.pop %v5773
        %v5781 = vrsqrt.pop %v5774
        %v5782 = vrsqrt.pop %v5775
        %v5783 = vrsqrt.pop %v5776
        %v5784 = vmul.f32 %v5728, %v5777
        %v5785 = vmul.f32 %v5729, %v5778
        %v5786 = vmul.f32 %v5730, %v5779
        %v5787 = vmul.f32 %v5731, %v5780
        %v5788 = vmul.f32 %v5732, %v5781
        %v5789 = vmul.f32 %v5733, %v5782
        %v5790 = vmul.f32 %v5734, %v5783
        %v5791 = vlaneseq
        %v5792 = vshrl.u32 %v5791, 7
        %v5793 = vsub.s32 7, %v5792
        %v5794 = vrot.slane %v3699, %v5793
        %v5795 = vmul.f32 %v5784, %v5794
        %v5796 = vmul.f32 %v5785, %v5794
        %v5797 = vmul.f32 %v5786, %v5794
        %v5798 = vmul.f32 %v5787, %v5794
        %v5799 = vmul.f32 %v5788, %v5794
        %v5800 = vmul.f32 %v5789, %v5794
        %v5801 = vmul.f32 %v5790, %v5794
        %v5802 = vlaneseq
        %v5803 = vshrl.u32 %v5802, 7
        %v5804 = vsub.s32 0, %v5803
        %v5805 = vrot.slane %v3701, %v5804
        %v5806 = vadd.f32 %v5795, %v5805
        %v5807 = vadd.f32 %v5796, %v5805
        %v5808 = vadd.f32 %v5797, %v5805
        %v5809 = vadd.f32 %v5798, %v5805
        %v5810 = vadd.f32 %v5799, %v5805
        %v5811 = vadd.f32 %v5800, %v5805
        %v5812 = vadd.f32 %v5801, %v5805
        %v5813 = vld [vmem:[%s9] sm:$0x1]
        %v5814 = vld [vmem:[%s9 + $0x1] sm:$0x1]
        %v5815 = vsel %vm1633, %v5806, 0.0
        %5816 = vadd.xlane.f32.xlu0 %v5815
        %v5817 = vpop.xlane.xlu0 %5816
        %v5818 = vsel %vm1633, %v5807, 0.0
        %5819 = vadd.xlane.f32.xlu0 %v5818
        %v5820 = vpop.xlane.xlu0 %5819
        %v5821 = vsel %vm1633, %v5808, 0.0
        %5822 = vadd.xlane.f32.xlu0 %v5821
        %v5823 = vpop.xlane.xlu0 %5822
        %v5824 = vsel %vm1633, %v5809, 0.0
        %5825 = vadd.xlane.f32.xlu0 %v5824
        %v5826 = vpop.xlane.xlu0 %5825
        %v5827 = vsel %vm1633, %v5810, 0.0
        %5828 = vadd.xlane.f32.xlu0 %v5827
        %v5829 = vpop.xlane.xlu0 %5828
        %v5830 = vsel %vm1633, %v5811, 0.0
        %5831 = vadd.xlane.f32.xlu0 %v5830
        %v5832 = vpop.xlane.xlu0 %5831
        %v5833 = vsel %vm2991, %v5812, 0.0
        %5834 = vadd.xlane.f32.xlu0 %v5833
        %v5835 = vpop.xlane.xlu0 %5834
        %v5836 = vmul.f32 %v5817, %v2995
        %v5837 = vmul.f32 %v5820, %v2995
        %v5838 = vmul.f32 %v5823, %v2995
        %v5839 = vmul.f32 %v5826, %v2995
        %v5840 = vmul.f32 %v5829, %v2995
        %v5841 = vmul.f32 %v5832, %v2995
        %v5842 = vmul.f32 %v5835, %v2995
        %v5843 = vsub.f32 %v5806, %v5836
        %v5844 = vsub.f32 %v5807, %v5837
        %v5845 = vsub.f32 %v5808, %v5838
        %v5846 = vsub.f32 %v5809, %v5839
        %v5847 = vsub.f32 %v5810, %v5840
        %v5848 = vsub.f32 %v5811, %v5841
        %v5849 = vsub.f32 %v5812, %v5842
        %v5850 = vmul.f32 %v5843, %v5843
        %v5851 = vmul.f32 %v5844, %v5844
        %v5852 = vmul.f32 %v5845, %v5845
        %v5853 = vmul.f32 %v5846, %v5846
        %v5854 = vmul.f32 %v5847, %v5847
        %v5855 = vmul.f32 %v5848, %v5848
        %v5856 = vmul.f32 %v5849, %v5849
        %v5857 = vsel %vm1633, %v5850, 0.0
        %5858 = vadd.xlane.f32.xlu0 %v5857
        %v5859 = vpop.xlane.xlu0 %5858
        %v5860 = vsel %vm1633, %v5851, 0.0
        %5861 = vadd.xlane.f32.xlu0 %v5860
        %v5862 = vpop.xlane.xlu0 %5861
        %v5863 = vsel %vm1633, %v5852, 0.0
        %5864 = vadd.xlane.f32.xlu0 %v5863
        %v5865 = vpop.xlane.xlu0 %5864
        %v5866 = vsel %vm1633, %v5853, 0.0
        %5867 = vadd.xlane.f32.xlu0 %v5866
        %v5868 = vpop.xlane.xlu0 %5867
        %v5869 = vsel %vm1633, %v5854, 0.0
        %5870 = vadd.xlane.f32.xlu0 %v5869
        %v5871 = vpop.xlane.xlu0 %5870
        %v5872 = vsel %vm1633, %v5855, 0.0
        %5873 = vadd.xlane.f32.xlu0 %v5872
        %v5874 = vpop.xlane.xlu0 %5873
        %v5875 = vsel %vm2991, %v5856, 0.0
        %5876 = vadd.xlane.f32.xlu0 %v5875
        %v5877 = vpop.xlane.xlu0 %5876
        %v5878 = vmul.f32 %v5859, %v2995
        %v5879 = vmul.f32 %v5862, %v2995
        %v5880 = vmul.f32 %v5865, %v2995
        %v5881 = vmul.f32 %v5868, %v2995
        %v5882 = vmul.f32 %v5871, %v2995
        %v5883 = vmul.f32 %v5874, %v2995
        %v5884 = vmul.f32 %v5877, %v2995
        %v5885 = vadd.f32 %v5878, 1e-05
        %v5886 = vadd.f32 %v5879, 1e-05
        %v5887 = vadd.f32 %v5880, 1e-05
        %v5888 = vadd.f32 %v5881, 1e-05
        %v5889 = vadd.f32 %v5882, 1e-05
        %v5890 = vadd.f32 %v5883, 1e-05
        %v5891 = vadd.f32 %v5884, 1e-05
        %v5892 = vrsqrt.pop %v5885
        %v5893 = vrsqrt.pop %v5886
        %v5894 = vrsqrt.pop %v5887
        %v5895 = vrsqrt.pop %v5888
        %v5896 = vrsqrt.pop %v5889
        %v5897 = vrsqrt.pop %v5890
        %v5898 = vrsqrt.pop %v5891
        %v5899 = vmul.f32 %v5843, %v5892
        %v5900 = vmul.f32 %v5844, %v5893
        %v5901 = vmul.f32 %v5845, %v5894
        %v5902 = vmul.f32 %v5846, %v5895
        %v5903 = vmul.f32 %v5847, %v5896
        %v5904 = vmul.f32 %v5848, %v5897
        %v5905 = vmul.f32 %v5849, %v5898
        %v5906 = vlaneseq
        %v5907 = vshrl.u32 %v5906, 7
        %v5908 = vsub.s32 0, %v5907
        %v5909 = vrot.slane %v5813, %v5908
        %v5910 = vmul.f32 %v5899, %v5909
        %v5911 = vmul.f32 %v5900, %v5909
        %v5912 = vmul.f32 %v5901, %v5909
        %v5913 = vmul.f32 %v5902, %v5909
        %v5914 = vmul.f32 %v5903, %v5909
        %v5915 = vmul.f32 %v5904, %v5909
        %v5916 = vmul.f32 %v5905, %v5909
        %v5917 = vlaneseq
        %v5918 = vshrl.u32 %v5917, 7
        %v5919 = vsub.s32 0, %v5918
        %v5920 = vrot.slane %v5814, %v5919
        %v5921 = vadd.f32 %v5910, %v5920
        %v5922 = vadd.f32 %v5911, %v5920
        %v5923 = vadd.f32 %v5912, %v5920
        %v5924 = vadd.f32 %v5913, %v5920
        %v5925 = vadd.f32 %v5914, %v5920
        %v5926 = vadd.f32 %v5915, %v5920
        %v5927 = vadd.f32 %v5916, %v5920
        %v5928 = vld [vmem:[%s9 + $0x2] sm:$0x1]
        %v5929 = vpack.c.bf16 %v5928, %v5928
        %v5930 = vpack.c.bf16 %v5922, %v5921
        %v5931 = vpack.c.bf16 %v5924, %v5923
        %v5932 = vpack.c.bf16 %v5926, %v5925
        %v5933 = vpack.c.bf16 %v5927, %v5927
        %v5934 = vld [vmem:[%s9 + $0x3] sm:$0x1]
        %5936 = vset.pattern.permute.xlu0 0
        %5937 = vperm.xlu0 %5936, %v5934
        %v5938 = vpop.permute.xlu0 %5937
        %v5941 = vsel %vm1633, %v5929, 0
        %v5944 = vsel %vm1633, %v5930, 0
        %v5947 = vsel %vm1633, %v5931, 0
        %v5950 = vsel %vm1633, %v5932, 0
        %v5953 = vsel %vm1633, %v5933, 0
        %5955 = vmatprep.subr.bf16.mxu0 0
        %5956 = vmatpush1.bf16.xpose.msra.mxu0 %v5944
        %5957 = vmatprep.subr.bf16.mxu0 0
        %5958 = vmatpush1.bf16.xpose.msra.mxu0 %v5947
        %5959 = vmatprep.subr.bf16.mxu0 0
        %5960 = vmatpush1.bf16.xpose.msra.mxu0 %v5950
        %5961 = vmatprep.subr.bf16.mxu0 0
        %5962 = vmatpush1.bf16.xpose.msra.mxu0 %v5953
        %5963 = vmatprep.subr.bf16.mxu0 0
        %5964 = vmatpush1.bf16.xpose.msra.mxu0 0
        %5965 = vmatprep.subr.bf16.mxu0 0
        %5966 = vmatpush1.bf16.xpose.msra.mxu0 0
        %5967 = vmatprep.subr.bf16.mxu0 0
        %5968 = vmatpush1.bf16.xpose.msra.mxu0 0
        %5969 = vmatprep.subr.bf16.mxu0 0
        %5970 = vmatpush1.bf16.xpose.msra.mxu0 0
        %5971 = vmatprep.subr.bf16.mxu0 0
        %5972 = vmatpush1.bf16.xpose.msra.mxu0 0
        %5973 = vmatprep.subr.bf16.mxu0 0
        %5974 = vmatpush1.bf16.xpose.msra.mxu0 0
        %5975 = vmatprep.subr.bf16.mxu0 0
        %5976 = vmatpush1.bf16.xpose.msra.mxu0 0
        %5977 = vmatprep.subr.bf16.mxu0 0
        %5978 = vmatpush1.bf16.xpose.msra.mxu0 0
        %5979 = vmatprep.subr.bf16.mxu0 0
        %5980 = vmatpush1.bf16.xpose.msra.mxu0 0
        %5981 = vmatprep.subr.bf16.mxu0 0
        %5982 = vmatpush1.bf16.xpose.msra.mxu0 0
        %5983 = vmatprep.subr.bf16.mxu0 0
        %5984 = vmatpush1.bf16.xpose.msra.mxu0 0
        %5985 = vmatprep.subr.bf16.mxu0 0
        %5986 = vmatpush1.bf16.xpose.msra.mxu0 0
        %5987 = vmatprep.mubr.bf16.mxu0 0
        %5988 = vmatmul.mubr.bf16.gmra.mrb[0].mxu0 %v5941
        %v5989 = vpop.f32.mrb[0].mxu0
        %v5990 = vadd.f32 %v5938, %v5989
        %v5991 = vpop.f32.mrb[0].mxu0
        %v5992 = vpop.f32.mrb[0].mxu0
        %v5993 = vpop.f32.mrb[0].mxu0
        %5994 = vdwg.mxu0
        %v5995 = vsub.f32 0.0, %v5990
        %v5996 = vmul.f32 %v5995, 1.442695
        %v5997 = vpow.pop %v5996
        %v5998 = vadd.f32 %v5997, 1.0
        %v5999 = vrcp.pop %v5998
        %v6000 = vmul.f32 1.0, %v5999
        %vm6001 = vcmask 401408
        %6002 = vst.msk [vmem:[%s351] sm:$0x1] %vm6001, %v6000
        %s6003 = sand.u32 %s247, 1
        %s6004 = scalar_lea.sflag [#allocation3], %s6003
        %s6005 = sand.u32 %s247, 1
        %s6006 = scalar_lea.vmem [#allocation2], %s6005
        // Predicated region
        $region61: #{ecog_hubert_classifier_forward.3} parent=59 // pred_check
          %p6007 = pneg %p257
        $region62: #{ecog_hubert_classifier_forward.3} parent=59 // pred_check_branch
          %6009 = sbr.rel (%p6007) target = $region64
        $region63: #{ecog_hubert_classifier_forward.3} parent=59 // pred_region
          %s6011 = ssub.s32 16, 16
          %6012 = vsyncadd %s6004, %s6011
          %s6013 = smul.addr %s24, 16
          %s6014 = scalar_lea.hbm %s10, %s6013
          %s6016 = sshll.u32 %s6006, 4
          %s6017 = int_to_ptr.vmem [resolvable:$true] %s6016
          %6019 = dma.vmem_to_hbm [thread:$0]  %s6017, 16, %s6014, %s6004
        $region64: #{ecog_hubert_classifier_forward.3} parent=59 // pred_fallthru
          _
      $region60: #{ecog_hubert_classifier_forward.3} parent=5 // pred_fallthru
        _
      %p6020 = scmp.le.s32.totalorder 2, %s19
      // Predicated region
      $region65: #{ecog_hubert_classifier_forward.3} parent=5 // pred_check
        %p6021 = pneg %p6020
      $region66: #{ecog_hubert_classifier_forward.3} parent=5 // pred_check_branch
        %6023 = sbr.rel (%p6021) target = $region68
      $region67: #{ecog_hubert_classifier_forward.3} parent=5 // pred_region
        %s6024 = ssub.s32 %s19, 2
        // Predicated region
        $region69: #{ecog_hubert_classifier_forward.3} parent=67 // pred_check
          %p6025 = pneg %p263
        $region70: #{ecog_hubert_classifier_forward.3} parent=67 // pred_check_branch
          %6027 = sbr.rel (%p6025) target = $region72
        $region71: #{ecog_hubert_classifier_forward.3} parent=67 // pred_region
          %s6028 = sand.u32 %s248, 1
          %s6029 = scalar_lea.sflag [#allocation3], %s6028
          %s6030 = sand.u32 %s248, 1
          %s6031 = scalar_lea.vmem [#allocation2], %s6030
          %6032 = dma.done %s6029, 16
        $region72: #{ecog_hubert_classifier_forward.3} parent=67 // pred_fallthru
          _
      $region68: #{ecog_hubert_classifier_forward.3} parent=5 // pred_fallthru
        _
    $region6: #{ecog_hubert_classifier_forward.3} parent=1 // loop_footer
      %s23 = sadd.s32 1, %s19
    $region7: #{ecog_hubert_classifier_forward.3} parent=1 // loop_footer_branch
      %18 = sbr.rel target = $region3
    $region8: #{ecog_hubert_classifier_forward.3} parent=1 // loop_exit
      _
    %6033 = vsyncpa [#allocation3], 1
    %s6034 = scalar_lea.sflag [#allocation3], 1
    %6035 = vsyncpa %s6034, 1

</llo_original>
